<compile_context>
chip_gen: v6e
topology: v6e:2x2x1
jax: 0.10.0
libtpu: 0.0.40
codegen_flags: <defaults>
</compile_context>

<pallas_src>
import jax
import jax.numpy as jnp
from jax.experimental import pallas as pl
from jax.experimental.pallas import tpu as pltpu

# ----------------------------- sizes (small, consistent with the module) -----
B = 8            # BATCH_SIZE
H = 32           # hidden_size
G = 3 * H        # fused gate width (r|z|n)
E = 16           # embedding_size
T_ENC = 8        # english source length
HINDILEN = 32    # fixed in train.py
V_EN = 20        # len(englishvocab)
V_HI = 24        # len(hindivocab)
SOS_ID = 0       # hindidictc['0']


# ----------------------------- in-kernel fused-gate GRU cell -----------------
def _gru_gates(gx, gh, h):
    """gx, gh: (B, 3H) pre-activations in gate order (r, z, n)."""
    r = jax.nn.sigmoid(gx[:, 0:H] + gh[:, 0:H])
    z = jax.nn.sigmoid(gx[:, H:2 * H] + gh[:, H:2 * H])
    n = jnp.tanh(gx[:, 2 * H:] + r * gh[:, 2 * H:])
    return (1.0 - z) * n + z * h


def _gru_cell(x, h, wih, whh, bih, bhh):
    """PyTorch GRU cell with fused gate matmuls. wih: (I,3H), whh: (H,3H)."""
    gx = jnp.dot(x, wih, preferred_element_type=jnp.float32) + bih
    gh = jnp.dot(h, whh, preferred_element_type=jnp.float32) + bhh
    return _gru_gates(gx, gh, h)


# ----------------------- encoder: one fully fused kernel ---------------------
def encoder_kernel(x_ref,
                   wih0f_ref, whh0f_ref, bih0f_ref, bhh0f_ref,
                   wih0b_ref, whh0b_ref, bih0b_ref, bhh0b_ref,
                   wih1b_ref, whh1b_ref, bih1b_ref, bhh1b_ref,
                   hdec_ref):
    wih0f, whh0f = wih0f_ref[...], whh0f_ref[...]
    bih0f, bhh0f = bih0f_ref[...], bhh0f_ref[...]
    wih0b, whh0b = wih0b_ref[...], whh0b_ref[...]
    bih0b, bhh0b = bih0b_ref[...], bhh0b_ref[...]
    wih1b, whh1b = wih1b_ref[...], whh1b_ref[...]
    bih1b, bhh1b = bih1b_ref[...], bhh1b_ref[...]
    # split the (2H,3H) layer-1 input weights once, so layer-1 input is two
    # matmuls instead of a lane-concat + matmul.
    w1_from_f = wih1b[:H]
    w1_from_b = wih1b[H:]

    zeros = jnp.zeros((B, H), jnp.float32)

    # layer 0, forward direction (t = 0 .. T-1); initHidden() = zeros
    h = zeros
    outs_f = []
    for t in range(T_ENC):
        h = _gru_cell(x_ref[t], h, wih0f, whh0f, bih0f, bhh0f)
        outs_f.append(h)

    # layer 0, backward direction (t = T-1 .. 0) -- indexed directly, no reverse
    hb = zeros
    outs_b = [None] * T_ENC
    for t in range(T_ENC - 1, -1, -1):
        hb = _gru_cell(x_ref[t], hb, wih0b, whh0b, bih0b, bhh0b)
        outs_b[t] = hb
    h0b_final = hb

    # layer 1, backward direction over concat(fwd, bwd) layer-0 outputs.
    # (layer-1 forward is unused by Seq2Seq.forward -> not computed at all.)
    h1 = zeros
    for t in range(T_ENC - 1, -1, -1):
        gx = (jnp.dot(outs_f[t], w1_from_f, preferred_element_type=jnp.float32)
              + jnp.dot(outs_b[t], w1_from_b, preferred_element_type=jnp.float32)
              + bih1b)
        gh = jnp.dot(h1, whh1b, preferred_element_type=jnp.float32) + bhh1b
        h1 = _gru_gates(gx, gh, h1)

    # Seq2Seq: hdecoder = h_enc[l0_bwd] + h_enc[l1_bwd]
    hdec_ref[...] = h0b_final + h1


def encoder_call(x_emb, params):
    p0f, p0b, p1b = params['enc_l0_f'], params['enc_l0_b'], params['enc_l1_b']
    return pl.pallas_call(
        encoder_kernel,
        out_shape=jax.ShapeDtypeStruct((B, H), jnp.float32),
    )(x_emb,
      p0f['wih'], p0f['whh'], p0f['bih'], p0f['bhh'],
      p0b['wih'], p0b['whh'], p0b['bih'], p0b['bhh'],
      p1b['wih'], p1b['whh'], p1b['bih'], p1b['bhh'])


# ------------- decoder: ONE kernel for the whole HINDILEN-step loop ----------
def decoder_kernel(flags_ref,                       # scalar prefetch (SMEM)
                   feed_ref, hdec_ref, emb_ref,
                   wih0_ref, whh0_ref, bih0_ref, bhh0_ref,
                   wih1_ref, whh1_ref, bih1_ref, bhh1_ref,
                   woutT_ref, bout_ref,
                   out_ref,
                   h0_scr, h1_scr, lg_scr):
    t = pl.program_id(0)

    @pl.when(t == 0)
    def _():
        h0_scr[...] = hdec_ref[...]       # hdecoder repeated for both layers
        h1_scr[...] = hdec_ref[...]
        lg_scr[...] = jnp.zeros_like(lg_scr)

    # --- choose this step's input embedding -----------------------------
    # teacher / SOS path: precomputed embedding stream (row 0 = SOS,
    # row t>=1 = embedding of target[t-1]).
    feed = feed_ref[0]                                            # (B, E)

    # argmax-feedback path: argmax of previous logits (softmax dropped --
    # argmax-invariant), then one-hot @ dec_emb embedding lookup on the MXU.
    prev = lg_scr[...]                                            # (B, V_HI)
    ids = jax.lax.broadcasted_iota(jnp.int32, (B, V_HI), 1)
    mx = jnp.max(prev, axis=-1, keepdims=True)
    arg = jnp.min(jnp.where(prev == mx, ids, V_HI),
                  axis=-1, keepdims=True)                         # (B, 1)
    onehot = (ids == arg).astype(jnp.float32)                     # (B, V_HI)
    x_arg = jnp.dot(onehot, emb_ref[...],
                    preferred_element_type=jnp.float32)           # (B, E)

    use_arg = flags_ref[t] != 0                                   # scalar
    x = jnp.where(use_arg, x_arg, feed)

    # --- 2-layer GRU step (inter-layer dropout is identity in eval) -----
    h0n = _gru_cell(x, h0_scr[...], wih0_ref[...], whh0_ref[...],
                    bih0_ref[...], bhh0_ref[...])
    h1n = _gru_cell(h0n, h1_scr[...], wih1_ref[...], whh1_ref[...],
                    bih1_ref[...], bhh1_ref[...])

    logits = (jnp.dot(h1n, woutT_ref[...], preferred_element_type=jnp.float32)
              + bout_ref[...])

    h0_scr[...] = h0n
    h1_scr[...] = h1n
    lg_scr[...] = logits
    out_ref[0] = logits


def decoder_call(flags, feed_emb, hdec, params):
    p0, p1 = params['dec_l0'], params['dec_l1']
    const = lambda t, *_: (0, 0)
    grid_spec = pltpu.PrefetchScalarGridSpec(
        num_scalar_prefetch=1,
        grid=(HINDILEN,),
        in_specs=[
            pl.BlockSpec((1, B, E), lambda t, *_: (t, 0, 0)),   # feed_emb stream
            pl.BlockSpec((B, H), const),                        # hdec
            pl.BlockSpec((V_HI, E), const),                     # dec_emb
            pl.BlockSpec((E, G), const),                        # wih0
            pl.BlockSpec((H, G), const),                        # whh0
            pl.BlockSpec((1, G), const),                        # bih0
            pl.BlockSpec((1, G), const),                        # bhh0
            pl.BlockSpec((H, G), const),                        # wih1
            pl.BlockSpec((H, G), const),                        # whh1
            pl.BlockSpec((1, G), const),                        # bih1
            pl.BlockSpec((1, G), const),                        # bhh1
            pl.BlockSpec((H, V_HI), const),                     # woutT
            pl.BlockSpec((1, V_HI), const),                     # bout
        ],
        out_specs=pl.BlockSpec((1, B, V_HI), lambda t, *_: (t, 0, 0)),
        scratch_shapes=[pltpu.VMEM((B, H), jnp.float32),        # h0
                        pltpu.VMEM((B, H), jnp.float32),        # h1
                        pltpu.VMEM((B, V_HI), jnp.float32)],    # prev logits
    )
    return pl.pallas_call(
        decoder_kernel,
        out_shape=jax.ShapeDtypeStruct((HINDILEN, B, V_HI), jnp.float32),
        grid_spec=grid_spec,
        compiler_params=pltpu.CompilerParams(
            dimension_semantics=("arbitrary",)),
    )(flags, feed_emb, hdec, params['dec_emb'],
      p0['wih'], p0['whh'], p0['bih'], p0['bhh'],
      p1['wih'], p1['whh'], p1['bih'], p1['bhh'],
      params['woutT'], params['bout'])


# ----------------------------- full Seq2Seq forward --------------------------
def seq2seq_forward(params, inp_tokens, target_tokens, teacher_force_ratio, tf_key):
    # ---- EncoderRNN (bidirectional, 2 layers, GRU), fully fused ----
    x_emb = jnp.take(params['enc_emb'], inp_tokens, axis=0)            # (T,B,E)
    hdec = encoder_call(x_emb, params)                                 # (B,H)

    # ---- precompute the non-data-dependent decoder inputs ----
    # feed stream: row 0 = SOS embedding, row t>=1 = embedding of target[t-1]
    sos = jnp.full((1, B), SOS_ID, dtype=jnp.int32)
    feed_tokens = jnp.concatenate(
        [sos, target_tokens[:HINDILEN - 1].astype(jnp.int32)], axis=0)  # (HINDILEN,B)
    feed_emb = jnp.take(params['dec_emb'], feed_tokens, axis=0)         # (HINDILEN,B,E)

    # TODO(synk): PyTorch uses host-side random.random() per step for teacher
    # forcing; here the per-step decision is a deterministic jax PRNG draw.
    use_argmax = jax.random.uniform(tf_key, (HINDILEN - 1,)) > teacher_force_ratio
    flags = jnp.concatenate(
        [jnp.zeros((1,), jnp.int32), use_argmax.astype(jnp.int32)])     # (HINDILEN,)

    # ---- fused 32-step decoder (single pallas_call) ----
    return decoder_call(flags, feed_emb, hdec, params)                  # (HINDILEN,B,V_HI)


# ----------------------------- deterministic parameter init ------------------
def init_params(key):
    keys = iter(jax.random.split(key, 32))
    s = 1.0 / (H ** 0.5)

    def u(shape):
        return jax.random.uniform(next(keys), shape, jnp.float32, -s, s)

    def gru_layer(in_size):
        # gate-fused layout: (I,3H)/(H,3H), gate order (r|z|n) along 3H axis
        return dict(wih=u((in_size, G)), whh=u((H, G)),
                    bih=u((1, G)), bhh=u((1, G)))

    p = {
        'enc_emb': u((V_EN, E)),
        'dec_emb': u((V_HI, E)),
        'enc_l0_f': gru_layer(E), 'enc_l0_b': gru_layer(E),
        # enc layer-1 forward direction is dead code in Seq2Seq.forward
        # (only hidden indices 1 and 3 -- the backward directions -- are used),
        # so its parameters/compute are omitted entirely.
        'enc_l1_b': gru_layer(2 * H),
        'dec_l0': gru_layer(E), 'dec_l1': gru_layer(H),
        'woutT': u((H, V_HI)),      # nn.Linear(hidden, vocab) weight, transposed
        'bout': u((1, V_HI)),
    }
    return p


# ----------------------------------- main -------------------------------------
if __name__ == "__main__":
    k_inp, k_tgt, k_tf = jax.random.split(jax.random.PRNGKey(0), 3)
    inp = jax.random.randint(k_inp, (T_ENC, B), 0, V_EN, dtype=jnp.int32)
    target = jax.random.randint(k_tgt, (HINDILEN, B), 0, V_HI, dtype=jnp.int32)
    params = init_params(jax.random.PRNGKey(42))

    fwd = jax.jit(lambda i, t: seq2seq_forward(params, i, t,
                                               teacher_force_ratio=0.5,
                                               tf_key=k_tf))
    out = fwd(inp, target)
    jax.block_until_ready(out)
    assert out.shape == (HINDILEN, B, V_HI), out.shape
    assert out.dtype == jnp.float32
    print("KERNEL_OK")
</pallas_src>

<mosaic_0001>
module attributes {stable_mosaic.version = 11 : i64} {
  func.func @decoder_kernel(%arg0: i32, %arg1: memref<32xi32, #tpu.memory_space<smem>>, %arg2: memref<1x8x16xf32, #tpu.memory_space<vmem>>, %arg3: memref<8x32xf32, #tpu.memory_space<vmem>>, %arg4: memref<24x16xf32, #tpu.memory_space<vmem>>, %arg5: memref<16x96xf32, #tpu.memory_space<vmem>>, %arg6: memref<32x96xf32, #tpu.memory_space<vmem>>, %arg7: memref<1x96xf32, #tpu.memory_space<vmem>>, %arg8: memref<1x96xf32, #tpu.memory_space<vmem>>, %arg9: memref<32x96xf32, #tpu.memory_space<vmem>>, %arg10: memref<32x96xf32, #tpu.memory_space<vmem>>, %arg11: memref<1x96xf32, #tpu.memory_space<vmem>>, %arg12: memref<1x96xf32, #tpu.memory_space<vmem>>, %arg13: memref<32x24xf32, #tpu.memory_space<vmem>>, %arg14: memref<1x24xf32, #tpu.memory_space<vmem>>, %arg15: memref<1x8x24xf32, #tpu.memory_space<vmem>>, %arg16: memref<8x32xf32, #tpu.memory_space<vmem>>, %arg17: memref<8x32xf32, #tpu.memory_space<vmem>>, %arg18: memref<8x24xf32, #tpu.memory_space<vmem>>) attributes {dimension_semantics = [#tpu.dimension_semantics<arbitrary>], iteration_bounds = array<i64: 32>, scalar_prefetch = 1 : i64, scratch_operands = 3 : i64, tpu.core_type = #tpu.core_type<tc>, window_params = [{transform_indices = @transform_0, window_bounds = array<i64: 1, 8, 16>}, {pipeline_mode = #tpu.pipeline_mode<synchronous>, transform_indices = @transform_1, window_bounds = array<i64: 8, 32>}, {pipeline_mode = #tpu.pipeline_mode<synchronous>, transform_indices = @transform_2, window_bounds = array<i64: 24, 16>}, {pipeline_mode = #tpu.pipeline_mode<synchronous>, transform_indices = @transform_3, window_bounds = array<i64: 16, 96>}, {pipeline_mode = #tpu.pipeline_mode<synchronous>, transform_indices = @transform_4, window_bounds = array<i64: 32, 96>}, {pipeline_mode = #tpu.pipeline_mode<synchronous>, transform_indices = @transform_5, window_bounds = array<i64: 1, 96>}, {pipeline_mode = #tpu.pipeline_mode<synchronous>, transform_indices = @transform_6, window_bounds = array<i64: 1, 96>}, {pipeline_mode = #tpu.pipeline_mode<synchronous>, transform_indices = @transform_7, window_bounds = array<i64: 32, 96>}, {pipeline_mode = #tpu.pipeline_mode<synchronous>, transform_indices = @transform_8, window_bounds = array<i64: 32, 96>}, {pipeline_mode = #tpu.pipeline_mode<synchronous>, transform_indices = @transform_9, window_bounds = array<i64: 1, 96>}, {pipeline_mode = #tpu.pipeline_mode<synchronous>, transform_indices = @transform_10, window_bounds = array<i64: 1, 96>}, {pipeline_mode = #tpu.pipeline_mode<synchronous>, transform_indices = @transform_11, window_bounds = array<i64: 32, 24>}, {pipeline_mode = #tpu.pipeline_mode<synchronous>, transform_indices = @transform_12, window_bounds = array<i64: 1, 24>}, {transform_indices = @transform_13, window_bounds = array<i64: 1, 8, 24>}]} {
    %c0_i32 = arith.constant 0 : i32
    %0 = arith.cmpi eq, %arg0, %c0_i32 : i32
    %1 = arith.extui %0 : i1 to i32
    %c0_i32_0 = arith.constant 0 : i32
    %2 = arith.cmpi ne, %1, %c0_i32_0 : i32
    scf.if %2 {
      %c0_54 = arith.constant 0 : index
      %c0_55 = arith.constant 0 : index
      %110 = vector.load %arg3[%c0_54, %c0_55] : memref<8x32xf32, #tpu.memory_space<vmem>>, vector<8x32xf32>
      %c0_56 = arith.constant 0 : index
      %c0_57 = arith.constant 0 : index
      %111 = vector.load %arg16[%c0_56, %c0_57] : memref<8x32xf32, #tpu.memory_space<vmem>>, vector<8x32xf32>
      tpu.vector_store %arg16[%c0_56, %c0_57], %110 {strides = array<i32>} : memref<8x32xf32, #tpu.memory_space<vmem>>, vector<8x32xf32>,
      %c0_58 = arith.constant 0 : index
      %c0_59 = arith.constant 0 : index
      %112 = vector.load %arg3[%c0_58, %c0_59] : memref<8x32xf32, #tpu.memory_space<vmem>>, vector<8x32xf32>
      %c0_60 = arith.constant 0 : index
      %c0_61 = arith.constant 0 : index
      %113 = vector.load %arg17[%c0_60, %c0_61] : memref<8x32xf32, #tpu.memory_space<vmem>>, vector<8x32xf32>
      tpu.vector_store %arg17[%c0_60, %c0_61], %112 {strides = array<i32>} : memref<8x32xf32, #tpu.memory_space<vmem>>, vector<8x32xf32>,
      %cst_62 = arith.constant 0.000000e+00 : f32
      %114 = vector.broadcast %cst_62 : f32 to vector<8x24xf32>
      %c0_63 = arith.constant 0 : index
      %c0_64 = arith.constant 0 : index
      %115 = vector.load %arg18[%c0_63, %c0_64] : memref<8x24xf32, #tpu.memory_space<vmem>>, vector<8x24xf32>
      tpu.vector_store %arg18[%c0_63, %c0_64], %114 {strides = array<i32>} : memref<8x24xf32, #tpu.memory_space<vmem>>, vector<8x24xf32>,
    } else {
    }
    %c0 = arith.constant 0 : index
    %c0_1 = arith.constant 0 : index
    %c0_2 = arith.constant 0 : index
    %3 = vector.load %arg2[%c0, %c0_1, %c0_2] : memref<1x8x16xf32, #tpu.memory_space<vmem>>, vector<1x8x16xf32>
    %4 = vector.shape_cast %3 : vector<1x8x16xf32> to vector<8x16xf32>
    %c0_3 = arith.constant 0 : index
    %c0_4 = arith.constant 0 : index
    %5 = vector.load %arg18[%c0_3, %c0_4] : memref<8x24xf32, #tpu.memory_space<vmem>>, vector<8x24xf32>
    %6 = tpu.iota {dimensions = array<i32: 1>} : vector<8x24xi32>
    %cst = arith.constant dense<0xFF800000> : vector<8xf32>
    %7 = vector.multi_reduction <maximumf>, %5, %cst [1] : vector<8x24xf32> to vector<8xf32>
    %8 = vector.shape_cast %7 : vector<8xf32> to vector<8x1xf32>
    %9 = vector.broadcast %8 : vector<8x1xf32> to vector<8x24xf32>
    %10 = arith.cmpf oeq, %5, %9 : vector<8x24xf32>
    %c24_i32 = arith.constant 24 : i32
    %11 = vector.broadcast %c24_i32 : i32 to vector<8x24xi32>
    %12 = arith.select %10, %6, %11 : vector<8x24xi1>, vector<8x24xi32>
    %cst_5 = arith.constant dense<2147483647> : vector<8xi32>
    %13 = vector.multi_reduction <minsi>, %12, %cst_5 [1] : vector<8x24xi32> to vector<8xi32>
    %14 = vector.shape_cast %13 : vector<8xi32> to vector<8x1xi32>
    %15 = vector.broadcast %14 : vector<8x1xi32> to vector<8x24xi32>
    %16 = arith.cmpi eq, %6, %15 : vector<8x24xi32>
    %17 = arith.extui %16 : vector<8x24xi1> to vector<8x24xi32>
    %18 = arith.sitofp %17 : vector<8x24xi32> to vector<8x24xf32>
    %c0_6 = arith.constant 0 : index
    %c0_7 = arith.constant 0 : index
    %19 = vector.load %arg4[%c0_6, %c0_7] : memref<24x16xf32, #tpu.memory_space<vmem>>, vector<24x16xf32>
    %cst_8 = arith.constant dense<0.000000e+00> : vector<8x16xf32>
    %20 = tpu.matmul %18, %19, %cst_8 {dimension_numbers = #tpu.dot_dimension_numbers<[1], [0], [0], [1], [0, 0, 1, 1], [], []>} : vector<8x24xf32>, vector<24x16xf32>, vector<8x16xf32> -> vector<8x16xf32>
    %21 = arith.index_cast %arg0 : i32 to index
    %22 = memref.load %arg1[%21] : memref<32xi32, #tpu.memory_space<smem>>
    %c0_i32_9 = arith.constant 0 : i32
    %23 = arith.cmpi ne, %22, %c0_i32_9 : i32
    %24 = arith.select %23, %20, %4 : vector<8x16xf32>
    %c0_10 = arith.constant 0 : index
    %c0_11 = arith.constant 0 : index
    %25 = vector.load %arg16[%c0_10, %c0_11] : memref<8x32xf32, #tpu.memory_space<vmem>>, vector<8x32xf32>
    %c0_12 = arith.constant 0 : index
    %c0_13 = arith.constant 0 : index
    %26 = vector.load %arg5[%c0_12, %c0_13] : memref<16x96xf32, #tpu.memory_space<vmem>>, vector<16x96xf32>
    %c0_14 = arith.constant 0 : index
    %c0_15 = arith.constant 0 : index
    %27 = vector.load %arg6[%c0_14, %c0_15] : memref<32x96xf32, #tpu.memory_space<vmem>>, vector<32x96xf32>
    %c0_16 = arith.constant 0 : index
    %c0_17 = arith.constant 0 : index
    %28 = vector.load %arg7[%c0_16, %c0_17] : memref<1x96xf32, #tpu.memory_space<vmem>>, vector<1x96xf32>
    %c0_18 = arith.constant 0 : index
    %c0_19 = arith.constant 0 : index
    %29 = vector.load %arg8[%c0_18, %c0_19] : memref<1x96xf32, #tpu.memory_space<vmem>>, vector<1x96xf32>
    %cst_20 = arith.constant dense<0.000000e+00> : vector<8x96xf32>
    %30 = tpu.matmul %24, %26, %cst_20 {dimension_numbers = #tpu.dot_dimension_numbers<[1], [0], [0], [1], [0, 0, 1, 1], [], []>} : vector<8x16xf32>, vector<16x96xf32>, vector<8x96xf32> -> vector<8x96xf32>
    %31 = vector.broadcast %28 : vector<1x96xf32> to vector<8x96xf32>
    %32 = arith.addf %30, %31 : vector<8x96xf32>
    %cst_21 = arith.constant dense<0.000000e+00> : vector<8x96xf32>
    %33 = tpu.matmul %25, %27, %cst_21 {dimension_numbers = #tpu.dot_dimension_numbers<[1], [0], [0], [1], [0, 0, 1, 1], [], []>} : vector<8x32xf32>, vector<32x96xf32>, vector<8x96xf32> -> vector<8x96xf32>
    %34 = vector.broadcast %29 : vector<1x96xf32> to vector<8x96xf32>
    %35 = arith.addf %33, %34 : vector<8x96xf32>
    %36 = vector.extract_strided_slice %32 {offsets = [0, 0], sizes = [8, 32], strides = [1, 1]} : vector<8x96xf32> to vector<8x32xf32>
    %37 = vector.extract_strided_slice %35 {offsets = [0, 0], sizes = [8, 32], strides = [1, 1]} : vector<8x96xf32> to vector<8x32xf32>
    %38 = arith.addf %36, %37 : vector<8x32xf32>
    %39 = arith.negf %38 : vector<8x32xf32>
    %40 = math.exp %39 : vector<8x32xf32>
    %cst_22 = arith.constant 1.000000e+00 : f32
    %41 = vector.broadcast %cst_22 : f32 to vector<8x32xf32>
    %42 = arith.addf %41, %40 : vector<8x32xf32>
    %43 = arith.divf %41, %42 : vector<8x32xf32>
    %44 = vector.extract_strided_slice %32 {offsets = [0, 32], sizes = [8, 32], strides = [1, 1]} : vector<8x96xf32> to vector<8x32xf32>
    %45 = vector.extract_strided_slice %35 {offsets = [0, 32], sizes = [8, 32], strides = [1, 1]} : vector<8x96xf32> to vector<8x32xf32>
    %46 = arith.addf %44, %45 : vector<8x32xf32>
    %47 = arith.negf %46 : vector<8x32xf32>
    %48 = math.exp %47 : vector<8x32xf32>
    %cst_23 = arith.constant 1.000000e+00 : f32
    %49 = vector.broadcast %cst_23 : f32 to vector<8x32xf32>
    %50 = arith.addf %49, %48 : vector<8x32xf32>
    %51 = arith.divf %49, %50 : vector<8x32xf32>
    %52 = vector.extract_strided_slice %32 {offsets = [0, 64], sizes = [8, 32], strides = [1, 1]} : vector<8x96xf32> to vector<8x32xf32>
    %53 = vector.extract_strided_slice %35 {offsets = [0, 64], sizes = [8, 32], strides = [1, 1]} : vector<8x96xf32> to vector<8x32xf32>
    %54 = arith.mulf %43, %53 : vector<8x32xf32>
    %55 = arith.addf %52, %54 : vector<8x32xf32>
    %56 = math.tanh %55 : vector<8x32xf32>
    %cst_24 = arith.constant 1.000000e+00 : f32
    %57 = vector.broadcast %cst_24 : f32 to vector<8x32xf32>
    %58 = arith.subf %57, %51 : vector<8x32xf32>
    %59 = arith.mulf %58, %56 : vector<8x32xf32>
    %60 = arith.mulf %51, %25 : vector<8x32xf32>
    %61 = arith.addf %59, %60 : vector<8x32xf32>
    %c0_25 = arith.constant 0 : index
    %c0_26 = arith.constant 0 : index
    %62 = vector.load %arg17[%c0_25, %c0_26] : memref<8x32xf32, #tpu.memory_space<vmem>>, vector<8x32xf32>
    %c0_27 = arith.constant 0 : index
    %c0_28 = arith.constant 0 : index
    %63 = vector.load %arg9[%c0_27, %c0_28] : memref<32x96xf32, #tpu.memory_space<vmem>>, vector<32x96xf32>
    %c0_29 = arith.constant 0 : index
    %c0_30 = arith.constant 0 : index
    %64 = vector.load %arg10[%c0_29, %c0_30] : memref<32x96xf32, #tpu.memory_space<vmem>>, vector<32x96xf32>
    %c0_31 = arith.constant 0 : index
    %c0_32 = arith.constant 0 : index
    %65 = vector.load %arg11[%c0_31, %c0_32] : memref<1x96xf32, #tpu.memory_space<vmem>>, vector<1x96xf32>
    %c0_33 = arith.constant 0 : index
    %c0_34 = arith.constant 0 : index
    %66 = vector.load %arg12[%c0_33, %c0_34] : memref<1x96xf32, #tpu.memory_space<vmem>>, vector<1x96xf32>
    %cst_35 = arith.constant dense<0.000000e+00> : vector<8x96xf32>
    %67 = tpu.matmul %61, %63, %cst_35 {dimension_numbers = #tpu.dot_dimension_numbers<[1], [0], [0], [1], [0, 0, 1, 1], [], []>} : vector<8x32xf32>, vector<32x96xf32>, vector<8x96xf32> -> vector<8x96xf32>
    %68 = vector.broadcast %65 : vector<1x96xf32> to vector<8x96xf32>
    %69 = arith.addf %67, %68 : vector<8x96xf32>
    %cst_36 = arith.constant dense<0.000000e+00> : vector<8x96xf32>
    %70 = tpu.matmul %62, %64, %cst_36 {dimension_numbers = #tpu.dot_dimension_numbers<[1], [0], [0], [1], [0, 0, 1, 1], [], []>} : vector<8x32xf32>, vector<32x96xf32>, vector<8x96xf32> -> vector<8x96xf32>
    %71 = vector.broadcast %66 : vector<1x96xf32> to vector<8x96xf32>
    %72 = arith.addf %70, %71 : vector<8x96xf32>
    %73 = vector.extract_strided_slice %69 {offsets = [0, 0], sizes = [8, 32], strides = [1, 1]} : vector<8x96xf32> to vector<8x32xf32>
    %74 = vector.extract_strided_slice %72 {offsets = [0, 0], sizes = [8, 32], strides = [1, 1]} : vector<8x96xf32> to vector<8x32xf32>
    %75 = arith.addf %73, %74 : vector<8x32xf32>
    %76 = arith.negf %75 : vector<8x32xf32>
    %77 = math.exp %76 : vector<8x32xf32>
    %cst_37 = arith.constant 1.000000e+00 : f32
    %78 = vector.broadcast %cst_37 : f32 to vector<8x32xf32>
    %79 = arith.addf %78, %77 : vector<8x32xf32>
    %80 = arith.divf %78, %79 : vector<8x32xf32>
    %81 = vector.extract_strided_slice %69 {offsets = [0, 32], sizes = [8, 32], strides = [1, 1]} : vector<8x96xf32> to vector<8x32xf32>
    %82 = vector.extract_strided_slice %72 {offsets = [0, 32], sizes = [8, 32], strides = [1, 1]} : vector<8x96xf32> to vector<8x32xf32>
    %83 = arith.addf %81, %82 : vector<8x32xf32>
    %84 = arith.negf %83 : vector<8x32xf32>
    %85 = math.exp %84 : vector<8x32xf32>
    %cst_38 = arith.constant 1.000000e+00 : f32
    %86 = vector.broadcast %cst_38 : f32 to vector<8x32xf32>
    %87 = arith.addf %86, %85 : vector<8x32xf32>
    %88 = arith.divf %86, %87 : vector<8x32xf32>
    %89 = vector.extract_strided_slice %69 {offsets = [0, 64], sizes = [8, 32], strides = [1, 1]} : vector<8x96xf32> to vector<8x32xf32>
    %90 = vector.extract_strided_slice %72 {offsets = [0, 64], sizes = [8, 32], strides = [1, 1]} : vector<8x96xf32> to vector<8x32xf32>
    %91 = arith.mulf %80, %90 : vector<8x32xf32>
    %92 = arith.addf %89, %91 : vector<8x32xf32>
    %93 = math.tanh %92 : vector<8x32xf32>
    %cst_39 = arith.constant 1.000000e+00 : f32
    %94 = vector.broadcast %cst_39 : f32 to vector<8x32xf32>
    %95 = arith.subf %94, %88 : vector<8x32xf32>
    %96 = arith.mulf %95, %93 : vector<8x32xf32>
    %97 = arith.mulf %88, %62 : vector<8x32xf32>
    %98 = arith.addf %96, %97 : vector<8x32xf32>
    %c0_40 = arith.constant 0 : index
    %c0_41 = arith.constant 0 : index
    %99 = vector.load %arg13[%c0_40, %c0_41] : memref<32x24xf32, #tpu.memory_space<vmem>>, vector<32x24xf32>
    %cst_42 = arith.constant dense<0.000000e+00> : vector<8x24xf32>
    %100 = tpu.matmul %98, %99, %cst_42 {dimension_numbers = #tpu.dot_dimension_numbers<[1], [0], [0], [1], [0, 0, 1, 1], [], []>} : vector<8x32xf32>, vector<32x24xf32>, vector<8x24xf32> -> vector<8x24xf32>
    %c0_43 = arith.constant 0 : index
    %c0_44 = arith.constant 0 : index
    %101 = vector.load %arg14[%c0_43, %c0_44] : memref<1x24xf32, #tpu.memory_space<vmem>>, vector<1x24xf32>
    %102 = vector.broadcast %101 : vector<1x24xf32> to vector<8x24xf32>
    %103 = arith.addf %100, %102 : vector<8x24xf32>
    %c0_45 = arith.constant 0 : index
    %c0_46 = arith.constant 0 : index
    %104 = vector.load %arg16[%c0_45, %c0_46] : memref<8x32xf32, #tpu.memory_space<vmem>>, vector<8x32xf32>
    tpu.vector_store %arg16[%c0_45, %c0_46], %61 {strides = array<i32>} : memref<8x32xf32, #tpu.memory_space<vmem>>, vector<8x32xf32>,
    %c0_47 = arith.constant 0 : index
    %c0_48 = arith.constant 0 : index
    %105 = vector.load %arg17[%c0_47, %c0_48] : memref<8x32xf32, #tpu.memory_space<vmem>>, vector<8x32xf32>
    tpu.vector_store %arg17[%c0_47, %c0_48], %98 {strides = array<i32>} : memref<8x32xf32, #tpu.memory_space<vmem>>, vector<8x32xf32>,
    %c0_49 = arith.constant 0 : index
    %c0_50 = arith.constant 0 : index
    %106 = vector.load %arg18[%c0_49, %c0_50] : memref<8x24xf32, #tpu.memory_space<vmem>>, vector<8x24xf32>
    tpu.vector_store %arg18[%c0_49, %c0_50], %103 {strides = array<i32>} : memref<8x24xf32, #tpu.memory_space<vmem>>, vector<8x24xf32>,
    %c0_51 = arith.constant 0 : index
    %c0_52 = arith.constant 0 : index
    %c0_53 = arith.constant 0 : index
    %107 = vector.load %arg15[%c0_51, %c0_52, %c0_53] : memref<1x8x24xf32, #tpu.memory_space<vmem>>, vector<1x8x24xf32>
    %108 = vector.shape_cast %107 : vector<1x8x24xf32> to vector<8x24xf32>
    %109 = vector.shape_cast %103 : vector<8x24xf32> to vector<1x8x24xf32>
    tpu.vector_store %arg15[%c0_51, %c0_52, %c0_53], %109 {strides = array<i32>} : memref<1x8x24xf32, #tpu.memory_space<vmem>>, vector<1x8x24xf32>,
    return
  }
  func.func @transform_0(%arg0: i32, %arg1: memref<32xi32, #tpu.memory_space<smem>>) -> (i32, i32, i32) {
    %c0_i32 = arith.constant 0 : i32
    %c0_i32_0 = arith.constant 0 : i32
    %c0_i32_1 = arith.constant 0 : i32
    return %arg0, %c0_i32, %c0_i32_0 : i32, i32, i32
  }
  func.func @transform_1(%arg0: i32, %arg1: memref<32xi32, #tpu.memory_space<smem>>) -> (i32, i32) {
    %c0_i32 = arith.constant 0 : i32
    %c0_i32_0 = arith.constant 0 : i32
    %c0_i32_1 = arith.constant 0 : i32
    return %c0_i32, %c0_i32_0 : i32, i32
  }
  func.func @transform_2(%arg0: i32, %arg1: memref<32xi32, #tpu.memory_space<smem>>) -> (i32, i32) {
    %c0_i32 = arith.constant 0 : i32
    %c0_i32_0 = arith.constant 0 : i32
    %c0_i32_1 = arith.constant 0 : i32
    return %c0_i32, %c0_i32_0 : i32, i32
  }
  func.func @transform_3(%arg0: i32, %arg1: memref<32xi32, #tpu.memory_space<smem>>) -> (i32, i32) {
    %c0_i32 = arith.constant 0 : i32
    %c0_i32_0 = arith.constant 0 : i32
    %c0_i32_1 = arith.constant 0 : i32
    return %c0_i32, %c0_i32_0 : i32, i32
  }
  func.func @transform_4(%arg0: i32, %arg1: memref<32xi32, #tpu.memory_space<smem>>) -> (i32, i32) {
    %c0_i32 = arith.constant 0 : i32
    %c0_i32_0 = arith.constant 0 : i32
    %c0_i32_1 = arith.constant 0 : i32
    return %c0_i32, %c0_i32_0 : i32, i32
  }
  func.func @transform_5(%arg0: i32, %arg1: memref<32xi32, #tpu.memory_space<smem>>) -> (i32, i32) {
    %c0_i32 = arith.constant 0 : i32
    %c0_i32_0 = arith.constant 0 : i32
    %c0_i32_1 = arith.constant 0 : i32
    return %c0_i32, %c0_i32_0 : i32, i32
  }
  func.func @transform_6(%arg0: i32, %arg1: memref<32xi32, #tpu.memory_space<smem>>) -> (i32, i32) {
    %c0_i32 = arith.constant 0 : i32
    %c0_i32_0 = arith.constant 0 : i32
    %c0_i32_1 = arith.constant 0 : i32
    return %c0_i32, %c0_i32_0 : i32, i32
  }
  func.func @transform_7(%arg0: i32, %arg1: memref<32xi32, #tpu.memory_space<smem>>) -> (i32, i32) {
    %c0_i32 = arith.constant 0 : i32
    %c0_i32_0 = arith.constant 0 : i32
    %c0_i32_1 = arith.constant 0 : i32
    return %c0_i32, %c0_i32_0 : i32, i32
  }
  func.func @transform_8(%arg0: i32, %arg1: memref<32xi32, #tpu.memory_space<smem>>) -> (i32, i32) {
    %c0_i32 = arith.constant 0 : i32
    %c0_i32_0 = arith.constant 0 : i32
    %c0_i32_1 = arith.constant 0 : i32
    return %c0_i32, %c0_i32_0 : i32, i32
  }
  func.func @transform_9(%arg0: i32, %arg1: memref<32xi32, #tpu.memory_space<smem>>) -> (i32, i32) {
    %c0_i32 = arith.constant 0 : i32
    %c0_i32_0 = arith.constant 0 : i32
    %c0_i32_1 = arith.constant 0 : i32
    return %c0_i32, %c0_i32_0 : i32, i32
  }
  func.func @transform_10(%arg0: i32, %arg1: memref<32xi32, #tpu.memory_space<smem>>) -> (i32, i32) {
    %c0_i32 = arith.constant 0 : i32
    %c0_i32_0 = arith.constant 0 : i32
    %c0_i32_1 = arith.constant 0 : i32
    return %c0_i32, %c0_i32_0 : i32, i32
  }
  func.func @transform_11(%arg0: i32, %arg1: memref<32xi32, #tpu.memory_space<smem>>) -> (i32, i32) {
    %c0_i32 = arith.constant 0 : i32
    %c0_i32_0 = arith.constant 0 : i32
    %c0_i32_1 = arith.constant 0 : i32
    return %c0_i32, %c0_i32_0 : i32, i32
  }
  func.func @transform_12(%arg0: i32, %arg1: memref<32xi32, #tpu.memory_space<smem>>) -> (i32, i32) {
    %c0_i32 = arith.constant 0 : i32
    %c0_i32_0 = arith.constant 0 : i32
    %c0_i32_1 = arith.constant 0 : i32
    return %c0_i32, %c0_i32_0 : i32, i32
  }
  func.func @transform_13(%arg0: i32, %arg1: memref<32xi32, #tpu.memory_space<smem>>) -> (i32, i32, i32) {
    %c0_i32 = arith.constant 0 : i32
    %c0_i32_0 = arith.constant 0 : i32
    %c0_i32_1 = arith.constant 0 : i32
    return %arg0, %c0_i32, %c0_i32_0 : i32, i32, i32
  }
}

module attributes {stable_mosaic.version = 11 : i64} {
  func.func @encoder_kernel(%arg0: memref<8x8x16xf32, #tpu.memory_space<vmem>>, %arg1: memref<16x96xf32, #tpu.memory_space<vmem>>, %arg2: memref<32x96xf32, #tpu.memory_space<vmem>>, %arg3: memref<1x96xf32, #tpu.memory_space<vmem>>, %arg4: memref<1x96xf32, #tpu.memory_space<vmem>>, %arg5: memref<16x96xf32, #tpu.memory_space<vmem>>, %arg6: memref<32x96xf32, #tpu.memory_space<vmem>>, %arg7: memref<1x96xf32, #tpu.memory_space<vmem>>, %arg8: memref<1x96xf32, #tpu.memory_space<vmem>>, %arg9: memref<64x96xf32, #tpu.memory_space<vmem>>, %arg10: memref<32x96xf32, #tpu.memory_space<vmem>>, %arg11: memref<1x96xf32, #tpu.memory_space<vmem>>, %arg12: memref<1x96xf32, #tpu.memory_space<vmem>>, %arg13: memref<8x32xf32, #tpu.memory_space<vmem>>) attributes {dimension_semantics = [], scalar_prefetch = 0 : i64, scratch_operands = 0 : i64, tpu.core_type = #tpu.core_type<tc>} {
    %c0 = arith.constant 0 : index
    %c0_0 = arith.constant 0 : index
    %0 = vector.load %arg1[%c0, %c0_0] : memref<16x96xf32, #tpu.memory_space<vmem>>, vector<16x96xf32>
    %c0_1 = arith.constant 0 : index
    %c0_2 = arith.constant 0 : index
    %1 = vector.load %arg2[%c0_1, %c0_2] : memref<32x96xf32, #tpu.memory_space<vmem>>, vector<32x96xf32>
    %c0_3 = arith.constant 0 : index
    %c0_4 = arith.constant 0 : index
    %2 = vector.load %arg3[%c0_3, %c0_4] : memref<1x96xf32, #tpu.memory_space<vmem>>, vector<1x96xf32>
    %c0_5 = arith.constant 0 : index
    %c0_6 = arith.constant 0 : index
    %3 = vector.load %arg4[%c0_5, %c0_6] : memref<1x96xf32, #tpu.memory_space<vmem>>, vector<1x96xf32>
    %c0_7 = arith.constant 0 : index
    %c0_8 = arith.constant 0 : index
    %4 = vector.load %arg5[%c0_7, %c0_8] : memref<16x96xf32, #tpu.memory_space<vmem>>, vector<16x96xf32>
    %c0_9 = arith.constant 0 : index
    %c0_10 = arith.constant 0 : index
    %5 = vector.load %arg6[%c0_9, %c0_10] : memref<32x96xf32, #tpu.memory_space<vmem>>, vector<32x96xf32>
    %c0_11 = arith.constant 0 : index
    %c0_12 = arith.constant 0 : index
    %6 = vector.load %arg7[%c0_11, %c0_12] : memref<1x96xf32, #tpu.memory_space<vmem>>, vector<1x96xf32>
    %c0_13 = arith.constant 0 : index
    %c0_14 = arith.constant 0 : index
    %7 = vector.load %arg8[%c0_13, %c0_14] : memref<1x96xf32, #tpu.memory_space<vmem>>, vector<1x96xf32>
    %c0_15 = arith.constant 0 : index
    %c0_16 = arith.constant 0 : index
    %8 = vector.load %arg9[%c0_15, %c0_16] : memref<64x96xf32, #tpu.memory_space<vmem>>, vector<64x96xf32>
    %c0_17 = arith.constant 0 : index
    %c0_18 = arith.constant 0 : index
    %9 = vector.load %arg10[%c0_17, %c0_18] : memref<32x96xf32, #tpu.memory_space<vmem>>, vector<32x96xf32>
    %c0_19 = arith.constant 0 : index
    %c0_20 = arith.constant 0 : index
    %10 = vector.load %arg11[%c0_19, %c0_20] : memref<1x96xf32, #tpu.memory_space<vmem>>, vector<1x96xf32>
    %c0_21 = arith.constant 0 : index
    %c0_22 = arith.constant 0 : index
    %11 = vector.load %arg12[%c0_21, %c0_22] : memref<1x96xf32, #tpu.memory_space<vmem>>, vector<1x96xf32>
    %12 = vector.extract_strided_slice %8 {offsets = [0, 0], sizes = [32, 96], strides = [1, 1]} : vector<64x96xf32> to vector<32x96xf32>
    %13 = vector.extract_strided_slice %8 {offsets = [32, 0], sizes = [32, 96], strides = [1, 1]} : vector<64x96xf32> to vector<32x96xf32>
    %cst = arith.constant 0.000000e+00 : f32
    %14 = vector.broadcast %cst : f32 to vector<8x32xf32>
    %c0_23 = arith.constant 0 : index
    %c0_24 = arith.constant 0 : index
    %c0_25 = arith.constant 0 : index
    %15 = vector.load %arg0[%c0_23, %c0_24, %c0_25] : memref<8x8x16xf32, #tpu.memory_space<vmem>>, vector<1x8x16xf32>
    %16 = vector.shape_cast %15 : vector<1x8x16xf32> to vector<8x16xf32>
    %cst_26 = arith.constant dense<0.000000e+00> : vector<8x96xf32>
    %17 = tpu.matmul %16, %0, %cst_26 {dimension_numbers = #tpu.dot_dimension_numbers<[1], [0], [0], [1], [0, 0, 1, 1], [], []>} : vector<8x16xf32>, vector<16x96xf32>, vector<8x96xf32> -> vector<8x96xf32>
    %18 = vector.broadcast %2 : vector<1x96xf32> to vector<8x96xf32>
    %19 = arith.addf %17, %18 : vector<8x96xf32>
    %cst_27 = arith.constant dense<0.000000e+00> : vector<8x96xf32>
    %20 = tpu.matmul %14, %1, %cst_27 {dimension_numbers = #tpu.dot_dimension_numbers<[1], [0], [0], [1], [0, 0, 1, 1], [], []>} : vector<8x32xf32>, vector<32x96xf32>, vector<8x96xf32> -> vector<8x96xf32>
    %21 = vector.broadcast %3 : vector<1x96xf32> to vector<8x96xf32>
    %22 = arith.addf %20, %21 : vector<8x96xf32>
    %23 = vector.extract_strided_slice %19 {offsets = [0, 0], sizes = [8, 32], strides = [1, 1]} : vector<8x96xf32> to vector<8x32xf32>
    %24 = vector.extract_strided_slice %22 {offsets = [0, 0], sizes = [8, 32], strides = [1, 1]} : vector<8x96xf32> to vector<8x32xf32>
    %25 = arith.addf %23, %24 : vector<8x32xf32>
    %26 = arith.negf %25 : vector<8x32xf32>
    %27 = math.exp %26 : vector<8x32xf32>
    %cst_28 = arith.constant 1.000000e+00 : f32
    %28 = vector.broadcast %cst_28 : f32 to vector<8x32xf32>
    %29 = arith.addf %28, %27 : vector<8x32xf32>
    %30 = arith.divf %28, %29 : vector<8x32xf32>
    %31 = vector.extract_strided_slice %19 {offsets = [0, 32], sizes = [8, 32], strides = [1, 1]} : vector<8x96xf32> to vector<8x32xf32>
    %32 = vector.extract_strided_slice %22 {offsets = [0, 32], sizes = [8, 32], strides = [1, 1]} : vector<8x96xf32> to vector<8x32xf32>
    %33 = arith.addf %31, %32 : vector<8x32xf32>
    %34 = arith.negf %33 : vector<8x32xf32>
    %35 = math.exp %34 : vector<8x32xf32>
    %cst_29 = arith.constant 1.000000e+00 : f32
    %36 = vector.broadcast %cst_29 : f32 to vector<8x32xf32>
    %37 = arith.addf %36, %35 : vector<8x32xf32>
    %38 = arith.divf %36, %37 : vector<8x32xf32>
    %39 = vector.extract_strided_slice %19 {offsets = [0, 64], sizes = [8, 32], strides = [1, 1]} : vector<8x96xf32> to vector<8x32xf32>
    %40 = vector.extract_strided_slice %22 {offsets = [0, 64], sizes = [8, 32], strides = [1, 1]} : vector<8x96xf32> to vector<8x32xf32>
    %41 = arith.mulf %30, %40 : vector<8x32xf32>
    %42 = arith.addf %39, %41 : vector<8x32xf32>
    %43 = math.tanh %42 : vector<8x32xf32>
    %cst_30 = arith.constant 1.000000e+00 : f32
    %44 = vector.broadcast %cst_30 : f32 to vector<8x32xf32>
    %45 = arith.subf %44, %38 : vector<8x32xf32>
    %46 = arith.mulf %45, %43 : vector<8x32xf32>
    %47 = arith.mulf %38, %14 : vector<8x32xf32>
    %48 = arith.addf %46, %47 : vector<8x32xf32>
    %c1 = arith.constant 1 : index
    %c0_31 = arith.constant 0 : index
    %c0_32 = arith.constant 0 : index
    %49 = vector.load %arg0[%c1, %c0_31, %c0_32] : memref<8x8x16xf32, #tpu.memory_space<vmem>>, vector<1x8x16xf32>
    %50 = vector.shape_cast %49 : vector<1x8x16xf32> to vector<8x16xf32>
    %cst_33 = arith.constant dense<0.000000e+00> : vector<8x96xf32>
    %51 = tpu.matmul %50, %0, %cst_33 {dimension_numbers = #tpu.dot_dimension_numbers<[1], [0], [0], [1], [0, 0, 1, 1], [], []>} : vector<8x16xf32>, vector<16x96xf32>, vector<8x96xf32> -> vector<8x96xf32>
    %52 = vector.broadcast %2 : vector<1x96xf32> to vector<8x96xf32>
    %53 = arith.addf %51, %52 : vector<8x96xf32>
    %cst_34 = arith.constant dense<0.000000e+00> : vector<8x96xf32>
    %54 = tpu.matmul %48, %1, %cst_34 {dimension_numbers = #tpu.dot_dimension_numbers<[1], [0], [0], [1], [0, 0, 1, 1], [], []>} : vector<8x32xf32>, vector<32x96xf32>, vector<8x96xf32> -> vector<8x96xf32>
    %55 = vector.broadcast %3 : vector<1x96xf32> to vector<8x96xf32>
    %56 = arith.addf %54, %55 : vector<8x96xf32>
    %57 = vector.extract_strided_slice %53 {offsets = [0, 0], sizes = [8, 32], strides = [1, 1]} : vector<8x96xf32> to vector<8x32xf32>
    %58 = vector.extract_strided_slice %56 {offsets = [0, 0], sizes = [8, 32], strides = [1, 1]} : vector<8x96xf32> to vector<8x32xf32>
    %59 = arith.addf %57, %58 : vector<8x32xf32>
    %60 = arith.negf %59 : vector<8x32xf32>
    %61 = math.exp %60 : vector<8x32xf32>
    %cst_35 = arith.constant 1.000000e+00 : f32
    %62 = vector.broadcast %cst_35 : f32 to vector<8x32xf32>
    %63 = arith.addf %62, %61 : vector<8x32xf32>
    %64 = arith.divf %62, %63 : vector<8x32xf32>
    %65 = vector.extract_strided_slice %53 {offsets = [0, 32], sizes = [8, 32], strides = [1, 1]} : vector<8x96xf32> to vector<8x32xf32>
    %66 = vector.extract_strided_slice %56 {offsets = [0, 32], sizes = [8, 32], strides = [1, 1]} : vector<8x96xf32> to vector<8x32xf32>
    %67 = arith.addf %65, %66 : vector<8x32xf32>
    %68 = arith.negf %67 : vector<8x32xf32>
    %69 = math.exp %68 : vector<8x32xf32>
    %cst_36 = arith.constant 1.000000e+00 : f32
    %70 = vector.broadcast %cst_36 : f32 to vector<8x32xf32>
    %71 = arith.addf %70, %69 : vector<8x32xf32>
    %72 = arith.divf %70, %71 : vector<8x32xf32>
    %73 = vector.extract_strided_slice %53 {offsets = [0, 64], sizes = [8, 32], strides = [1, 1]} : vector<8x96xf32> to vector<8x32xf32>
    %74 = vector.extract_strided_slice %56 {offsets = [0, 64], sizes = [8, 32], strides = [1, 1]} : vector<8x96xf32> to vector<8x32xf32>
    %75 = arith.mulf %64, %74 : vector<8x32xf32>
    %76 = arith.addf %73, %75 : vector<8x32xf32>
    %77 = math.tanh %76 : vector<8x32xf32>
    %cst_37 = arith.constant 1.000000e+00 : f32
    %78 = vector.broadcast %cst_37 : f32 to vector<8x32xf32>
    %79 = arith.subf %78, %72 : vector<8x32xf32>
    %80 = arith.mulf %79, %77 : vector<8x32xf32>
    %81 = arith.mulf %72, %48 : vector<8x32xf32>
    %82 = arith.addf %80, %81 : vector<8x32xf32>
    %c2 = arith.constant 2 : index
    %c0_38 = arith.constant 0 : index
    %c0_39 = arith.constant 0 : index
    %83 = vector.load %arg0[%c2, %c0_38, %c0_39] : memref<8x8x16xf32, #tpu.memory_space<vmem>>, vector<1x8x16xf32>
    %84 = vector.shape_cast %83 : vector<1x8x16xf32> to vector<8x16xf32>
    %cst_40 = arith.constant dense<0.000000e+00> : vector<8x96xf32>
    %85 = tpu.matmul %84, %0, %cst_40 {dimension_numbers = #tpu.dot_dimension_numbers<[1], [0], [0], [1], [0, 0, 1, 1], [], []>} : vector<8x16xf32>, vector<16x96xf32>, vector<8x96xf32> -> vector<8x96xf32>
    %86 = vector.broadcast %2 : vector<1x96xf32> to vector<8x96xf32>
    %87 = arith.addf %85, %86 : vector<8x96xf32>
    %cst_41 = arith.constant dense<0.000000e+00> : vector<8x96xf32>
    %88 = tpu.matmul %82, %1, %cst_41 {dimension_numbers = #tpu.dot_dimension_numbers<[1], [0], [0], [1], [0, 0, 1, 1], [], []>} : vector<8x32xf32>, vector<32x96xf32>, vector<8x96xf32> -> vector<8x96xf32>
    %89 = vector.broadcast %3 : vector<1x96xf32> to vector<8x96xf32>
    %90 = arith.addf %88, %89 : vector<8x96xf32>
    %91 = vector.extract_strided_slice %87 {offsets = [0, 0], sizes = [8, 32], strides = [1, 1]} : vector<8x96xf32> to vector<8x32xf32>
    %92 = vector.extract_strided_slice %90 {offsets = [0, 0], sizes = [8, 32], strides = [1, 1]} : vector<8x96xf32> to vector<8x32xf32>
    %93 = arith.addf %91, %92 : vector<8x32xf32>
    %94 = arith.negf %93 : vector<8x32xf32>
    %95 = math.exp %94 : vector<8x32xf32>
    %cst_42 = arith.constant 1.000000e+00 : f32
    %96 = vector.broadcast %cst_42 : f32 to vector<8x32xf32>
    %97 = arith.addf %96, %95 : vector<8x32xf32>
    %98 = arith.divf %96, %97 : vector<8x32xf32>
    %99 = vector.extract_strided_slice %87 {offsets = [0, 32], sizes = [8, 32], strides = [1, 1]} : vector<8x96xf32> to vector<8x32xf32>
    %100 = vector.extract_strided_slice %90 {offsets = [0, 32], sizes = [8, 32], strides = [1, 1]} : vector<8x96xf32> to vector<8x32xf32>
    %101 = arith.addf %99, %100 : vector<8x32xf32>
    %102 = arith.negf %101 : vector<8x32xf32>
    %103 = math.exp %102 : vector<8x32xf32>
    %cst_43 = arith.constant 1.000000e+00 : f32
    %104 = vector.broadcast %cst_43 : f32 to vector<8x32xf32>
    %105 = arith.addf %104, %103 : vector<8x32xf32>
    %106 = arith.divf %104, %105 : vector<8x32xf32>
    %107 = vector.extract_strided_slice %87 {offsets = [0, 64], sizes = [8, 32], strides = [1, 1]} : vector<8x96xf32> to vector<8x32xf32>
    %108 = vector.extract_strided_slice %90 {offsets = [0, 64], sizes = [8, 32], strides = [1, 1]} : vector<8x96xf32> to vector<8x32xf32>
    %109 = arith.mulf %98, %108 : vector<8x32xf32>
    %110 = arith.addf %107, %109 : vector<8x32xf32>
    %111 = math.tanh %110 : vector<8x32xf32>
    %cst_44 = arith.constant 1.000000e+00 : f32
    %112 = vector.broadcast %cst_44 : f32 to vector<8x32xf32>
    %113 = arith.subf %112, %106 : vector<8x32xf32>
    %114 = arith.mulf %113, %111 : vector<8x32xf32>
    %115 = arith.mulf %106, %82 : vector<8x32xf32>
    %116 = arith.addf %114, %115 : vector<8x32xf32>
    %c3 = arith.constant 3 : index
    %c0_45 = arith.constant 0 : index
    %c0_46 = arith.constant 0 : index
    %117 = vector.load %arg0[%c3, %c0_45, %c0_46] : memref<8x8x16xf32, #tpu.memory_space<vmem>>, vector<1x8x16xf32>
    %118 = vector.shape_cast %117 : vector<1x8x16xf32> to vector<8x16xf32>
    %cst_47 = arith.constant dense<0.000000e+00> : vector<8x96xf32>
    %119 = tpu.matmul %118, %0, %cst_47 {dimension_numbers = #tpu.dot_dimension_numbers<[1], [0], [0], [1], [0, 0, 1, 1], [], []>} : vector<8x16xf32>, vector<16x96xf32>, vector<8x96xf32> -> vector<8x96xf32>
    %120 = vector.broadcast %2 : vector<1x96xf32> to vector<8x96xf32>
    %121 = arith.addf %119, %120 : vector<8x96xf32>
    %cst_48 = arith.constant dense<0.000000e+00> : vector<8x96xf32>
    %122 = tpu.matmul %116, %1, %cst_48 {dimension_numbers = #tpu.dot_dimension_numbers<[1], [0], [0], [1], [0, 0, 1, 1], [], []>} : vector<8x32xf32>, vector<32x96xf32>, vector<8x96xf32> -> vector<8x96xf32>
    %123 = vector.broadcast %3 : vector<1x96xf32> to vector<8x96xf32>
    %124 = arith.addf %122, %123 : vector<8x96xf32>
    %125 = vector.extract_strided_slice %121 {offsets = [0, 0], sizes = [8, 32], strides = [1, 1]} : vector<8x96xf32> to vector<8x32xf32>
    %126 = vector.extract_strided_slice %124 {offsets = [0, 0], sizes = [8, 32], strides = [1, 1]} : vector<8x96xf32> to vector<8x32xf32>
    %127 = arith.addf %125, %126 : vector<8x32xf32>
    %128 = arith.negf %127 : vector<8x32xf32>
    %129 = math.exp %128 : vector<8x32xf32>
    %cst_49 = arith.constant 1.000000e+00 : f32
    %130 = vector.broadcast %cst_49 : f32 to vector<8x32xf32>
    %131 = arith.addf %130, %129 : vector<8x32xf32>
    %132 = arith.divf %130, %131 : vector<8x32xf32>
    %133 = vector.extract_strided_slice %121 {offsets = [0, 32], sizes = [8, 32], strides = [1, 1]} : vector<8x96xf32> to vector<8x32xf32>
    %134 = vector.extract_strided_slice %124 {offsets = [0, 32], sizes = [8, 32], strides = [1, 1]} : vector<8x96xf32> to vector<8x32xf32>
    %135 = arith.addf %133, %134 : vector<8x32xf32>
    %136 = arith.negf %135 : vector<8x32xf32>
    %137 = math.exp %136 : vector<8x32xf32>
    %cst_50 = arith.constant 1.000000e+00 : f32
    %138 = vector.broadcast %cst_50 : f32 to vector<8x32xf32>
    %139 = arith.addf %138, %137 : vector<8x32xf32>
    %140 = arith.divf %138, %139 : vector<8x32xf32>
    %141 = vector.extract_strided_slice %121 {offsets = [0, 64], sizes = [8, 32], strides = [1, 1]} : vector<8x96xf32> to vector<8x32xf32>
    %142 = vector.extract_strided_slice %124 {offsets = [0, 64], sizes = [8, 32], strides = [1, 1]} : vector<8x96xf32> to vector<8x32xf32>
    %143 = arith.mulf %132, %142 : vector<8x32xf32>
    %144 = arith.addf %141, %143 : vector<8x32xf32>
    %145 = math.tanh %144 : vector<8x32xf32>
    %cst_51 = arith.constant 1.000000e+00 : f32
    %146 = vector.broadcast %cst_51 : f32 to vector<8x32xf32>
    %147 = arith.subf %146, %140 : vector<8x32xf32>
    %148 = arith.mulf %147, %145 : vector<8x32xf32>
    %149 = arith.mulf %140, %116 : vector<8x32xf32>
    %150 = arith.addf %148, %149 : vector<8x32xf32>
    %c4 = arith.constant 4 : index
    %c0_52 = arith.constant 0 : index
    %c0_53 = arith.constant 0 : index
    %151 = vector.load %arg0[%c4, %c0_52, %c0_53] : memref<8x8x16xf32, #tpu.memory_space<vmem>>, vector<1x8x16xf32>
    %152 = vector.shape_cast %151 : vector<1x8x16xf32> to vector<8x16xf32>
    %cst_54 = arith.constant dense<0.000000e+00> : vector<8x96xf32>
    %153 = tpu.matmul %152, %0, %cst_54 {dimension_numbers = #tpu.dot_dimension_numbers<[1], [0], [0], [1], [0, 0, 1, 1], [], []>} : vector<8x16xf32>, vector<16x96xf32>, vector<8x96xf32> -> vector<8x96xf32>
    %154 = vector.broadcast %2 : vector<1x96xf32> to vector<8x96xf32>
    %155 = arith.addf %153, %154 : vector<8x96xf32>
    %cst_55 = arith.constant dense<0.000000e+00> : vector<8x96xf32>
    %156 = tpu.matmul %150, %1, %cst_55 {dimension_numbers = #tpu.dot_dimension_numbers<[1], [0], [0], [1], [0, 0, 1, 1], [], []>} : vector<8x32xf32>, vector<32x96xf32>, vector<8x96xf32> -> vector<8x96xf32>
    %157 = vector.broadcast %3 : vector<1x96xf32> to vector<8x96xf32>
    %158 = arith.addf %156, %157 : vector<8x96xf32>
    %159 = vector.extract_strided_slice %155 {offsets = [0, 0], sizes = [8, 32], strides = [1, 1]} : vector<8x96xf32> to vector<8x32xf32>
    %160 = vector.extract_strided_slice %158 {offsets = [0, 0], sizes = [8, 32], strides = [1, 1]} : vector<8x96xf32> to vector<8x32xf32>
    %161 = arith.addf %159, %160 : vector<8x32xf32>
    %162 = arith.negf %161 : vector<8x32xf32>
    %163 = math.exp %162 : vector<8x32xf32>
    %cst_56 = arith.constant 1.000000e+00 : f32
    %164 = vector.broadcast %cst_56 : f32 to vector<8x32xf32>
    %165 = arith.addf %164, %163 : vector<8x32xf32>
    %166 = arith.divf %164, %165 : vector<8x32xf32>
    %167 = vector.extract_strided_slice %155 {offsets = [0, 32], sizes = [8, 32], strides = [1, 1]} : vector<8x96xf32> to vector<8x32xf32>
    %168 = vector.extract_strided_slice %158 {offsets = [0, 32], sizes = [8, 32], strides = [1, 1]} : vector<8x96xf32> to vector<8x32xf32>
    %169 = arith.addf %167, %168 : vector<8x32xf32>
    %170 = arith.negf %169 : vector<8x32xf32>
    %171 = math.exp %170 : vector<8x32xf32>
    %cst_57 = arith.constant 1.000000e+00 : f32
    %172 = vector.broadcast %cst_57 : f32 to vector<8x32xf32>
    %173 = arith.addf %172, %171 : vector<8x32xf32>
    %174 = arith.divf %172, %173 : vector<8x32xf32>
    %175 = vector.extract_strided_slice %155 {offsets = [0, 64], sizes = [8, 32], strides = [1, 1]} : vector<8x96xf32> to vector<8x32xf32>
    %176 = vector.extract_strided_slice %158 {offsets = [0, 64], sizes = [8, 32], strides = [1, 1]} : vector<8x96xf32> to vector<8x32xf32>
    %177 = arith.mulf %166, %176 : vector<8x32xf32>
    %178 = arith.addf %175, %177 : vector<8x32xf32>
    %179 = math.tanh %178 : vector<8x32xf32>
    %cst_58 = arith.constant 1.000000e+00 : f32
    %180 = vector.broadcast %cst_58 : f32 to vector<8x32xf32>
    %181 = arith.subf %180, %174 : vector<8x32xf32>
    %182 = arith.mulf %181, %179 : vector<8x32xf32>
    %183 = arith.mulf %174, %150 : vector<8x32xf32>
    %184 = arith.addf %182, %183 : vector<8x32xf32>
    %c5 = arith.constant 5 : index
    %c0_59 = arith.constant 0 : index
    %c0_60 = arith.constant 0 : index
    %185 = vector.load %arg0[%c5, %c0_59, %c0_60] : memref<8x8x16xf32, #tpu.memory_space<vmem>>, vector<1x8x16xf32>
    %186 = vector.shape_cast %185 : vector<1x8x16xf32> to vector<8x16xf32>
    %cst_61 = arith.constant dense<0.000000e+00> : vector<8x96xf32>
    %187 = tpu.matmul %186, %0, %cst_61 {dimension_numbers = #tpu.dot_dimension_numbers<[1], [0], [0], [1], [0, 0, 1, 1], [], []>} : vector<8x16xf32>, vector<16x96xf32>, vector<8x96xf32> -> vector<8x96xf32>
    %188 = vector.broadcast %2 : vector<1x96xf32> to vector<8x96xf32>
    %189 = arith.addf %187, %188 : vector<8x96xf32>
    %cst_62 = arith.constant dense<0.000000e+00> : vector<8x96xf32>
    %190 = tpu.matmul %184, %1, %cst_62 {dimension_numbers = #tpu.dot_dimension_numbers<[1], [0], [0], [1], [0, 0, 1, 1], [], []>} : vector<8x32xf32>, vector<32x96xf32>, vector<8x96xf32> -> vector<8x96xf32>
    %191 = vector.broadcast %3 : vector<1x96xf32> to vector<8x96xf32>
    %192 = arith.addf %190, %191 : vector<8x96xf32>
    %193 = vector.extract_strided_slice %189 {offsets = [0, 0], sizes = [8, 32], strides = [1, 1]} : vector<8x96xf32> to vector<8x32xf32>
    %194 = vector.extract_strided_slice %192 {offsets = [0, 0], sizes = [8, 32], strides = [1, 1]} : vector<8x96xf32> to vector<8x32xf32>
    %195 = arith.addf %193, %194 : vector<8x32xf32>
    %196 = arith.negf %195 : vector<8x32xf32>
    %197 = math.exp %196 : vector<8x32xf32>
    %cst_63 = arith.constant 1.000000e+00 : f32
    %198 = vector.broadcast %cst_63 : f32 to vector<8x32xf32>
    %199 = arith.addf %198, %197 : vector<8x32xf32>
    %200 = arith.divf %198, %199 : vector<8x32xf32>
    %201 = vector.extract_strided_slice %189 {offsets = [0, 32], sizes = [8, 32], strides = [1, 1]} : vector<8x96xf32> to vector<8x32xf32>
    %202 = vector.extract_strided_slice %192 {offsets = [0, 32], sizes = [8, 32], strides = [1, 1]} : vector<8x96xf32> to vector<8x32xf32>
    %203 = arith.addf %201, %202 : vector<8x32xf32>
    %204 = arith.negf %203 : vector<8x32xf32>
    %205 = math.exp %204 : vector<8x32xf32>
    %cst_64 = arith.constant 1.000000e+00 : f32
    %206 = vector.broadcast %cst_64 : f32 to vector<8x32xf32>
    %207 = arith.addf %206, %205 : vector<8x32xf32>
    %208 = arith.divf %206, %207 : vector<8x32xf32>
    %209 = vector.extract_strided_slice %189 {offsets = [0, 64], sizes = [8, 32], strides = [1, 1]} : vector<8x96xf32> to vector<8x32xf32>
    %210 = vector.extract_strided_slice %192 {offsets = [0, 64], sizes = [8, 32], strides = [1, 1]} : vector<8x96xf32> to vector<8x32xf32>
    %211 = arith.mulf %200, %210 : vector<8x32xf32>
    %212 = arith.addf %209, %211 : vector<8x32xf32>
    %213 = math.tanh %212 : vector<8x32xf32>
    %cst_65 = arith.constant 1.000000e+00 : f32
    %214 = vector.broadcast %cst_65 : f32 to vector<8x32xf32>
    %215 = arith.subf %214, %208 : vector<8x32xf32>
    %216 = arith.mulf %215, %213 : vector<8x32xf32>
    %217 = arith.mulf %208, %184 : vector<8x32xf32>
    %218 = arith.addf %216, %217 : vector<8x32xf32>
    %c6 = arith.constant 6 : index
    %c0_66 = arith.constant 0 : index
    %c0_67 = arith.constant 0 : index
    %219 = vector.load %arg0[%c6, %c0_66, %c0_67] : memref<8x8x16xf32, #tpu.memory_space<vmem>>, vector<1x8x16xf32>
    %220 = vector.shape_cast %219 : vector<1x8x16xf32> to vector<8x16xf32>
    %cst_68 = arith.constant dense<0.000000e+00> : vector<8x96xf32>
    %221 = tpu.matmul %220, %0, %cst_68 {dimension_numbers = #tpu.dot_dimension_numbers<[1], [0], [0], [1], [0, 0, 1, 1], [], []>} : vector<8x16xf32>, vector<16x96xf32>, vector<8x96xf32> -> vector<8x96xf32>
    %222 = vector.broadcast %2 : vector<1x96xf32> to vector<8x96xf32>
    %223 = arith.addf %221, %222 : vector<8x96xf32>
    %cst_69 = arith.constant dense<0.000000e+00> : vector<8x96xf32>
    %224 = tpu.matmul %218, %1, %cst_69 {dimension_numbers = #tpu.dot_dimension_numbers<[1], [0], [0], [1], [0, 0, 1, 1], [], []>} : vector<8x32xf32>, vector<32x96xf32>, vector<8x96xf32> -> vector<8x96xf32>
    %225 = vector.broadcast %3 : vector<1x96xf32> to vector<8x96xf32>
    %226 = arith.addf %224, %225 : vector<8x96xf32>
    %227 = vector.extract_strided_slice %223 {offsets = [0, 0], sizes = [8, 32], strides = [1, 1]} : vector<8x96xf32> to vector<8x32xf32>
    %228 = vector.extract_strided_slice %226 {offsets = [0, 0], sizes = [8, 32], strides = [1, 1]} : vector<8x96xf32> to vector<8x32xf32>
    %229 = arith.addf %227, %228 : vector<8x32xf32>
    %230 = arith.negf %229 : vector<8x32xf32>
    %231 = math.exp %230 : vector<8x32xf32>
    %cst_70 = arith.constant 1.000000e+00 : f32
    %232 = vector.broadcast %cst_70 : f32 to vector<8x32xf32>
    %233 = arith.addf %232, %231 : vector<8x32xf32>
    %234 = arith.divf %232, %233 : vector<8x32xf32>
    %235 = vector.extract_strided_slice %223 {offsets = [0, 32], sizes = [8, 32], strides = [1, 1]} : vector<8x96xf32> to vector<8x32xf32>
    %236 = vector.extract_strided_slice %226 {offsets = [0, 32], sizes = [8, 32], strides = [1, 1]} : vector<8x96xf32> to vector<8x32xf32>
    %237 = arith.addf %235, %236 : vector<8x32xf32>
    %238 = arith.negf %237 : vector<8x32xf32>
    %239 = math.exp %238 : vector<8x32xf32>
    %cst_71 = arith.constant 1.000000e+00 : f32
    %240 = vector.broadcast %cst_71 : f32 to vector<8x32xf32>
    %241 = arith.addf %240, %239 : vector<8x32xf32>
    %242 = arith.divf %240, %241 : vector<8x32xf32>
    %243 = vector.extract_strided_slice %223 {offsets = [0, 64], sizes = [8, 32], strides = [1, 1]} : vector<8x96xf32> to vector<8x32xf32>
    %244 = vector.extract_strided_slice %226 {offsets = [0, 64], sizes = [8, 32], strides = [1, 1]} : vector<8x96xf32> to vector<8x32xf32>
    %245 = arith.mulf %234, %244 : vector<8x32xf32>
    %246 = arith.addf %243, %245 : vector<8x32xf32>
    %247 = math.tanh %246 : vector<8x32xf32>
    %cst_72 = arith.constant 1.000000e+00 : f32
    %248 = vector.broadcast %cst_72 : f32 to vector<8x32xf32>
    %249 = arith.subf %248, %242 : vector<8x32xf32>
    %250 = arith.mulf %249, %247 : vector<8x32xf32>
    %251 = arith.mulf %242, %218 : vector<8x32xf32>
    %252 = arith.addf %250, %251 : vector<8x32xf32>
    %c7 = arith.constant 7 : index
    %c0_73 = arith.constant 0 : index
    %c0_74 = arith.constant 0 : index
    %253 = vector.load %arg0[%c7, %c0_73, %c0_74] : memref<8x8x16xf32, #tpu.memory_space<vmem>>, vector<1x8x16xf32>
    %254 = vector.shape_cast %253 : vector<1x8x16xf32> to vector<8x16xf32>
    %cst_75 = arith.constant dense<0.000000e+00> : vector<8x96xf32>
    %255 = tpu.matmul %254, %0, %cst_75 {dimension_numbers = #tpu.dot_dimension_numbers<[1], [0], [0], [1], [0, 0, 1, 1], [], []>} : vector<8x16xf32>, vector<16x96xf32>, vector<8x96xf32> -> vector<8x96xf32>
    %256 = vector.broadcast %2 : vector<1x96xf32> to vector<8x96xf32>
    %257 = arith.addf %255, %256 : vector<8x96xf32>
    %cst_76 = arith.constant dense<0.000000e+00> : vector<8x96xf32>
    %258 = tpu.matmul %252, %1, %cst_76 {dimension_numbers = #tpu.dot_dimension_numbers<[1], [0], [0], [1], [0, 0, 1, 1], [], []>} : vector<8x32xf32>, vector<32x96xf32>, vector<8x96xf32> -> vector<8x96xf32>
    %259 = vector.broadcast %3 : vector<1x96xf32> to vector<8x96xf32>
    %260 = arith.addf %258, %259 : vector<8x96xf32>
    %261 = vector.extract_strided_slice %257 {offsets = [0, 0], sizes = [8, 32], strides = [1, 1]} : vector<8x96xf32> to vector<8x32xf32>
    %262 = vector.extract_strided_slice %260 {offsets = [0, 0], sizes = [8, 32], strides = [1, 1]} : vector<8x96xf32> to vector<8x32xf32>
    %263 = arith.addf %261, %262 : vector<8x32xf32>
    %264 = arith.negf %263 : vector<8x32xf32>
    %265 = math.exp %264 : vector<8x32xf32>
    %cst_77 = arith.constant 1.000000e+00 : f32
    %266 = vector.broadcast %cst_77 : f32 to vector<8x32xf32>
    %267 = arith.addf %266, %265 : vector<8x32xf32>
    %268 = arith.divf %266, %267 : vector<8x32xf32>
    %269 = vector.extract_strided_slice %257 {offsets = [0, 32], sizes = [8, 32], strides = [1, 1]} : vector<8x96xf32> to vector<8x32xf32>
    %270 = vector.extract_strided_slice %260 {offsets = [0, 32], sizes = [8, 32], strides = [1, 1]} : vector<8x96xf32> to vector<8x32xf32>
    %271 = arith.addf %269, %270 : vector<8x32xf32>
    %272 = arith.negf %271 : vector<8x32xf32>
    %273 = math.exp %272 : vector<8x32xf32>
    %cst_78 = arith.constant 1.000000e+00 : f32
    %274 = vector.broadcast %cst_78 : f32 to vector<8x32xf32>
    %275 = arith.addf %274, %273 : vector<8x32xf32>
    %276 = arith.divf %274, %275 : vector<8x32xf32>
    %277 = vector.extract_strided_slice %257 {offsets = [0, 64], sizes = [8, 32], strides = [1, 1]} : vector<8x96xf32> to vector<8x32xf32>
    %278 = vector.extract_strided_slice %260 {offsets = [0, 64], sizes = [8, 32], strides = [1, 1]} : vector<8x96xf32> to vector<8x32xf32>
    %279 = arith.mulf %268, %278 : vector<8x32xf32>
    %280 = arith.addf %277, %279 : vector<8x32xf32>
    %281 = math.tanh %280 : vector<8x32xf32>
    %cst_79 = arith.constant 1.000000e+00 : f32
    %282 = vector.broadcast %cst_79 : f32 to vector<8x32xf32>
    %283 = arith.subf %282, %276 : vector<8x32xf32>
    %284 = arith.mulf %283, %281 : vector<8x32xf32>
    %285 = arith.mulf %276, %252 : vector<8x32xf32>
    %286 = arith.addf %284, %285 : vector<8x32xf32>
    %c7_80 = arith.constant 7 : index
    %c0_81 = arith.constant 0 : index
    %c0_82 = arith.constant 0 : index
    %287 = vector.load %arg0[%c7_80, %c0_81, %c0_82] : memref<8x8x16xf32, #tpu.memory_space<vmem>>, vector<1x8x16xf32>
    %288 = vector.shape_cast %287 : vector<1x8x16xf32> to vector<8x16xf32>
    %cst_83 = arith.constant dense<0.000000e+00> : vector<8x96xf32>
    %289 = tpu.matmul %288, %4, %cst_83 {dimension_numbers = #tpu.dot_dimension_numbers<[1], [0], [0], [1], [0, 0, 1, 1], [], []>} : vector<8x16xf32>, vector<16x96xf32>, vector<8x96xf32> -> vector<8x96xf32>
    %290 = vector.broadcast %6 : vector<1x96xf32> to vector<8x96xf32>
    %291 = arith.addf %289, %290 : vector<8x96xf32>
    %cst_84 = arith.constant dense<0.000000e+00> : vector<8x96xf32>
    %292 = tpu.matmul %14, %5, %cst_84 {dimension_numbers = #tpu.dot_dimension_numbers<[1], [0], [0], [1], [0, 0, 1, 1], [], []>} : vector<8x32xf32>, vector<32x96xf32>, vector<8x96xf32> -> vector<8x96xf32>
    %293 = vector.broadcast %7 : vector<1x96xf32> to vector<8x96xf32>
    %294 = arith.addf %292, %293 : vector<8x96xf32>
    %295 = vector.extract_strided_slice %291 {offsets = [0, 0], sizes = [8, 32], strides = [1, 1]} : vector<8x96xf32> to vector<8x32xf32>
    %296 = vector.extract_strided_slice %294 {offsets = [0, 0], sizes = [8, 32], strides = [1, 1]} : vector<8x96xf32> to vector<8x32xf32>
    %297 = arith.addf %295, %296 : vector<8x32xf32>
    %298 = arith.negf %297 : vector<8x32xf32>
    %299 = math.exp %298 : vector<8x32xf32>
    %cst_85 = arith.constant 1.000000e+00 : f32
    %300 = vector.broadcast %cst_85 : f32 to vector<8x32xf32>
    %301 = arith.addf %300, %299 : vector<8x32xf32>
    %302 = arith.divf %300, %301 : vector<8x32xf32>
    %303 = vector.extract_strided_slice %291 {offsets = [0, 32], sizes = [8, 32], strides = [1, 1]} : vector<8x96xf32> to vector<8x32xf32>
    %304 = vector.extract_strided_slice %294 {offsets = [0, 32], sizes = [8, 32], strides = [1, 1]} : vector<8x96xf32> to vector<8x32xf32>
    %305 = arith.addf %303, %304 : vector<8x32xf32>
    %306 = arith.negf %305 : vector<8x32xf32>
    %307 = math.exp %306 : vector<8x32xf32>
    %cst_86 = arith.constant 1.000000e+00 : f32
    %308 = vector.broadcast %cst_86 : f32 to vector<8x32xf32>
    %309 = arith.addf %308, %307 : vector<8x32xf32>
    %310 = arith.divf %308, %309 : vector<8x32xf32>
    %311 = vector.extract_strided_slice %291 {offsets = [0, 64], sizes = [8, 32], strides = [1, 1]} : vector<8x96xf32> to vector<8x32xf32>
    %312 = vector.extract_strided_slice %294 {offsets = [0, 64], sizes = [8, 32], strides = [1, 1]} : vector<8x96xf32> to vector<8x32xf32>
    %313 = arith.mulf %302, %312 : vector<8x32xf32>
    %314 = arith.addf %311, %313 : vector<8x32xf32>
    %315 = math.tanh %314 : vector<8x32xf32>
    %cst_87 = arith.constant 1.000000e+00 : f32
    %316 = vector.broadcast %cst_87 : f32 to vector<8x32xf32>
    %317 = arith.subf %316, %310 : vector<8x32xf32>
    %318 = arith.mulf %317, %315 : vector<8x32xf32>
    %319 = arith.mulf %310, %14 : vector<8x32xf32>
    %320 = arith.addf %318, %319 : vector<8x32xf32>
    %c6_88 = arith.constant 6 : index
    %c0_89 = arith.constant 0 : index
    %c0_90 = arith.constant 0 : index
    %321 = vector.load %arg0[%c6_88, %c0_89, %c0_90] : memref<8x8x16xf32, #tpu.memory_space<vmem>>, vector<1x8x16xf32>
    %322 = vector.shape_cast %321 : vector<1x8x16xf32> to vector<8x16xf32>
    %cst_91 = arith.constant dense<0.000000e+00> : vector<8x96xf32>
    %323 = tpu.matmul %322, %4, %cst_91 {dimension_numbers = #tpu.dot_dimension_numbers<[1], [0], [0], [1], [0, 0, 1, 1], [], []>} : vector<8x16xf32>, vector<16x96xf32>, vector<8x96xf32> -> vector<8x96xf32>
    %324 = vector.broadcast %6 : vector<1x96xf32> to vector<8x96xf32>
    %325 = arith.addf %323, %324 : vector<8x96xf32>
    %cst_92 = arith.constant dense<0.000000e+00> : vector<8x96xf32>
    %326 = tpu.matmul %320, %5, %cst_92 {dimension_numbers = #tpu.dot_dimension_numbers<[1], [0], [0], [1], [0, 0, 1, 1], [], []>} : vector<8x32xf32>, vector<32x96xf32>, vector<8x96xf32> -> vector<8x96xf32>
    %327 = vector.broadcast %7 : vector<1x96xf32> to vector<8x96xf32>
    %328 = arith.addf %326, %327 : vector<8x96xf32>
    %329 = vector.extract_strided_slice %325 {offsets = [0, 0], sizes = [8, 32], strides = [1, 1]} : vector<8x96xf32> to vector<8x32xf32>
    %330 = vector.extract_strided_slice %328 {offsets = [0, 0], sizes = [8, 32], strides = [1, 1]} : vector<8x96xf32> to vector<8x32xf32>
    %331 = arith.addf %329, %330 : vector<8x32xf32>
    %332 = arith.negf %331 : vector<8x32xf32>
    %333 = math.exp %332 : vector<8x32xf32>
    %cst_93 = arith.constant 1.000000e+00 : f32
    %334 = vector.broadcast %cst_93 : f32 to vector<8x32xf32>
    %335 = arith.addf %334, %333 : vector<8x32xf32>
    %336 = arith.divf %334, %335 : vector<8x32xf32>
    %337 = vector.extract_strided_slice %325 {offsets = [0, 32], sizes = [8, 32], strides = [1, 1]} : vector<8x96xf32> to vector<8x32xf32>
    %338 = vector.extract_strided_slice %328 {offsets = [0, 32], sizes = [8, 32], strides = [1, 1]} : vector<8x96xf32> to vector<8x32xf32>
    %339 = arith.addf %337, %338 : vector<8x32xf32>
    %340 = arith.negf %339 : vector<8x32xf32>
    %341 = math.exp %340 : vector<8x32xf32>
    %cst_94 = arith.constant 1.000000e+00 : f32
    %342 = vector.broadcast %cst_94 : f32 to vector<8x32xf32>
    %343 = arith.addf %342, %341 : vector<8x32xf32>
    %344 = arith.divf %342, %343 : vector<8x32xf32>
    %345 = vector.extract_strided_slice %325 {offsets = [0, 64], sizes = [8, 32], strides = [1, 1]} : vector<8x96xf32> to vector<8x32xf32>
    %346 = vector.extract_strided_slice %328 {offsets = [0, 64], sizes = [8, 32], strides = [1, 1]} : vector<8x96xf32> to vector<8x32xf32>
    %347 = arith.mulf %336, %346 : vector<8x32xf32>
    %348 = arith.addf %345, %347 : vector<8x32xf32>
    %349 = math.tanh %348 : vector<8x32xf32>
    %cst_95 = arith.constant 1.000000e+00 : f32
    %350 = vector.broadcast %cst_95 : f32 to vector<8x32xf32>
    %351 = arith.subf %350, %344 : vector<8x32xf32>
    %352 = arith.mulf %351, %349 : vector<8x32xf32>
    %353 = arith.mulf %344, %320 : vector<8x32xf32>
    %354 = arith.addf %352, %353 : vector<8x32xf32>
    %c5_96 = arith.constant 5 : index
    %c0_97 = arith.constant 0 : index
    %c0_98 = arith.constant 0 : index
    %355 = vector.load %arg0[%c5_96, %c0_97, %c0_98] : memref<8x8x16xf32, #tpu.memory_space<vmem>>, vector<1x8x16xf32>
    %356 = vector.shape_cast %355 : vector<1x8x16xf32> to vector<8x16xf32>
    %cst_99 = arith.constant dense<0.000000e+00> : vector<8x96xf32>
    %357 = tpu.matmul %356, %4, %cst_99 {dimension_numbers = #tpu.dot_dimension_numbers<[1], [0], [0], [1], [0, 0, 1, 1], [], []>} : vector<8x16xf32>, vector<16x96xf32>, vector<8x96xf32> -> vector<8x96xf32>
    %358 = vector.broadcast %6 : vector<1x96xf32> to vector<8x96xf32>
    %359 = arith.addf %357, %358 : vector<8x96xf32>
    %cst_100 = arith.constant dense<0.000000e+00> : vector<8x96xf32>
    %360 = tpu.matmul %354, %5, %cst_100 {dimension_numbers = #tpu.dot_dimension_numbers<[1], [0], [0], [1], [0, 0, 1, 1], [], []>} : vector<8x32xf32>, vector<32x96xf32>, vector<8x96xf32> -> vector<8x96xf32>
    %361 = vector.broadcast %7 : vector<1x96xf32> to vector<8x96xf32>
    %362 = arith.addf %360, %361 : vector<8x96xf32>
    %363 = vector.extract_strided_slice %359 {offsets = [0, 0], sizes = [8, 32], strides = [1, 1]} : vector<8x96xf32> to vector<8x32xf32>
    %364 = vector.extract_strided_slice %362 {offsets = [0, 0], sizes = [8, 32], strides = [1, 1]} : vector<8x96xf32> to vector<8x32xf32>
    %365 = arith.addf %363, %364 : vector<8x32xf32>
    %366 = arith.negf %365 : vector<8x32xf32>
    %367 = math.exp %366 : vector<8x32xf32>
    %cst_101 = arith.constant 1.000000e+00 : f32
    %368 = vector.broadcast %cst_101 : f32 to vector<8x32xf32>
    %369 = arith.addf %368, %367 : vector<8x32xf32>
    %370 = arith.divf %368, %369 : vector<8x32xf32>
    %371 = vector.extract_strided_slice %359 {offsets = [0, 32], sizes = [8, 32], strides = [1, 1]} : vector<8x96xf32> to vector<8x32xf32>
    %372 = vector.extract_strided_slice %362 {offsets = [0, 32], sizes = [8, 32], strides = [1, 1]} : vector<8x96xf32> to vector<8x32xf32>
    %373 = arith.addf %371, %372 : vector<8x32xf32>
    %374 = arith.negf %373 : vector<8x32xf32>
    %375 = math.exp %374 : vector<8x32xf32>
    %cst_102 = arith.constant 1.000000e+00 : f32
    %376 = vector.broadcast %cst_102 : f32 to vector<8x32xf32>
    %377 = arith.addf %376, %375 : vector<8x32xf32>
    %378 = arith.divf %376, %377 : vector<8x32xf32>
    %379 = vector.extract_strided_slice %359 {offsets = [0, 64], sizes = [8, 32], strides = [1, 1]} : vector<8x96xf32> to vector<8x32xf32>
    %380 = vector.extract_strided_slice %362 {offsets = [0, 64], sizes = [8, 32], strides = [1, 1]} : vector<8x96xf32> to vector<8x32xf32>
    %381 = arith.mulf %370, %380 : vector<8x32xf32>
    %382 = arith.addf %379, %381 : vector<8x32xf32>
    %383 = math.tanh %382 : vector<8x32xf32>
    %cst_103 = arith.constant 1.000000e+00 : f32
    %384 = vector.broadcast %cst_103 : f32 to vector<8x32xf32>
    %385 = arith.subf %384, %378 : vector<8x32xf32>
    %386 = arith.mulf %385, %383 : vector<8x32xf32>
    %387 = arith.mulf %378, %354 : vector<8x32xf32>
    %388 = arith.addf %386, %387 : vector<8x32xf32>
    %c4_104 = arith.constant 4 : index
    %c0_105 = arith.constant 0 : index
    %c0_106 = arith.constant 0 : index
    %389 = vector.load %arg0[%c4_104, %c0_105, %c0_106] : memref<8x8x16xf32, #tpu.memory_space<vmem>>, vector<1x8x16xf32>
    %390 = vector.shape_cast %389 : vector<1x8x16xf32> to vector<8x16xf32>
    %cst_107 = arith.constant dense<0.000000e+00> : vector<8x96xf32>
    %391 = tpu.matmul %390, %4, %cst_107 {dimension_numbers = #tpu.dot_dimension_numbers<[1], [0], [0], [1], [0, 0, 1, 1], [], []>} : vector<8x16xf32>, vector<16x96xf32>, vector<8x96xf32> -> vector<8x96xf32>
    %392 = vector.broadcast %6 : vector<1x96xf32> to vector<8x96xf32>
    %393 = arith.addf %391, %392 : vector<8x96xf32>
    %cst_108 = arith.constant dense<0.000000e+00> : vector<8x96xf32>
    %394 = tpu.matmul %388, %5, %cst_108 {dimension_numbers = #tpu.dot_dimension_numbers<[1], [0], [0], [1], [0, 0, 1, 1], [], []>} : vector<8x32xf32>, vector<32x96xf32>, vector<8x96xf32> -> vector<8x96xf32>
    %395 = vector.broadcast %7 : vector<1x96xf32> to vector<8x96xf32>
    %396 = arith.addf %394, %395 : vector<8x96xf32>
    %397 = vector.extract_strided_slice %393 {offsets = [0, 0], sizes = [8, 32], strides = [1, 1]} : vector<8x96xf32> to vector<8x32xf32>
    %398 = vector.extract_strided_slice %396 {offsets = [0, 0], sizes = [8, 32], strides = [1, 1]} : vector<8x96xf32> to vector<8x32xf32>
    %399 = arith.addf %397, %398 : vector<8x32xf32>
    %400 = arith.negf %399 : vector<8x32xf32>
    %401 = math.exp %400 : vector<8x32xf32>
    %cst_109 = arith.constant 1.000000e+00 : f32
    %402 = vector.broadcast %cst_109 : f32 to vector<8x32xf32>
    %403 = arith.addf %402, %401 : vector<8x32xf32>
    %404 = arith.divf %402, %403 : vector<8x32xf32>
    %405 = vector.extract_strided_slice %393 {offsets = [0, 32], sizes = [8, 32], strides = [1, 1]} : vector<8x96xf32> to vector<8x32xf32>
    %406 = vector.extract_strided_slice %396 {offsets = [0, 32], sizes = [8, 32], strides = [1, 1]} : vector<8x96xf32> to vector<8x32xf32>
    %407 = arith.addf %405, %406 : vector<8x32xf32>
    %408 = arith.negf %407 : vector<8x32xf32>
    %409 = math.exp %408 : vector<8x32xf32>
    %cst_110 = arith.constant 1.000000e+00 : f32
    %410 = vector.broadcast %cst_110 : f32 to vector<8x32xf32>
    %411 = arith.addf %410, %409 : vector<8x32xf32>
    %412 = arith.divf %410, %411 : vector<8x32xf32>
    %413 = vector.extract_strided_slice %393 {offsets = [0, 64], sizes = [8, 32], strides = [1, 1]} : vector<8x96xf32> to vector<8x32xf32>
    %414 = vector.extract_strided_slice %396 {offsets = [0, 64], sizes = [8, 32], strides = [1, 1]} : vector<8x96xf32> to vector<8x32xf32>
    %415 = arith.mulf %404, %414 : vector<8x32xf32>
    %416 = arith.addf %413, %415 : vector<8x32xf32>
    %417 = math.tanh %416 : vector<8x32xf32>
    %cst_111 = arith.constant 1.000000e+00 : f32
    %418 = vector.broadcast %cst_111 : f32 to vector<8x32xf32>
    %419 = arith.subf %418, %412 : vector<8x32xf32>
    %420 = arith.mulf %419, %417 : vector<8x32xf32>
    %421 = arith.mulf %412, %388 : vector<8x32xf32>
    %422 = arith.addf %420, %421 : vector<8x32xf32>
    %c3_112 = arith.constant 3 : index
    %c0_113 = arith.constant 0 : index
    %c0_114 = arith.constant 0 : index
    %423 = vector.load %arg0[%c3_112, %c0_113, %c0_114] : memref<8x8x16xf32, #tpu.memory_space<vmem>>, vector<1x8x16xf32>
    %424 = vector.shape_cast %423 : vector<1x8x16xf32> to vector<8x16xf32>
    %cst_115 = arith.constant dense<0.000000e+00> : vector<8x96xf32>
    %425 = tpu.matmul %424, %4, %cst_115 {dimension_numbers = #tpu.dot_dimension_numbers<[1], [0], [0], [1], [0, 0, 1, 1], [], []>} : vector<8x16xf32>, vector<16x96xf32>, vector<8x96xf32> -> vector<8x96xf32>
    %426 = vector.broadcast %6 : vector<1x96xf32> to vector<8x96xf32>
    %427 = arith.addf %425, %426 : vector<8x96xf32>
    %cst_116 = arith.constant dense<0.000000e+00> : vector<8x96xf32>
    %428 = tpu.matmul %422, %5, %cst_116 {dimension_numbers = #tpu.dot_dimension_numbers<[1], [0], [0], [1], [0, 0, 1, 1], [], []>} : vector<8x32xf32>, vector<32x96xf32>, vector<8x96xf32> -> vector<8x96xf32>
    %429 = vector.broadcast %7 : vector<1x96xf32> to vector<8x96xf32>
    %430 = arith.addf %428, %429 : vector<8x96xf32>
    %431 = vector.extract_strided_slice %427 {offsets = [0, 0], sizes = [8, 32], strides = [1, 1]} : vector<8x96xf32> to vector<8x32xf32>
    %432 = vector.extract_strided_slice %430 {offsets = [0, 0], sizes = [8, 32], strides = [1, 1]} : vector<8x96xf32> to vector<8x32xf32>
    %433 = arith.addf %431, %432 : vector<8x32xf32>
    %434 = arith.negf %433 : vector<8x32xf32>
    %435 = math.exp %434 : vector<8x32xf32>
    %cst_117 = arith.constant 1.000000e+00 : f32
    %436 = vector.broadcast %cst_117 : f32 to vector<8x32xf32>
    %437 = arith.addf %436, %435 : vector<8x32xf32>
    %438 = arith.divf %436, %437 : vector<8x32xf32>
    %439 = vector.extract_strided_slice %427 {offsets = [0, 32], sizes = [8, 32], strides = [1, 1]} : vector<8x96xf32> to vector<8x32xf32>
    %440 = vector.extract_strided_slice %430 {offsets = [0, 32], sizes = [8, 32], strides = [1, 1]} : vector<8x96xf32> to vector<8x32xf32>
    %441 = arith.addf %439, %440 : vector<8x32xf32>
    %442 = arith.negf %441 : vector<8x32xf32>
    %443 = math.exp %442 : vector<8x32xf32>
    %cst_118 = arith.constant 1.000000e+00 : f32
    %444 = vector.broadcast %cst_118 : f32 to vector<8x32xf32>
    %445 = arith.addf %444, %443 : vector<8x32xf32>
    %446 = arith.divf %444, %445 : vector<8x32xf32>
    %447 = vector.extract_strided_slice %427 {offsets = [0, 64], sizes = [8, 32], strides = [1, 1]} : vector<8x96xf32> to vector<8x32xf32>
    %448 = vector.extract_strided_slice %430 {offsets = [0, 64], sizes = [8, 32], strides = [1, 1]} : vector<8x96xf32> to vector<8x32xf32>
    %449 = arith.mulf %438, %448 : vector<8x32xf32>
    %450 = arith.addf %447, %449 : vector<8x32xf32>
    %451 = math.tanh %450 : vector<8x32xf32>
    %cst_119 = arith.constant 1.000000e+00 : f32
    %452 = vector.broadcast %cst_119 : f32 to vector<8x32xf32>
    %453 = arith.subf %452, %446 : vector<8x32xf32>
    %454 = arith.mulf %453, %451 : vector<8x32xf32>
    %455 = arith.mulf %446, %422 : vector<8x32xf32>
    %456 = arith.addf %454, %455 : vector<8x32xf32>
    %c2_120 = arith.constant 2 : index
    %c0_121 = arith.constant 0 : index
    %c0_122 = arith.constant 0 : index
    %457 = vector.load %arg0[%c2_120, %c0_121, %c0_122] : memref<8x8x16xf32, #tpu.memory_space<vmem>>, vector<1x8x16xf32>
    %458 = vector.shape_cast %457 : vector<1x8x16xf32> to vector<8x16xf32>
    %cst_123 = arith.constant dense<0.000000e+00> : vector<8x96xf32>
    %459 = tpu.matmul %458, %4, %cst_123 {dimension_numbers = #tpu.dot_dimension_numbers<[1], [0], [0], [1], [0, 0, 1, 1], [], []>} : vector<8x16xf32>, vector<16x96xf32>, vector<8x96xf32> -> vector<8x96xf32>
    %460 = vector.broadcast %6 : vector<1x96xf32> to vector<8x96xf32>
    %461 = arith.addf %459, %460 : vector<8x96xf32>
    %cst_124 = arith.constant dense<0.000000e+00> : vector<8x96xf32>
    %462 = tpu.matmul %456, %5, %cst_124 {dimension_numbers = #tpu.dot_dimension_numbers<[1], [0], [0], [1], [0, 0, 1, 1], [], []>} : vector<8x32xf32>, vector<32x96xf32>, vector<8x96xf32> -> vector<8x96xf32>
    %463 = vector.broadcast %7 : vector<1x96xf32> to vector<8x96xf32>
    %464 = arith.addf %462, %463 : vector<8x96xf32>
    %465 = vector.extract_strided_slice %461 {offsets = [0, 0], sizes = [8, 32], strides = [1, 1]} : vector<8x96xf32> to vector<8x32xf32>
    %466 = vector.extract_strided_slice %464 {offsets = [0, 0], sizes = [8, 32], strides = [1, 1]} : vector<8x96xf32> to vector<8x32xf32>
    %467 = arith.addf %465, %466 : vector<8x32xf32>
    %468 = arith.negf %467 : vector<8x32xf32>
    %469 = math.exp %468 : vector<8x32xf32>
    %cst_125 = arith.constant 1.000000e+00 : f32
    %470 = vector.broadcast %cst_125 : f32 to vector<8x32xf32>
    %471 = arith.addf %470, %469 : vector<8x32xf32>
    %472 = arith.divf %470, %471 : vector<8x32xf32>
    %473 = vector.extract_strided_slice %461 {offsets = [0, 32], sizes = [8, 32], strides = [1, 1]} : vector<8x96xf32> to vector<8x32xf32>
    %474 = vector.extract_strided_slice %464 {offsets = [0, 32], sizes = [8, 32], strides = [1, 1]} : vector<8x96xf32> to vector<8x32xf32>
    %475 = arith.addf %473, %474 : vector<8x32xf32>
    %476 = arith.negf %475 : vector<8x32xf32>
    %477 = math.exp %476 : vector<8x32xf32>
    %cst_126 = arith.constant 1.000000e+00 : f32
    %478 = vector.broadcast %cst_126 : f32 to vector<8x32xf32>
    %479 = arith.addf %478, %477 : vector<8x32xf32>
    %480 = arith.divf %478, %479 : vector<8x32xf32>
    %481 = vector.extract_strided_slice %461 {offsets = [0, 64], sizes = [8, 32], strides = [1, 1]} : vector<8x96xf32> to vector<8x32xf32>
    %482 = vector.extract_strided_slice %464 {offsets = [0, 64], sizes = [8, 32], strides = [1, 1]} : vector<8x96xf32> to vector<8x32xf32>
    %483 = arith.mulf %472, %482 : vector<8x32xf32>
    %484 = arith.addf %481, %483 : vector<8x32xf32>
    %485 = math.tanh %484 : vector<8x32xf32>
    %cst_127 = arith.constant 1.000000e+00 : f32
    %486 = vector.broadcast %cst_127 : f32 to vector<8x32xf32>
    %487 = arith.subf %486, %480 : vector<8x32xf32>
    %488 = arith.mulf %487, %485 : vector<8x32xf32>
    %489 = arith.mulf %480, %456 : vector<8x32xf32>
    %490 = arith.addf %488, %489 : vector<8x32xf32>
    %c1_128 = arith.constant 1 : index
    %c0_129 = arith.constant 0 : index
    %c0_130 = arith.constant 0 : index
    %491 = vector.load %arg0[%c1_128, %c0_129, %c0_130] : memref<8x8x16xf32, #tpu.memory_space<vmem>>, vector<1x8x16xf32>
    %492 = vector.shape_cast %491 : vector<1x8x16xf32> to vector<8x16xf32>
    %cst_131 = arith.constant dense<0.000000e+00> : vector<8x96xf32>
    %493 = tpu.matmul %492, %4, %cst_131 {dimension_numbers = #tpu.dot_dimension_numbers<[1], [0], [0], [1], [0, 0, 1, 1], [], []>} : vector<8x16xf32>, vector<16x96xf32>, vector<8x96xf32> -> vector<8x96xf32>
    %494 = vector.broadcast %6 : vector<1x96xf32> to vector<8x96xf32>
    %495 = arith.addf %493, %494 : vector<8x96xf32>
    %cst_132 = arith.constant dense<0.000000e+00> : vector<8x96xf32>
    %496 = tpu.matmul %490, %5, %cst_132 {dimension_numbers = #tpu.dot_dimension_numbers<[1], [0], [0], [1], [0, 0, 1, 1], [], []>} : vector<8x32xf32>, vector<32x96xf32>, vector<8x96xf32> -> vector<8x96xf32>
    %497 = vector.broadcast %7 : vector<1x96xf32> to vector<8x96xf32>
    %498 = arith.addf %496, %497 : vector<8x96xf32>
    %499 = vector.extract_strided_slice %495 {offsets = [0, 0], sizes = [8, 32], strides = [1, 1]} : vector<8x96xf32> to vector<8x32xf32>
    %500 = vector.extract_strided_slice %498 {offsets = [0, 0], sizes = [8, 32], strides = [1, 1]} : vector<8x96xf32> to vector<8x32xf32>
    %501 = arith.addf %499, %500 : vector<8x32xf32>
    %502 = arith.negf %501 : vector<8x32xf32>
    %503 = math.exp %502 : vector<8x32xf32>
    %cst_133 = arith.constant 1.000000e+00 : f32
    %504 = vector.broadcast %cst_133 : f32 to vector<8x32xf32>
    %505 = arith.addf %504, %503 : vector<8x32xf32>
    %506 = arith.divf %504, %505 : vector<8x32xf32>
    %507 = vector.extract_strided_slice %495 {offsets = [0, 32], sizes = [8, 32], strides = [1, 1]} : vector<8x96xf32> to vector<8x32xf32>
    %508 = vector.extract_strided_slice %498 {offsets = [0, 32], sizes = [8, 32], strides = [1, 1]} : vector<8x96xf32> to vector<8x32xf32>
    %509 = arith.addf %507, %508 : vector<8x32xf32>
    %510 = arith.negf %509 : vector<8x32xf32>
    %511 = math.exp %510 : vector<8x32xf32>
    %cst_134 = arith.constant 1.000000e+00 : f32
    %512 = vector.broadcast %cst_134 : f32 to vector<8x32xf32>
    %513 = arith.addf %512, %511 : vector<8x32xf32>
    %514 = arith.divf %512, %513 : vector<8x32xf32>
    %515 = vector.extract_strided_slice %495 {offsets = [0, 64], sizes = [8, 32], strides = [1, 1]} : vector<8x96xf32> to vector<8x32xf32>
    %516 = vector.extract_strided_slice %498 {offsets = [0, 64], sizes = [8, 32], strides = [1, 1]} : vector<8x96xf32> to vector<8x32xf32>
    %517 = arith.mulf %506, %516 : vector<8x32xf32>
    %518 = arith.addf %515, %517 : vector<8x32xf32>
    %519 = math.tanh %518 : vector<8x32xf32>
    %cst_135 = arith.constant 1.000000e+00 : f32
    %520 = vector.broadcast %cst_135 : f32 to vector<8x32xf32>
    %521 = arith.subf %520, %514 : vector<8x32xf32>
    %522 = arith.mulf %521, %519 : vector<8x32xf32>
    %523 = arith.mulf %514, %490 : vector<8x32xf32>
    %524 = arith.addf %522, %523 : vector<8x32xf32>
    %c0_136 = arith.constant 0 : index
    %c0_137 = arith.constant 0 : index
    %c0_138 = arith.constant 0 : index
    %525 = vector.load %arg0[%c0_136, %c0_137, %c0_138] : memref<8x8x16xf32, #tpu.memory_space<vmem>>, vector<1x8x16xf32>
    %526 = vector.shape_cast %525 : vector<1x8x16xf32> to vector<8x16xf32>
    %cst_139 = arith.constant dense<0.000000e+00> : vector<8x96xf32>
    %527 = tpu.matmul %526, %4, %cst_139 {dimension_numbers = #tpu.dot_dimension_numbers<[1], [0], [0], [1], [0, 0, 1, 1], [], []>} : vector<8x16xf32>, vector<16x96xf32>, vector<8x96xf32> -> vector<8x96xf32>
    %528 = vector.broadcast %6 : vector<1x96xf32> to vector<8x96xf32>
    %529 = arith.addf %527, %528 : vector<8x96xf32>
    %cst_140 = arith.constant dense<0.000000e+00> : vector<8x96xf32>
    %530 = tpu.matmul %524, %5, %cst_140 {dimension_numbers = #tpu.dot_dimension_numbers<[1], [0], [0], [1], [0, 0, 1, 1], [], []>} : vector<8x32xf32>, vector<32x96xf32>, vector<8x96xf32> -> vector<8x96xf32>
    %531 = vector.broadcast %7 : vector<1x96xf32> to vector<8x96xf32>
    %532 = arith.addf %530, %531 : vector<8x96xf32>
    %533 = vector.extract_strided_slice %529 {offsets = [0, 0], sizes = [8, 32], strides = [1, 1]} : vector<8x96xf32> to vector<8x32xf32>
    %534 = vector.extract_strided_slice %532 {offsets = [0, 0], sizes = [8, 32], strides = [1, 1]} : vector<8x96xf32> to vector<8x32xf32>
    %535 = arith.addf %533, %534 : vector<8x32xf32>
    %536 = arith.negf %535 : vector<8x32xf32>
    %537 = math.exp %536 : vector<8x32xf32>
    %cst_141 = arith.constant 1.000000e+00 : f32
    %538 = vector.broadcast %cst_141 : f32 to vector<8x32xf32>
    %539 = arith.addf %538, %537 : vector<8x32xf32>
    %540 = arith.divf %538, %539 : vector<8x32xf32>
    %541 = vector.extract_strided_slice %529 {offsets = [0, 32], sizes = [8, 32], strides = [1, 1]} : vector<8x96xf32> to vector<8x32xf32>
    %542 = vector.extract_strided_slice %532 {offsets = [0, 32], sizes = [8, 32], strides = [1, 1]} : vector<8x96xf32> to vector<8x32xf32>
    %543 = arith.addf %541, %542 : vector<8x32xf32>
    %544 = arith.negf %543 : vector<8x32xf32>
    %545 = math.exp %544 : vector<8x32xf32>
    %cst_142 = arith.constant 1.000000e+00 : f32
    %546 = vector.broadcast %cst_142 : f32 to vector<8x32xf32>
    %547 = arith.addf %546, %545 : vector<8x32xf32>
    %548 = arith.divf %546, %547 : vector<8x32xf32>
    %549 = vector.extract_strided_slice %529 {offsets = [0, 64], sizes = [8, 32], strides = [1, 1]} : vector<8x96xf32> to vector<8x32xf32>
    %550 = vector.extract_strided_slice %532 {offsets = [0, 64], sizes = [8, 32], strides = [1, 1]} : vector<8x96xf32> to vector<8x32xf32>
    %551 = arith.mulf %540, %550 : vector<8x32xf32>
    %552 = arith.addf %549, %551 : vector<8x32xf32>
    %553 = math.tanh %552 : vector<8x32xf32>
    %cst_143 = arith.constant 1.000000e+00 : f32
    %554 = vector.broadcast %cst_143 : f32 to vector<8x32xf32>
    %555 = arith.subf %554, %548 : vector<8x32xf32>
    %556 = arith.mulf %555, %553 : vector<8x32xf32>
    %557 = arith.mulf %548, %524 : vector<8x32xf32>
    %558 = arith.addf %556, %557 : vector<8x32xf32>
    %cst_144 = arith.constant dense<0.000000e+00> : vector<8x96xf32>
    %559 = tpu.matmul %286, %12, %cst_144 {dimension_numbers = #tpu.dot_dimension_numbers<[1], [0], [0], [1], [0, 0, 1, 1], [], []>} : vector<8x32xf32>, vector<32x96xf32>, vector<8x96xf32> -> vector<8x96xf32>
    %cst_145 = arith.constant dense<0.000000e+00> : vector<8x96xf32>
    %560 = tpu.matmul %320, %13, %cst_145 {dimension_numbers = #tpu.dot_dimension_numbers<[1], [0], [0], [1], [0, 0, 1, 1], [], []>} : vector<8x32xf32>, vector<32x96xf32>, vector<8x96xf32> -> vector<8x96xf32>
    %561 = arith.addf %559, %560 : vector<8x96xf32>
    %562 = vector.broadcast %10 : vector<1x96xf32> to vector<8x96xf32>
    %563 = arith.addf %561, %562 : vector<8x96xf32>
    %cst_146 = arith.constant dense<0.000000e+00> : vector<8x96xf32>
    %564 = tpu.matmul %14, %9, %cst_146 {dimension_numbers = #tpu.dot_dimension_numbers<[1], [0], [0], [1], [0, 0, 1, 1], [], []>} : vector<8x32xf32>, vector<32x96xf32>, vector<8x96xf32> -> vector<8x96xf32>
    %565 = vector.broadcast %11 : vector<1x96xf32> to vector<8x96xf32>
    %566 = arith.addf %564, %565 : vector<8x96xf32>
    %567 = vector.extract_strided_slice %563 {offsets = [0, 0], sizes = [8, 32], strides = [1, 1]} : vector<8x96xf32> to vector<8x32xf32>
    %568 = vector.extract_strided_slice %566 {offsets = [0, 0], sizes = [8, 32], strides = [1, 1]} : vector<8x96xf32> to vector<8x32xf32>
    %569 = arith.addf %567, %568 : vector<8x32xf32>
    %570 = arith.negf %569 : vector<8x32xf32>
    %571 = math.exp %570 : vector<8x32xf32>
    %cst_147 = arith.constant 1.000000e+00 : f32
    %572 = vector.broadcast %cst_147 : f32 to vector<8x32xf32>
    %573 = arith.addf %572, %571 : vector<8x32xf32>
    %574 = arith.divf %572, %573 : vector<8x32xf32>
    %575 = vector.extract_strided_slice %563 {offsets = [0, 32], sizes = [8, 32], strides = [1, 1]} : vector<8x96xf32> to vector<8x32xf32>
    %576 = vector.extract_strided_slice %566 {offsets = [0, 32], sizes = [8, 32], strides = [1, 1]} : vector<8x96xf32> to vector<8x32xf32>
    %577 = arith.addf %575, %576 : vector<8x32xf32>
    %578 = arith.negf %577 : vector<8x32xf32>
    %579 = math.exp %578 : vector<8x32xf32>
    %cst_148 = arith.constant 1.000000e+00 : f32
    %580 = vector.broadcast %cst_148 : f32 to vector<8x32xf32>
    %581 = arith.addf %580, %579 : vector<8x32xf32>
    %582 = arith.divf %580, %581 : vector<8x32xf32>
    %583 = vector.extract_strided_slice %563 {offsets = [0, 64], sizes = [8, 32], strides = [1, 1]} : vector<8x96xf32> to vector<8x32xf32>
    %584 = vector.extract_strided_slice %566 {offsets = [0, 64], sizes = [8, 32], strides = [1, 1]} : vector<8x96xf32> to vector<8x32xf32>
    %585 = arith.mulf %574, %584 : vector<8x32xf32>
    %586 = arith.addf %583, %585 : vector<8x32xf32>
    %587 = math.tanh %586 : vector<8x32xf32>
    %cst_149 = arith.constant 1.000000e+00 : f32
    %588 = vector.broadcast %cst_149 : f32 to vector<8x32xf32>
    %589 = arith.subf %588, %582 : vector<8x32xf32>
    %590 = arith.mulf %589, %587 : vector<8x32xf32>
    %591 = arith.mulf %582, %14 : vector<8x32xf32>
    %592 = arith.addf %590, %591 : vector<8x32xf32>
    %cst_150 = arith.constant dense<0.000000e+00> : vector<8x96xf32>
    %593 = tpu.matmul %252, %12, %cst_150 {dimension_numbers = #tpu.dot_dimension_numbers<[1], [0], [0], [1], [0, 0, 1, 1], [], []>} : vector<8x32xf32>, vector<32x96xf32>, vector<8x96xf32> -> vector<8x96xf32>
    %cst_151 = arith.constant dense<0.000000e+00> : vector<8x96xf32>
    %594 = tpu.matmul %354, %13, %cst_151 {dimension_numbers = #tpu.dot_dimension_numbers<[1], [0], [0], [1], [0, 0, 1, 1], [], []>} : vector<8x32xf32>, vector<32x96xf32>, vector<8x96xf32> -> vector<8x96xf32>
    %595 = arith.addf %593, %594 : vector<8x96xf32>
    %596 = vector.broadcast %10 : vector<1x96xf32> to vector<8x96xf32>
    %597 = arith.addf %595, %596 : vector<8x96xf32>
    %cst_152 = arith.constant dense<0.000000e+00> : vector<8x96xf32>
    %598 = tpu.matmul %592, %9, %cst_152 {dimension_numbers = #tpu.dot_dimension_numbers<[1], [0], [0], [1], [0, 0, 1, 1], [], []>} : vector<8x32xf32>, vector<32x96xf32>, vector<8x96xf32> -> vector<8x96xf32>
    %599 = vector.broadcast %11 : vector<1x96xf32> to vector<8x96xf32>
    %600 = arith.addf %598, %599 : vector<8x96xf32>
    %601 = vector.extract_strided_slice %597 {offsets = [0, 0], sizes = [8, 32], strides = [1, 1]} : vector<8x96xf32> to vector<8x32xf32>
    %602 = vector.extract_strided_slice %600 {offsets = [0, 0], sizes = [8, 32], strides = [1, 1]} : vector<8x96xf32> to vector<8x32xf32>
    %603 = arith.addf %601, %602 : vector<8x32xf32>
    %604 = arith.negf %603 : vector<8x32xf32>
    %605 = math.exp %604 : vector<8x32xf32>
    %cst_153 = arith.constant 1.000000e+00 : f32
    %606 = vector.broadcast %cst_153 : f32 to vector<8x32xf32>
    %607 = arith.addf %606, %605 : vector<8x32xf32>
    %608 = arith.divf %606, %607 : vector<8x32xf32>
    %609 = vector.extract_strided_slice %597 {offsets = [0, 32], sizes = [8, 32], strides = [1, 1]} : vector<8x96xf32> to vector<8x32xf32>
    %610 = vector.extract_strided_slice %600 {offsets = [0, 32], sizes = [8, 32], strides = [1, 1]} : vector<8x96xf32> to vector<8x32xf32>
    %611 = arith.addf %609, %610 : vector<8x32xf32>
    %612 = arith.negf %611 : vector<8x32xf32>
    %613 = math.exp %612 : vector<8x32xf32>
    %cst_154 = arith.constant 1.000000e+00 : f32
    %614 = vector.broadcast %cst_154 : f32 to vector<8x32xf32>
    %615 = arith.addf %614, %613 : vector<8x32xf32>
    %616 = arith.divf %614, %615 : vector<8x32xf32>
    %617 = vector.extract_strided_slice %597 {offsets = [0, 64], sizes = [8, 32], strides = [1, 1]} : vector<8x96xf32> to vector<8x32xf32>
    %618 = vector.extract_strided_slice %600 {offsets = [0, 64], sizes = [8, 32], strides = [1, 1]} : vector<8x96xf32> to vector<8x32xf32>
    %619 = arith.mulf %608, %618 : vector<8x32xf32>
    %620 = arith.addf %617, %619 : vector<8x32xf32>
    %621 = math.tanh %620 : vector<8x32xf32>
    %cst_155 = arith.constant 1.000000e+00 : f32
    %622 = vector.broadcast %cst_155 : f32 to vector<8x32xf32>
    %623 = arith.subf %622, %616 : vector<8x32xf32>
    %624 = arith.mulf %623, %621 : vector<8x32xf32>
    %625 = arith.mulf %616, %592 : vector<8x32xf32>
    %626 = arith.addf %624, %625 : vector<8x32xf32>
    %cst_156 = arith.constant dense<0.000000e+00> : vector<8x96xf32>
    %627 = tpu.matmul %218, %12, %cst_156 {dimension_numbers = #tpu.dot_dimension_numbers<[1], [0], [0], [1], [0, 0, 1, 1], [], []>} : vector<8x32xf32>, vector<32x96xf32>, vector<8x96xf32> -> vector<8x96xf32>
    %cst_157 = arith.constant dense<0.000000e+00> : vector<8x96xf32>
    %628 = tpu.matmul %388, %13, %cst_157 {dimension_numbers = #tpu.dot_dimension_numbers<[1], [0], [0], [1], [0, 0, 1, 1], [], []>} : vector<8x32xf32>, vector<32x96xf32>, vector<8x96xf32> -> vector<8x96xf32>
    %629 = arith.addf %627, %628 : vector<8x96xf32>
    %630 = vector.broadcast %10 : vector<1x96xf32> to vector<8x96xf32>
    %631 = arith.addf %629, %630 : vector<8x96xf32>
    %cst_158 = arith.constant dense<0.000000e+00> : vector<8x96xf32>
    %632 = tpu.matmul %626, %9, %cst_158 {dimension_numbers = #tpu.dot_dimension_numbers<[1], [0], [0], [1], [0, 0, 1, 1], [], []>} : vector<8x32xf32>, vector<32x96xf32>, vector<8x96xf32> -> vector<8x96xf32>
    %633 = vector.broadcast %11 : vector<1x96xf32> to vector<8x96xf32>
    %634 = arith.addf %632, %633 : vector<8x96xf32>
    %635 = vector.extract_strided_slice %631 {offsets = [0, 0], sizes = [8, 32], strides = [1, 1]} : vector<8x96xf32> to vector<8x32xf32>
    %636 = vector.extract_strided_slice %634 {offsets = [0, 0], sizes = [8, 32], strides = [1, 1]} : vector<8x96xf32> to vector<8x32xf32>
    %637 = arith.addf %635, %636 : vector<8x32xf32>
    %638 = arith.negf %637 : vector<8x32xf32>
    %639 = math.exp %638 : vector<8x32xf32>
    %cst_159 = arith.constant 1.000000e+00 : f32
    %640 = vector.broadcast %cst_159 : f32 to vector<8x32xf32>
    %641 = arith.addf %640, %639 : vector<8x32xf32>
    %642 = arith.divf %640, %641 : vector<8x32xf32>
    %643 = vector.extract_strided_slice %631 {offsets = [0, 32], sizes = [8, 32], strides = [1, 1]} : vector<8x96xf32> to vector<8x32xf32>
    %644 = vector.extract_strided_slice %634 {offsets = [0, 32], sizes = [8, 32], strides = [1, 1]} : vector<8x96xf32> to vector<8x32xf32>
    %645 = arith.addf %643, %644 : vector<8x32xf32>
    %646 = arith.negf %645 : vector<8x32xf32>
    %647 = math.exp %646 : vector<8x32xf32>
    %cst_160 = arith.constant 1.000000e+00 : f32
    %648 = vector.broadcast %cst_160 : f32 to vector<8x32xf32>
    %649 = arith.addf %648, %647 : vector<8x32xf32>
    %650 = arith.divf %648, %649 : vector<8x32xf32>
    %651 = vector.extract_strided_slice %631 {offsets = [0, 64], sizes = [8, 32], strides = [1, 1]} : vector<8x96xf32> to vector<8x32xf32>
    %652 = vector.extract_strided_slice %634 {offsets = [0, 64], sizes = [8, 32], strides = [1, 1]} : vector<8x96xf32> to vector<8x32xf32>
    %653 = arith.mulf %642, %652 : vector<8x32xf32>
    %654 = arith.addf %651, %653 : vector<8x32xf32>
    %655 = math.tanh %654 : vector<8x32xf32>
    %cst_161 = arith.constant 1.000000e+00 : f32
    %656 = vector.broadcast %cst_161 : f32 to vector<8x32xf32>
    %657 = arith.subf %656, %650 : vector<8x32xf32>
    %658 = arith.mulf %657, %655 : vector<8x32xf32>
    %659 = arith.mulf %650, %626 : vector<8x32xf32>
    %660 = arith.addf %658, %659 : vector<8x32xf32>
    %cst_162 = arith.constant dense<0.000000e+00> : vector<8x96xf32>
    %661 = tpu.matmul %184, %12, %cst_162 {dimension_numbers = #tpu.dot_dimension_numbers<[1], [0], [0], [1], [0, 0, 1, 1], [], []>} : vector<8x32xf32>, vector<32x96xf32>, vector<8x96xf32> -> vector<8x96xf32>
    %cst_163 = arith.constant dense<0.000000e+00> : vector<8x96xf32>
    %662 = tpu.matmul %422, %13, %cst_163 {dimension_numbers = #tpu.dot_dimension_numbers<[1], [0], [0], [1], [0, 0, 1, 1], [], []>} : vector<8x32xf32>, vector<32x96xf32>, vector<8x96xf32> -> vector<8x96xf32>
    %663 = arith.addf %661, %662 : vector<8x96xf32>
    %664 = vector.broadcast %10 : vector<1x96xf32> to vector<8x96xf32>
    %665 = arith.addf %663, %664 : vector<8x96xf32>
    %cst_164 = arith.constant dense<0.000000e+00> : vector<8x96xf32>
    %666 = tpu.matmul %660, %9, %cst_164 {dimension_numbers = #tpu.dot_dimension_numbers<[1], [0], [0], [1], [0, 0, 1, 1], [], []>} : vector<8x32xf32>, vector<32x96xf32>, vector<8x96xf32> -> vector<8x96xf32>
    %667 = vector.broadcast %11 : vector<1x96xf32> to vector<8x96xf32>
    %668 = arith.addf %666, %667 : vector<8x96xf32>
    %669 = vector.extract_strided_slice %665 {offsets = [0, 0], sizes = [8, 32], strides = [1, 1]} : vector<8x96xf32> to vector<8x32xf32>
    %670 = vector.extract_strided_slice %668 {offsets = [0, 0], sizes = [8, 32], strides = [1, 1]} : vector<8x96xf32> to vector<8x32xf32>
    %671 = arith.addf %669, %670 : vector<8x32xf32>
    %672 = arith.negf %671 : vector<8x32xf32>
    %673 = math.exp %672 : vector<8x32xf32>
    %cst_165 = arith.constant 1.000000e+00 : f32
    %674 = vector.broadcast %cst_165 : f32 to vector<8x32xf32>
    %675 = arith.addf %674, %673 : vector<8x32xf32>
    %676 = arith.divf %674, %675 : vector<8x32xf32>
    %677 = vector.extract_strided_slice %665 {offsets = [0, 32], sizes = [8, 32], strides = [1, 1]} : vector<8x96xf32> to vector<8x32xf32>
    %678 = vector.extract_strided_slice %668 {offsets = [0, 32], sizes = [8, 32], strides = [1, 1]} : vector<8x96xf32> to vector<8x32xf32>
    %679 = arith.addf %677, %678 : vector<8x32xf32>
    %680 = arith.negf %679 : vector<8x32xf32>
    %681 = math.exp %680 : vector<8x32xf32>
    %cst_166 = arith.constant 1.000000e+00 : f32
    %682 = vector.broadcast %cst_166 : f32 to vector<8x32xf32>
    %683 = arith.addf %682, %681 : vector<8x32xf32>
    %684 = arith.divf %682, %683 : vector<8x32xf32>
    %685 = vector.extract_strided_slice %665 {offsets = [0, 64], sizes = [8, 32], strides = [1, 1]} : vector<8x96xf32> to vector<8x32xf32>
    %686 = vector.extract_strided_slice %668 {offsets = [0, 64], sizes = [8, 32], strides = [1, 1]} : vector<8x96xf32> to vector<8x32xf32>
    %687 = arith.mulf %676, %686 : vector<8x32xf32>
    %688 = arith.addf %685, %687 : vector<8x32xf32>
    %689 = math.tanh %688 : vector<8x32xf32>
    %cst_167 = arith.constant 1.000000e+00 : f32
    %690 = vector.broadcast %cst_167 : f32 to vector<8x32xf32>
    %691 = arith.subf %690, %684 : vector<8x32xf32>
    %692 = arith.mulf %691, %689 : vector<8x32xf32>
    %693 = arith.mulf %684, %660 : vector<8x32xf32>
    %694 = arith.addf %692, %693 : vector<8x32xf32>
    %cst_168 = arith.constant dense<0.000000e+00> : vector<8x96xf32>
    %695 = tpu.matmul %150, %12, %cst_168 {dimension_numbers = #tpu.dot_dimension_numbers<[1], [0], [0], [1], [0, 0, 1, 1], [], []>} : vector<8x32xf32>, vector<32x96xf32>, vector<8x96xf32> -> vector<8x96xf32>
    %cst_169 = arith.constant dense<0.000000e+00> : vector<8x96xf32>
    %696 = tpu.matmul %456, %13, %cst_169 {dimension_numbers = #tpu.dot_dimension_numbers<[1], [0], [0], [1], [0, 0, 1, 1], [], []>} : vector<8x32xf32>, vector<32x96xf32>, vector<8x96xf32> -> vector<8x96xf32>
    %697 = arith.addf %695, %696 : vector<8x96xf32>
    %698 = vector.broadcast %10 : vector<1x96xf32> to vector<8x96xf32>
    %699 = arith.addf %697, %698 : vector<8x96xf32>
    %cst_170 = arith.constant dense<0.000000e+00> : vector<8x96xf32>
    %700 = tpu.matmul %694, %9, %cst_170 {dimension_numbers = #tpu.dot_dimension_numbers<[1], [0], [0], [1], [0, 0, 1, 1], [], []>} : vector<8x32xf32>, vector<32x96xf32>, vector<8x96xf32> -> vector<8x96xf32>
    %701 = vector.broadcast %11 : vector<1x96xf32> to vector<8x96xf32>
    %702 = arith.addf %700, %701 : vector<8x96xf32>
    %703 = vector.extract_strided_slice %699 {offsets = [0, 0], sizes = [8, 32], strides = [1, 1]} : vector<8x96xf32> to vector<8x32xf32>
    %704 = vector.extract_strided_slice %702 {offsets = [0, 0], sizes = [8, 32], strides = [1, 1]} : vector<8x96xf32> to vector<8x32xf32>
    %705 = arith.addf %703, %704 : vector<8x32xf32>
    %706 = arith.negf %705 : vector<8x32xf32>
    %707 = math.exp %706 : vector<8x32xf32>
    %cst_171 = arith.constant 1.000000e+00 : f32
    %708 = vector.broadcast %cst_171 : f32 to vector<8x32xf32>
    %709 = arith.addf %708, %707 : vector<8x32xf32>
    %710 = arith.divf %708, %709 : vector<8x32xf32>
    %711 = vector.extract_strided_slice %699 {offsets = [0, 32], sizes = [8, 32], strides = [1, 1]} : vector<8x96xf32> to vector<8x32xf32>
    %712 = vector.extract_strided_slice %702 {offsets = [0, 32], sizes = [8, 32], strides = [1, 1]} : vector<8x96xf32> to vector<8x32xf32>
    %713 = arith.addf %711, %712 : vector<8x32xf32>
    %714 = arith.negf %713 : vector<8x32xf32>
    %715 = math.exp %714 : vector<8x32xf32>
    %cst_172 = arith.constant 1.000000e+00 : f32
    %716 = vector.broadcast %cst_172 : f32 to vector<8x32xf32>
    %717 = arith.addf %716, %715 : vector<8x32xf32>
    %718 = arith.divf %716, %717 : vector<8x32xf32>
    %719 = vector.extract_strided_slice %699 {offsets = [0, 64], sizes = [8, 32], strides = [1, 1]} : vector<8x96xf32> to vector<8x32xf32>
    %720 = vector.extract_strided_slice %702 {offsets = [0, 64], sizes = [8, 32], strides = [1, 1]} : vector<8x96xf32> to vector<8x32xf32>
    %721 = arith.mulf %710, %720 : vector<8x32xf32>
    %722 = arith.addf %719, %721 : vector<8x32xf32>
    %723 = math.tanh %722 : vector<8x32xf32>
    %cst_173 = arith.constant 1.000000e+00 : f32
    %724 = vector.broadcast %cst_173 : f32 to vector<8x32xf32>
    %725 = arith.subf %724, %718 : vector<8x32xf32>
    %726 = arith.mulf %725, %723 : vector<8x32xf32>
    %727 = arith.mulf %718, %694 : vector<8x32xf32>
    %728 = arith.addf %726, %727 : vector<8x32xf32>
    %cst_174 = arith.constant dense<0.000000e+00> : vector<8x96xf32>
    %729 = tpu.matmul %116, %12, %cst_174 {dimension_numbers = #tpu.dot_dimension_numbers<[1], [0], [0], [1], [0, 0, 1, 1], [], []>} : vector<8x32xf32>, vector<32x96xf32>, vector<8x96xf32> -> vector<8x96xf32>
    %cst_175 = arith.constant dense<0.000000e+00> : vector<8x96xf32>
    %730 = tpu.matmul %490, %13, %cst_175 {dimension_numbers = #tpu.dot_dimension_numbers<[1], [0], [0], [1], [0, 0, 1, 1], [], []>} : vector<8x32xf32>, vector<32x96xf32>, vector<8x96xf32> -> vector<8x96xf32>
    %731 = arith.addf %729, %730 : vector<8x96xf32>
    %732 = vector.broadcast %10 : vector<1x96xf32> to vector<8x96xf32>
    %733 = arith.addf %731, %732 : vector<8x96xf32>
    %cst_176 = arith.constant dense<0.000000e+00> : vector<8x96xf32>
    %734 = tpu.matmul %728, %9, %cst_176 {dimension_numbers = #tpu.dot_dimension_numbers<[1], [0], [0], [1], [0, 0, 1, 1], [], []>} : vector<8x32xf32>, vector<32x96xf32>, vector<8x96xf32> -> vector<8x96xf32>
    %735 = vector.broadcast %11 : vector<1x96xf32> to vector<8x96xf32>
    %736 = arith.addf %734, %735 : vector<8x96xf32>
    %737 = vector.extract_strided_slice %733 {offsets = [0, 0], sizes = [8, 32], strides = [1, 1]} : vector<8x96xf32> to vector<8x32xf32>
    %738 = vector.extract_strided_slice %736 {offsets = [0, 0], sizes = [8, 32], strides = [1, 1]} : vector<8x96xf32> to vector<8x32xf32>
    %739 = arith.addf %737, %738 : vector<8x32xf32>
    %740 = arith.negf %739 : vector<8x32xf32>
    %741 = math.exp %740 : vector<8x32xf32>
    %cst_177 = arith.constant 1.000000e+00 : f32
    %742 = vector.broadcast %cst_177 : f32 to vector<8x32xf32>
    %743 = arith.addf %742, %741 : vector<8x32xf32>
    %744 = arith.divf %742, %743 : vector<8x32xf32>
    %745 = vector.extract_strided_slice %733 {offsets = [0, 32], sizes = [8, 32], strides = [1, 1]} : vector<8x96xf32> to vector<8x32xf32>
    %746 = vector.extract_strided_slice %736 {offsets = [0, 32], sizes = [8, 32], strides = [1, 1]} : vector<8x96xf32> to vector<8x32xf32>
    %747 = arith.addf %745, %746 : vector<8x32xf32>
    %748 = arith.negf %747 : vector<8x32xf32>
    %749 = math.exp %748 : vector<8x32xf32>
    %cst_178 = arith.constant 1.000000e+00 : f32
    %750 = vector.broadcast %cst_178 : f32 to vector<8x32xf32>
    %751 = arith.addf %750, %749 : vector<8x32xf32>
    %752 = arith.divf %750, %751 : vector<8x32xf32>
    %753 = vector.extract_strided_slice %733 {offsets = [0, 64], sizes = [8, 32], strides = [1, 1]} : vector<8x96xf32> to vector<8x32xf32>
    %754 = vector.extract_strided_slice %736 {offsets = [0, 64], sizes = [8, 32], strides = [1, 1]} : vector<8x96xf32> to vector<8x32xf32>
    %755 = arith.mulf %744, %754 : vector<8x32xf32>
    %756 = arith.addf %753, %755 : vector<8x32xf32>
    %757 = math.tanh %756 : vector<8x32xf32>
    %cst_179 = arith.constant 1.000000e+00 : f32
    %758 = vector.broadcast %cst_179 : f32 to vector<8x32xf32>
    %759 = arith.subf %758, %752 : vector<8x32xf32>
    %760 = arith.mulf %759, %757 : vector<8x32xf32>
    %761 = arith.mulf %752, %728 : vector<8x32xf32>
    %762 = arith.addf %760, %761 : vector<8x32xf32>
    %cst_180 = arith.constant dense<0.000000e+00> : vector<8x96xf32>
    %763 = tpu.matmul %82, %12, %cst_180 {dimension_numbers = #tpu.dot_dimension_numbers<[1], [0], [0], [1], [0, 0, 1, 1], [], []>} : vector<8x32xf32>, vector<32x96xf32>, vector<8x96xf32> -> vector<8x96xf32>
    %cst_181 = arith.constant dense<0.000000e+00> : vector<8x96xf32>
    %764 = tpu.matmul %524, %13, %cst_181 {dimension_numbers = #tpu.dot_dimension_numbers<[1], [0], [0], [1], [0, 0, 1, 1], [], []>} : vector<8x32xf32>, vector<32x96xf32>, vector<8x96xf32> -> vector<8x96xf32>
    %765 = arith.addf %763, %764 : vector<8x96xf32>
    %766 = vector.broadcast %10 : vector<1x96xf32> to vector<8x96xf32>
    %767 = arith.addf %765, %766 : vector<8x96xf32>
    %cst_182 = arith.constant dense<0.000000e+00> : vector<8x96xf32>
    %768 = tpu.matmul %762, %9, %cst_182 {dimension_numbers = #tpu.dot_dimension_numbers<[1], [0], [0], [1], [0, 0, 1, 1], [], []>} : vector<8x32xf32>, vector<32x96xf32>, vector<8x96xf32> -> vector<8x96xf32>
    %769 = vector.broadcast %11 : vector<1x96xf32> to vector<8x96xf32>
    %770 = arith.addf %768, %769 : vector<8x96xf32>
    %771 = vector.extract_strided_slice %767 {offsets = [0, 0], sizes = [8, 32], strides = [1, 1]} : vector<8x96xf32> to vector<8x32xf32>
    %772 = vector.extract_strided_slice %770 {offsets = [0, 0], sizes = [8, 32], strides = [1, 1]} : vector<8x96xf32> to vector<8x32xf32>
    %773 = arith.addf %771, %772 : vector<8x32xf32>
    %774 = arith.negf %773 : vector<8x32xf32>
    %775 = math.exp %774 : vector<8x32xf32>
    %cst_183 = arith.constant 1.000000e+00 : f32
    %776 = vector.broadcast %cst_183 : f32 to vector<8x32xf32>
    %777 = arith.addf %776, %775 : vector<8x32xf32>
    %778 = arith.divf %776, %777 : vector<8x32xf32>
    %779 = vector.extract_strided_slice %767 {offsets = [0, 32], sizes = [8, 32], strides = [1, 1]} : vector<8x96xf32> to vector<8x32xf32>
    %780 = vector.extract_strided_slice %770 {offsets = [0, 32], sizes = [8, 32], strides = [1, 1]} : vector<8x96xf32> to vector<8x32xf32>
    %781 = arith.addf %779, %780 : vector<8x32xf32>
    %782 = arith.negf %781 : vector<8x32xf32>
    %783 = math.exp %782 : vector<8x32xf32>
    %cst_184 = arith.constant 1.000000e+00 : f32
    %784 = vector.broadcast %cst_184 : f32 to vector<8x32xf32>
    %785 = arith.addf %784, %783 : vector<8x32xf32>
    %786 = arith.divf %784, %785 : vector<8x32xf32>
    %787 = vector.extract_strided_slice %767 {offsets = [0, 64], sizes = [8, 32], strides = [1, 1]} : vector<8x96xf32> to vector<8x32xf32>
    %788 = vector.extract_strided_slice %770 {offsets = [0, 64], sizes = [8, 32], strides = [1, 1]} : vector<8x96xf32> to vector<8x32xf32>
    %789 = arith.mulf %778, %788 : vector<8x32xf32>
    %790 = arith.addf %787, %789 : vector<8x32xf32>
    %791 = math.tanh %790 : vector<8x32xf32>
    %cst_185 = arith.constant 1.000000e+00 : f32
    %792 = vector.broadcast %cst_185 : f32 to vector<8x32xf32>
    %793 = arith.subf %792, %786 : vector<8x32xf32>
    %794 = arith.mulf %793, %791 : vector<8x32xf32>
    %795 = arith.mulf %786, %762 : vector<8x32xf32>
    %796 = arith.addf %794, %795 : vector<8x32xf32>
    %cst_186 = arith.constant dense<0.000000e+00> : vector<8x96xf32>
    %797 = tpu.matmul %48, %12, %cst_186 {dimension_numbers = #tpu.dot_dimension_numbers<[1], [0], [0], [1], [0, 0, 1, 1], [], []>} : vector<8x32xf32>, vector<32x96xf32>, vector<8x96xf32> -> vector<8x96xf32>
    %cst_187 = arith.constant dense<0.000000e+00> : vector<8x96xf32>
    %798 = tpu.matmul %558, %13, %cst_187 {dimension_numbers = #tpu.dot_dimension_numbers<[1], [0], [0], [1], [0, 0, 1, 1], [], []>} : vector<8x32xf32>, vector<32x96xf32>, vector<8x96xf32> -> vector<8x96xf32>
    %799 = arith.addf %797, %798 : vector<8x96xf32>
    %800 = vector.broadcast %10 : vector<1x96xf32> to vector<8x96xf32>
    %801 = arith.addf %799, %800 : vector<8x96xf32>
    %cst_188 = arith.constant dense<0.000000e+00> : vector<8x96xf32>
    %802 = tpu.matmul %796, %9, %cst_188 {dimension_numbers = #tpu.dot_dimension_numbers<[1], [0], [0], [1], [0, 0, 1, 1], [], []>} : vector<8x32xf32>, vector<32x96xf32>, vector<8x96xf32> -> vector<8x96xf32>
    %803 = vector.broadcast %11 : vector<1x96xf32> to vector<8x96xf32>
    %804 = arith.addf %802, %803 : vector<8x96xf32>
    %805 = vector.extract_strided_slice %801 {offsets = [0, 0], sizes = [8, 32], strides = [1, 1]} : vector<8x96xf32> to vector<8x32xf32>
    %806 = vector.extract_strided_slice %804 {offsets = [0, 0], sizes = [8, 32], strides = [1, 1]} : vector<8x96xf32> to vector<8x32xf32>
    %807 = arith.addf %805, %806 : vector<8x32xf32>
    %808 = arith.negf %807 : vector<8x32xf32>
    %809 = math.exp %808 : vector<8x32xf32>
    %cst_189 = arith.constant 1.000000e+00 : f32
    %810 = vector.broadcast %cst_189 : f32 to vector<8x32xf32>
    %811 = arith.addf %810, %809 : vector<8x32xf32>
    %812 = arith.divf %810, %811 : vector<8x32xf32>
    %813 = vector.extract_strided_slice %801 {offsets = [0, 32], sizes = [8, 32], strides = [1, 1]} : vector<8x96xf32> to vector<8x32xf32>
    %814 = vector.extract_strided_slice %804 {offsets = [0, 32], sizes = [8, 32], strides = [1, 1]} : vector<8x96xf32> to vector<8x32xf32>
    %815 = arith.addf %813, %814 : vector<8x32xf32>
    %816 = arith.negf %815 : vector<8x32xf32>
    %817 = math.exp %816 : vector<8x32xf32>
    %cst_190 = arith.constant 1.000000e+00 : f32
    %818 = vector.broadcast %cst_190 : f32 to vector<8x32xf32>
    %819 = arith.addf %818, %817 : vector<8x32xf32>
    %820 = arith.divf %818, %819 : vector<8x32xf32>
    %821 = vector.extract_strided_slice %801 {offsets = [0, 64], sizes = [8, 32], strides = [1, 1]} : vector<8x96xf32> to vector<8x32xf32>
    %822 = vector.extract_strided_slice %804 {offsets = [0, 64], sizes = [8, 32], strides = [1, 1]} : vector<8x96xf32> to vector<8x32xf32>
    %823 = arith.mulf %812, %822 : vector<8x32xf32>
    %824 = arith.addf %821, %823 : vector<8x32xf32>
    %825 = math.tanh %824 : vector<8x32xf32>
    %cst_191 = arith.constant 1.000000e+00 : f32
    %826 = vector.broadcast %cst_191 : f32 to vector<8x32xf32>
    %827 = arith.subf %826, %820 : vector<8x32xf32>
    %828 = arith.mulf %827, %825 : vector<8x32xf32>
    %829 = arith.mulf %820, %796 : vector<8x32xf32>
    %830 = arith.addf %828, %829 : vector<8x32xf32>
    %831 = arith.addf %558, %830 : vector<8x32xf32>
    %c0_192 = arith.constant 0 : index
    %c0_193 = arith.constant 0 : index
    %832 = vector.load %arg13[%c0_192, %c0_193] : memref<8x32xf32, #tpu.memory_space<vmem>>, vector<8x32xf32>
    tpu.vector_store %arg13[%c0_192, %c0_193], %831 {strides = array<i32>} : memref<8x32xf32, #tpu.memory_space<vmem>>, vector<8x32xf32>,
    return
  }
}

</mosaic_0001>

<llo_original>
// kernel: _lambda_.3
$region0: #{_lambda_.3}
  #allocation0 [shape = 'u32[]', space=smem, size = 0x4, offset = 0x4, fixed_abs, tag = 'smem constant byte address 0x4 - core index']
  #allocation1 [shape = 'u32[144,128]{1,0:T(1,128)}', space=vmem, size = 0x12000, scoped, tag = 'internal scratch']
  #allocation2 [shape = 'f32[8,32]{1,0:T(8,128)}', space=vmem, size = 0x1000, scoped, tag = 'scratch operand']
  #allocation3 [shape = 'f32[8,32]{1,0:T(8,128)}', space=vmem, size = 0x1000, scoped, tag = 'scratch operand']
  #allocation4 [shape = 'f32[8,24]{1,0:T(8,128)}', space=vmem, size = 0x1000, scoped, tag = 'scratch operand']
  #allocation5 [shape = 's32[1]{0}', space=sflag, size = 0x4, scoped, tag = 'scoped memory for _lambda_.3']
  #allocation6 [shape = 'u8[512]{0}', space=smem, size = 0x200, scoped, tag = 'prefetched SMEM operand 0']
  %s0 = inlined_call_operand.vmem [shape: s32[32], index: 0, kind: input, shape index: {}]
  %s1 = inlined_call_operand.vmem [shape: f32[32,8,16], index: 1, kind: input, shape index: {}]
  %s2 = inlined_call_operand.vmem [shape: f32[8,32], index: 2, kind: input, shape index: {}]
  %s3 = inlined_call_operand.vmem [shape: f32[24,16], index: 3, kind: input, shape index: {}]
  %s4 = inlined_call_operand.vmem [shape: f32[16,96], index: 4, kind: input, shape index: {}]
  %s5 = inlined_call_operand.vmem [shape: f32[32,96], index: 5, kind: input, shape index: {}]
  %s6 = inlined_call_operand.vmem [shape: f32[1,96], index: 6, kind: input, shape index: {}]
  %s7 = inlined_call_operand.vmem [shape: f32[1,96], index: 7, kind: input, shape index: {}]
  %s8 = inlined_call_operand.vmem [shape: f32[32,96], index: 8, kind: input, shape index: {}]
  %s9 = inlined_call_operand.vmem [shape: f32[32,96], index: 9, kind: input, shape index: {}]
  %s10 = inlined_call_operand.vmem [shape: f32[1,96], index: 10, kind: input, shape index: {}]
  %s11 = inlined_call_operand.vmem [shape: f32[1,96], index: 11, kind: input, shape index: {}]
  %s12 = inlined_call_operand.vmem [shape: f32[32,24], index: 12, kind: input, shape index: {}]
  %s13 = inlined_call_operand.vmem [shape: f32[1,24], index: 13, kind: input, shape index: {}]
  %s14 = inlined_call_operand.vmem [shape: f32[32,8,24], index: 14, kind: output, shape index: {}]
  %s15 = sld [smem:[#allocation0]]
  $region89: #{_lambda_.3} parent=0
    _
  %s17 = ssub.s32 1, %s15
  %s18 = scalar_select 0, %s17, %s15
  %s19 = sshll.u32 %s0, 4
  %s20 = int_to_ptr.vmem [resolvable:$true] %s19
  %22 = dma.vmem_to_smem %s20, 16, [#allocation6], [#allocation5]
  %23 = dma.done [#allocation5], 16
  %24 = sfence
  loop: start=0, step=1, limit=34
  $region2: #{_lambda_.3} parent=0 // loop_pre_header
    _
  $region3: #{_lambda_.3} parent=0 // loop_header
    %s26 = sphi 0, %s30
    %p27 = scmp.ge.s32.totalorder %s26, 34
    %s36 = sphi 0, %s38
    %s39 = sphi 0, %s36
    %s40 = sphi 0, %s39
    %s56 = sphi 0, %s40
    %s60 = sphi 0, %s60
    %s62 = sphi 0, %s60
    %s63 = sphi 0, %s62
    %s77 = sphi 0, %s63
    %s81 = sphi 0, %s81
    %s83 = sphi 0, %s81
    %s84 = sphi 0, %s83
    %s98 = sphi 0, %s84
    %s102 = sphi 0, %s102
    %s104 = sphi 0, %s102
    %s105 = sphi 0, %s104
    %s119 = sphi 0, %s105
    %s123 = sphi 0, %s123
    %s125 = sphi 0, %s123
    %s126 = sphi 0, %s125
    %s140 = sphi 0, %s126
    %s144 = sphi 0, %s144
    %s146 = sphi 0, %s144
    %s147 = sphi 0, %s146
    %s161 = sphi 0, %s147
    %s165 = sphi 0, %s165
    %s167 = sphi 0, %s165
    %s168 = sphi 0, %s167
    %s182 = sphi 0, %s168
    %s186 = sphi 0, %s186
    %s188 = sphi 0, %s186
    %s189 = sphi 0, %s188
    %s203 = sphi 0, %s189
    %s207 = sphi 0, %s207
    %s209 = sphi 0, %s207
    %s210 = sphi 0, %s209
    %s224 = sphi 0, %s210
    %s228 = sphi 0, %s228
    %s230 = sphi 0, %s228
    %s231 = sphi 0, %s230
    %s245 = sphi 0, %s231
    %s249 = sphi 0, %s249
    %s251 = sphi 0, %s249
    %s252 = sphi 0, %s251
    %s266 = sphi 0, %s252
    %s270 = sphi 0, %s270
    %s272 = sphi 0, %s270
    %s273 = sphi 0, %s272
    %s287 = sphi 0, %s273
    %s291 = sphi 0, %s291
    %s293 = sphi 0, %s291
    %s294 = sphi 0, %s293
    %s308 = sphi 0, %s294
    %s314 = sphi 0, %s316
    %s317 = sphi 0, %s314
    %s318 = sphi 0, %s317
    %s334 = sphi 0, %s318
  $region4: #{_lambda_.3} parent=0 // loop_header_branch
    %29 = sbr.rel (%p27) target = $region8
  $region5: #{_lambda_.3} parent=0 // loop_body
    %s31 = ssub.s32 %s26, 1
    %s32 = ssub.s32 %s26, 2
    %s33 = sadd.s32 %s26, 1
    %s34 = ssub.s32 %s26, %s33
    %p35 = scmp.eq.s32.totalorder %s34, 0
    %s37 = sadd.s32 %s36, 1
    %s38 = scalar_select %p35, %s36, %s37
    %p41 = pneg %p35
    %p42 = scmp.eq.s32.totalorder %s26, 31
    %p43 = por %p41, %p42
    %p44 = scmp.ne.s32.totalorder %s36, %s39
    %p45 = scmp.eq.s32.totalorder %s26, 0
    %p46 = por %p44, %p45
    %p47 = scmp.ne.s32.totalorder %s36, %s39
    %p48 = scmp.eq.s32.totalorder %s31, 31
    %p49 = por %p47, %p48
    %p50 = scmp.ne.s32.totalorder %s39, %s40
    %p51 = scmp.eq.s32.totalorder %s31, 0
    %p52 = por %p50, %p51
    %p53 = scmp.ne.s32.totalorder %s39, %s40
    %p54 = scmp.eq.s32.totalorder %s32, 31
    %p55 = por %p53, %p54
    %p57 = scmp.ne.s32.totalorder %s40, %s56
    %p58 = scmp.eq.s32.totalorder %s32, 0
    %p59 = por %p57, %p58
    %s61 = sadd.s32 %s60, 1
    %p64 = scmp.eq.s32.totalorder %s26, 31
    %p65 = scmp.ne.s32.totalorder %s60, %s62
    %p66 = scmp.eq.s32.totalorder %s26, 0
    %p67 = por %p65, %p66
    %p68 = scmp.ne.s32.totalorder %s60, %s62
    %p69 = scmp.eq.s32.totalorder %s31, 31
    %p70 = por %p68, %p69
    %p71 = scmp.ne.s32.totalorder %s62, %s63
    %p72 = scmp.eq.s32.totalorder %s31, 0
    %p73 = por %p71, %p72
    %p74 = scmp.ne.s32.totalorder %s62, %s63
    %p75 = scmp.eq.s32.totalorder %s32, 31
    %p76 = por %p74, %p75
    %p78 = scmp.ne.s32.totalorder %s63, %s77
    %p79 = scmp.eq.s32.totalorder %s32, 0
    %p80 = por %p78, %p79
    %s82 = sadd.s32 %s81, 1
    %p85 = scmp.eq.s32.totalorder %s26, 31
    %p86 = scmp.ne.s32.totalorder %s81, %s83
    %p87 = scmp.eq.s32.totalorder %s26, 0
    %p88 = por %p86, %p87
    %p89 = scmp.ne.s32.totalorder %s81, %s83
    %p90 = scmp.eq.s32.totalorder %s31, 31
    %p91 = por %p89, %p90
    %p92 = scmp.ne.s32.totalorder %s83, %s84
    %p93 = scmp.eq.s32.totalorder %s31, 0
    %p94 = por %p92, %p93
    %p95 = scmp.ne.s32.totalorder %s83, %s84
    %p96 = scmp.eq.s32.totalorder %s32, 31
    %p97 = por %p95, %p96
    %p99 = scmp.ne.s32.totalorder %s84, %s98
    %p100 = scmp.eq.s32.totalorder %s32, 0
    %p101 = por %p99, %p100
    %s103 = sadd.s32 %s102, 1
    %p106 = scmp.eq.s32.totalorder %s26, 31
    %p107 = scmp.ne.s32.totalorder %s102, %s104
    %p108 = scmp.eq.s32.totalorder %s26, 0
    %p109 = por %p107, %p108
    %p110 = scmp.ne.s32.totalorder %s102, %s104
    %p111 = scmp.eq.s32.totalorder %s31, 31
    %p112 = por %p110, %p111
    %p113 = scmp.ne.s32.totalorder %s104, %s105
    %p114 = scmp.eq.s32.totalorder %s31, 0
    %p115 = por %p113, %p114
    %p116 = scmp.ne.s32.totalorder %s104, %s105
    %p117 = scmp.eq.s32.totalorder %s32, 31
    %p118 = por %p116, %p117
    %p120 = scmp.ne.s32.totalorder %s105, %s119
    %p121 = scmp.eq.s32.totalorder %s32, 0
    %p122 = por %p120, %p121
    %s124 = sadd.s32 %s123, 1
    %p127 = scmp.eq.s32.totalorder %s26, 31
    %p128 = scmp.ne.s32.totalorder %s123, %s125
    %p129 = scmp.eq.s32.totalorder %s26, 0
    %p130 = por %p128, %p129
    %p131 = scmp.ne.s32.totalorder %s123, %s125
    %p132 = scmp.eq.s32.totalorder %s31, 31
    %p133 = por %p131, %p132
    %p134 = scmp.ne.s32.totalorder %s125, %s126
    %p135 = scmp.eq.s32.totalorder %s31, 0
    %p136 = por %p134, %p135
    %p137 = scmp.ne.s32.totalorder %s125, %s126
    %p138 = scmp.eq.s32.totalorder %s32, 31
    %p139 = por %p137, %p138
    %p141 = scmp.ne.s32.totalorder %s126, %s140
    %p142 = scmp.eq.s32.totalorder %s32, 0
    %p143 = por %p141, %p142
    %s145 = sadd.s32 %s144, 1
    %p148 = scmp.eq.s32.totalorder %s26, 31
    %p149 = scmp.ne.s32.totalorder %s144, %s146
    %p150 = scmp.eq.s32.totalorder %s26, 0
    %p151 = por %p149, %p150
    %p152 = scmp.ne.s32.totalorder %s144, %s146
    %p153 = scmp.eq.s32.totalorder %s31, 31
    %p154 = por %p152, %p153
    %p155 = scmp.ne.s32.totalorder %s146, %s147
    %p156 = scmp.eq.s32.totalorder %s31, 0
    %p157 = por %p155, %p156
    %p158 = scmp.ne.s32.totalorder %s146, %s147
    %p159 = scmp.eq.s32.totalorder %s32, 31
    %p160 = por %p158, %p159
    %p162 = scmp.ne.s32.totalorder %s147, %s161
    %p163 = scmp.eq.s32.totalorder %s32, 0
    %p164 = por %p162, %p163
    %s166 = sadd.s32 %s165, 1
    %p169 = scmp.eq.s32.totalorder %s26, 31
    %p170 = scmp.ne.s32.totalorder %s165, %s167
    %p171 = scmp.eq.s32.totalorder %s26, 0
    %p172 = por %p170, %p171
    %p173 = scmp.ne.s32.totalorder %s165, %s167
    %p174 = scmp.eq.s32.totalorder %s31, 31
    %p175 = por %p173, %p174
    %p176 = scmp.ne.s32.totalorder %s167, %s168
    %p177 = scmp.eq.s32.totalorder %s31, 0
    %p178 = por %p176, %p177
    %p179 = scmp.ne.s32.totalorder %s167, %s168
    %p180 = scmp.eq.s32.totalorder %s32, 31
    %p181 = por %p179, %p180
    %p183 = scmp.ne.s32.totalorder %s168, %s182
    %p184 = scmp.eq.s32.totalorder %s32, 0
    %p185 = por %p183, %p184
    %s187 = sadd.s32 %s186, 1
    %p190 = scmp.eq.s32.totalorder %s26, 31
    %p191 = scmp.ne.s32.totalorder %s186, %s188
    %p192 = scmp.eq.s32.totalorder %s26, 0
    %p193 = por %p191, %p192
    %p194 = scmp.ne.s32.totalorder %s186, %s188
    %p195 = scmp.eq.s32.totalorder %s31, 31
    %p196 = por %p194, %p195
    %p197 = scmp.ne.s32.totalorder %s188, %s189
    %p198 = scmp.eq.s32.totalorder %s31, 0
    %p199 = por %p197, %p198
    %p200 = scmp.ne.s32.totalorder %s188, %s189
    %p201 = scmp.eq.s32.totalorder %s32, 31
    %p202 = por %p200, %p201
    %p204 = scmp.ne.s32.totalorder %s189, %s203
    %p205 = scmp.eq.s32.totalorder %s32, 0
    %p206 = por %p204, %p205
    %s208 = sadd.s32 %s207, 1
    %p211 = scmp.eq.s32.totalorder %s26, 31
    %p212 = scmp.ne.s32.totalorder %s207, %s209
    %p213 = scmp.eq.s32.totalorder %s26, 0
    %p214 = por %p212, %p213
    %p215 = scmp.ne.s32.totalorder %s207, %s209
    %p216 = scmp.eq.s32.totalorder %s31, 31
    %p217 = por %p215, %p216
    %p218 = scmp.ne.s32.totalorder %s209, %s210
    %p219 = scmp.eq.s32.totalorder %s31, 0
    %p220 = por %p218, %p219
    %p221 = scmp.ne.s32.totalorder %s209, %s210
    %p222 = scmp.eq.s32.totalorder %s32, 31
    %p223 = por %p221, %p222
    %p225 = scmp.ne.s32.totalorder %s210, %s224
    %p226 = scmp.eq.s32.totalorder %s32, 0
    %p227 = por %p225, %p226
    %s229 = sadd.s32 %s228, 1
    %p232 = scmp.eq.s32.totalorder %s26, 31
    %p233 = scmp.ne.s32.totalorder %s228, %s230
    %p234 = scmp.eq.s32.totalorder %s26, 0
    %p235 = por %p233, %p234
    %p236 = scmp.ne.s32.totalorder %s228, %s230
    %p237 = scmp.eq.s32.totalorder %s31, 31
    %p238 = por %p236, %p237
    %p239 = scmp.ne.s32.totalorder %s230, %s231
    %p240 = scmp.eq.s32.totalorder %s31, 0
    %p241 = por %p239, %p240
    %p242 = scmp.ne.s32.totalorder %s230, %s231
    %p243 = scmp.eq.s32.totalorder %s32, 31
    %p244 = por %p242, %p243
    %p246 = scmp.ne.s32.totalorder %s231, %s245
    %p247 = scmp.eq.s32.totalorder %s32, 0
    %p248 = por %p246, %p247
    %s250 = sadd.s32 %s249, 1
    %p253 = scmp.eq.s32.totalorder %s26, 31
    %p254 = scmp.ne.s32.totalorder %s249, %s251
    %p255 = scmp.eq.s32.totalorder %s26, 0
    %p256 = por %p254, %p255
    %p257 = scmp.ne.s32.totalorder %s249, %s251
    %p258 = scmp.eq.s32.totalorder %s31, 31
    %p259 = por %p257, %p258
    %p260 = scmp.ne.s32.totalorder %s251, %s252
    %p261 = scmp.eq.s32.totalorder %s31, 0
    %p262 = por %p260, %p261
    %p263 = scmp.ne.s32.totalorder %s251, %s252
    %p264 = scmp.eq.s32.totalorder %s32, 31
    %p265 = por %p263, %p264
    %p267 = scmp.ne.s32.totalorder %s252, %s266
    %p268 = scmp.eq.s32.totalorder %s32, 0
    %p269 = por %p267, %p268
    %s271 = sadd.s32 %s270, 1
    %p274 = scmp.eq.s32.totalorder %s26, 31
    %p275 = scmp.ne.s32.totalorder %s270, %s272
    %p276 = scmp.eq.s32.totalorder %s26, 0
    %p277 = por %p275, %p276
    %p278 = scmp.ne.s32.totalorder %s270, %s272
    %p279 = scmp.eq.s32.totalorder %s31, 31
    %p280 = por %p278, %p279
    %p281 = scmp.ne.s32.totalorder %s272, %s273
    %p282 = scmp.eq.s32.totalorder %s31, 0
    %p283 = por %p281, %p282
    %p284 = scmp.ne.s32.totalorder %s272, %s273
    %p285 = scmp.eq.s32.totalorder %s32, 31
    %p286 = por %p284, %p285
    %p288 = scmp.ne.s32.totalorder %s273, %s287
    %p289 = scmp.eq.s32.totalorder %s32, 0
    %p290 = por %p288, %p289
    %s292 = sadd.s32 %s291, 1
    %p295 = scmp.eq.s32.totalorder %s26, 31
    %p296 = scmp.ne.s32.totalorder %s291, %s293
    %p297 = scmp.eq.s32.totalorder %s26, 0
    %p298 = por %p296, %p297
    %p299 = scmp.ne.s32.totalorder %s291, %s293
    %p300 = scmp.eq.s32.totalorder %s31, 31
    %p301 = por %p299, %p300
    %p302 = scmp.ne.s32.totalorder %s293, %s294
    %p303 = scmp.eq.s32.totalorder %s31, 0
    %p304 = por %p302, %p303
    %p305 = scmp.ne.s32.totalorder %s293, %s294
    %p306 = scmp.eq.s32.totalorder %s32, 31
    %p307 = por %p305, %p306
    %p309 = scmp.ne.s32.totalorder %s294, %s308
    %p310 = scmp.eq.s32.totalorder %s32, 0
    %p311 = por %p309, %p310
    %s312 = ssub.s32 %s26, %s33
    %p313 = scmp.eq.s32.totalorder %s312, 0
    %s315 = sadd.s32 %s314, 1
    %s316 = scalar_select %p313, %s314, %s315
    %p319 = pneg %p313
    %p320 = scmp.eq.s32.totalorder %s26, 31
    %p321 = por %p319, %p320
    %p322 = scmp.ne.s32.totalorder %s314, %s317
    %p323 = scmp.eq.s32.totalorder %s26, 0
    %p324 = por %p322, %p323
    %p325 = scmp.ne.s32.totalorder %s314, %s317
    %p326 = scmp.eq.s32.totalorder %s31, 31
    %p327 = por %p325, %p326
    %p328 = scmp.ne.s32.totalorder %s317, %s318
    %p329 = scmp.eq.s32.totalorder %s31, 0
    %p330 = por %p328, %p329
    %p331 = scmp.ne.s32.totalorder %s317, %s318
    %p332 = scmp.eq.s32.totalorder %s32, 31
    %p333 = por %p331, %p332
    %p335 = scmp.ne.s32.totalorder %s318, %s334
    %p336 = scmp.eq.s32.totalorder %s32, 0
    %p337 = por %p335, %p336
    %p338 = scmp.le.s32.totalorder 1, %s26
    %p339 = scmp.lt.s32.totalorder %s26, 33
    %p340 = pnand %p338, %p339
    %p341 = pneg %p340
    // Predicated region
    $region9: #{_lambda_.3} parent=5 // pred_check
      _
    $region10: #{_lambda_.3} parent=5 // pred_check_branch
      %343 = sbr.rel (%p340) target = $region12
    $region11: #{_lambda_.3} parent=5 // pred_region
      %s344 = ssub.s32 %s26, 1
      // Predicated region
      $region13: #{_lambda_.3} parent=11 // pred_check
        %p345 = pneg %p73
      $region14: #{_lambda_.3} parent=11 // pred_check_branch
        %347 = sbr.rel (%p345) target = $region16
      $region15: #{_lambda_.3} parent=11 // pred_region
        _
      $region16: #{_lambda_.3} parent=11 // pred_fallthru
        _
      // Predicated region
      $region17: #{_lambda_.3} parent=11 // pred_check
        %p348 = pneg %p94
      $region18: #{_lambda_.3} parent=11 // pred_check_branch
        %350 = sbr.rel (%p348) target = $region20
      $region19: #{_lambda_.3} parent=11 // pred_region
        _
      $region20: #{_lambda_.3} parent=11 // pred_fallthru
        _
      // Predicated region
      $region21: #{_lambda_.3} parent=11 // pred_check
        %p351 = pneg %p115
      $region22: #{_lambda_.3} parent=11 // pred_check_branch
        %353 = sbr.rel (%p351) target = $region24
      $region23: #{_lambda_.3} parent=11 // pred_region
        _
      $region24: #{_lambda_.3} parent=11 // pred_fallthru
        _
      // Predicated region
      $region25: #{_lambda_.3} parent=11 // pred_check
        %p354 = pneg %p136
      $region26: #{_lambda_.3} parent=11 // pred_check_branch
        %356 = sbr.rel (%p354) target = $region28
      $region27: #{_lambda_.3} parent=11 // pred_region
        _
      $region28: #{_lambda_.3} parent=11 // pred_fallthru
        _
      // Predicated region
      $region29: #{_lambda_.3} parent=11 // pred_check
        %p357 = pneg %p157
      $region30: #{_lambda_.3} parent=11 // pred_check_branch
        %359 = sbr.rel (%p357) target = $region32
      $region31: #{_lambda_.3} parent=11 // pred_region
        _
      $region32: #{_lambda_.3} parent=11 // pred_fallthru
        _
      // Predicated region
      $region33: #{_lambda_.3} parent=11 // pred_check
        %p360 = pneg %p178
      $region34: #{_lambda_.3} parent=11 // pred_check_branch
        %362 = sbr.rel (%p360) target = $region36
      $region35: #{_lambda_.3} parent=11 // pred_region
        _
      $region36: #{_lambda_.3} parent=11 // pred_fallthru
        _
      // Predicated region
      $region37: #{_lambda_.3} parent=11 // pred_check
        %p363 = pneg %p199
      $region38: #{_lambda_.3} parent=11 // pred_check_branch
        %365 = sbr.rel (%p363) target = $region40
      $region39: #{_lambda_.3} parent=11 // pred_region
        _
      $region40: #{_lambda_.3} parent=11 // pred_fallthru
        _
      // Predicated region
      $region41: #{_lambda_.3} parent=11 // pred_check
        %p366 = pneg %p220
      $region42: #{_lambda_.3} parent=11 // pred_check_branch
        %368 = sbr.rel (%p366) target = $region44
      $region43: #{_lambda_.3} parent=11 // pred_region
        _
      $region44: #{_lambda_.3} parent=11 // pred_fallthru
        _
      // Predicated region
      $region45: #{_lambda_.3} parent=11 // pred_check
        %p369 = pneg %p241
      $region46: #{_lambda_.3} parent=11 // pred_check_branch
        %371 = sbr.rel (%p369) target = $region48
      $region47: #{_lambda_.3} parent=11 // pred_region
        _
      $region48: #{_lambda_.3} parent=11 // pred_fallthru
        _
      // Predicated region
      $region49: #{_lambda_.3} parent=11 // pred_check
        %p372 = pneg %p262
      $region50: #{_lambda_.3} parent=11 // pred_check_branch
        %374 = sbr.rel (%p372) target = $region52
      $region51: #{_lambda_.3} parent=11 // pred_region
        _
      $region52: #{_lambda_.3} parent=11 // pred_fallthru
        _
      // Predicated region
      $region53: #{_lambda_.3} parent=11 // pred_check
        %p375 = pneg %p283
      $region54: #{_lambda_.3} parent=11 // pred_check_branch
        %377 = sbr.rel (%p375) target = $region56
      $region55: #{_lambda_.3} parent=11 // pred_region
        _
      $region56: #{_lambda_.3} parent=11 // pred_fallthru
        _
      // Predicated region
      $region57: #{_lambda_.3} parent=11 // pred_check
        %p378 = pneg %p304
      $region58: #{_lambda_.3} parent=11 // pred_check_branch
        %380 = sbr.rel (%p378) target = $region60
      $region59: #{_lambda_.3} parent=11 // pred_region
        _
      $region60: #{_lambda_.3} parent=11 // pred_fallthru
        _
    $region12: #{_lambda_.3} parent=5 // pred_fallthru
      _
    %p381 = scmp.lt.s32.totalorder %s26, 32
    // Predicated region
    $region61: #{_lambda_.3} parent=5 // pred_check
      %p382 = pneg %p381
    $region62: #{_lambda_.3} parent=5 // pred_check_branch
      %384 = sbr.rel (%p382) target = $region64
    $region63: #{_lambda_.3} parent=5 // pred_region
      // Predicated region
      $region65: #{_lambda_.3} parent=63 // pred_check
        %p385 = pneg %p46
      $region66: #{_lambda_.3} parent=63 // pred_check_branch
        %387 = sbr.rel (%p385) target = $region68
      $region67: #{_lambda_.3} parent=63 // pred_region
        %p388 = scmp.lt.s32.totalorder %s26, 31
        %s389 = scalar_select %p388, %s26, 31
        %s390 = smul.addr %s389, 8
        %s391 = scalar_lea.vmem %s1, %s390
      $region68: #{_lambda_.3} parent=63 // pred_fallthru
        _
    $region64: #{_lambda_.3} parent=5 // pred_fallthru
      _
    %p392 = scmp.le.s32.totalorder 1, %s26
    %p393 = scmp.lt.s32.totalorder %s26, 33
    %p394 = pnand %p392, %p393
    %p395 = pneg %p394
    // Predicated region
    $region69: #{_lambda_.3} parent=5 // pred_check
      _
    $region70: #{_lambda_.3} parent=5 // pred_check_branch
      %397 = sbr.rel (%p394) target = $region72
    $region71: #{_lambda_.3} parent=5 // pred_region
      %s398 = ssub.s32 %s26, 1
      %p399 = scmp.lt.s32.totalorder %s31, 31
      %s400 = scalar_select %p399, %s31, 31
      %s401 = smul.addr %s400, 8
      %s402 = scalar_lea.vmem %s1, %s401
      %p403 = pneg %p52
      %p404 = pneg %p49
      %p405 = pneg %p73
      %p406 = pneg %p70
      %p407 = pneg %p94
      %p408 = pneg %p91
      %p409 = pneg %p115
      %p410 = pneg %p112
      %p411 = pneg %p136
      %p412 = pneg %p133
      %p413 = pneg %p157
      %p414 = pneg %p154
      %p415 = pneg %p178
      %p416 = pneg %p175
      %p417 = pneg %p199
      %p418 = pneg %p196
      %p419 = pneg %p220
      %p420 = pneg %p217
      %p421 = pneg %p241
      %p422 = pneg %p238
      %p423 = pneg %p262
      %p424 = pneg %p259
      %p425 = pneg %p283
      %p426 = pneg %p280
      %p427 = pneg %p304
      %p428 = pneg %p301
      %p429 = pneg %p330
      %p430 = pneg %p327
      %p431 = scmp.lt.s32.totalorder %s31, 31
      %s432 = scalar_select %p431, %s31, 31
      %s433 = smul.addr %s432, 8
      %s434 = scalar_lea.vmem %s14, %s433
      %p435 = scmp.lt.s32.totalorder %s31, 31
      %s436 = scalar_select %p435, %s31, 31
      %s437 = smul.addr %s436, 8
      %s438 = scalar_lea.vmem %s1, %s437
      %p439 = scmp.lt.s32.totalorder %s31, 31
      %s440 = scalar_select %p439, %s31, 31
      %s441 = smul.addr %s440, 8
      %s442 = scalar_lea.vmem %s14, %s441
      %p443 = scmp.eq.s32.totalorder %s31, 0
      // Predicated region
      $region73: #{_lambda_.3} parent=71 // pred_check
        %p444 = pneg %p443
      $region74: #{_lambda_.3} parent=71 // pred_check_branch
        %446 = sbr.rel (%p444) target = $region76
      $region75: #{_lambda_.3} parent=71 // pred_region
        %v447 = vld [vmem:[%s2] sm:$0xff]
        %vm448 = vcmask 261120
        %449 = vst.msk [vmem:[#allocation2] sm:$0xff] %vm448, %v447
        %v450 = vld [vmem:[%s2] sm:$0xff]
        %451 = vst.msk [vmem:[#allocation3] sm:$0xff] %vm448, %v450
        %vm452 = vcmask 195584
        %453 = vst.msk [vmem:[#allocation4] sm:$0xff] %vm452, 0.0
      $region76: #{_lambda_.3} parent=71 // pred_fallthru
        _
      %v454 = vld [vmem:[%s438] sm:$0xff]
      %v455 = vld [vmem:[#allocation4] sm:$0xff]
      %v456 = vlaneseq
      %v457 = vand.u32 %v456, 127
      %vm458 = vcmask 195584
      %v459 = vsel %vm458, %v455, -inf
      %460 = vmax.xlane.f32.xlu0 %v459
      %v461 = vpop.xlane.xlu0 %460
      %vm462 = vcmp.eq.f32.partialorder %v455, %v461
      %v463 = vsel %vm462, %v457, 24
      %v464 = vsel %vm458, %v463, 2147483647
      %v465 = vand.u32 %v464, 65535
      %v466 = vshra.s32 %v464, 16
      %v467 = vcvt.s32.f32 %v465
      %v468 = vcvt.s32.f32 %v466
      %469 = vmin.xlane.f32.xlu0 %v468
      %v470 = vpop.xlane.xlu0 %469
      %vm471 = vcmp.eq.f32.partialorder %v468, %v470
      %v472 = vsel %vm471, %v467, inf
      %473 = vmin.xlane.f32.xlu0 %v472
      %v474 = vpop.xlane.xlu0 %473
      %v475 = vcvt.f32.s32 %v474
      %v476 = vcvt.f32.s32 %v470
      %v477 = vshll.u32 %v476, 16
      %v478 = vadd.s32 %v477, %v475
      %vm479 = vcmp.eq.s32.totalorder %v457, %v478
      %v480 = vsel %vm479, 1, 0
      %v481 = vcvt.s32.f32 %v480
      %v482 = vld [vmem:[%s3] sm:$0xff]
      %v483 = vld [vmem:[%s3 + $0x8] sm:$0xff]
      %v484 = vld [vmem:[%s3 + $0x10] sm:$0xff]
      %v486 = vsel %vm458, %v481, 0
      %488 = vmatprep.subr.mxu0 0.0
      %489 = vmatpush1.msra.mxu0 0.0
      %490 = vmatprep.subr.mxu0 0.0
      %491 = vmatpush1.msra.mxu0 0.0
      %492 = vmatprep.subr.mxu0 0.0
      %493 = vmatpush1.msra.mxu0 0.0
      %494 = vmatprep.subr.mxu0 0.0
      %495 = vmatpush1.msra.mxu0 0.0
      %496 = vmatprep.subr.mxu0 0.0
      %497 = vmatpush1.msra.mxu0 0.0
      %498 = vmatprep.subr.mxu0 0.0
      %499 = vmatpush1.msra.mxu0 0.0
      %500 = vmatprep.subr.mxu0 0.0
      %501 = vmatpush1.msra.mxu0 0.0
      %502 = vmatprep.subr.mxu0 0.0
      %503 = vmatpush1.msra.mxu0 0.0
      %504 = vmatprep.subr.mxu0 0.0
      %505 = vmatpush1.msra.mxu0 0.0
      %506 = vmatprep.subr.mxu0 0.0
      %507 = vmatpush1.msra.mxu0 0.0
      %508 = vmatprep.subr.mxu0 0.0
      %509 = vmatpush1.msra.mxu0 0.0
      %510 = vmatprep.subr.mxu0 0.0
      %511 = vmatpush1.msra.mxu0 0.0
      %512 = vmatprep.subr.mxu0 0.0
      %513 = vmatpush1.msra.mxu0 0.0
      %514 = vmatprep.subr.mxu0 0.0
      %515 = vmatpush1.msra.mxu0 %v484
      %516 = vmatprep.subr.mxu0 0.0
      %517 = vmatpush1.msra.mxu0 %v483
      %518 = vmatprep.subr.mxu0 0.0
      %519 = vmatpush1.msra.mxu0 %v482
      %520 = vmatprep.subr.mxu0 0.0
      %521 = vmatpush2.msra.mxu0 0.0
      %522 = vmatprep.subr.mxu0 0.0
      %523 = vmatpush2.msra.mxu0 0.0
      %524 = vmatprep.subr.mxu0 0.0
      %525 = vmatpush2.msra.mxu0 0.0
      %526 = vmatprep.subr.mxu0 0.0
      %527 = vmatpush2.msra.mxu0 0.0
      %528 = vmatprep.subr.mxu0 0.0
      %529 = vmatpush2.msra.mxu0 0.0
      %530 = vmatprep.subr.mxu0 0.0
      %531 = vmatpush2.msra.mxu0 0.0
      %532 = vmatprep.subr.mxu0 0.0
      %533 = vmatpush2.msra.mxu0 0.0
      %534 = vmatprep.subr.mxu0 0.0
      %535 = vmatpush2.msra.mxu0 0.0
      %536 = vmatprep.subr.mxu0 0.0
      %537 = vmatpush2.msra.mxu0 0.0
      %538 = vmatprep.subr.mxu0 0.0
      %539 = vmatpush2.msra.mxu0 0.0
      %540 = vmatprep.subr.mxu0 0.0
      %541 = vmatpush2.msra.mxu0 0.0
      %542 = vmatprep.subr.mxu0 0.0
      %543 = vmatpush2.msra.mxu0 0.0
      %544 = vmatprep.subr.mxu0 0.0
      %545 = vmatpush2.msra.mxu0 0.0
      %546 = vmatprep.subr.mxu0 0.0
      %547 = vmatpush2.msra.mxu0 0.0
      %548 = vmatprep.subr.mxu0 0.0
      %549 = vmatpush2.msra.mxu0 0.0
      %550 = vmatprep.subr.mxu0 0.0
      %551 = vmatpush2.msra.mxu0 0.0
      %552 = vmatprep.mubr.f32.mxu0 0.0
      %553 = vmatmul.mubr.f32.gmra.mxu0 %v486
      %v554 = vpop.f32.mrf.mxu0
      %v555 = vadd.f32 0.0, %v554
      %v556 = vpop.f32.mrf.mxu0
      %557 = vdwg.mxu0
      %s558 = sld [smem:[#allocation6 + %s31]]
      %p559 = scmp.ne.s32.totalorder %s558, 0
      %s560 = scalar_select %p559, 1, 0
      %v561 = vstv %s560
      %vm562 = vcmp.eq.s32.totalorder %v561, 1
      %v563 = vsel %vm562, %v555, %v454
      %v564 = vld [vmem:[#allocation2] sm:$0xff]
      %v565 = vld [vmem:[%s4] sm:$0xff]
      %v566 = vld [vmem:[%s4 + $0x8] sm:$0xff]
      %v567 = vld [vmem:[%s5] sm:$0xff]
      %v568 = vld [vmem:[%s5 + $0x8] sm:$0xff]
      %v569 = vld [vmem:[%s5 + $0x10] sm:$0xff]
      %v570 = vld [vmem:[%s5 + $0x18] sm:$0xff]
      %v571 = vld [vmem:[%s6] sm:$0x1]
      %v572 = vld [vmem:[%s7] sm:$0x1]
      %v574 = vlaneseq
      %v575 = vshrl.u32 %v574, 7
      %v576 = vsub.s32 0, %v575
      %v577 = vrot.slane %v571, %v576
      %vm579 = vcmask 130048
      %v581 = vsel %vm579, %v563, 0
      %583 = vmatprep.subr.mxu0 0.0
      %584 = vmatpush1.msra.mxu0 0.0
      %585 = vmatprep.subr.mxu0 0.0
      %586 = vmatpush1.msra.mxu0 0.0
      %587 = vmatprep.subr.mxu0 0.0
      %588 = vmatpush1.msra.mxu0 0.0
      %589 = vmatprep.subr.mxu0 0.0
      %590 = vmatpush1.msra.mxu0 0.0
      %591 = vmatprep.subr.mxu0 0.0
      %592 = vmatpush1.msra.mxu0 0.0
      %593 = vmatprep.subr.mxu0 0.0
      %594 = vmatpush1.msra.mxu0 0.0
      %595 = vmatprep.subr.mxu0 0.0
      %596 = vmatpush1.msra.mxu0 0.0
      %597 = vmatprep.subr.mxu0 0.0
      %598 = vmatpush1.msra.mxu0 0.0
      %599 = vmatprep.subr.mxu0 0.0
      %600 = vmatpush1.msra.mxu0 0.0
      %601 = vmatprep.subr.mxu0 0.0
      %602 = vmatpush1.msra.mxu0 0.0
      %603 = vmatprep.subr.mxu0 0.0
      %604 = vmatpush1.msra.mxu0 0.0
      %605 = vmatprep.subr.mxu0 0.0
      %606 = vmatpush1.msra.mxu0 0.0
      %607 = vmatprep.subr.mxu0 0.0
      %608 = vmatpush1.msra.mxu0 0.0
      %609 = vmatprep.subr.mxu0 0.0
      %610 = vmatpush1.msra.mxu0 0.0
      %611 = vmatprep.subr.mxu0 0.0
      %612 = vmatpush1.msra.mxu0 %v566
      %613 = vmatprep.subr.mxu0 0.0
      %614 = vmatpush1.msra.mxu0 %v565
      %615 = vmatprep.subr.mxu0 0.0
      %616 = vmatpush2.msra.mxu0 0.0
      %617 = vmatprep.subr.mxu0 0.0
      %618 = vmatpush2.msra.mxu0 0.0
      %619 = vmatprep.subr.mxu0 0.0
      %620 = vmatpush2.msra.mxu0 0.0
      %621 = vmatprep.subr.mxu0 0.0
      %622 = vmatpush2.msra.mxu0 0.0
      %623 = vmatprep.subr.mxu0 0.0
      %624 = vmatpush2.msra.mxu0 0.0
      %625 = vmatprep.subr.mxu0 0.0
      %626 = vmatpush2.msra.mxu0 0.0
      %627 = vmatprep.subr.mxu0 0.0
      %628 = vmatpush2.msra.mxu0 0.0
      %629 = vmatprep.subr.mxu0 0.0
      %630 = vmatpush2.msra.mxu0 0.0
      %631 = vmatprep.subr.mxu0 0.0
      %632 = vmatpush2.msra.mxu0 0.0
      %633 = vmatprep.subr.mxu0 0.0
      %634 = vmatpush2.msra.mxu0 0.0
      %635 = vmatprep.subr.mxu0 0.0
      %636 = vmatpush2.msra.mxu0 0.0
      %637 = vmatprep.subr.mxu0 0.0
      %638 = vmatpush2.msra.mxu0 0.0
      %639 = vmatprep.subr.mxu0 0.0
      %640 = vmatpush2.msra.mxu0 0.0
      %641 = vmatprep.subr.mxu0 0.0
      %642 = vmatpush2.msra.mxu0 0.0
      %643 = vmatprep.subr.mxu0 0.0
      %644 = vmatpush2.msra.mxu0 0.0
      %645 = vmatprep.subr.mxu0 0.0
      %646 = vmatpush2.msra.mxu0 0.0
      %647 = vmatprep.mubr.f32.mxu0 0.0
      %648 = vmatmul.mubr.f32.gmra.mxu0 %v581
      %v649 = vpop.f32.mrf.mxu0
      %v650 = vadd.f32 %v577, %v649
      %v651 = vpop.f32.mrf.mxu0
      %652 = vdwg.mxu0
      %v654 = vlaneseq
      %v655 = vshrl.u32 %v654, 7
      %v656 = vsub.s32 0, %v655
      %v657 = vrot.slane %v572, %v656
      %vm659 = vcmask 261120
      %v661 = vsel %vm659, %v564, 0
      %663 = vmatprep.subr.mxu0 0.0
      %664 = vmatpush1.msra.mxu0 0.0
      %665 = vmatprep.subr.mxu0 0.0
      %666 = vmatpush1.msra.mxu0 0.0
      %667 = vmatprep.subr.mxu0 0.0
      %668 = vmatpush1.msra.mxu0 0.0
      %669 = vmatprep.subr.mxu0 0.0
      %670 = vmatpush1.msra.mxu0 0.0
      %671 = vmatprep.subr.mxu0 0.0
      %672 = vmatpush1.msra.mxu0 0.0
      %673 = vmatprep.subr.mxu0 0.0
      %674 = vmatpush1.msra.mxu0 0.0
      %675 = vmatprep.subr.mxu0 0.0
      %676 = vmatpush1.msra.mxu0 0.0
      %677 = vmatprep.subr.mxu0 0.0
      %678 = vmatpush1.msra.mxu0 0.0
      %679 = vmatprep.subr.mxu0 0.0
      %680 = vmatpush1.msra.mxu0 0.0
      %681 = vmatprep.subr.mxu0 0.0
      %682 = vmatpush1.msra.mxu0 0.0
      %683 = vmatprep.subr.mxu0 0.0
      %684 = vmatpush1.msra.mxu0 0.0
      %685 = vmatprep.subr.mxu0 0.0
      %686 = vmatpush1.msra.mxu0 0.0
      %687 = vmatprep.subr.mxu0 0.0
      %688 = vmatpush1.msra.mxu0 %v570
      %689 = vmatprep.subr.mxu0 0.0
      %690 = vmatpush1.msra.mxu0 %v569
      %691 = vmatprep.subr.mxu0 0.0
      %692 = vmatpush1.msra.mxu0 %v568
      %693 = vmatprep.subr.mxu0 0.0
      %694 = vmatpush1.msra.mxu0 %v567
      %695 = vmatprep.subr.mxu0 0.0
      %696 = vmatpush2.msra.mxu0 0.0
      %697 = vmatprep.subr.mxu0 0.0
      %698 = vmatpush2.msra.mxu0 0.0
      %699 = vmatprep.subr.mxu0 0.0
      %700 = vmatpush2.msra.mxu0 0.0
      %701 = vmatprep.subr.mxu0 0.0
      %702 = vmatpush2.msra.mxu0 0.0
      %703 = vmatprep.subr.mxu0 0.0
      %704 = vmatpush2.msra.mxu0 0.0
      %705 = vmatprep.subr.mxu0 0.0
      %706 = vmatpush2.msra.mxu0 0.0
      %707 = vmatprep.subr.mxu0 0.0
      %708 = vmatpush2.msra.mxu0 0.0
      %709 = vmatprep.subr.mxu0 0.0
      %710 = vmatpush2.msra.mxu0 0.0
      %711 = vmatprep.subr.mxu0 0.0
      %712 = vmatpush2.msra.mxu0 0.0
      %713 = vmatprep.subr.mxu0 0.0
      %714 = vmatpush2.msra.mxu0 0.0
      %715 = vmatprep.subr.mxu0 0.0
      %716 = vmatpush2.msra.mxu0 0.0
      %717 = vmatprep.subr.mxu0 0.0
      %718 = vmatpush2.msra.mxu0 0.0
      %719 = vmatprep.subr.mxu0 0.0
      %720 = vmatpush2.msra.mxu0 0.0
      %721 = vmatprep.subr.mxu0 0.0
      %722 = vmatpush2.msra.mxu0 0.0
      %723 = vmatprep.subr.mxu0 0.0
      %724 = vmatpush2.msra.mxu0 0.0
      %725 = vmatprep.subr.mxu0 0.0
      %726 = vmatpush2.msra.mxu0 0.0
      %727 = vmatprep.mubr.f32.mxu0 0.0
      %728 = vmatmul.mubr.f32.gmra.mxu0 %v661
      %v729 = vpop.f32.mrf.mxu0
      %v730 = vadd.f32 %v657, %v729
      %v731 = vpop.f32.mrf.mxu0
      %732 = vdwg.mxu0
      %v733 = vadd.f32 %v650, %v730
      %v734 = vxor.u32 %v733, 2147483648
      %v735 = vmul.f32 %v734, 1.442695
      %v736 = vpow.pop %v735
      %v737 = vadd.f32 %v736, 1.0
      %v738 = vrcp.pop %v737
      %v739 = vmul.f32 1.0, %v738
      %741 = vrot.lane.b32.xlu0 %v730, 64
      %v742 = vpop.permute.xlu0 %741
      %v744 = vmul.f32 %v739, %v742
      %746 = vrot.lane.b32.xlu0 %v744, 64
      %v747 = vpop.permute.xlu0 %746
      %v749 = vadd.f32 %v650, %v747
      %v750 = vtanh.pop %v749
      %v751 = vsub.f32 1.0, %v739
      %753 = vrot.lane.b32.xlu0 %v750, 96
      %v754 = vpop.permute.xlu0 %753
      %v756 = vmul.f32 %v751, %v754
      %757 = vrot.lane.b32.xlu0 %v564, 32
      %v758 = vpop.permute.xlu0 %757
      %v760 = vmul.f32 %v739, %v758
      %v761 = vadd.f32 %v756, %v760
      %v762 = vld [vmem:[#allocation3] sm:$0xff]
      %v763 = vld [vmem:[%s8] sm:$0xff]
      %v764 = vld [vmem:[%s8 + $0x8] sm:$0xff]
      %v765 = vld [vmem:[%s8 + $0x10] sm:$0xff]
      %v766 = vld [vmem:[%s8 + $0x18] sm:$0xff]
      %v767 = vld [vmem:[%s9] sm:$0xff]
      %v768 = vld [vmem:[%s9 + $0x8] sm:$0xff]
      %v769 = vld [vmem:[%s9 + $0x10] sm:$0xff]
      %v770 = vld [vmem:[%s9 + $0x18] sm:$0xff]
      %v771 = vld [vmem:[%s10] sm:$0x1]
      %v772 = vld [vmem:[%s11] sm:$0x1]
      %v774 = vlaneseq
      %v775 = vshrl.u32 %v774, 7
      %v776 = vsub.s32 0, %v775
      %v777 = vrot.slane %v771, %v776
      %780 = vrot.lane.b32.xlu0 %v761, 96
      %v781 = vpop.permute.xlu0 %780
      %v782 = vsel %vm659, %v781, 0
      %784 = vmatprep.subr.mxu0 0.0
      %785 = vmatpush1.msra.mxu0 0.0
      %786 = vmatprep.subr.mxu0 0.0
      %787 = vmatpush1.msra.mxu0 0.0
      %788 = vmatprep.subr.mxu0 0.0
      %789 = vmatpush1.msra.mxu0 0.0
      %790 = vmatprep.subr.mxu0 0.0
      %791 = vmatpush1.msra.mxu0 0.0
      %792 = vmatprep.subr.mxu0 0.0
      %793 = vmatpush1.msra.mxu0 0.0
      %794 = vmatprep.subr.mxu0 0.0
      %795 = vmatpush1.msra.mxu0 0.0
      %796 = vmatprep.subr.mxu0 0.0
      %797 = vmatpush1.msra.mxu0 0.0
      %798 = vmatprep.subr.mxu0 0.0
      %799 = vmatpush1.msra.mxu0 0.0
      %800 = vmatprep.subr.mxu0 0.0
      %801 = vmatpush1.msra.mxu0 0.0
      %802 = vmatprep.subr.mxu0 0.0
      %803 = vmatpush1.msra.mxu0 0.0
      %804 = vmatprep.subr.mxu0 0.0
      %805 = vmatpush1.msra.mxu0 0.0
      %806 = vmatprep.subr.mxu0 0.0
      %807 = vmatpush1.msra.mxu0 0.0
      %808 = vmatprep.subr.mxu0 0.0
      %809 = vmatpush1.msra.mxu0 %v766
      %810 = vmatprep.subr.mxu0 0.0
      %811 = vmatpush1.msra.mxu0 %v765
      %812 = vmatprep.subr.mxu0 0.0
      %813 = vmatpush1.msra.mxu0 %v764
      %814 = vmatprep.subr.mxu0 0.0
      %815 = vmatpush1.msra.mxu0 %v763
      %816 = vmatprep.subr.mxu0 0.0
      %817 = vmatpush2.msra.mxu0 0.0
      %818 = vmatprep.subr.mxu0 0.0
      %819 = vmatpush2.msra.mxu0 0.0
      %820 = vmatprep.subr.mxu0 0.0
      %821 = vmatpush2.msra.mxu0 0.0
      %822 = vmatprep.subr.mxu0 0.0
      %823 = vmatpush2.msra.mxu0 0.0
      %824 = vmatprep.subr.mxu0 0.0
      %825 = vmatpush2.msra.mxu0 0.0
      %826 = vmatprep.subr.mxu0 0.0
      %827 = vmatpush2.msra.mxu0 0.0
      %828 = vmatprep.subr.mxu0 0.0
      %829 = vmatpush2.msra.mxu0 0.0
      %830 = vmatprep.subr.mxu0 0.0
      %831 = vmatpush2.msra.mxu0 0.0
      %832 = vmatprep.subr.mxu0 0.0
      %833 = vmatpush2.msra.mxu0 0.0
      %834 = vmatprep.subr.mxu0 0.0
      %835 = vmatpush2.msra.mxu0 0.0
      %836 = vmatprep.subr.mxu0 0.0
      %837 = vmatpush2.msra.mxu0 0.0
      %838 = vmatprep.subr.mxu0 0.0
      %839 = vmatpush2.msra.mxu0 0.0
      %840 = vmatprep.subr.mxu0 0.0
      %841 = vmatpush2.msra.mxu0 0.0
      %842 = vmatprep.subr.mxu0 0.0
      %843 = vmatpush2.msra.mxu0 0.0
      %844 = vmatprep.subr.mxu0 0.0
      %845 = vmatpush2.msra.mxu0 0.0
      %846 = vmatprep.subr.mxu0 0.0
      %847 = vmatpush2.msra.mxu0 0.0
      %848 = vmatprep.mubr.f32.mxu0 0.0
      %849 = vmatmul.mubr.f32.gmra.mxu0 %v782
      %v850 = vpop.f32.mrf.mxu0
      %v851 = vadd.f32 %v777, %v850
      %v852 = vpop.f32.mrf.mxu0
      %853 = vdwg.mxu0
      %v855 = vlaneseq
      %v856 = vshrl.u32 %v855, 7
      %v857 = vsub.s32 0, %v856
      %v858 = vrot.slane %v772, %v857
      %v861 = vsel %vm659, %v762, 0
      %863 = vmatprep.subr.mxu0 0.0
      %864 = vmatpush1.msra.mxu0 0.0
      %865 = vmatprep.subr.mxu0 0.0
      %866 = vmatpush1.msra.mxu0 0.0
      %867 = vmatprep.subr.mxu0 0.0
      %868 = vmatpush1.msra.mxu0 0.0
      %869 = vmatprep.subr.mxu0 0.0
      %870 = vmatpush1.msra.mxu0 0.0
      %871 = vmatprep.subr.mxu0 0.0
      %872 = vmatpush1.msra.mxu0 0.0
      %873 = vmatprep.subr.mxu0 0.0
      %874 = vmatpush1.msra.mxu0 0.0
      %875 = vmatprep.subr.mxu0 0.0
      %876 = vmatpush1.msra.mxu0 0.0
      %877 = vmatprep.subr.mxu0 0.0
      %878 = vmatpush1.msra.mxu0 0.0
      %879 = vmatprep.subr.mxu0 0.0
      %880 = vmatpush1.msra.mxu0 0.0
      %881 = vmatprep.subr.mxu0 0.0
      %882 = vmatpush1.msra.mxu0 0.0
      %883 = vmatprep.subr.mxu0 0.0
      %884 = vmatpush1.msra.mxu0 0.0
      %885 = vmatprep.subr.mxu0 0.0
      %886 = vmatpush1.msra.mxu0 0.0
      %887 = vmatprep.subr.mxu0 0.0
      %888 = vmatpush1.msra.mxu0 %v770
      %889 = vmatprep.subr.mxu0 0.0
      %890 = vmatpush1.msra.mxu0 %v769
      %891 = vmatprep.subr.mxu0 0.0
      %892 = vmatpush1.msra.mxu0 %v768
      %893 = vmatprep.subr.mxu0 0.0
      %894 = vmatpush1.msra.mxu0 %v767
      %895 = vmatprep.subr.mxu0 0.0
      %896 = vmatpush2.msra.mxu0 0.0
      %897 = vmatprep.subr.mxu0 0.0
      %898 = vmatpush2.msra.mxu0 0.0
      %899 = vmatprep.subr.mxu0 0.0
      %900 = vmatpush2.msra.mxu0 0.0
      %901 = vmatprep.subr.mxu0 0.0
      %902 = vmatpush2.msra.mxu0 0.0
      %903 = vmatprep.subr.mxu0 0.0
      %904 = vmatpush2.msra.mxu0 0.0
      %905 = vmatprep.subr.mxu0 0.0
      %906 = vmatpush2.msra.mxu0 0.0
      %907 = vmatprep.subr.mxu0 0.0
      %908 = vmatpush2.msra.mxu0 0.0
      %909 = vmatprep.subr.mxu0 0.0
      %910 = vmatpush2.msra.mxu0 0.0
      %911 = vmatprep.subr.mxu0 0.0
      %912 = vmatpush2.msra.mxu0 0.0
      %913 = vmatprep.subr.mxu0 0.0
      %914 = vmatpush2.msra.mxu0 0.0
      %915 = vmatprep.subr.mxu0 0.0
      %916 = vmatpush2.msra.mxu0 0.0
      %917 = vmatprep.subr.mxu0 0.0
      %918 = vmatpush2.msra.mxu0 0.0
      %919 = vmatprep.subr.mxu0 0.0
      %920 = vmatpush2.msra.mxu0 0.0
      %921 = vmatprep.subr.mxu0 0.0
      %922 = vmatpush2.msra.mxu0 0.0
      %923 = vmatprep.subr.mxu0 0.0
      %924 = vmatpush2.msra.mxu0 0.0
      %925 = vmatprep.subr.mxu0 0.0
      %926 = vmatpush2.msra.mxu0 0.0
      %927 = vmatprep.mubr.f32.mxu0 0.0
      %928 = vmatmul.mubr.f32.gmra.mxu0 %v861
      %v929 = vpop.f32.mrf.mxu0
      %v930 = vadd.f32 %v858, %v929
      %v931 = vpop.f32.mrf.mxu0
      %932 = vdwg.mxu0
      %v933 = vadd.f32 %v851, %v930
      %v934 = vxor.u32 %v933, 2147483648
      %v935 = vmul.f32 %v934, 1.442695
      %v936 = vpow.pop %v935
      %v937 = vadd.f32 %v936, 1.0
      %v938 = vrcp.pop %v937
      %v939 = vmul.f32 1.0, %v938
      %941 = vrot.lane.b32.xlu0 %v930, 64
      %v942 = vpop.permute.xlu0 %941
      %v944 = vmul.f32 %v939, %v942
      %946 = vrot.lane.b32.xlu0 %v944, 64
      %v947 = vpop.permute.xlu0 %946
      %v949 = vadd.f32 %v851, %v947
      %v950 = vtanh.pop %v949
      %v951 = vsub.f32 1.0, %v939
      %953 = vrot.lane.b32.xlu0 %v950, 96
      %v954 = vpop.permute.xlu0 %953
      %v956 = vmul.f32 %v951, %v954
      %957 = vrot.lane.b32.xlu0 %v762, 32
      %v958 = vpop.permute.xlu0 %957
      %v960 = vmul.f32 %v939, %v958
      %v961 = vadd.f32 %v956, %v960
      %v962 = vld [vmem:[%s12] sm:$0xff]
      %v963 = vld [vmem:[%s12 + $0x8] sm:$0xff]
      %v964 = vld [vmem:[%s12 + $0x10] sm:$0xff]
      %v965 = vld [vmem:[%s12 + $0x18] sm:$0xff]
      %v966 = vld [vmem:[%s13] sm:$0x1]
      %v968 = vlaneseq
      %v969 = vshrl.u32 %v968, 7
      %v970 = vsub.s32 0, %v969
      %v971 = vrot.slane %v966, %v970
      %974 = vrot.lane.b32.xlu0 %v961, 96
      %v975 = vpop.permute.xlu0 %974
      %v976 = vsel %vm659, %v975, 0
      %978 = vmatprep.subr.mxu0 0.0
      %979 = vmatpush1.msra.mxu0 0.0
      %980 = vmatprep.subr.mxu0 0.0
      %981 = vmatpush1.msra.mxu0 0.0
      %982 = vmatprep.subr.mxu0 0.0
      %983 = vmatpush1.msra.mxu0 0.0
      %984 = vmatprep.subr.mxu0 0.0
      %985 = vmatpush1.msra.mxu0 0.0
      %986 = vmatprep.subr.mxu0 0.0
      %987 = vmatpush1.msra.mxu0 0.0
      %988 = vmatprep.subr.mxu0 0.0
      %989 = vmatpush1.msra.mxu0 0.0
      %990 = vmatprep.subr.mxu0 0.0
      %991 = vmatpush1.msra.mxu0 0.0
      %992 = vmatprep.subr.mxu0 0.0
      %993 = vmatpush1.msra.mxu0 0.0
      %994 = vmatprep.subr.mxu0 0.0
      %995 = vmatpush1.msra.mxu0 0.0
      %996 = vmatprep.subr.mxu0 0.0
      %997 = vmatpush1.msra.mxu0 0.0
      %998 = vmatprep.subr.mxu0 0.0
      %999 = vmatpush1.msra.mxu0 0.0
      %1000 = vmatprep.subr.mxu0 0.0
      %1001 = vmatpush1.msra.mxu0 0.0
      %1002 = vmatprep.subr.mxu0 0.0
      %1003 = vmatpush1.msra.mxu0 %v965
      %1004 = vmatprep.subr.mxu0 0.0
      %1005 = vmatpush1.msra.mxu0 %v964
      %1006 = vmatprep.subr.mxu0 0.0
      %1007 = vmatpush1.msra.mxu0 %v963
      %1008 = vmatprep.subr.mxu0 0.0
      %1009 = vmatpush1.msra.mxu0 %v962
      %1010 = vmatprep.subr.mxu0 0.0
      %1011 = vmatpush2.msra.mxu0 0.0
      %1012 = vmatprep.subr.mxu0 0.0
      %1013 = vmatpush2.msra.mxu0 0.0
      %1014 = vmatprep.subr.mxu0 0.0
      %1015 = vmatpush2.msra.mxu0 0.0
      %1016 = vmatprep.subr.mxu0 0.0
      %1017 = vmatpush2.msra.mxu0 0.0
      %1018 = vmatprep.subr.mxu0 0.0
      %1019 = vmatpush2.msra.mxu0 0.0
      %1020 = vmatprep.subr.mxu0 0.0
      %1021 = vmatpush2.msra.mxu0 0.0
      %1022 = vmatprep.subr.mxu0 0.0
      %1023 = vmatpush2.msra.mxu0 0.0
      %1024 = vmatprep.subr.mxu0 0.0
      %1025 = vmatpush2.msra.mxu0 0.0
      %1026 = vmatprep.subr.mxu0 0.0
      %1027 = vmatpush2.msra.mxu0 0.0
      %1028 = vmatprep.subr.mxu0 0.0
      %1029 = vmatpush2.msra.mxu0 0.0
      %1030 = vmatprep.subr.mxu0 0.0
      %1031 = vmatpush2.msra.mxu0 0.0
      %1032 = vmatprep.subr.mxu0 0.0
      %1033 = vmatpush2.msra.mxu0 0.0
      %1034 = vmatprep.subr.mxu0 0.0
      %1035 = vmatpush2.msra.mxu0 0.0
      %1036 = vmatprep.subr.mxu0 0.0
      %1037 = vmatpush2.msra.mxu0 0.0
      %1038 = vmatprep.subr.mxu0 0.0
      %1039 = vmatpush2.msra.mxu0 0.0
      %1040 = vmatprep.subr.mxu0 0.0
      %1041 = vmatpush2.msra.mxu0 0.0
      %1042 = vmatprep.mubr.f32.mxu0 0.0
      %1043 = vmatmul.mubr.f32.gmra.mxu0 %v976
      %v1044 = vpop.f32.mrf.mxu0
      %v1045 = vadd.f32 %v971, %v1044
      %v1046 = vpop.f32.mrf.mxu0
      %1047 = vdwg.mxu0
      %1049 = vst.msk [vmem:[#allocation2] sm:$0xff] %vm659, %v781
      %1051 = vst.msk [vmem:[#allocation3] sm:$0xff] %vm659, %v975
      %1052 = vst.msk [vmem:[#allocation4] sm:$0xff] %vm458, %v1045
      %1053 = vst.msk [vmem:[%s442] sm:$0xff] %vm458, %v1045
      %p1054 = scmp.lt.s32.totalorder %s31, 31
      %s1055 = scalar_select %p1054, %s31, 31
      %s1056 = smul.addr %s1055, 8
      %s1057 = scalar_lea.vmem %s14, %s1056
      // Predicated region
      $region77: #{_lambda_.3} parent=71 // pred_check
        %p1058 = pneg %p327
      $region78: #{_lambda_.3} parent=71 // pred_check_branch
        %1060 = sbr.rel (%p1058) target = $region80
      $region79: #{_lambda_.3} parent=71 // pred_region
        _
      $region80: #{_lambda_.3} parent=71 // pred_fallthru
        _
    $region72: #{_lambda_.3} parent=5 // pred_fallthru
      _
    %p1061 = scmp.le.s32.totalorder 2, %s26
    // Predicated region
    $region81: #{_lambda_.3} parent=5 // pred_check
      %p1062 = pneg %p1061
    $region82: #{_lambda_.3} parent=5 // pred_check_branch
      %1064 = sbr.rel (%p1062) target = $region84
    $region83: #{_lambda_.3} parent=5 // pred_region
      %s1065 = ssub.s32 %s26, 2
      // Predicated region
      $region85: #{_lambda_.3} parent=83 // pred_check
        %p1066 = pneg %p333
      $region86: #{_lambda_.3} parent=83 // pred_check_branch
        %1068 = sbr.rel (%p1066) target = $region88
      $region87: #{_lambda_.3} parent=83 // pred_region
        %p1069 = scmp.lt.s32.totalorder %s32, 31
        %s1070 = scalar_select %p1069, %s32, 31
        %s1071 = smul.addr %s1070, 8
        %s1072 = scalar_lea.vmem %s14, %s1071
      $region88: #{_lambda_.3} parent=83 // pred_fallthru
        _
    $region84: #{_lambda_.3} parent=5 // pred_fallthru
      _
  $region6: #{_lambda_.3} parent=0 // loop_footer
    %s30 = sadd.s32 1, %s26
  $region7: #{_lambda_.3} parent=0 // loop_footer_branch
    %25 = sbr.rel target = $region3
  $region8: #{_lambda_.3} parent=0 // loop_exit
    _

// kernel: _lambda_.2
$region0: #{_lambda_.2}
  #allocation0 [shape = 'u32[]', space=smem, size = 0x4, offset = 0x4, fixed_abs, tag = 'smem constant byte address 0x4 - core index']
  #allocation1 [shape = 'u32[144,128]{1,0:T(1,128)}', space=vmem, size = 0x12000, scoped, tag = 'internal scratch']
  %s0 = inlined_call_operand.vmem [shape: f32[8,8,16], index: 0, kind: input, shape index: {}]
  %s1 = inlined_call_operand.vmem [shape: f32[16,96], index: 1, kind: input, shape index: {}]
  %s2 = inlined_call_operand.vmem [shape: f32[32,96], index: 2, kind: input, shape index: {}]
  %s3 = inlined_call_operand.vmem [shape: f32[1,96], index: 3, kind: input, shape index: {}]
  %s4 = inlined_call_operand.vmem [shape: f32[1,96], index: 4, kind: input, shape index: {}]
  %s5 = inlined_call_operand.vmem [shape: f32[16,96], index: 5, kind: input, shape index: {}]
  %s6 = inlined_call_operand.vmem [shape: f32[32,96], index: 6, kind: input, shape index: {}]
  %s7 = inlined_call_operand.vmem [shape: f32[1,96], index: 7, kind: input, shape index: {}]
  %s8 = inlined_call_operand.vmem [shape: f32[1,96], index: 8, kind: input, shape index: {}]
  %s9 = inlined_call_operand.vmem [shape: f32[64,96], index: 9, kind: input, shape index: {}]
  %s10 = inlined_call_operand.vmem [shape: f32[32,96], index: 10, kind: input, shape index: {}]
  %s11 = inlined_call_operand.vmem [shape: f32[1,96], index: 11, kind: input, shape index: {}]
  %s12 = inlined_call_operand.vmem [shape: f32[1,96], index: 12, kind: input, shape index: {}]
  %s13 = inlined_call_operand.vmem [shape: f32[8,32], index: 13, kind: output, shape index: {}]
  %s14 = sld [smem:[#allocation0]]
  $region62: #{_lambda_.2} parent=0
    _
  %s16 = ssub.s32 1, %s14
  %s17 = scalar_select 0, %s16, %s14
  // Predicated region
  $region2: #{_lambda_.2} parent=0 // pred_check
    _
  $region3: #{_lambda_.2} parent=0 // pred_check_branch
    %19 = sbr.rel (0) target = $region5
  $region4: #{_lambda_.2} parent=0 // pred_region
    _
  $region5: #{_lambda_.2} parent=0 // pred_fallthru
    _
  // Predicated region
  $region6: #{_lambda_.2} parent=0 // pred_check
    _
  $region7: #{_lambda_.2} parent=0 // pred_check_branch
    %21 = sbr.rel (0) target = $region9
  $region8: #{_lambda_.2} parent=0 // pred_region
    _
  $region9: #{_lambda_.2} parent=0 // pred_fallthru
    _
  // Predicated region
  $region10: #{_lambda_.2} parent=0 // pred_check
    _
  $region11: #{_lambda_.2} parent=0 // pred_check_branch
    %23 = sbr.rel (0) target = $region13
  $region12: #{_lambda_.2} parent=0 // pred_region
    _
  $region13: #{_lambda_.2} parent=0 // pred_fallthru
    _
  // Predicated region
  $region14: #{_lambda_.2} parent=0 // pred_check
    _
  $region15: #{_lambda_.2} parent=0 // pred_check_branch
    %25 = sbr.rel (0) target = $region17
  $region16: #{_lambda_.2} parent=0 // pred_region
    _
  $region17: #{_lambda_.2} parent=0 // pred_fallthru
    _
  // Predicated region
  $region18: #{_lambda_.2} parent=0 // pred_check
    _
  $region19: #{_lambda_.2} parent=0 // pred_check_branch
    %27 = sbr.rel (0) target = $region21
  $region20: #{_lambda_.2} parent=0 // pred_region
    _
  $region21: #{_lambda_.2} parent=0 // pred_fallthru
    _
  // Predicated region
  $region22: #{_lambda_.2} parent=0 // pred_check
    _
  $region23: #{_lambda_.2} parent=0 // pred_check_branch
    %29 = sbr.rel (0) target = $region25
  $region24: #{_lambda_.2} parent=0 // pred_region
    _
  $region25: #{_lambda_.2} parent=0 // pred_fallthru
    _
  // Predicated region
  $region26: #{_lambda_.2} parent=0 // pred_check
    _
  $region27: #{_lambda_.2} parent=0 // pred_check_branch
    %31 = sbr.rel (0) target = $region29
  $region28: #{_lambda_.2} parent=0 // pred_region
    _
  $region29: #{_lambda_.2} parent=0 // pred_fallthru
    _
  // Predicated region
  $region30: #{_lambda_.2} parent=0 // pred_check
    _
  $region31: #{_lambda_.2} parent=0 // pred_check_branch
    %33 = sbr.rel (0) target = $region33
  $region32: #{_lambda_.2} parent=0 // pred_region
    _
  $region33: #{_lambda_.2} parent=0 // pred_fallthru
    _
  // Predicated region
  $region34: #{_lambda_.2} parent=0 // pred_check
    _
  $region35: #{_lambda_.2} parent=0 // pred_check_branch
    %35 = sbr.rel (0) target = $region37
  $region36: #{_lambda_.2} parent=0 // pred_region
    _
  $region37: #{_lambda_.2} parent=0 // pred_fallthru
    _
  // Predicated region
  $region38: #{_lambda_.2} parent=0 // pred_check
    _
  $region39: #{_lambda_.2} parent=0 // pred_check_branch
    %37 = sbr.rel (0) target = $region41
  $region40: #{_lambda_.2} parent=0 // pred_region
    _
  $region41: #{_lambda_.2} parent=0 // pred_fallthru
    _
  // Predicated region
  $region42: #{_lambda_.2} parent=0 // pred_check
    _
  $region43: #{_lambda_.2} parent=0 // pred_check_branch
    %39 = sbr.rel (0) target = $region45
  $region44: #{_lambda_.2} parent=0 // pred_region
    _
  $region45: #{_lambda_.2} parent=0 // pred_fallthru
    _
  // Predicated region
  $region46: #{_lambda_.2} parent=0 // pred_check
    _
  $region47: #{_lambda_.2} parent=0 // pred_check_branch
    %41 = sbr.rel (0) target = $region49
  $region48: #{_lambda_.2} parent=0 // pred_region
    _
  $region49: #{_lambda_.2} parent=0 // pred_fallthru
    _
  // Predicated region
  $region50: #{_lambda_.2} parent=0 // pred_check
    _
  $region51: #{_lambda_.2} parent=0 // pred_check_branch
    %43 = sbr.rel (0) target = $region53
  $region52: #{_lambda_.2} parent=0 // pred_region
    _
  $region53: #{_lambda_.2} parent=0 // pred_fallthru
    _
  %v44 = vld [vmem:[%s1] sm:$0xff]
  %v45 = vld [vmem:[%s1 + $0x8] sm:$0xff]
  %v46 = vld [vmem:[%s2] sm:$0xff]
  %v47 = vld [vmem:[%s2 + $0x8] sm:$0xff]
  %v48 = vld [vmem:[%s2 + $0x10] sm:$0xff]
  %v49 = vld [vmem:[%s2 + $0x18] sm:$0xff]
  %v50 = vld [vmem:[%s3] sm:$0x1]
  %v51 = vld [vmem:[%s4] sm:$0x1]
  %v52 = vld [vmem:[%s5] sm:$0xff]
  %v53 = vld [vmem:[%s5 + $0x8] sm:$0xff]
  %v54 = vld [vmem:[%s6] sm:$0xff]
  %v55 = vld [vmem:[%s6 + $0x8] sm:$0xff]
  %v56 = vld [vmem:[%s6 + $0x10] sm:$0xff]
  %v57 = vld [vmem:[%s6 + $0x18] sm:$0xff]
  %v58 = vld [vmem:[%s7] sm:$0x1]
  %v59 = vld [vmem:[%s8] sm:$0x1]
  %v60 = vld [vmem:[%s9] sm:$0xff]
  %v61 = vld [vmem:[%s9 + $0x8] sm:$0xff]
  %v62 = vld [vmem:[%s9 + $0x10] sm:$0xff]
  %v63 = vld [vmem:[%s9 + $0x18] sm:$0xff]
  %v64 = vld [vmem:[%s9 + $0x20] sm:$0xff]
  %v65 = vld [vmem:[%s9 + $0x28] sm:$0xff]
  %v66 = vld [vmem:[%s9 + $0x30] sm:$0xff]
  %v67 = vld [vmem:[%s9 + $0x38] sm:$0xff]
  %v68 = vld [vmem:[%s10] sm:$0xff]
  %v69 = vld [vmem:[%s10 + $0x8] sm:$0xff]
  %v70 = vld [vmem:[%s10 + $0x10] sm:$0xff]
  %v71 = vld [vmem:[%s10 + $0x18] sm:$0xff]
  %v72 = vld [vmem:[%s11] sm:$0x1]
  %v73 = vld [vmem:[%s12] sm:$0x1]
  %v74 = vld [vmem:[%s0] sm:$0xff]
  %v76 = vlaneseq
  %v77 = vshrl.u32 %v76, 7
  %v78 = vsub.s32 0, %v77
  %v79 = vrot.slane %v50, %v78
  %vm81 = vcmask 130048
  %v83 = vsel %vm81, %v74, 0
  %85 = vmatprep.subr.mxu0 0.0
  %86 = vmatpush1.msra.mxu0 0.0
  %87 = vmatprep.subr.mxu0 0.0
  %88 = vmatpush1.msra.mxu0 0.0
  %89 = vmatprep.subr.mxu0 0.0
  %90 = vmatpush1.msra.mxu0 0.0
  %91 = vmatprep.subr.mxu0 0.0
  %92 = vmatpush1.msra.mxu0 0.0
  %93 = vmatprep.subr.mxu0 0.0
  %94 = vmatpush1.msra.mxu0 0.0
  %95 = vmatprep.subr.mxu0 0.0
  %96 = vmatpush1.msra.mxu0 0.0
  %97 = vmatprep.subr.mxu0 0.0
  %98 = vmatpush1.msra.mxu0 0.0
  %99 = vmatprep.subr.mxu0 0.0
  %100 = vmatpush1.msra.mxu0 0.0
  %101 = vmatprep.subr.mxu0 0.0
  %102 = vmatpush1.msra.mxu0 0.0
  %103 = vmatprep.subr.mxu0 0.0
  %104 = vmatpush1.msra.mxu0 0.0
  %105 = vmatprep.subr.mxu0 0.0
  %106 = vmatpush1.msra.mxu0 0.0
  %107 = vmatprep.subr.mxu0 0.0
  %108 = vmatpush1.msra.mxu0 0.0
  %109 = vmatprep.subr.mxu0 0.0
  %110 = vmatpush1.msra.mxu0 0.0
  %111 = vmatprep.subr.mxu0 0.0
  %112 = vmatpush1.msra.mxu0 0.0
  %113 = vmatprep.subr.mxu0 0.0
  %114 = vmatpush1.msra.mxu0 %v45
  %115 = vmatprep.subr.mxu0 0.0
  %116 = vmatpush1.msra.mxu0 %v44
  %117 = vmatprep.subr.mxu0 0.0
  %118 = vmatpush2.msra.mxu0 0.0
  %119 = vmatprep.subr.mxu0 0.0
  %120 = vmatpush2.msra.mxu0 0.0
  %121 = vmatprep.subr.mxu0 0.0
  %122 = vmatpush2.msra.mxu0 0.0
  %123 = vmatprep.subr.mxu0 0.0
  %124 = vmatpush2.msra.mxu0 0.0
  %125 = vmatprep.subr.mxu0 0.0
  %126 = vmatpush2.msra.mxu0 0.0
  %127 = vmatprep.subr.mxu0 0.0
  %128 = vmatpush2.msra.mxu0 0.0
  %129 = vmatprep.subr.mxu0 0.0
  %130 = vmatpush2.msra.mxu0 0.0
  %131 = vmatprep.subr.mxu0 0.0
  %132 = vmatpush2.msra.mxu0 0.0
  %133 = vmatprep.subr.mxu0 0.0
  %134 = vmatpush2.msra.mxu0 0.0
  %135 = vmatprep.subr.mxu0 0.0
  %136 = vmatpush2.msra.mxu0 0.0
  %137 = vmatprep.subr.mxu0 0.0
  %138 = vmatpush2.msra.mxu0 0.0
  %139 = vmatprep.subr.mxu0 0.0
  %140 = vmatpush2.msra.mxu0 0.0
  %141 = vmatprep.subr.mxu0 0.0
  %142 = vmatpush2.msra.mxu0 0.0
  %143 = vmatprep.subr.mxu0 0.0
  %144 = vmatpush2.msra.mxu0 0.0
  %145 = vmatprep.subr.mxu0 0.0
  %146 = vmatpush2.msra.mxu0 0.0
  %147 = vmatprep.subr.mxu0 0.0
  %148 = vmatpush2.msra.mxu0 0.0
  %149 = vmatprep.mubr.f32.mxu0 0.0
  %150 = vmatmul.mubr.f32.gmra.mxu0 %v83
  %v151 = vpop.f32.mrf.mxu0
  %v152 = vadd.f32 %v79, %v151
  %v153 = vpop.f32.mrf.mxu0
  %154 = vdwg.mxu0
  %v156 = vlaneseq
  %v157 = vshrl.u32 %v156, 7
  %v158 = vsub.s32 0, %v157
  %v159 = vrot.slane %v51, %v158
  %vm161 = vcmask 261120
  %v163 = vsel %vm161, 0.0, 0
  %165 = vmatprep.subr.mxu0 0.0
  %166 = vmatpush1.msra.mxu0 0.0
  %167 = vmatprep.subr.mxu0 0.0
  %168 = vmatpush1.msra.mxu0 0.0
  %169 = vmatprep.subr.mxu0 0.0
  %170 = vmatpush1.msra.mxu0 0.0
  %171 = vmatprep.subr.mxu0 0.0
  %172 = vmatpush1.msra.mxu0 0.0
  %173 = vmatprep.subr.mxu0 0.0
  %174 = vmatpush1.msra.mxu0 0.0
  %175 = vmatprep.subr.mxu0 0.0
  %176 = vmatpush1.msra.mxu0 0.0
  %177 = vmatprep.subr.mxu0 0.0
  %178 = vmatpush1.msra.mxu0 0.0
  %179 = vmatprep.subr.mxu0 0.0
  %180 = vmatpush1.msra.mxu0 0.0
  %181 = vmatprep.subr.mxu0 0.0
  %182 = vmatpush1.msra.mxu0 0.0
  %183 = vmatprep.subr.mxu0 0.0
  %184 = vmatpush1.msra.mxu0 0.0
  %185 = vmatprep.subr.mxu0 0.0
  %186 = vmatpush1.msra.mxu0 0.0
  %187 = vmatprep.subr.mxu0 0.0
  %188 = vmatpush1.msra.mxu0 0.0
  %189 = vmatprep.subr.mxu0 0.0
  %190 = vmatpush1.msra.mxu0 %v49
  %191 = vmatprep.subr.mxu0 0.0
  %192 = vmatpush1.msra.mxu0 %v48
  %193 = vmatprep.subr.mxu0 0.0
  %194 = vmatpush1.msra.mxu0 %v47
  %195 = vmatprep.subr.mxu0 0.0
  %196 = vmatpush1.msra.mxu0 %v46
  %197 = vmatprep.subr.mxu0 0.0
  %198 = vmatpush2.msra.mxu0 0.0
  %199 = vmatprep.subr.mxu0 0.0
  %200 = vmatpush2.msra.mxu0 0.0
  %201 = vmatprep.subr.mxu0 0.0
  %202 = vmatpush2.msra.mxu0 0.0
  %203 = vmatprep.subr.mxu0 0.0
  %204 = vmatpush2.msra.mxu0 0.0
  %205 = vmatprep.subr.mxu0 0.0
  %206 = vmatpush2.msra.mxu0 0.0
  %207 = vmatprep.subr.mxu0 0.0
  %208 = vmatpush2.msra.mxu0 0.0
  %209 = vmatprep.subr.mxu0 0.0
  %210 = vmatpush2.msra.mxu0 0.0
  %211 = vmatprep.subr.mxu0 0.0
  %212 = vmatpush2.msra.mxu0 0.0
  %213 = vmatprep.subr.mxu0 0.0
  %214 = vmatpush2.msra.mxu0 0.0
  %215 = vmatprep.subr.mxu0 0.0
  %216 = vmatpush2.msra.mxu0 0.0
  %217 = vmatprep.subr.mxu0 0.0
  %218 = vmatpush2.msra.mxu0 0.0
  %219 = vmatprep.subr.mxu0 0.0
  %220 = vmatpush2.msra.mxu0 0.0
  %221 = vmatprep.subr.mxu0 0.0
  %222 = vmatpush2.msra.mxu0 0.0
  %223 = vmatprep.subr.mxu0 0.0
  %224 = vmatpush2.msra.mxu0 0.0
  %225 = vmatprep.subr.mxu0 0.0
  %226 = vmatpush2.msra.mxu0 0.0
  %227 = vmatprep.subr.mxu0 0.0
  %228 = vmatpush2.msra.mxu0 0.0
  %229 = vmatprep.mubr.f32.mxu0 0.0
  %230 = vmatmul.mubr.f32.gmra.mxu0 %v163
  %v231 = vpop.f32.mrf.mxu0
  %v232 = vadd.f32 %v159, %v231
  %v233 = vpop.f32.mrf.mxu0
  %234 = vdwg.mxu0
  %v235 = vadd.f32 %v152, %v232
  %v236 = vxor.u32 %v235, 2147483648
  %v237 = vmul.f32 %v236, 1.442695
  %v238 = vpow.pop %v237
  %v239 = vadd.f32 %v238, 1.0
  %v240 = vrcp.pop %v239
  %v241 = vmul.f32 1.0, %v240
  %243 = vrot.lane.b32.xlu0 %v232, 64
  %v244 = vpop.permute.xlu0 %243
  %v246 = vmul.f32 %v241, %v244
  %248 = vrot.lane.b32.xlu0 %v246, 64
  %v249 = vpop.permute.xlu0 %248
  %v251 = vadd.f32 %v152, %v249
  %v252 = vtanh.pop %v251
  %v253 = vsub.f32 1.0, %v241
  %255 = vrot.lane.b32.xlu0 %v252, 96
  %v256 = vpop.permute.xlu0 %255
  %v258 = vmul.f32 %v253, %v256
  %v259 = vmul.f32 %v241, 0.0
  %v260 = vadd.f32 %v258, %v259
  %s261 = scalar_lea.vmem %s0, 8
  %v262 = vld [vmem:[%s261] sm:$0xff]
  %v264 = vsel %vm81, %v262, 0
  %266 = vmatprep.subr.mxu0 0.0
  %267 = vmatpush1.msra.mxu0 0.0
  %268 = vmatprep.subr.mxu0 0.0
  %269 = vmatpush1.msra.mxu0 0.0
  %270 = vmatprep.subr.mxu0 0.0
  %271 = vmatpush1.msra.mxu0 0.0
  %272 = vmatprep.subr.mxu0 0.0
  %273 = vmatpush1.msra.mxu0 0.0
  %274 = vmatprep.subr.mxu0 0.0
  %275 = vmatpush1.msra.mxu0 0.0
  %276 = vmatprep.subr.mxu0 0.0
  %277 = vmatpush1.msra.mxu0 0.0
  %278 = vmatprep.subr.mxu0 0.0
  %279 = vmatpush1.msra.mxu0 0.0
  %280 = vmatprep.subr.mxu0 0.0
  %281 = vmatpush1.msra.mxu0 0.0
  %282 = vmatprep.subr.mxu0 0.0
  %283 = vmatpush1.msra.mxu0 0.0
  %284 = vmatprep.subr.mxu0 0.0
  %285 = vmatpush1.msra.mxu0 0.0
  %286 = vmatprep.subr.mxu0 0.0
  %287 = vmatpush1.msra.mxu0 0.0
  %288 = vmatprep.subr.mxu0 0.0
  %289 = vmatpush1.msra.mxu0 0.0
  %290 = vmatprep.subr.mxu0 0.0
  %291 = vmatpush1.msra.mxu0 0.0
  %292 = vmatprep.subr.mxu0 0.0
  %293 = vmatpush1.msra.mxu0 0.0
  %294 = vmatprep.subr.mxu0 0.0
  %295 = vmatpush1.msra.mxu0 %v45
  %296 = vmatprep.subr.mxu0 0.0
  %297 = vmatpush1.msra.mxu0 %v44
  %298 = vmatprep.subr.mxu0 0.0
  %299 = vmatpush2.msra.mxu0 0.0
  %300 = vmatprep.subr.mxu0 0.0
  %301 = vmatpush2.msra.mxu0 0.0
  %302 = vmatprep.subr.mxu0 0.0
  %303 = vmatpush2.msra.mxu0 0.0
  %304 = vmatprep.subr.mxu0 0.0
  %305 = vmatpush2.msra.mxu0 0.0
  %306 = vmatprep.subr.mxu0 0.0
  %307 = vmatpush2.msra.mxu0 0.0
  %308 = vmatprep.subr.mxu0 0.0
  %309 = vmatpush2.msra.mxu0 0.0
  %310 = vmatprep.subr.mxu0 0.0
  %311 = vmatpush2.msra.mxu0 0.0
  %312 = vmatprep.subr.mxu0 0.0
  %313 = vmatpush2.msra.mxu0 0.0
  %314 = vmatprep.subr.mxu0 0.0
  %315 = vmatpush2.msra.mxu0 0.0
  %316 = vmatprep.subr.mxu0 0.0
  %317 = vmatpush2.msra.mxu0 0.0
  %318 = vmatprep.subr.mxu0 0.0
  %319 = vmatpush2.msra.mxu0 0.0
  %320 = vmatprep.subr.mxu0 0.0
  %321 = vmatpush2.msra.mxu0 0.0
  %322 = vmatprep.subr.mxu0 0.0
  %323 = vmatpush2.msra.mxu0 0.0
  %324 = vmatprep.subr.mxu0 0.0
  %325 = vmatpush2.msra.mxu0 0.0
  %326 = vmatprep.subr.mxu0 0.0
  %327 = vmatpush2.msra.mxu0 0.0
  %328 = vmatprep.subr.mxu0 0.0
  %329 = vmatpush2.msra.mxu0 0.0
  %330 = vmatprep.mubr.f32.mxu0 0.0
  %331 = vmatmul.mubr.f32.gmra.mxu0 %v264
  %v332 = vpop.f32.mrf.mxu0
  %v333 = vadd.f32 %v79, %v332
  %v334 = vpop.f32.mrf.mxu0
  %335 = vdwg.mxu0
  %337 = vrot.lane.b32.xlu0 %v260, 96
  %v338 = vpop.permute.xlu0 %337
  %v339 = vsel %vm161, %v338, 0
  %341 = vmatprep.subr.mxu0 0.0
  %342 = vmatpush1.msra.mxu0 0.0
  %343 = vmatprep.subr.mxu0 0.0
  %344 = vmatpush1.msra.mxu0 0.0
  %345 = vmatprep.subr.mxu0 0.0
  %346 = vmatpush1.msra.mxu0 0.0
  %347 = vmatprep.subr.mxu0 0.0
  %348 = vmatpush1.msra.mxu0 0.0
  %349 = vmatprep.subr.mxu0 0.0
  %350 = vmatpush1.msra.mxu0 0.0
  %351 = vmatprep.subr.mxu0 0.0
  %352 = vmatpush1.msra.mxu0 0.0
  %353 = vmatprep.subr.mxu0 0.0
  %354 = vmatpush1.msra.mxu0 0.0
  %355 = vmatprep.subr.mxu0 0.0
  %356 = vmatpush1.msra.mxu0 0.0
  %357 = vmatprep.subr.mxu0 0.0
  %358 = vmatpush1.msra.mxu0 0.0
  %359 = vmatprep.subr.mxu0 0.0
  %360 = vmatpush1.msra.mxu0 0.0
  %361 = vmatprep.subr.mxu0 0.0
  %362 = vmatpush1.msra.mxu0 0.0
  %363 = vmatprep.subr.mxu0 0.0
  %364 = vmatpush1.msra.mxu0 0.0
  %365 = vmatprep.subr.mxu0 0.0
  %366 = vmatpush1.msra.mxu0 %v49
  %367 = vmatprep.subr.mxu0 0.0
  %368 = vmatpush1.msra.mxu0 %v48
  %369 = vmatprep.subr.mxu0 0.0
  %370 = vmatpush1.msra.mxu0 %v47
  %371 = vmatprep.subr.mxu0 0.0
  %372 = vmatpush1.msra.mxu0 %v46
  %373 = vmatprep.subr.mxu0 0.0
  %374 = vmatpush2.msra.mxu0 0.0
  %375 = vmatprep.subr.mxu0 0.0
  %376 = vmatpush2.msra.mxu0 0.0
  %377 = vmatprep.subr.mxu0 0.0
  %378 = vmatpush2.msra.mxu0 0.0
  %379 = vmatprep.subr.mxu0 0.0
  %380 = vmatpush2.msra.mxu0 0.0
  %381 = vmatprep.subr.mxu0 0.0
  %382 = vmatpush2.msra.mxu0 0.0
  %383 = vmatprep.subr.mxu0 0.0
  %384 = vmatpush2.msra.mxu0 0.0
  %385 = vmatprep.subr.mxu0 0.0
  %386 = vmatpush2.msra.mxu0 0.0
  %387 = vmatprep.subr.mxu0 0.0
  %388 = vmatpush2.msra.mxu0 0.0
  %389 = vmatprep.subr.mxu0 0.0
  %390 = vmatpush2.msra.mxu0 0.0
  %391 = vmatprep.subr.mxu0 0.0
  %392 = vmatpush2.msra.mxu0 0.0
  %393 = vmatprep.subr.mxu0 0.0
  %394 = vmatpush2.msra.mxu0 0.0
  %395 = vmatprep.subr.mxu0 0.0
  %396 = vmatpush2.msra.mxu0 0.0
  %397 = vmatprep.subr.mxu0 0.0
  %398 = vmatpush2.msra.mxu0 0.0
  %399 = vmatprep.subr.mxu0 0.0
  %400 = vmatpush2.msra.mxu0 0.0
  %401 = vmatprep.subr.mxu0 0.0
  %402 = vmatpush2.msra.mxu0 0.0
  %403 = vmatprep.subr.mxu0 0.0
  %404 = vmatpush2.msra.mxu0 0.0
  %405 = vmatprep.mubr.f32.mxu0 0.0
  %406 = vmatmul.mubr.f32.gmra.mxu0 %v339
  %v407 = vpop.f32.mrf.mxu0
  %v408 = vadd.f32 %v159, %v407
  %v409 = vpop.f32.mrf.mxu0
  %410 = vdwg.mxu0
  %v411 = vadd.f32 %v333, %v408
  %v412 = vxor.u32 %v411, 2147483648
  %v413 = vmul.f32 %v412, 1.442695
  %v414 = vpow.pop %v413
  %v415 = vadd.f32 %v414, 1.0
  %v416 = vrcp.pop %v415
  %v417 = vmul.f32 1.0, %v416
  %419 = vrot.lane.b32.xlu0 %v408, 64
  %v420 = vpop.permute.xlu0 %419
  %v422 = vmul.f32 %v417, %v420
  %424 = vrot.lane.b32.xlu0 %v422, 64
  %v425 = vpop.permute.xlu0 %424
  %v427 = vadd.f32 %v333, %v425
  %v428 = vtanh.pop %v427
  %v429 = vsub.f32 1.0, %v417
  %431 = vrot.lane.b32.xlu0 %v428, 96
  %v432 = vpop.permute.xlu0 %431
  %v434 = vmul.f32 %v429, %v432
  %v435 = vmul.f32 %v417, %v260
  %v436 = vadd.f32 %v434, %v435
  %s437 = scalar_lea.vmem %s0, 16
  %v438 = vld [vmem:[%s437] sm:$0xff]
  %v440 = vsel %vm81, %v438, 0
  %442 = vmatprep.subr.mxu0 0.0
  %443 = vmatpush1.msra.mxu0 0.0
  %444 = vmatprep.subr.mxu0 0.0
  %445 = vmatpush1.msra.mxu0 0.0
  %446 = vmatprep.subr.mxu0 0.0
  %447 = vmatpush1.msra.mxu0 0.0
  %448 = vmatprep.subr.mxu0 0.0
  %449 = vmatpush1.msra.mxu0 0.0
  %450 = vmatprep.subr.mxu0 0.0
  %451 = vmatpush1.msra.mxu0 0.0
  %452 = vmatprep.subr.mxu0 0.0
  %453 = vmatpush1.msra.mxu0 0.0
  %454 = vmatprep.subr.mxu0 0.0
  %455 = vmatpush1.msra.mxu0 0.0
  %456 = vmatprep.subr.mxu0 0.0
  %457 = vmatpush1.msra.mxu0 0.0
  %458 = vmatprep.subr.mxu0 0.0
  %459 = vmatpush1.msra.mxu0 0.0
  %460 = vmatprep.subr.mxu0 0.0
  %461 = vmatpush1.msra.mxu0 0.0
  %462 = vmatprep.subr.mxu0 0.0
  %463 = vmatpush1.msra.mxu0 0.0
  %464 = vmatprep.subr.mxu0 0.0
  %465 = vmatpush1.msra.mxu0 0.0
  %466 = vmatprep.subr.mxu0 0.0
  %467 = vmatpush1.msra.mxu0 0.0
  %468 = vmatprep.subr.mxu0 0.0
  %469 = vmatpush1.msra.mxu0 0.0
  %470 = vmatprep.subr.mxu0 0.0
  %471 = vmatpush1.msra.mxu0 %v45
  %472 = vmatprep.subr.mxu0 0.0
  %473 = vmatpush1.msra.mxu0 %v44
  %474 = vmatprep.subr.mxu0 0.0
  %475 = vmatpush2.msra.mxu0 0.0
  %476 = vmatprep.subr.mxu0 0.0
  %477 = vmatpush2.msra.mxu0 0.0
  %478 = vmatprep.subr.mxu0 0.0
  %479 = vmatpush2.msra.mxu0 0.0
  %480 = vmatprep.subr.mxu0 0.0
  %481 = vmatpush2.msra.mxu0 0.0
  %482 = vmatprep.subr.mxu0 0.0
  %483 = vmatpush2.msra.mxu0 0.0
  %484 = vmatprep.subr.mxu0 0.0
  %485 = vmatpush2.msra.mxu0 0.0
  %486 = vmatprep.subr.mxu0 0.0
  %487 = vmatpush2.msra.mxu0 0.0
  %488 = vmatprep.subr.mxu0 0.0
  %489 = vmatpush2.msra.mxu0 0.0
  %490 = vmatprep.subr.mxu0 0.0
  %491 = vmatpush2.msra.mxu0 0.0
  %492 = vmatprep.subr.mxu0 0.0
  %493 = vmatpush2.msra.mxu0 0.0
  %494 = vmatprep.subr.mxu0 0.0
  %495 = vmatpush2.msra.mxu0 0.0
  %496 = vmatprep.subr.mxu0 0.0
  %497 = vmatpush2.msra.mxu0 0.0
  %498 = vmatprep.subr.mxu0 0.0
  %499 = vmatpush2.msra.mxu0 0.0
  %500 = vmatprep.subr.mxu0 0.0
  %501 = vmatpush2.msra.mxu0 0.0
  %502 = vmatprep.subr.mxu0 0.0
  %503 = vmatpush2.msra.mxu0 0.0
  %504 = vmatprep.subr.mxu0 0.0
  %505 = vmatpush2.msra.mxu0 0.0
  %506 = vmatprep.mubr.f32.mxu0 0.0
  %507 = vmatmul.mubr.f32.gmra.mxu0 %v440
  %v508 = vpop.f32.mrf.mxu0
  %v509 = vadd.f32 %v79, %v508
  %v510 = vpop.f32.mrf.mxu0
  %511 = vdwg.mxu0
  %513 = vrot.lane.b32.xlu0 %v436, 96
  %v514 = vpop.permute.xlu0 %513
  %v515 = vsel %vm161, %v514, 0
  %517 = vmatprep.subr.mxu0 0.0
  %518 = vmatpush1.msra.mxu0 0.0
  %519 = vmatprep.subr.mxu0 0.0
  %520 = vmatpush1.msra.mxu0 0.0
  %521 = vmatprep.subr.mxu0 0.0
  %522 = vmatpush1.msra.mxu0 0.0
  %523 = vmatprep.subr.mxu0 0.0
  %524 = vmatpush1.msra.mxu0 0.0
  %525 = vmatprep.subr.mxu0 0.0
  %526 = vmatpush1.msra.mxu0 0.0
  %527 = vmatprep.subr.mxu0 0.0
  %528 = vmatpush1.msra.mxu0 0.0
  %529 = vmatprep.subr.mxu0 0.0
  %530 = vmatpush1.msra.mxu0 0.0
  %531 = vmatprep.subr.mxu0 0.0
  %532 = vmatpush1.msra.mxu0 0.0
  %533 = vmatprep.subr.mxu0 0.0
  %534 = vmatpush1.msra.mxu0 0.0
  %535 = vmatprep.subr.mxu0 0.0
  %536 = vmatpush1.msra.mxu0 0.0
  %537 = vmatprep.subr.mxu0 0.0
  %538 = vmatpush1.msra.mxu0 0.0
  %539 = vmatprep.subr.mxu0 0.0
  %540 = vmatpush1.msra.mxu0 0.0
  %541 = vmatprep.subr.mxu0 0.0
  %542 = vmatpush1.msra.mxu0 %v49
  %543 = vmatprep.subr.mxu0 0.0
  %544 = vmatpush1.msra.mxu0 %v48
  %545 = vmatprep.subr.mxu0 0.0
  %546 = vmatpush1.msra.mxu0 %v47
  %547 = vmatprep.subr.mxu0 0.0
  %548 = vmatpush1.msra.mxu0 %v46
  %549 = vmatprep.subr.mxu0 0.0
  %550 = vmatpush2.msra.mxu0 0.0
  %551 = vmatprep.subr.mxu0 0.0
  %552 = vmatpush2.msra.mxu0 0.0
  %553 = vmatprep.subr.mxu0 0.0
  %554 = vmatpush2.msra.mxu0 0.0
  %555 = vmatprep.subr.mxu0 0.0
  %556 = vmatpush2.msra.mxu0 0.0
  %557 = vmatprep.subr.mxu0 0.0
  %558 = vmatpush2.msra.mxu0 0.0
  %559 = vmatprep.subr.mxu0 0.0
  %560 = vmatpush2.msra.mxu0 0.0
  %561 = vmatprep.subr.mxu0 0.0
  %562 = vmatpush2.msra.mxu0 0.0
  %563 = vmatprep.subr.mxu0 0.0
  %564 = vmatpush2.msra.mxu0 0.0
  %565 = vmatprep.subr.mxu0 0.0
  %566 = vmatpush2.msra.mxu0 0.0
  %567 = vmatprep.subr.mxu0 0.0
  %568 = vmatpush2.msra.mxu0 0.0
  %569 = vmatprep.subr.mxu0 0.0
  %570 = vmatpush2.msra.mxu0 0.0
  %571 = vmatprep.subr.mxu0 0.0
  %572 = vmatpush2.msra.mxu0 0.0
  %573 = vmatprep.subr.mxu0 0.0
  %574 = vmatpush2.msra.mxu0 0.0
  %575 = vmatprep.subr.mxu0 0.0
  %576 = vmatpush2.msra.mxu0 0.0
  %577 = vmatprep.subr.mxu0 0.0
  %578 = vmatpush2.msra.mxu0 0.0
  %579 = vmatprep.subr.mxu0 0.0
  %580 = vmatpush2.msra.mxu0 0.0
  %581 = vmatprep.mubr.f32.mxu0 0.0
  %582 = vmatmul.mubr.f32.gmra.mxu0 %v515
  %v583 = vpop.f32.mrf.mxu0
  %v584 = vadd.f32 %v159, %v583
  %v585 = vpop.f32.mrf.mxu0
  %586 = vdwg.mxu0
  %v587 = vadd.f32 %v509, %v584
  %v588 = vxor.u32 %v587, 2147483648
  %v589 = vmul.f32 %v588, 1.442695
  %v590 = vpow.pop %v589
  %v591 = vadd.f32 %v590, 1.0
  %v592 = vrcp.pop %v591
  %v593 = vmul.f32 1.0, %v592
  %595 = vrot.lane.b32.xlu0 %v584, 64
  %v596 = vpop.permute.xlu0 %595
  %v598 = vmul.f32 %v593, %v596
  %600 = vrot.lane.b32.xlu0 %v598, 64
  %v601 = vpop.permute.xlu0 %600
  %v603 = vadd.f32 %v509, %v601
  %v604 = vtanh.pop %v603
  %v605 = vsub.f32 1.0, %v593
  %607 = vrot.lane.b32.xlu0 %v604, 96
  %v608 = vpop.permute.xlu0 %607
  %v610 = vmul.f32 %v605, %v608
  %v611 = vmul.f32 %v593, %v436
  %v612 = vadd.f32 %v610, %v611
  %s613 = scalar_lea.vmem %s0, 24
  %v614 = vld [vmem:[%s613] sm:$0xff]
  %v616 = vsel %vm81, %v614, 0
  %618 = vmatprep.subr.mxu0 0.0
  %619 = vmatpush1.msra.mxu0 0.0
  %620 = vmatprep.subr.mxu0 0.0
  %621 = vmatpush1.msra.mxu0 0.0
  %622 = vmatprep.subr.mxu0 0.0
  %623 = vmatpush1.msra.mxu0 0.0
  %624 = vmatprep.subr.mxu0 0.0
  %625 = vmatpush1.msra.mxu0 0.0
  %626 = vmatprep.subr.mxu0 0.0
  %627 = vmatpush1.msra.mxu0 0.0
  %628 = vmatprep.subr.mxu0 0.0
  %629 = vmatpush1.msra.mxu0 0.0
  %630 = vmatprep.subr.mxu0 0.0
  %631 = vmatpush1.msra.mxu0 0.0
  %632 = vmatprep.subr.mxu0 0.0
  %633 = vmatpush1.msra.mxu0 0.0
  %634 = vmatprep.subr.mxu0 0.0
  %635 = vmatpush1.msra.mxu0 0.0
  %636 = vmatprep.subr.mxu0 0.0
  %637 = vmatpush1.msra.mxu0 0.0
  %638 = vmatprep.subr.mxu0 0.0
  %639 = vmatpush1.msra.mxu0 0.0
  %640 = vmatprep.subr.mxu0 0.0
  %641 = vmatpush1.msra.mxu0 0.0
  %642 = vmatprep.subr.mxu0 0.0
  %643 = vmatpush1.msra.mxu0 0.0
  %644 = vmatprep.subr.mxu0 0.0
  %645 = vmatpush1.msra.mxu0 0.0
  %646 = vmatprep.subr.mxu0 0.0
  %647 = vmatpush1.msra.mxu0 %v45
  %648 = vmatprep.subr.mxu0 0.0
  %649 = vmatpush1.msra.mxu0 %v44
  %650 = vmatprep.subr.mxu0 0.0
  %651 = vmatpush2.msra.mxu0 0.0
  %652 = vmatprep.subr.mxu0 0.0
  %653 = vmatpush2.msra.mxu0 0.0
  %654 = vmatprep.subr.mxu0 0.0
  %655 = vmatpush2.msra.mxu0 0.0
  %656 = vmatprep.subr.mxu0 0.0
  %657 = vmatpush2.msra.mxu0 0.0
  %658 = vmatprep.subr.mxu0 0.0
  %659 = vmatpush2.msra.mxu0 0.0
  %660 = vmatprep.subr.mxu0 0.0
  %661 = vmatpush2.msra.mxu0 0.0
  %662 = vmatprep.subr.mxu0 0.0
  %663 = vmatpush2.msra.mxu0 0.0
  %664 = vmatprep.subr.mxu0 0.0
  %665 = vmatpush2.msra.mxu0 0.0
  %666 = vmatprep.subr.mxu0 0.0
  %667 = vmatpush2.msra.mxu0 0.0
  %668 = vmatprep.subr.mxu0 0.0
  %669 = vmatpush2.msra.mxu0 0.0
  %670 = vmatprep.subr.mxu0 0.0
  %671 = vmatpush2.msra.mxu0 0.0
  %672 = vmatprep.subr.mxu0 0.0
  %673 = vmatpush2.msra.mxu0 0.0
  %674 = vmatprep.subr.mxu0 0.0
  %675 = vmatpush2.msra.mxu0 0.0
  %676 = vmatprep.subr.mxu0 0.0
  %677 = vmatpush2.msra.mxu0 0.0
  %678 = vmatprep.subr.mxu0 0.0
  %679 = vmatpush2.msra.mxu0 0.0
  %680 = vmatprep.subr.mxu0 0.0
  %681 = vmatpush2.msra.mxu0 0.0
  %682 = vmatprep.mubr.f32.mxu0 0.0
  %683 = vmatmul.mubr.f32.gmra.mxu0 %v616
  %v684 = vpop.f32.mrf.mxu0
  %v685 = vadd.f32 %v79, %v684
  %v686 = vpop.f32.mrf.mxu0
  %687 = vdwg.mxu0
  %689 = vrot.lane.b32.xlu0 %v612, 96
  %v690 = vpop.permute.xlu0 %689
  %v691 = vsel %vm161, %v690, 0
  %693 = vmatprep.subr.mxu0 0.0
  %694 = vmatpush1.msra.mxu0 0.0
  %695 = vmatprep.subr.mxu0 0.0
  %696 = vmatpush1.msra.mxu0 0.0
  %697 = vmatprep.subr.mxu0 0.0
  %698 = vmatpush1.msra.mxu0 0.0
  %699 = vmatprep.subr.mxu0 0.0
  %700 = vmatpush1.msra.mxu0 0.0
  %701 = vmatprep.subr.mxu0 0.0
  %702 = vmatpush1.msra.mxu0 0.0
  %703 = vmatprep.subr.mxu0 0.0
  %704 = vmatpush1.msra.mxu0 0.0
  %705 = vmatprep.subr.mxu0 0.0
  %706 = vmatpush1.msra.mxu0 0.0
  %707 = vmatprep.subr.mxu0 0.0
  %708 = vmatpush1.msra.mxu0 0.0
  %709 = vmatprep.subr.mxu0 0.0
  %710 = vmatpush1.msra.mxu0 0.0
  %711 = vmatprep.subr.mxu0 0.0
  %712 = vmatpush1.msra.mxu0 0.0
  %713 = vmatprep.subr.mxu0 0.0
  %714 = vmatpush1.msra.mxu0 0.0
  %715 = vmatprep.subr.mxu0 0.0
  %716 = vmatpush1.msra.mxu0 0.0
  %717 = vmatprep.subr.mxu0 0.0
  %718 = vmatpush1.msra.mxu0 %v49
  %719 = vmatprep.subr.mxu0 0.0
  %720 = vmatpush1.msra.mxu0 %v48
  %721 = vmatprep.subr.mxu0 0.0
  %722 = vmatpush1.msra.mxu0 %v47
  %723 = vmatprep.subr.mxu0 0.0
  %724 = vmatpush1.msra.mxu0 %v46
  %725 = vmatprep.subr.mxu0 0.0
  %726 = vmatpush2.msra.mxu0 0.0
  %727 = vmatprep.subr.mxu0 0.0
  %728 = vmatpush2.msra.mxu0 0.0
  %729 = vmatprep.subr.mxu0 0.0
  %730 = vmatpush2.msra.mxu0 0.0
  %731 = vmatprep.subr.mxu0 0.0
  %732 = vmatpush2.msra.mxu0 0.0
  %733 = vmatprep.subr.mxu0 0.0
  %734 = vmatpush2.msra.mxu0 0.0
  %735 = vmatprep.subr.mxu0 0.0
  %736 = vmatpush2.msra.mxu0 0.0
  %737 = vmatprep.subr.mxu0 0.0
  %738 = vmatpush2.msra.mxu0 0.0
  %739 = vmatprep.subr.mxu0 0.0
  %740 = vmatpush2.msra.mxu0 0.0
  %741 = vmatprep.subr.mxu0 0.0
  %742 = vmatpush2.msra.mxu0 0.0
  %743 = vmatprep.subr.mxu0 0.0
  %744 = vmatpush2.msra.mxu0 0.0
  %745 = vmatprep.subr.mxu0 0.0
  %746 = vmatpush2.msra.mxu0 0.0
  %747 = vmatprep.subr.mxu0 0.0
  %748 = vmatpush2.msra.mxu0 0.0
  %749 = vmatprep.subr.mxu0 0.0
  %750 = vmatpush2.msra.mxu0 0.0
  %751 = vmatprep.subr.mxu0 0.0
  %752 = vmatpush2.msra.mxu0 0.0
  %753 = vmatprep.subr.mxu0 0.0
  %754 = vmatpush2.msra.mxu0 0.0
  %755 = vmatprep.subr.mxu0 0.0
  %756 = vmatpush2.msra.mxu0 0.0
  %757 = vmatprep.mubr.f32.mxu0 0.0
  %758 = vmatmul.mubr.f32.gmra.mxu0 %v691
  %v759 = vpop.f32.mrf.mxu0
  %v760 = vadd.f32 %v159, %v759
  %v761 = vpop.f32.mrf.mxu0
  %762 = vdwg.mxu0
  %v763 = vadd.f32 %v685, %v760
  %v764 = vxor.u32 %v763, 2147483648
  %v765 = vmul.f32 %v764, 1.442695
  %v766 = vpow.pop %v765
  %v767 = vadd.f32 %v766, 1.0
  %v768 = vrcp.pop %v767
  %v769 = vmul.f32 1.0, %v768
  %771 = vrot.lane.b32.xlu0 %v760, 64
  %v772 = vpop.permute.xlu0 %771
  %v774 = vmul.f32 %v769, %v772
  %776 = vrot.lane.b32.xlu0 %v774, 64
  %v777 = vpop.permute.xlu0 %776
  %v779 = vadd.f32 %v685, %v777
  %v780 = vtanh.pop %v779
  %v781 = vsub.f32 1.0, %v769
  %783 = vrot.lane.b32.xlu0 %v780, 96
  %v784 = vpop.permute.xlu0 %783
  %v786 = vmul.f32 %v781, %v784
  %v787 = vmul.f32 %v769, %v612
  %v788 = vadd.f32 %v786, %v787
  %s789 = scalar_lea.vmem %s0, 32
  %v790 = vld [vmem:[%s789] sm:$0xff]
  %v792 = vsel %vm81, %v790, 0
  %794 = vmatprep.subr.mxu0 0.0
  %795 = vmatpush1.msra.mxu0 0.0
  %796 = vmatprep.subr.mxu0 0.0
  %797 = vmatpush1.msra.mxu0 0.0
  %798 = vmatprep.subr.mxu0 0.0
  %799 = vmatpush1.msra.mxu0 0.0
  %800 = vmatprep.subr.mxu0 0.0
  %801 = vmatpush1.msra.mxu0 0.0
  %802 = vmatprep.subr.mxu0 0.0
  %803 = vmatpush1.msra.mxu0 0.0
  %804 = vmatprep.subr.mxu0 0.0
  %805 = vmatpush1.msra.mxu0 0.0
  %806 = vmatprep.subr.mxu0 0.0
  %807 = vmatpush1.msra.mxu0 0.0
  %808 = vmatprep.subr.mxu0 0.0
  %809 = vmatpush1.msra.mxu0 0.0
  %810 = vmatprep.subr.mxu0 0.0
  %811 = vmatpush1.msra.mxu0 0.0
  %812 = vmatprep.subr.mxu0 0.0
  %813 = vmatpush1.msra.mxu0 0.0
  %814 = vmatprep.subr.mxu0 0.0
  %815 = vmatpush1.msra.mxu0 0.0
  %816 = vmatprep.subr.mxu0 0.0
  %817 = vmatpush1.msra.mxu0 0.0
  %818 = vmatprep.subr.mxu0 0.0
  %819 = vmatpush1.msra.mxu0 0.0
  %820 = vmatprep.subr.mxu0 0.0
  %821 = vmatpush1.msra.mxu0 0.0
  %822 = vmatprep.subr.mxu0 0.0
  %823 = vmatpush1.msra.mxu0 %v45
  %824 = vmatprep.subr.mxu0 0.0
  %825 = vmatpush1.msra.mxu0 %v44
  %826 = vmatprep.subr.mxu0 0.0
  %827 = vmatpush2.msra.mxu0 0.0
  %828 = vmatprep.subr.mxu0 0.0
  %829 = vmatpush2.msra.mxu0 0.0
  %830 = vmatprep.subr.mxu0 0.0
  %831 = vmatpush2.msra.mxu0 0.0
  %832 = vmatprep.subr.mxu0 0.0
  %833 = vmatpush2.msra.mxu0 0.0
  %834 = vmatprep.subr.mxu0 0.0
  %835 = vmatpush2.msra.mxu0 0.0
  %836 = vmatprep.subr.mxu0 0.0
  %837 = vmatpush2.msra.mxu0 0.0
  %838 = vmatprep.subr.mxu0 0.0
  %839 = vmatpush2.msra.mxu0 0.0
  %840 = vmatprep.subr.mxu0 0.0
  %841 = vmatpush2.msra.mxu0 0.0
  %842 = vmatprep.subr.mxu0 0.0
  %843 = vmatpush2.msra.mxu0 0.0
  %844 = vmatprep.subr.mxu0 0.0
  %845 = vmatpush2.msra.mxu0 0.0
  %846 = vmatprep.subr.mxu0 0.0
  %847 = vmatpush2.msra.mxu0 0.0
  %848 = vmatprep.subr.mxu0 0.0
  %849 = vmatpush2.msra.mxu0 0.0
  %850 = vmatprep.subr.mxu0 0.0
  %851 = vmatpush2.msra.mxu0 0.0
  %852 = vmatprep.subr.mxu0 0.0
  %853 = vmatpush2.msra.mxu0 0.0
  %854 = vmatprep.subr.mxu0 0.0
  %855 = vmatpush2.msra.mxu0 0.0
  %856 = vmatprep.subr.mxu0 0.0
  %857 = vmatpush2.msra.mxu0 0.0
  %858 = vmatprep.mubr.f32.mxu0 0.0
  %859 = vmatmul.mubr.f32.gmra.mxu0 %v792
  %v860 = vpop.f32.mrf.mxu0
  %v861 = vadd.f32 %v79, %v860
  %v862 = vpop.f32.mrf.mxu0
  %863 = vdwg.mxu0
  %865 = vrot.lane.b32.xlu0 %v788, 96
  %v866 = vpop.permute.xlu0 %865
  %v867 = vsel %vm161, %v866, 0
  %869 = vmatprep.subr.mxu0 0.0
  %870 = vmatpush1.msra.mxu0 0.0
  %871 = vmatprep.subr.mxu0 0.0
  %872 = vmatpush1.msra.mxu0 0.0
  %873 = vmatprep.subr.mxu0 0.0
  %874 = vmatpush1.msra.mxu0 0.0
  %875 = vmatprep.subr.mxu0 0.0
  %876 = vmatpush1.msra.mxu0 0.0
  %877 = vmatprep.subr.mxu0 0.0
  %878 = vmatpush1.msra.mxu0 0.0
  %879 = vmatprep.subr.mxu0 0.0
  %880 = vmatpush1.msra.mxu0 0.0
  %881 = vmatprep.subr.mxu0 0.0
  %882 = vmatpush1.msra.mxu0 0.0
  %883 = vmatprep.subr.mxu0 0.0
  %884 = vmatpush1.msra.mxu0 0.0
  %885 = vmatprep.subr.mxu0 0.0
  %886 = vmatpush1.msra.mxu0 0.0
  %887 = vmatprep.subr.mxu0 0.0
  %888 = vmatpush1.msra.mxu0 0.0
  %889 = vmatprep.subr.mxu0 0.0
  %890 = vmatpush1.msra.mxu0 0.0
  %891 = vmatprep.subr.mxu0 0.0
  %892 = vmatpush1.msra.mxu0 0.0
  %893 = vmatprep.subr.mxu0 0.0
  %894 = vmatpush1.msra.mxu0 %v49
  %895 = vmatprep.subr.mxu0 0.0
  %896 = vmatpush1.msra.mxu0 %v48
  %897 = vmatprep.subr.mxu0 0.0
  %898 = vmatpush1.msra.mxu0 %v47
  %899 = vmatprep.subr.mxu0 0.0
  %900 = vmatpush1.msra.mxu0 %v46
  %901 = vmatprep.subr.mxu0 0.0
  %902 = vmatpush2.msra.mxu0 0.0
  %903 = vmatprep.subr.mxu0 0.0
  %904 = vmatpush2.msra.mxu0 0.0
  %905 = vmatprep.subr.mxu0 0.0
  %906 = vmatpush2.msra.mxu0 0.0
  %907 = vmatprep.subr.mxu0 0.0
  %908 = vmatpush2.msra.mxu0 0.0
  %909 = vmatprep.subr.mxu0 0.0
  %910 = vmatpush2.msra.mxu0 0.0
  %911 = vmatprep.subr.mxu0 0.0
  %912 = vmatpush2.msra.mxu0 0.0
  %913 = vmatprep.subr.mxu0 0.0
  %914 = vmatpush2.msra.mxu0 0.0
  %915 = vmatprep.subr.mxu0 0.0
  %916 = vmatpush2.msra.mxu0 0.0
  %917 = vmatprep.subr.mxu0 0.0
  %918 = vmatpush2.msra.mxu0 0.0
  %919 = vmatprep.subr.mxu0 0.0
  %920 = vmatpush2.msra.mxu0 0.0
  %921 = vmatprep.subr.mxu0 0.0
  %922 = vmatpush2.msra.mxu0 0.0
  %923 = vmatprep.subr.mxu0 0.0
  %924 = vmatpush2.msra.mxu0 0.0
  %925 = vmatprep.subr.mxu0 0.0
  %926 = vmatpush2.msra.mxu0 0.0
  %927 = vmatprep.subr.mxu0 0.0
  %928 = vmatpush2.msra.mxu0 0.0
  %929 = vmatprep.subr.mxu0 0.0
  %930 = vmatpush2.msra.mxu0 0.0
  %931 = vmatprep.subr.mxu0 0.0
  %932 = vmatpush2.msra.mxu0 0.0
  %933 = vmatprep.mubr.f32.mxu0 0.0
  %934 = vmatmul.mubr.f32.gmra.mxu0 %v867
  %v935 = vpop.f32.mrf.mxu0
  %v936 = vadd.f32 %v159, %v935
  %v937 = vpop.f32.mrf.mxu0
  %938 = vdwg.mxu0
  %v939 = vadd.f32 %v861, %v936
  %v940 = vxor.u32 %v939, 2147483648
  %v941 = vmul.f32 %v940, 1.442695
  %v942 = vpow.pop %v941
  %v943 = vadd.f32 %v942, 1.0
  %v944 = vrcp.pop %v943
  %v945 = vmul.f32 1.0, %v944
  %947 = vrot.lane.b32.xlu0 %v936, 64
  %v948 = vpop.permute.xlu0 %947
  %v950 = vmul.f32 %v945, %v948
  %952 = vrot.lane.b32.xlu0 %v950, 64
  %v953 = vpop.permute.xlu0 %952
  %v955 = vadd.f32 %v861, %v953
  %v956 = vtanh.pop %v955
  %v957 = vsub.f32 1.0, %v945
  %959 = vrot.lane.b32.xlu0 %v956, 96
  %v960 = vpop.permute.xlu0 %959
  %v962 = vmul.f32 %v957, %v960
  %v963 = vmul.f32 %v945, %v788
  %v964 = vadd.f32 %v962, %v963
  %s965 = scalar_lea.vmem %s0, 40
  %v966 = vld [vmem:[%s965] sm:$0xff]
  %v968 = vsel %vm81, %v966, 0
  %970 = vmatprep.subr.mxu0 0.0
  %971 = vmatpush1.msra.mxu0 0.0
  %972 = vmatprep.subr.mxu0 0.0
  %973 = vmatpush1.msra.mxu0 0.0
  %974 = vmatprep.subr.mxu0 0.0
  %975 = vmatpush1.msra.mxu0 0.0
  %976 = vmatprep.subr.mxu0 0.0
  %977 = vmatpush1.msra.mxu0 0.0
  %978 = vmatprep.subr.mxu0 0.0
  %979 = vmatpush1.msra.mxu0 0.0
  %980 = vmatprep.subr.mxu0 0.0
  %981 = vmatpush1.msra.mxu0 0.0
  %982 = vmatprep.subr.mxu0 0.0
  %983 = vmatpush1.msra.mxu0 0.0
  %984 = vmatprep.subr.mxu0 0.0
  %985 = vmatpush1.msra.mxu0 0.0
  %986 = vmatprep.subr.mxu0 0.0
  %987 = vmatpush1.msra.mxu0 0.0
  %988 = vmatprep.subr.mxu0 0.0
  %989 = vmatpush1.msra.mxu0 0.0
  %990 = vmatprep.subr.mxu0 0.0
  %991 = vmatpush1.msra.mxu0 0.0
  %992 = vmatprep.subr.mxu0 0.0
  %993 = vmatpush1.msra.mxu0 0.0
  %994 = vmatprep.subr.mxu0 0.0
  %995 = vmatpush1.msra.mxu0 0.0
  %996 = vmatprep.subr.mxu0 0.0
  %997 = vmatpush1.msra.mxu0 0.0
  %998 = vmatprep.subr.mxu0 0.0
  %999 = vmatpush1.msra.mxu0 %v45
  %1000 = vmatprep.subr.mxu0 0.0
  %1001 = vmatpush1.msra.mxu0 %v44
  %1002 = vmatprep.subr.mxu0 0.0
  %1003 = vmatpush2.msra.mxu0 0.0
  %1004 = vmatprep.subr.mxu0 0.0
  %1005 = vmatpush2.msra.mxu0 0.0
  %1006 = vmatprep.subr.mxu0 0.0
  %1007 = vmatpush2.msra.mxu0 0.0
  %1008 = vmatprep.subr.mxu0 0.0
  %1009 = vmatpush2.msra.mxu0 0.0
  %1010 = vmatprep.subr.mxu0 0.0
  %1011 = vmatpush2.msra.mxu0 0.0
  %1012 = vmatprep.subr.mxu0 0.0
  %1013 = vmatpush2.msra.mxu0 0.0
  %1014 = vmatprep.subr.mxu0 0.0
  %1015 = vmatpush2.msra.mxu0 0.0
  %1016 = vmatprep.subr.mxu0 0.0
  %1017 = vmatpush2.msra.mxu0 0.0
  %1018 = vmatprep.subr.mxu0 0.0
  %1019 = vmatpush2.msra.mxu0 0.0
  %1020 = vmatprep.subr.mxu0 0.0
  %1021 = vmatpush2.msra.mxu0 0.0
  %1022 = vmatprep.subr.mxu0 0.0
  %1023 = vmatpush2.msra.mxu0 0.0
  %1024 = vmatprep.subr.mxu0 0.0
  %1025 = vmatpush2.msra.mxu0 0.0
  %1026 = vmatprep.subr.mxu0 0.0
  %1027 = vmatpush2.msra.mxu0 0.0
  %1028 = vmatprep.subr.mxu0 0.0
  %1029 = vmatpush2.msra.mxu0 0.0
  %1030 = vmatprep.subr.mxu0 0.0
  %1031 = vmatpush2.msra.mxu0 0.0
  %1032 = vmatprep.subr.mxu0 0.0
  %1033 = vmatpush2.msra.mxu0 0.0
  %1034 = vmatprep.mubr.f32.mxu0 0.0
  %1035 = vmatmul.mubr.f32.gmra.mxu0 %v968
  %v1036 = vpop.f32.mrf.mxu0
  %v1037 = vadd.f32 %v79, %v1036
  %v1038 = vpop.f32.mrf.mxu0
  %1039 = vdwg.mxu0
  %1041 = vrot.lane.b32.xlu0 %v964, 96
  %v1042 = vpop.permute.xlu0 %1041
  %v1043 = vsel %vm161, %v1042, 0
  %1045 = vmatprep.subr.mxu0 0.0
  %1046 = vmatpush1.msra.mxu0 0.0
  %1047 = vmatprep.subr.mxu0 0.0
  %1048 = vmatpush1.msra.mxu0 0.0
  %1049 = vmatprep.subr.mxu0 0.0
  %1050 = vmatpush1.msra.mxu0 0.0
  %1051 = vmatprep.subr.mxu0 0.0
  %1052 = vmatpush1.msra.mxu0 0.0
  %1053 = vmatprep.subr.mxu0 0.0
  %1054 = vmatpush1.msra.mxu0 0.0
  %1055 = vmatprep.subr.mxu0 0.0
  %1056 = vmatpush1.msra.mxu0 0.0
  %1057 = vmatprep.subr.mxu0 0.0
  %1058 = vmatpush1.msra.mxu0 0.0
  %1059 = vmatprep.subr.mxu0 0.0
  %1060 = vmatpush1.msra.mxu0 0.0
  %1061 = vmatprep.subr.mxu0 0.0
  %1062 = vmatpush1.msra.mxu0 0.0
  %1063 = vmatprep.subr.mxu0 0.0
  %1064 = vmatpush1.msra.mxu0 0.0
  %1065 = vmatprep.subr.mxu0 0.0
  %1066 = vmatpush1.msra.mxu0 0.0
  %1067 = vmatprep.subr.mxu0 0.0
  %1068 = vmatpush1.msra.mxu0 0.0
  %1069 = vmatprep.subr.mxu0 0.0
  %1070 = vmatpush1.msra.mxu0 %v49
  %1071 = vmatprep.subr.mxu0 0.0
  %1072 = vmatpush1.msra.mxu0 %v48
  %1073 = vmatprep.subr.mxu0 0.0
  %1074 = vmatpush1.msra.mxu0 %v47
  %1075 = vmatprep.subr.mxu0 0.0
  %1076 = vmatpush1.msra.mxu0 %v46
  %1077 = vmatprep.subr.mxu0 0.0
  %1078 = vmatpush2.msra.mxu0 0.0
  %1079 = vmatprep.subr.mxu0 0.0
  %1080 = vmatpush2.msra.mxu0 0.0
  %1081 = vmatprep.subr.mxu0 0.0
  %1082 = vmatpush2.msra.mxu0 0.0
  %1083 = vmatprep.subr.mxu0 0.0
  %1084 = vmatpush2.msra.mxu0 0.0
  %1085 = vmatprep.subr.mxu0 0.0
  %1086 = vmatpush2.msra.mxu0 0.0
  %1087 = vmatprep.subr.mxu0 0.0
  %1088 = vmatpush2.msra.mxu0 0.0
  %1089 = vmatprep.subr.mxu0 0.0
  %1090 = vmatpush2.msra.mxu0 0.0
  %1091 = vmatprep.subr.mxu0 0.0
  %1092 = vmatpush2.msra.mxu0 0.0
  %1093 = vmatprep.subr.mxu0 0.0
  %1094 = vmatpush2.msra.mxu0 0.0
  %1095 = vmatprep.subr.mxu0 0.0
  %1096 = vmatpush2.msra.mxu0 0.0
  %1097 = vmatprep.subr.mxu0 0.0
  %1098 = vmatpush2.msra.mxu0 0.0
  %1099 = vmatprep.subr.mxu0 0.0
  %1100 = vmatpush2.msra.mxu0 0.0
  %1101 = vmatprep.subr.mxu0 0.0
  %1102 = vmatpush2.msra.mxu0 0.0
  %1103 = vmatprep.subr.mxu0 0.0
  %1104 = vmatpush2.msra.mxu0 0.0
  %1105 = vmatprep.subr.mxu0 0.0
  %1106 = vmatpush2.msra.mxu0 0.0
  %1107 = vmatprep.subr.mxu0 0.0
  %1108 = vmatpush2.msra.mxu0 0.0
  %1109 = vmatprep.mubr.f32.mxu0 0.0
  %1110 = vmatmul.mubr.f32.gmra.mxu0 %v1043
  %v1111 = vpop.f32.mrf.mxu0
  %v1112 = vadd.f32 %v159, %v1111
  %v1113 = vpop.f32.mrf.mxu0
  %1114 = vdwg.mxu0
  %v1115 = vadd.f32 %v1037, %v1112
  %v1116 = vxor.u32 %v1115, 2147483648
  %v1117 = vmul.f32 %v1116, 1.442695
  %v1118 = vpow.pop %v1117
  %v1119 = vadd.f32 %v1118, 1.0
  %v1120 = vrcp.pop %v1119
  %v1121 = vmul.f32 1.0, %v1120
  %1123 = vrot.lane.b32.xlu0 %v1112, 64
  %v1124 = vpop.permute.xlu0 %1123
  %v1126 = vmul.f32 %v1121, %v1124
  %1128 = vrot.lane.b32.xlu0 %v1126, 64
  %v1129 = vpop.permute.xlu0 %1128
  %v1131 = vadd.f32 %v1037, %v1129
  %v1132 = vtanh.pop %v1131
  %v1133 = vsub.f32 1.0, %v1121
  %1135 = vrot.lane.b32.xlu0 %v1132, 96
  %v1136 = vpop.permute.xlu0 %1135
  %v1138 = vmul.f32 %v1133, %v1136
  %v1139 = vmul.f32 %v1121, %v964
  %v1140 = vadd.f32 %v1138, %v1139
  %s1141 = scalar_lea.vmem %s0, 48
  %v1142 = vld [vmem:[%s1141] sm:$0xff]
  %v1144 = vsel %vm81, %v1142, 0
  %1146 = vmatprep.subr.mxu0 0.0
  %1147 = vmatpush1.msra.mxu0 0.0
  %1148 = vmatprep.subr.mxu0 0.0
  %1149 = vmatpush1.msra.mxu0 0.0
  %1150 = vmatprep.subr.mxu0 0.0
  %1151 = vmatpush1.msra.mxu0 0.0
  %1152 = vmatprep.subr.mxu0 0.0
  %1153 = vmatpush1.msra.mxu0 0.0
  %1154 = vmatprep.subr.mxu0 0.0
  %1155 = vmatpush1.msra.mxu0 0.0
  %1156 = vmatprep.subr.mxu0 0.0
  %1157 = vmatpush1.msra.mxu0 0.0
  %1158 = vmatprep.subr.mxu0 0.0
  %1159 = vmatpush1.msra.mxu0 0.0
  %1160 = vmatprep.subr.mxu0 0.0
  %1161 = vmatpush1.msra.mxu0 0.0
  %1162 = vmatprep.subr.mxu0 0.0
  %1163 = vmatpush1.msra.mxu0 0.0
  %1164 = vmatprep.subr.mxu0 0.0
  %1165 = vmatpush1.msra.mxu0 0.0
  %1166 = vmatprep.subr.mxu0 0.0
  %1167 = vmatpush1.msra.mxu0 0.0
  %1168 = vmatprep.subr.mxu0 0.0
  %1169 = vmatpush1.msra.mxu0 0.0
  %1170 = vmatprep.subr.mxu0 0.0
  %1171 = vmatpush1.msra.mxu0 0.0
  %1172 = vmatprep.subr.mxu0 0.0
  %1173 = vmatpush1.msra.mxu0 0.0
  %1174 = vmatprep.subr.mxu0 0.0
  %1175 = vmatpush1.msra.mxu0 %v45
  %1176 = vmatprep.subr.mxu0 0.0
  %1177 = vmatpush1.msra.mxu0 %v44
  %1178 = vmatprep.subr.mxu0 0.0
  %1179 = vmatpush2.msra.mxu0 0.0
  %1180 = vmatprep.subr.mxu0 0.0
  %1181 = vmatpush2.msra.mxu0 0.0
  %1182 = vmatprep.subr.mxu0 0.0
  %1183 = vmatpush2.msra.mxu0 0.0
  %1184 = vmatprep.subr.mxu0 0.0
  %1185 = vmatpush2.msra.mxu0 0.0
  %1186 = vmatprep.subr.mxu0 0.0
  %1187 = vmatpush2.msra.mxu0 0.0
  %1188 = vmatprep.subr.mxu0 0.0
  %1189 = vmatpush2.msra.mxu0 0.0
  %1190 = vmatprep.subr.mxu0 0.0
  %1191 = vmatpush2.msra.mxu0 0.0
  %1192 = vmatprep.subr.mxu0 0.0
  %1193 = vmatpush2.msra.mxu0 0.0
  %1194 = vmatprep.subr.mxu0 0.0
  %1195 = vmatpush2.msra.mxu0 0.0
  %1196 = vmatprep.subr.mxu0 0.0
  %1197 = vmatpush2.msra.mxu0 0.0
  %1198 = vmatprep.subr.mxu0 0.0
  %1199 = vmatpush2.msra.mxu0 0.0
  %1200 = vmatprep.subr.mxu0 0.0
  %1201 = vmatpush2.msra.mxu0 0.0
  %1202 = vmatprep.subr.mxu0 0.0
  %1203 = vmatpush2.msra.mxu0 0.0
  %1204 = vmatprep.subr.mxu0 0.0
  %1205 = vmatpush2.msra.mxu0 0.0
  %1206 = vmatprep.subr.mxu0 0.0
  %1207 = vmatpush2.msra.mxu0 0.0
  %1208 = vmatprep.subr.mxu0 0.0
  %1209 = vmatpush2.msra.mxu0 0.0
  %1210 = vmatprep.mubr.f32.mxu0 0.0
  %1211 = vmatmul.mubr.f32.gmra.mxu0 %v1144
  %v1212 = vpop.f32.mrf.mxu0
  %v1213 = vadd.f32 %v79, %v1212
  %v1214 = vpop.f32.mrf.mxu0
  %1215 = vdwg.mxu0
  %1217 = vrot.lane.b32.xlu0 %v1140, 96
  %v1218 = vpop.permute.xlu0 %1217
  %v1219 = vsel %vm161, %v1218, 0
  %1221 = vmatprep.subr.mxu0 0.0
  %1222 = vmatpush1.msra.mxu0 0.0
  %1223 = vmatprep.subr.mxu0 0.0
  %1224 = vmatpush1.msra.mxu0 0.0
  %1225 = vmatprep.subr.mxu0 0.0
  %1226 = vmatpush1.msra.mxu0 0.0
  %1227 = vmatprep.subr.mxu0 0.0
  %1228 = vmatpush1.msra.mxu0 0.0
  %1229 = vmatprep.subr.mxu0 0.0
  %1230 = vmatpush1.msra.mxu0 0.0
  %1231 = vmatprep.subr.mxu0 0.0
  %1232 = vmatpush1.msra.mxu0 0.0
  %1233 = vmatprep.subr.mxu0 0.0
  %1234 = vmatpush1.msra.mxu0 0.0
  %1235 = vmatprep.subr.mxu0 0.0
  %1236 = vmatpush1.msra.mxu0 0.0
  %1237 = vmatprep.subr.mxu0 0.0
  %1238 = vmatpush1.msra.mxu0 0.0
  %1239 = vmatprep.subr.mxu0 0.0
  %1240 = vmatpush1.msra.mxu0 0.0
  %1241 = vmatprep.subr.mxu0 0.0
  %1242 = vmatpush1.msra.mxu0 0.0
  %1243 = vmatprep.subr.mxu0 0.0
  %1244 = vmatpush1.msra.mxu0 0.0
  %1245 = vmatprep.subr.mxu0 0.0
  %1246 = vmatpush1.msra.mxu0 %v49
  %1247 = vmatprep.subr.mxu0 0.0
  %1248 = vmatpush1.msra.mxu0 %v48
  %1249 = vmatprep.subr.mxu0 0.0
  %1250 = vmatpush1.msra.mxu0 %v47
  %1251 = vmatprep.subr.mxu0 0.0
  %1252 = vmatpush1.msra.mxu0 %v46
  %1253 = vmatprep.subr.mxu0 0.0
  %1254 = vmatpush2.msra.mxu0 0.0
  %1255 = vmatprep.subr.mxu0 0.0
  %1256 = vmatpush2.msra.mxu0 0.0
  %1257 = vmatprep.subr.mxu0 0.0
  %1258 = vmatpush2.msra.mxu0 0.0
  %1259 = vmatprep.subr.mxu0 0.0
  %1260 = vmatpush2.msra.mxu0 0.0
  %1261 = vmatprep.subr.mxu0 0.0
  %1262 = vmatpush2.msra.mxu0 0.0
  %1263 = vmatprep.subr.mxu0 0.0
  %1264 = vmatpush2.msra.mxu0 0.0
  %1265 = vmatprep.subr.mxu0 0.0
  %1266 = vmatpush2.msra.mxu0 0.0
  %1267 = vmatprep.subr.mxu0 0.0
  %1268 = vmatpush2.msra.mxu0 0.0
  %1269 = vmatprep.subr.mxu0 0.0
  %1270 = vmatpush2.msra.mxu0 0.0
  %1271 = vmatprep.subr.mxu0 0.0
  %1272 = vmatpush2.msra.mxu0 0.0
  %1273 = vmatprep.subr.mxu0 0.0
  %1274 = vmatpush2.msra.mxu0 0.0
  %1275 = vmatprep.subr.mxu0 0.0
  %1276 = vmatpush2.msra.mxu0 0.0
  %1277 = vmatprep.subr.mxu0 0.0
  %1278 = vmatpush2.msra.mxu0 0.0
  %1279 = vmatprep.subr.mxu0 0.0
  %1280 = vmatpush2.msra.mxu0 0.0
  %1281 = vmatprep.subr.mxu0 0.0
  %1282 = vmatpush2.msra.mxu0 0.0
  %1283 = vmatprep.subr.mxu0 0.0
  %1284 = vmatpush2.msra.mxu0 0.0
  %1285 = vmatprep.mubr.f32.mxu0 0.0
  %1286 = vmatmul.mubr.f32.gmra.mxu0 %v1219
  %v1287 = vpop.f32.mrf.mxu0
  %v1288 = vadd.f32 %v159, %v1287
  %v1289 = vpop.f32.mrf.mxu0
  %1290 = vdwg.mxu0
  %v1291 = vadd.f32 %v1213, %v1288
  %v1292 = vxor.u32 %v1291, 2147483648
  %v1293 = vmul.f32 %v1292, 1.442695
  %v1294 = vpow.pop %v1293
  %v1295 = vadd.f32 %v1294, 1.0
  %v1296 = vrcp.pop %v1295
  %v1297 = vmul.f32 1.0, %v1296
  %1299 = vrot.lane.b32.xlu0 %v1288, 64
  %v1300 = vpop.permute.xlu0 %1299
  %v1302 = vmul.f32 %v1297, %v1300
  %1304 = vrot.lane.b32.xlu0 %v1302, 64
  %v1305 = vpop.permute.xlu0 %1304
  %v1307 = vadd.f32 %v1213, %v1305
  %v1308 = vtanh.pop %v1307
  %v1309 = vsub.f32 1.0, %v1297
  %1311 = vrot.lane.b32.xlu0 %v1308, 96
  %v1312 = vpop.permute.xlu0 %1311
  %v1314 = vmul.f32 %v1309, %v1312
  %v1315 = vmul.f32 %v1297, %v1140
  %v1316 = vadd.f32 %v1314, %v1315
  %s1317 = scalar_lea.vmem %s0, 56
  %v1318 = vld [vmem:[%s1317] sm:$0xff]
  %v1320 = vsel %vm81, %v1318, 0
  %1322 = vmatprep.subr.mxu0 0.0
  %1323 = vmatpush1.msra.mxu0 0.0
  %1324 = vmatprep.subr.mxu0 0.0
  %1325 = vmatpush1.msra.mxu0 0.0
  %1326 = vmatprep.subr.mxu0 0.0
  %1327 = vmatpush1.msra.mxu0 0.0
  %1328 = vmatprep.subr.mxu0 0.0
  %1329 = vmatpush1.msra.mxu0 0.0
  %1330 = vmatprep.subr.mxu0 0.0
  %1331 = vmatpush1.msra.mxu0 0.0
  %1332 = vmatprep.subr.mxu0 0.0
  %1333 = vmatpush1.msra.mxu0 0.0
  %1334 = vmatprep.subr.mxu0 0.0
  %1335 = vmatpush1.msra.mxu0 0.0
  %1336 = vmatprep.subr.mxu0 0.0
  %1337 = vmatpush1.msra.mxu0 0.0
  %1338 = vmatprep.subr.mxu0 0.0
  %1339 = vmatpush1.msra.mxu0 0.0
  %1340 = vmatprep.subr.mxu0 0.0
  %1341 = vmatpush1.msra.mxu0 0.0
  %1342 = vmatprep.subr.mxu0 0.0
  %1343 = vmatpush1.msra.mxu0 0.0
  %1344 = vmatprep.subr.mxu0 0.0
  %1345 = vmatpush1.msra.mxu0 0.0
  %1346 = vmatprep.subr.mxu0 0.0
  %1347 = vmatpush1.msra.mxu0 0.0
  %1348 = vmatprep.subr.mxu0 0.0
  %1349 = vmatpush1.msra.mxu0 0.0
  %1350 = vmatprep.subr.mxu0 0.0
  %1351 = vmatpush1.msra.mxu0 %v45
  %1352 = vmatprep.subr.mxu0 0.0
  %1353 = vmatpush1.msra.mxu0 %v44
  %1354 = vmatprep.subr.mxu0 0.0
  %1355 = vmatpush2.msra.mxu0 0.0
  %1356 = vmatprep.subr.mxu0 0.0
  %1357 = vmatpush2.msra.mxu0 0.0
  %1358 = vmatprep.subr.mxu0 0.0
  %1359 = vmatpush2.msra.mxu0 0.0
  %1360 = vmatprep.subr.mxu0 0.0
  %1361 = vmatpush2.msra.mxu0 0.0
  %1362 = vmatprep.subr.mxu0 0.0
  %1363 = vmatpush2.msra.mxu0 0.0
  %1364 = vmatprep.subr.mxu0 0.0
  %1365 = vmatpush2.msra.mxu0 0.0
  %1366 = vmatprep.subr.mxu0 0.0
  %1367 = vmatpush2.msra.mxu0 0.0
  %1368 = vmatprep.subr.mxu0 0.0
  %1369 = vmatpush2.msra.mxu0 0.0
  %1370 = vmatprep.subr.mxu0 0.0
  %1371 = vmatpush2.msra.mxu0 0.0
  %1372 = vmatprep.subr.mxu0 0.0
  %1373 = vmatpush2.msra.mxu0 0.0
  %1374 = vmatprep.subr.mxu0 0.0
  %1375 = vmatpush2.msra.mxu0 0.0
  %1376 = vmatprep.subr.mxu0 0.0
  %1377 = vmatpush2.msra.mxu0 0.0
  %1378 = vmatprep.subr.mxu0 0.0
  %1379 = vmatpush2.msra.mxu0 0.0
  %1380 = vmatprep.subr.mxu0 0.0
  %1381 = vmatpush2.msra.mxu0 0.0
  %1382 = vmatprep.subr.mxu0 0.0
  %1383 = vmatpush2.msra.mxu0 0.0
  %1384 = vmatprep.subr.mxu0 0.0
  %1385 = vmatpush2.msra.mxu0 0.0
  %1386 = vmatprep.mubr.f32.mxu0 0.0
  %1387 = vmatmul.mubr.f32.gmra.mxu0 %v1320
  %v1388 = vpop.f32.mrf.mxu0
  %v1389 = vadd.f32 %v79, %v1388
  %v1390 = vpop.f32.mrf.mxu0
  %1391 = vdwg.mxu0
  %1393 = vrot.lane.b32.xlu0 %v1316, 96
  %v1394 = vpop.permute.xlu0 %1393
  %v1395 = vsel %vm161, %v1394, 0
  %1397 = vmatprep.subr.mxu0 0.0
  %1398 = vmatpush1.msra.mxu0 0.0
  %1399 = vmatprep.subr.mxu0 0.0
  %1400 = vmatpush1.msra.mxu0 0.0
  %1401 = vmatprep.subr.mxu0 0.0
  %1402 = vmatpush1.msra.mxu0 0.0
  %1403 = vmatprep.subr.mxu0 0.0
  %1404 = vmatpush1.msra.mxu0 0.0
  %1405 = vmatprep.subr.mxu0 0.0
  %1406 = vmatpush1.msra.mxu0 0.0
  %1407 = vmatprep.subr.mxu0 0.0
  %1408 = vmatpush1.msra.mxu0 0.0
  %1409 = vmatprep.subr.mxu0 0.0
  %1410 = vmatpush1.msra.mxu0 0.0
  %1411 = vmatprep.subr.mxu0 0.0
  %1412 = vmatpush1.msra.mxu0 0.0
  %1413 = vmatprep.subr.mxu0 0.0
  %1414 = vmatpush1.msra.mxu0 0.0
  %1415 = vmatprep.subr.mxu0 0.0
  %1416 = vmatpush1.msra.mxu0 0.0
  %1417 = vmatprep.subr.mxu0 0.0
  %1418 = vmatpush1.msra.mxu0 0.0
  %1419 = vmatprep.subr.mxu0 0.0
  %1420 = vmatpush1.msra.mxu0 0.0
  %1421 = vmatprep.subr.mxu0 0.0
  %1422 = vmatpush1.msra.mxu0 %v49
  %1423 = vmatprep.subr.mxu0 0.0
  %1424 = vmatpush1.msra.mxu0 %v48
  %1425 = vmatprep.subr.mxu0 0.0
  %1426 = vmatpush1.msra.mxu0 %v47
  %1427 = vmatprep.subr.mxu0 0.0
  %1428 = vmatpush1.msra.mxu0 %v46
  %1429 = vmatprep.subr.mxu0 0.0
  %1430 = vmatpush2.msra.mxu0 0.0
  %1431 = vmatprep.subr.mxu0 0.0
  %1432 = vmatpush2.msra.mxu0 0.0
  %1433 = vmatprep.subr.mxu0 0.0
  %1434 = vmatpush2.msra.mxu0 0.0
  %1435 = vmatprep.subr.mxu0 0.0
  %1436 = vmatpush2.msra.mxu0 0.0
  %1437 = vmatprep.subr.mxu0 0.0
  %1438 = vmatpush2.msra.mxu0 0.0
  %1439 = vmatprep.subr.mxu0 0.0
  %1440 = vmatpush2.msra.mxu0 0.0
  %1441 = vmatprep.subr.mxu0 0.0
  %1442 = vmatpush2.msra.mxu0 0.0
  %1443 = vmatprep.subr.mxu0 0.0
  %1444 = vmatpush2.msra.mxu0 0.0
  %1445 = vmatprep.subr.mxu0 0.0
  %1446 = vmatpush2.msra.mxu0 0.0
  %1447 = vmatprep.subr.mxu0 0.0
  %1448 = vmatpush2.msra.mxu0 0.0
  %1449 = vmatprep.subr.mxu0 0.0
  %1450 = vmatpush2.msra.mxu0 0.0
  %1451 = vmatprep.subr.mxu0 0.0
  %1452 = vmatpush2.msra.mxu0 0.0
  %1453 = vmatprep.subr.mxu0 0.0
  %1454 = vmatpush2.msra.mxu0 0.0
  %1455 = vmatprep.subr.mxu0 0.0
  %1456 = vmatpush2.msra.mxu0 0.0
  %1457 = vmatprep.subr.mxu0 0.0
  %1458 = vmatpush2.msra.mxu0 0.0
  %1459 = vmatprep.subr.mxu0 0.0
  %1460 = vmatpush2.msra.mxu0 0.0
  %1461 = vmatprep.mubr.f32.mxu0 0.0
  %1462 = vmatmul.mubr.f32.gmra.mxu0 %v1395
  %v1463 = vpop.f32.mrf.mxu0
  %v1464 = vadd.f32 %v159, %v1463
  %v1465 = vpop.f32.mrf.mxu0
  %1466 = vdwg.mxu0
  %v1467 = vadd.f32 %v1389, %v1464
  %v1468 = vxor.u32 %v1467, 2147483648
  %v1469 = vmul.f32 %v1468, 1.442695
  %v1470 = vpow.pop %v1469
  %v1471 = vadd.f32 %v1470, 1.0
  %v1472 = vrcp.pop %v1471
  %v1473 = vmul.f32 1.0, %v1472
  %1475 = vrot.lane.b32.xlu0 %v1464, 64
  %v1476 = vpop.permute.xlu0 %1475
  %v1478 = vmul.f32 %v1473, %v1476
  %1480 = vrot.lane.b32.xlu0 %v1478, 64
  %v1481 = vpop.permute.xlu0 %1480
  %v1483 = vadd.f32 %v1389, %v1481
  %v1484 = vtanh.pop %v1483
  %v1485 = vsub.f32 1.0, %v1473
  %1487 = vrot.lane.b32.xlu0 %v1484, 96
  %v1488 = vpop.permute.xlu0 %1487
  %v1490 = vmul.f32 %v1485, %v1488
  %v1491 = vmul.f32 %v1473, %v1316
  %v1492 = vadd.f32 %v1490, %v1491
  %v1494 = vlaneseq
  %v1495 = vshrl.u32 %v1494, 7
  %v1496 = vsub.s32 0, %v1495
  %v1497 = vrot.slane %v58, %v1496
  %1499 = vmatprep.subr.mxu0 0.0
  %1500 = vmatpush1.msra.mxu0 0.0
  %1501 = vmatprep.subr.mxu0 0.0
  %1502 = vmatpush1.msra.mxu0 0.0
  %1503 = vmatprep.subr.mxu0 0.0
  %1504 = vmatpush1.msra.mxu0 0.0
  %1505 = vmatprep.subr.mxu0 0.0
  %1506 = vmatpush1.msra.mxu0 0.0
  %1507 = vmatprep.subr.mxu0 0.0
  %1508 = vmatpush1.msra.mxu0 0.0
  %1509 = vmatprep.subr.mxu0 0.0
  %1510 = vmatpush1.msra.mxu0 0.0
  %1511 = vmatprep.subr.mxu0 0.0
  %1512 = vmatpush1.msra.mxu0 0.0
  %1513 = vmatprep.subr.mxu0 0.0
  %1514 = vmatpush1.msra.mxu0 0.0
  %1515 = vmatprep.subr.mxu0 0.0
  %1516 = vmatpush1.msra.mxu0 0.0
  %1517 = vmatprep.subr.mxu0 0.0
  %1518 = vmatpush1.msra.mxu0 0.0
  %1519 = vmatprep.subr.mxu0 0.0
  %1520 = vmatpush1.msra.mxu0 0.0
  %1521 = vmatprep.subr.mxu0 0.0
  %1522 = vmatpush1.msra.mxu0 0.0
  %1523 = vmatprep.subr.mxu0 0.0
  %1524 = vmatpush1.msra.mxu0 0.0
  %1525 = vmatprep.subr.mxu0 0.0
  %1526 = vmatpush1.msra.mxu0 0.0
  %1527 = vmatprep.subr.mxu0 0.0
  %1528 = vmatpush1.msra.mxu0 %v53
  %1529 = vmatprep.subr.mxu0 0.0
  %1530 = vmatpush1.msra.mxu0 %v52
  %1531 = vmatprep.subr.mxu0 0.0
  %1532 = vmatpush2.msra.mxu0 0.0
  %1533 = vmatprep.subr.mxu0 0.0
  %1534 = vmatpush2.msra.mxu0 0.0
  %1535 = vmatprep.subr.mxu0 0.0
  %1536 = vmatpush2.msra.mxu0 0.0
  %1537 = vmatprep.subr.mxu0 0.0
  %1538 = vmatpush2.msra.mxu0 0.0
  %1539 = vmatprep.subr.mxu0 0.0
  %1540 = vmatpush2.msra.mxu0 0.0
  %1541 = vmatprep.subr.mxu0 0.0
  %1542 = vmatpush2.msra.mxu0 0.0
  %1543 = vmatprep.subr.mxu0 0.0
  %1544 = vmatpush2.msra.mxu0 0.0
  %1545 = vmatprep.subr.mxu0 0.0
  %1546 = vmatpush2.msra.mxu0 0.0
  %1547 = vmatprep.subr.mxu0 0.0
  %1548 = vmatpush2.msra.mxu0 0.0
  %1549 = vmatprep.subr.mxu0 0.0
  %1550 = vmatpush2.msra.mxu0 0.0
  %1551 = vmatprep.subr.mxu0 0.0
  %1552 = vmatpush2.msra.mxu0 0.0
  %1553 = vmatprep.subr.mxu0 0.0
  %1554 = vmatpush2.msra.mxu0 0.0
  %1555 = vmatprep.subr.mxu0 0.0
  %1556 = vmatpush2.msra.mxu0 0.0
  %1557 = vmatprep.subr.mxu0 0.0
  %1558 = vmatpush2.msra.mxu0 0.0
  %1559 = vmatprep.subr.mxu0 0.0
  %1560 = vmatpush2.msra.mxu0 0.0
  %1561 = vmatprep.subr.mxu0 0.0
  %1562 = vmatpush2.msra.mxu0 0.0
  %1563 = vmatprep.mubr.f32.mxu0 0.0
  %1564 = vmatmul.mubr.f32.gmra.mxu0 %v1320
  %v1565 = vpop.f32.mrf.mxu0
  %v1566 = vadd.f32 %v1497, %v1565
  %v1567 = vpop.f32.mrf.mxu0
  %1568 = vdwg.mxu0
  %v1570 = vlaneseq
  %v1571 = vshrl.u32 %v1570, 7
  %v1572 = vsub.s32 0, %v1571
  %v1573 = vrot.slane %v59, %v1572
  %1575 = vmatprep.subr.mxu0 0.0
  %1576 = vmatpush1.msra.mxu0 0.0
  %1577 = vmatprep.subr.mxu0 0.0
  %1578 = vmatpush1.msra.mxu0 0.0
  %1579 = vmatprep.subr.mxu0 0.0
  %1580 = vmatpush1.msra.mxu0 0.0
  %1581 = vmatprep.subr.mxu0 0.0
  %1582 = vmatpush1.msra.mxu0 0.0
  %1583 = vmatprep.subr.mxu0 0.0
  %1584 = vmatpush1.msra.mxu0 0.0
  %1585 = vmatprep.subr.mxu0 0.0
  %1586 = vmatpush1.msra.mxu0 0.0
  %1587 = vmatprep.subr.mxu0 0.0
  %1588 = vmatpush1.msra.mxu0 0.0
  %1589 = vmatprep.subr.mxu0 0.0
  %1590 = vmatpush1.msra.mxu0 0.0
  %1591 = vmatprep.subr.mxu0 0.0
  %1592 = vmatpush1.msra.mxu0 0.0
  %1593 = vmatprep.subr.mxu0 0.0
  %1594 = vmatpush1.msra.mxu0 0.0
  %1595 = vmatprep.subr.mxu0 0.0
  %1596 = vmatpush1.msra.mxu0 0.0
  %1597 = vmatprep.subr.mxu0 0.0
  %1598 = vmatpush1.msra.mxu0 0.0
  %1599 = vmatprep.subr.mxu0 0.0
  %1600 = vmatpush1.msra.mxu0 %v57
  %1601 = vmatprep.subr.mxu0 0.0
  %1602 = vmatpush1.msra.mxu0 %v56
  %1603 = vmatprep.subr.mxu0 0.0
  %1604 = vmatpush1.msra.mxu0 %v55
  %1605 = vmatprep.subr.mxu0 0.0
  %1606 = vmatpush1.msra.mxu0 %v54
  %1607 = vmatprep.subr.mxu0 0.0
  %1608 = vmatpush2.msra.mxu0 0.0
  %1609 = vmatprep.subr.mxu0 0.0
  %1610 = vmatpush2.msra.mxu0 0.0
  %1611 = vmatprep.subr.mxu0 0.0
  %1612 = vmatpush2.msra.mxu0 0.0
  %1613 = vmatprep.subr.mxu0 0.0
  %1614 = vmatpush2.msra.mxu0 0.0
  %1615 = vmatprep.subr.mxu0 0.0
  %1616 = vmatpush2.msra.mxu0 0.0
  %1617 = vmatprep.subr.mxu0 0.0
  %1618 = vmatpush2.msra.mxu0 0.0
  %1619 = vmatprep.subr.mxu0 0.0
  %1620 = vmatpush2.msra.mxu0 0.0
  %1621 = vmatprep.subr.mxu0 0.0
  %1622 = vmatpush2.msra.mxu0 0.0
  %1623 = vmatprep.subr.mxu0 0.0
  %1624 = vmatpush2.msra.mxu0 0.0
  %1625 = vmatprep.subr.mxu0 0.0
  %1626 = vmatpush2.msra.mxu0 0.0
  %1627 = vmatprep.subr.mxu0 0.0
  %1628 = vmatpush2.msra.mxu0 0.0
  %1629 = vmatprep.subr.mxu0 0.0
  %1630 = vmatpush2.msra.mxu0 0.0
  %1631 = vmatprep.subr.mxu0 0.0
  %1632 = vmatpush2.msra.mxu0 0.0
  %1633 = vmatprep.subr.mxu0 0.0
  %1634 = vmatpush2.msra.mxu0 0.0
  %1635 = vmatprep.subr.mxu0 0.0
  %1636 = vmatpush2.msra.mxu0 0.0
  %1637 = vmatprep.subr.mxu0 0.0
  %1638 = vmatpush2.msra.mxu0 0.0
  %1639 = vmatprep.mubr.f32.mxu0 0.0
  %1640 = vmatmul.mubr.f32.gmra.mxu0 %v163
  %v1641 = vpop.f32.mrf.mxu0
  %v1642 = vadd.f32 %v1573, %v1641
  %v1643 = vpop.f32.mrf.mxu0
  %1644 = vdwg.mxu0
  %v1645 = vadd.f32 %v1566, %v1642
  %v1646 = vxor.u32 %v1645, 2147483648
  %v1647 = vmul.f32 %v1646, 1.442695
  %v1648 = vpow.pop %v1647
  %v1649 = vadd.f32 %v1648, 1.0
  %v1650 = vrcp.pop %v1649
  %v1651 = vmul.f32 1.0, %v1650
  %1653 = vrot.lane.b32.xlu0 %v1642, 64
  %v1654 = vpop.permute.xlu0 %1653
  %v1656 = vmul.f32 %v1651, %v1654
  %1658 = vrot.lane.b32.xlu0 %v1656, 64
  %v1659 = vpop.permute.xlu0 %1658
  %v1661 = vadd.f32 %v1566, %v1659
  %v1662 = vtanh.pop %v1661
  %v1663 = vsub.f32 1.0, %v1651
  %1665 = vrot.lane.b32.xlu0 %v1662, 96
  %v1666 = vpop.permute.xlu0 %1665
  %v1668 = vmul.f32 %v1663, %v1666
  %v1669 = vmul.f32 %v1651, 0.0
  %v1670 = vadd.f32 %v1668, %v1669
  %1671 = vmatprep.subr.mxu0 0.0
  %1672 = vmatpush1.msra.mxu0 0.0
  %1673 = vmatprep.subr.mxu0 0.0
  %1674 = vmatpush1.msra.mxu0 0.0
  %1675 = vmatprep.subr.mxu0 0.0
  %1676 = vmatpush1.msra.mxu0 0.0
  %1677 = vmatprep.subr.mxu0 0.0
  %1678 = vmatpush1.msra.mxu0 0.0
  %1679 = vmatprep.subr.mxu0 0.0
  %1680 = vmatpush1.msra.mxu0 0.0
  %1681 = vmatprep.subr.mxu0 0.0
  %1682 = vmatpush1.msra.mxu0 0.0
  %1683 = vmatprep.subr.mxu0 0.0
  %1684 = vmatpush1.msra.mxu0 0.0
  %1685 = vmatprep.subr.mxu0 0.0
  %1686 = vmatpush1.msra.mxu0 0.0
  %1687 = vmatprep.subr.mxu0 0.0
  %1688 = vmatpush1.msra.mxu0 0.0
  %1689 = vmatprep.subr.mxu0 0.0
  %1690 = vmatpush1.msra.mxu0 0.0
  %1691 = vmatprep.subr.mxu0 0.0
  %1692 = vmatpush1.msra.mxu0 0.0
  %1693 = vmatprep.subr.mxu0 0.0
  %1694 = vmatpush1.msra.mxu0 0.0
  %1695 = vmatprep.subr.mxu0 0.0
  %1696 = vmatpush1.msra.mxu0 0.0
  %1697 = vmatprep.subr.mxu0 0.0
  %1698 = vmatpush1.msra.mxu0 0.0
  %1699 = vmatprep.subr.mxu0 0.0
  %1700 = vmatpush1.msra.mxu0 %v53
  %1701 = vmatprep.subr.mxu0 0.0
  %1702 = vmatpush1.msra.mxu0 %v52
  %1703 = vmatprep.subr.mxu0 0.0
  %1704 = vmatpush2.msra.mxu0 0.0
  %1705 = vmatprep.subr.mxu0 0.0
  %1706 = vmatpush2.msra.mxu0 0.0
  %1707 = vmatprep.subr.mxu0 0.0
  %1708 = vmatpush2.msra.mxu0 0.0
  %1709 = vmatprep.subr.mxu0 0.0
  %1710 = vmatpush2.msra.mxu0 0.0
  %1711 = vmatprep.subr.mxu0 0.0
  %1712 = vmatpush2.msra.mxu0 0.0
  %1713 = vmatprep.subr.mxu0 0.0
  %1714 = vmatpush2.msra.mxu0 0.0
  %1715 = vmatprep.subr.mxu0 0.0
  %1716 = vmatpush2.msra.mxu0 0.0
  %1717 = vmatprep.subr.mxu0 0.0
  %1718 = vmatpush2.msra.mxu0 0.0
  %1719 = vmatprep.subr.mxu0 0.0
  %1720 = vmatpush2.msra.mxu0 0.0
  %1721 = vmatprep.subr.mxu0 0.0
  %1722 = vmatpush2.msra.mxu0 0.0
  %1723 = vmatprep.subr.mxu0 0.0
  %1724 = vmatpush2.msra.mxu0 0.0
  %1725 = vmatprep.subr.mxu0 0.0
  %1726 = vmatpush2.msra.mxu0 0.0
  %1727 = vmatprep.subr.mxu0 0.0
  %1728 = vmatpush2.msra.mxu0 0.0
  %1729 = vmatprep.subr.mxu0 0.0
  %1730 = vmatpush2.msra.mxu0 0.0
  %1731 = vmatprep.subr.mxu0 0.0
  %1732 = vmatpush2.msra.mxu0 0.0
  %1733 = vmatprep.subr.mxu0 0.0
  %1734 = vmatpush2.msra.mxu0 0.0
  %1735 = vmatprep.mubr.f32.mxu0 0.0
  %1736 = vmatmul.mubr.f32.gmra.mxu0 %v1144
  %v1737 = vpop.f32.mrf.mxu0
  %v1738 = vadd.f32 %v1497, %v1737
  %v1739 = vpop.f32.mrf.mxu0
  %1740 = vdwg.mxu0
  %1742 = vrot.lane.b32.xlu0 %v1670, 96
  %v1743 = vpop.permute.xlu0 %1742
  %v1744 = vsel %vm161, %v1743, 0
  %1746 = vmatprep.subr.mxu0 0.0
  %1747 = vmatpush1.msra.mxu0 0.0
  %1748 = vmatprep.subr.mxu0 0.0
  %1749 = vmatpush1.msra.mxu0 0.0
  %1750 = vmatprep.subr.mxu0 0.0
  %1751 = vmatpush1.msra.mxu0 0.0
  %1752 = vmatprep.subr.mxu0 0.0
  %1753 = vmatpush1.msra.mxu0 0.0
  %1754 = vmatprep.subr.mxu0 0.0
  %1755 = vmatpush1.msra.mxu0 0.0
  %1756 = vmatprep.subr.mxu0 0.0
  %1757 = vmatpush1.msra.mxu0 0.0
  %1758 = vmatprep.subr.mxu0 0.0
  %1759 = vmatpush1.msra.mxu0 0.0
  %1760 = vmatprep.subr.mxu0 0.0
  %1761 = vmatpush1.msra.mxu0 0.0
  %1762 = vmatprep.subr.mxu0 0.0
  %1763 = vmatpush1.msra.mxu0 0.0
  %1764 = vmatprep.subr.mxu0 0.0
  %1765 = vmatpush1.msra.mxu0 0.0
  %1766 = vmatprep.subr.mxu0 0.0
  %1767 = vmatpush1.msra.mxu0 0.0
  %1768 = vmatprep.subr.mxu0 0.0
  %1769 = vmatpush1.msra.mxu0 0.0
  %1770 = vmatprep.subr.mxu0 0.0
  %1771 = vmatpush1.msra.mxu0 %v57
  %1772 = vmatprep.subr.mxu0 0.0
  %1773 = vmatpush1.msra.mxu0 %v56
  %1774 = vmatprep.subr.mxu0 0.0
  %1775 = vmatpush1.msra.mxu0 %v55
  %1776 = vmatprep.subr.mxu0 0.0
  %1777 = vmatpush1.msra.mxu0 %v54
  %1778 = vmatprep.subr.mxu0 0.0
  %1779 = vmatpush2.msra.mxu0 0.0
  %1780 = vmatprep.subr.mxu0 0.0
  %1781 = vmatpush2.msra.mxu0 0.0
  %1782 = vmatprep.subr.mxu0 0.0
  %1783 = vmatpush2.msra.mxu0 0.0
  %1784 = vmatprep.subr.mxu0 0.0
  %1785 = vmatpush2.msra.mxu0 0.0
  %1786 = vmatprep.subr.mxu0 0.0
  %1787 = vmatpush2.msra.mxu0 0.0
  %1788 = vmatprep.subr.mxu0 0.0
  %1789 = vmatpush2.msra.mxu0 0.0
  %1790 = vmatprep.subr.mxu0 0.0
  %1791 = vmatpush2.msra.mxu0 0.0
  %1792 = vmatprep.subr.mxu0 0.0
  %1793 = vmatpush2.msra.mxu0 0.0
  %1794 = vmatprep.subr.mxu0 0.0
  %1795 = vmatpush2.msra.mxu0 0.0
  %1796 = vmatprep.subr.mxu0 0.0
  %1797 = vmatpush2.msra.mxu0 0.0
  %1798 = vmatprep.subr.mxu0 0.0
  %1799 = vmatpush2.msra.mxu0 0.0
  %1800 = vmatprep.subr.mxu0 0.0
  %1801 = vmatpush2.msra.mxu0 0.0
  %1802 = vmatprep.subr.mxu0 0.0
  %1803 = vmatpush2.msra.mxu0 0.0
  %1804 = vmatprep.subr.mxu0 0.0
  %1805 = vmatpush2.msra.mxu0 0.0
  %1806 = vmatprep.subr.mxu0 0.0
  %1807 = vmatpush2.msra.mxu0 0.0
  %1808 = vmatprep.subr.mxu0 0.0
  %1809 = vmatpush2.msra.mxu0 0.0
  %1810 = vmatprep.mubr.f32.mxu0 0.0
  %1811 = vmatmul.mubr.f32.gmra.mxu0 %v1744
  %v1812 = vpop.f32.mrf.mxu0
  %v1813 = vadd.f32 %v1573, %v1812
  %v1814 = vpop.f32.mrf.mxu0
  %1815 = vdwg.mxu0
  %v1816 = vadd.f32 %v1738, %v1813
  %v1817 = vxor.u32 %v1816, 2147483648
  %v1818 = vmul.f32 %v1817, 1.442695
  %v1819 = vpow.pop %v1818
  %v1820 = vadd.f32 %v1819, 1.0
  %v1821 = vrcp.pop %v1820
  %v1822 = vmul.f32 1.0, %v1821
  %1824 = vrot.lane.b32.xlu0 %v1813, 64
  %v1825 = vpop.permute.xlu0 %1824
  %v1827 = vmul.f32 %v1822, %v1825
  %1829 = vrot.lane.b32.xlu0 %v1827, 64
  %v1830 = vpop.permute.xlu0 %1829
  %v1832 = vadd.f32 %v1738, %v1830
  %v1833 = vtanh.pop %v1832
  %v1834 = vsub.f32 1.0, %v1822
  %1836 = vrot.lane.b32.xlu0 %v1833, 96
  %v1837 = vpop.permute.xlu0 %1836
  %v1839 = vmul.f32 %v1834, %v1837
  %v1840 = vmul.f32 %v1822, %v1670
  %v1841 = vadd.f32 %v1839, %v1840
  %1842 = vmatprep.subr.mxu0 0.0
  %1843 = vmatpush1.msra.mxu0 0.0
  %1844 = vmatprep.subr.mxu0 0.0
  %1845 = vmatpush1.msra.mxu0 0.0
  %1846 = vmatprep.subr.mxu0 0.0
  %1847 = vmatpush1.msra.mxu0 0.0
  %1848 = vmatprep.subr.mxu0 0.0
  %1849 = vmatpush1.msra.mxu0 0.0
  %1850 = vmatprep.subr.mxu0 0.0
  %1851 = vmatpush1.msra.mxu0 0.0
  %1852 = vmatprep.subr.mxu0 0.0
  %1853 = vmatpush1.msra.mxu0 0.0
  %1854 = vmatprep.subr.mxu0 0.0
  %1855 = vmatpush1.msra.mxu0 0.0
  %1856 = vmatprep.subr.mxu0 0.0
  %1857 = vmatpush1.msra.mxu0 0.0
  %1858 = vmatprep.subr.mxu0 0.0
  %1859 = vmatpush1.msra.mxu0 0.0
  %1860 = vmatprep.subr.mxu0 0.0
  %1861 = vmatpush1.msra.mxu0 0.0
  %1862 = vmatprep.subr.mxu0 0.0
  %1863 = vmatpush1.msra.mxu0 0.0
  %1864 = vmatprep.subr.mxu0 0.0
  %1865 = vmatpush1.msra.mxu0 0.0
  %1866 = vmatprep.subr.mxu0 0.0
  %1867 = vmatpush1.msra.mxu0 0.0
  %1868 = vmatprep.subr.mxu0 0.0
  %1869 = vmatpush1.msra.mxu0 0.0
  %1870 = vmatprep.subr.mxu0 0.0
  %1871 = vmatpush1.msra.mxu0 %v53
  %1872 = vmatprep.subr.mxu0 0.0
  %1873 = vmatpush1.msra.mxu0 %v52
  %1874 = vmatprep.subr.mxu0 0.0
  %1875 = vmatpush2.msra.mxu0 0.0
  %1876 = vmatprep.subr.mxu0 0.0
  %1877 = vmatpush2.msra.mxu0 0.0
  %1878 = vmatprep.subr.mxu0 0.0
  %1879 = vmatpush2.msra.mxu0 0.0
  %1880 = vmatprep.subr.mxu0 0.0
  %1881 = vmatpush2.msra.mxu0 0.0
  %1882 = vmatprep.subr.mxu0 0.0
  %1883 = vmatpush2.msra.mxu0 0.0
  %1884 = vmatprep.subr.mxu0 0.0
  %1885 = vmatpush2.msra.mxu0 0.0
  %1886 = vmatprep.subr.mxu0 0.0
  %1887 = vmatpush2.msra.mxu0 0.0
  %1888 = vmatprep.subr.mxu0 0.0
  %1889 = vmatpush2.msra.mxu0 0.0
  %1890 = vmatprep.subr.mxu0 0.0
  %1891 = vmatpush2.msra.mxu0 0.0
  %1892 = vmatprep.subr.mxu0 0.0
  %1893 = vmatpush2.msra.mxu0 0.0
  %1894 = vmatprep.subr.mxu0 0.0
  %1895 = vmatpush2.msra.mxu0 0.0
  %1896 = vmatprep.subr.mxu0 0.0
  %1897 = vmatpush2.msra.mxu0 0.0
  %1898 = vmatprep.subr.mxu0 0.0
  %1899 = vmatpush2.msra.mxu0 0.0
  %1900 = vmatprep.subr.mxu0 0.0
  %1901 = vmatpush2.msra.mxu0 0.0
  %1902 = vmatprep.subr.mxu0 0.0
  %1903 = vmatpush2.msra.mxu0 0.0
  %1904 = vmatprep.subr.mxu0 0.0
  %1905 = vmatpush2.msra.mxu0 0.0
  %1906 = vmatprep.mubr.f32.mxu0 0.0
  %1907 = vmatmul.mubr.f32.gmra.mxu0 %v968
  %v1908 = vpop.f32.mrf.mxu0
  %v1909 = vadd.f32 %v1497, %v1908
  %v1910 = vpop.f32.mrf.mxu0
  %1911 = vdwg.mxu0
  %1913 = vrot.lane.b32.xlu0 %v1841, 96
  %v1914 = vpop.permute.xlu0 %1913
  %v1915 = vsel %vm161, %v1914, 0
  %1917 = vmatprep.subr.mxu0 0.0
  %1918 = vmatpush1.msra.mxu0 0.0
  %1919 = vmatprep.subr.mxu0 0.0
  %1920 = vmatpush1.msra.mxu0 0.0
  %1921 = vmatprep.subr.mxu0 0.0
  %1922 = vmatpush1.msra.mxu0 0.0
  %1923 = vmatprep.subr.mxu0 0.0
  %1924 = vmatpush1.msra.mxu0 0.0
  %1925 = vmatprep.subr.mxu0 0.0
  %1926 = vmatpush1.msra.mxu0 0.0
  %1927 = vmatprep.subr.mxu0 0.0
  %1928 = vmatpush1.msra.mxu0 0.0
  %1929 = vmatprep.subr.mxu0 0.0
  %1930 = vmatpush1.msra.mxu0 0.0
  %1931 = vmatprep.subr.mxu0 0.0
  %1932 = vmatpush1.msra.mxu0 0.0
  %1933 = vmatprep.subr.mxu0 0.0
  %1934 = vmatpush1.msra.mxu0 0.0
  %1935 = vmatprep.subr.mxu0 0.0
  %1936 = vmatpush1.msra.mxu0 0.0
  %1937 = vmatprep.subr.mxu0 0.0
  %1938 = vmatpush1.msra.mxu0 0.0
  %1939 = vmatprep.subr.mxu0 0.0
  %1940 = vmatpush1.msra.mxu0 0.0
  %1941 = vmatprep.subr.mxu0 0.0
  %1942 = vmatpush1.msra.mxu0 %v57
  %1943 = vmatprep.subr.mxu0 0.0
  %1944 = vmatpush1.msra.mxu0 %v56
  %1945 = vmatprep.subr.mxu0 0.0
  %1946 = vmatpush1.msra.mxu0 %v55
  %1947 = vmatprep.subr.mxu0 0.0
  %1948 = vmatpush1.msra.mxu0 %v54
  %1949 = vmatprep.subr.mxu0 0.0
  %1950 = vmatpush2.msra.mxu0 0.0
  %1951 = vmatprep.subr.mxu0 0.0
  %1952 = vmatpush2.msra.mxu0 0.0
  %1953 = vmatprep.subr.mxu0 0.0
  %1954 = vmatpush2.msra.mxu0 0.0
  %1955 = vmatprep.subr.mxu0 0.0
  %1956 = vmatpush2.msra.mxu0 0.0
  %1957 = vmatprep.subr.mxu0 0.0
  %1958 = vmatpush2.msra.mxu0 0.0
  %1959 = vmatprep.subr.mxu0 0.0
  %1960 = vmatpush2.msra.mxu0 0.0
  %1961 = vmatprep.subr.mxu0 0.0
  %1962 = vmatpush2.msra.mxu0 0.0
  %1963 = vmatprep.subr.mxu0 0.0
  %1964 = vmatpush2.msra.mxu0 0.0
  %1965 = vmatprep.subr.mxu0 0.0
  %1966 = vmatpush2.msra.mxu0 0.0
  %1967 = vmatprep.subr.mxu0 0.0
  %1968 = vmatpush2.msra.mxu0 0.0
  %1969 = vmatprep.subr.mxu0 0.0
  %1970 = vmatpush2.msra.mxu0 0.0
  %1971 = vmatprep.subr.mxu0 0.0
  %1972 = vmatpush2.msra.mxu0 0.0
  %1973 = vmatprep.subr.mxu0 0.0
  %1974 = vmatpush2.msra.mxu0 0.0
  %1975 = vmatprep.subr.mxu0 0.0
  %1976 = vmatpush2.msra.mxu0 0.0
  %1977 = vmatprep.subr.mxu0 0.0
  %1978 = vmatpush2.msra.mxu0 0.0
  %1979 = vmatprep.subr.mxu0 0.0
  %1980 = vmatpush2.msra.mxu0 0.0
  %1981 = vmatprep.mubr.f32.mxu0 0.0
  %1982 = vmatmul.mubr.f32.gmra.mxu0 %v1915
  %v1983 = vpop.f32.mrf.mxu0
  %v1984 = vadd.f32 %v1573, %v1983
  %v1985 = vpop.f32.mrf.mxu0
  %1986 = vdwg.mxu0
  %v1987 = vadd.f32 %v1909, %v1984
  %v1988 = vxor.u32 %v1987, 2147483648
  %v1989 = vmul.f32 %v1988, 1.442695
  %v1990 = vpow.pop %v1989
  %v1991 = vadd.f32 %v1990, 1.0
  %v1992 = vrcp.pop %v1991
  %v1993 = vmul.f32 1.0, %v1992
  %1995 = vrot.lane.b32.xlu0 %v1984, 64
  %v1996 = vpop.permute.xlu0 %1995
  %v1998 = vmul.f32 %v1993, %v1996
  %2000 = vrot.lane.b32.xlu0 %v1998, 64
  %v2001 = vpop.permute.xlu0 %2000
  %v2003 = vadd.f32 %v1909, %v2001
  %v2004 = vtanh.pop %v2003
  %v2005 = vsub.f32 1.0, %v1993
  %2007 = vrot.lane.b32.xlu0 %v2004, 96
  %v2008 = vpop.permute.xlu0 %2007
  %v2010 = vmul.f32 %v2005, %v2008
  %v2011 = vmul.f32 %v1993, %v1841
  %v2012 = vadd.f32 %v2010, %v2011
  %2013 = vmatprep.subr.mxu0 0.0
  %2014 = vmatpush1.msra.mxu0 0.0
  %2015 = vmatprep.subr.mxu0 0.0
  %2016 = vmatpush1.msra.mxu0 0.0
  %2017 = vmatprep.subr.mxu0 0.0
  %2018 = vmatpush1.msra.mxu0 0.0
  %2019 = vmatprep.subr.mxu0 0.0
  %2020 = vmatpush1.msra.mxu0 0.0
  %2021 = vmatprep.subr.mxu0 0.0
  %2022 = vmatpush1.msra.mxu0 0.0
  %2023 = vmatprep.subr.mxu0 0.0
  %2024 = vmatpush1.msra.mxu0 0.0
  %2025 = vmatprep.subr.mxu0 0.0
  %2026 = vmatpush1.msra.mxu0 0.0
  %2027 = vmatprep.subr.mxu0 0.0
  %2028 = vmatpush1.msra.mxu0 0.0
  %2029 = vmatprep.subr.mxu0 0.0
  %2030 = vmatpush1.msra.mxu0 0.0
  %2031 = vmatprep.subr.mxu0 0.0
  %2032 = vmatpush1.msra.mxu0 0.0
  %2033 = vmatprep.subr.mxu0 0.0
  %2034 = vmatpush1.msra.mxu0 0.0
  %2035 = vmatprep.subr.mxu0 0.0
  %2036 = vmatpush1.msra.mxu0 0.0
  %2037 = vmatprep.subr.mxu0 0.0
  %2038 = vmatpush1.msra.mxu0 0.0
  %2039 = vmatprep.subr.mxu0 0.0
  %2040 = vmatpush1.msra.mxu0 0.0
  %2041 = vmatprep.subr.mxu0 0.0
  %2042 = vmatpush1.msra.mxu0 %v53
  %2043 = vmatprep.subr.mxu0 0.0
  %2044 = vmatpush1.msra.mxu0 %v52
  %2045 = vmatprep.subr.mxu0 0.0
  %2046 = vmatpush2.msra.mxu0 0.0
  %2047 = vmatprep.subr.mxu0 0.0
  %2048 = vmatpush2.msra.mxu0 0.0
  %2049 = vmatprep.subr.mxu0 0.0
  %2050 = vmatpush2.msra.mxu0 0.0
  %2051 = vmatprep.subr.mxu0 0.0
  %2052 = vmatpush2.msra.mxu0 0.0
  %2053 = vmatprep.subr.mxu0 0.0
  %2054 = vmatpush2.msra.mxu0 0.0
  %2055 = vmatprep.subr.mxu0 0.0
  %2056 = vmatpush2.msra.mxu0 0.0
  %2057 = vmatprep.subr.mxu0 0.0
  %2058 = vmatpush2.msra.mxu0 0.0
  %2059 = vmatprep.subr.mxu0 0.0
  %2060 = vmatpush2.msra.mxu0 0.0
  %2061 = vmatprep.subr.mxu0 0.0
  %2062 = vmatpush2.msra.mxu0 0.0
  %2063 = vmatprep.subr.mxu0 0.0
  %2064 = vmatpush2.msra.mxu0 0.0
  %2065 = vmatprep.subr.mxu0 0.0
  %2066 = vmatpush2.msra.mxu0 0.0
  %2067 = vmatprep.subr.mxu0 0.0
  %2068 = vmatpush2.msra.mxu0 0.0
  %2069 = vmatprep.subr.mxu0 0.0
  %2070 = vmatpush2.msra.mxu0 0.0
  %2071 = vmatprep.subr.mxu0 0.0
  %2072 = vmatpush2.msra.mxu0 0.0
  %2073 = vmatprep.subr.mxu0 0.0
  %2074 = vmatpush2.msra.mxu0 0.0
  %2075 = vmatprep.subr.mxu0 0.0
  %2076 = vmatpush2.msra.mxu0 0.0
  %2077 = vmatprep.mubr.f32.mxu0 0.0
  %2078 = vmatmul.mubr.f32.gmra.mxu0 %v792
  %v2079 = vpop.f32.mrf.mxu0
  %v2080 = vadd.f32 %v1497, %v2079
  %v2081 = vpop.f32.mrf.mxu0
  %2082 = vdwg.mxu0
  %2084 = vrot.lane.b32.xlu0 %v2012, 96
  %v2085 = vpop.permute.xlu0 %2084
  %v2086 = vsel %vm161, %v2085, 0
  %2088 = vmatprep.subr.mxu0 0.0
  %2089 = vmatpush1.msra.mxu0 0.0
  %2090 = vmatprep.subr.mxu0 0.0
  %2091 = vmatpush1.msra.mxu0 0.0
  %2092 = vmatprep.subr.mxu0 0.0
  %2093 = vmatpush1.msra.mxu0 0.0
  %2094 = vmatprep.subr.mxu0 0.0
  %2095 = vmatpush1.msra.mxu0 0.0
  %2096 = vmatprep.subr.mxu0 0.0
  %2097 = vmatpush1.msra.mxu0 0.0
  %2098 = vmatprep.subr.mxu0 0.0
  %2099 = vmatpush1.msra.mxu0 0.0
  %2100 = vmatprep.subr.mxu0 0.0
  %2101 = vmatpush1.msra.mxu0 0.0
  %2102 = vmatprep.subr.mxu0 0.0
  %2103 = vmatpush1.msra.mxu0 0.0
  %2104 = vmatprep.subr.mxu0 0.0
  %2105 = vmatpush1.msra.mxu0 0.0
  %2106 = vmatprep.subr.mxu0 0.0
  %2107 = vmatpush1.msra.mxu0 0.0
  %2108 = vmatprep.subr.mxu0 0.0
  %2109 = vmatpush1.msra.mxu0 0.0
  %2110 = vmatprep.subr.mxu0 0.0
  %2111 = vmatpush1.msra.mxu0 0.0
  %2112 = vmatprep.subr.mxu0 0.0
  %2113 = vmatpush1.msra.mxu0 %v57
  %2114 = vmatprep.subr.mxu0 0.0
  %2115 = vmatpush1.msra.mxu0 %v56
  %2116 = vmatprep.subr.mxu0 0.0
  %2117 = vmatpush1.msra.mxu0 %v55
  %2118 = vmatprep.subr.mxu0 0.0
  %2119 = vmatpush1.msra.mxu0 %v54
  %2120 = vmatprep.subr.mxu0 0.0
  %2121 = vmatpush2.msra.mxu0 0.0
  %2122 = vmatprep.subr.mxu0 0.0
  %2123 = vmatpush2.msra.mxu0 0.0
  %2124 = vmatprep.subr.mxu0 0.0
  %2125 = vmatpush2.msra.mxu0 0.0
  %2126 = vmatprep.subr.mxu0 0.0
  %2127 = vmatpush2.msra.mxu0 0.0
  %2128 = vmatprep.subr.mxu0 0.0
  %2129 = vmatpush2.msra.mxu0 0.0
  %2130 = vmatprep.subr.mxu0 0.0
  %2131 = vmatpush2.msra.mxu0 0.0
  %2132 = vmatprep.subr.mxu0 0.0
  %2133 = vmatpush2.msra.mxu0 0.0
  %2134 = vmatprep.subr.mxu0 0.0
  %2135 = vmatpush2.msra.mxu0 0.0
  %2136 = vmatprep.subr.mxu0 0.0
  %2137 = vmatpush2.msra.mxu0 0.0
  %2138 = vmatprep.subr.mxu0 0.0
  %2139 = vmatpush2.msra.mxu0 0.0
  %2140 = vmatprep.subr.mxu0 0.0
  %2141 = vmatpush2.msra.mxu0 0.0
  %2142 = vmatprep.subr.mxu0 0.0
  %2143 = vmatpush2.msra.mxu0 0.0
  %2144 = vmatprep.subr.mxu0 0.0
  %2145 = vmatpush2.msra.mxu0 0.0
  %2146 = vmatprep.subr.mxu0 0.0
  %2147 = vmatpush2.msra.mxu0 0.0
  %2148 = vmatprep.subr.mxu0 0.0
  %2149 = vmatpush2.msra.mxu0 0.0
  %2150 = vmatprep.subr.mxu0 0.0
  %2151 = vmatpush2.msra.mxu0 0.0
  %2152 = vmatprep.mubr.f32.mxu0 0.0
  %2153 = vmatmul.mubr.f32.gmra.mxu0 %v2086
  %v2154 = vpop.f32.mrf.mxu0
  %v2155 = vadd.f32 %v1573, %v2154
  %v2156 = vpop.f32.mrf.mxu0
  %2157 = vdwg.mxu0
  %v2158 = vadd.f32 %v2080, %v2155
  %v2159 = vxor.u32 %v2158, 2147483648
  %v2160 = vmul.f32 %v2159, 1.442695
  %v2161 = vpow.pop %v2160
  %v2162 = vadd.f32 %v2161, 1.0
  %v2163 = vrcp.pop %v2162
  %v2164 = vmul.f32 1.0, %v2163
  %2166 = vrot.lane.b32.xlu0 %v2155, 64
  %v2167 = vpop.permute.xlu0 %2166
  %v2169 = vmul.f32 %v2164, %v2167
  %2171 = vrot.lane.b32.xlu0 %v2169, 64
  %v2172 = vpop.permute.xlu0 %2171
  %v2174 = vadd.f32 %v2080, %v2172
  %v2175 = vtanh.pop %v2174
  %v2176 = vsub.f32 1.0, %v2164
  %2178 = vrot.lane.b32.xlu0 %v2175, 96
  %v2179 = vpop.permute.xlu0 %2178
  %v2181 = vmul.f32 %v2176, %v2179
  %v2182 = vmul.f32 %v2164, %v2012
  %v2183 = vadd.f32 %v2181, %v2182
  %2184 = vmatprep.subr.mxu0 0.0
  %2185 = vmatpush1.msra.mxu0 0.0
  %2186 = vmatprep.subr.mxu0 0.0
  %2187 = vmatpush1.msra.mxu0 0.0
  %2188 = vmatprep.subr.mxu0 0.0
  %2189 = vmatpush1.msra.mxu0 0.0
  %2190 = vmatprep.subr.mxu0 0.0
  %2191 = vmatpush1.msra.mxu0 0.0
  %2192 = vmatprep.subr.mxu0 0.0
  %2193 = vmatpush1.msra.mxu0 0.0
  %2194 = vmatprep.subr.mxu0 0.0
  %2195 = vmatpush1.msra.mxu0 0.0
  %2196 = vmatprep.subr.mxu0 0.0
  %2197 = vmatpush1.msra.mxu0 0.0
  %2198 = vmatprep.subr.mxu0 0.0
  %2199 = vmatpush1.msra.mxu0 0.0
  %2200 = vmatprep.subr.mxu0 0.0
  %2201 = vmatpush1.msra.mxu0 0.0
  %2202 = vmatprep.subr.mxu0 0.0
  %2203 = vmatpush1.msra.mxu0 0.0
  %2204 = vmatprep.subr.mxu0 0.0
  %2205 = vmatpush1.msra.mxu0 0.0
  %2206 = vmatprep.subr.mxu0 0.0
  %2207 = vmatpush1.msra.mxu0 0.0
  %2208 = vmatprep.subr.mxu0 0.0
  %2209 = vmatpush1.msra.mxu0 0.0
  %2210 = vmatprep.subr.mxu0 0.0
  %2211 = vmatpush1.msra.mxu0 0.0
  %2212 = vmatprep.subr.mxu0 0.0
  %2213 = vmatpush1.msra.mxu0 %v53
  %2214 = vmatprep.subr.mxu0 0.0
  %2215 = vmatpush1.msra.mxu0 %v52
  %2216 = vmatprep.subr.mxu0 0.0
  %2217 = vmatpush2.msra.mxu0 0.0
  %2218 = vmatprep.subr.mxu0 0.0
  %2219 = vmatpush2.msra.mxu0 0.0
  %2220 = vmatprep.subr.mxu0 0.0
  %2221 = vmatpush2.msra.mxu0 0.0
  %2222 = vmatprep.subr.mxu0 0.0
  %2223 = vmatpush2.msra.mxu0 0.0
  %2224 = vmatprep.subr.mxu0 0.0
  %2225 = vmatpush2.msra.mxu0 0.0
  %2226 = vmatprep.subr.mxu0 0.0
  %2227 = vmatpush2.msra.mxu0 0.0
  %2228 = vmatprep.subr.mxu0 0.0
  %2229 = vmatpush2.msra.mxu0 0.0
  %2230 = vmatprep.subr.mxu0 0.0
  %2231 = vmatpush2.msra.mxu0 0.0
  %2232 = vmatprep.subr.mxu0 0.0
  %2233 = vmatpush2.msra.mxu0 0.0
  %2234 = vmatprep.subr.mxu0 0.0
  %2235 = vmatpush2.msra.mxu0 0.0
  %2236 = vmatprep.subr.mxu0 0.0
  %2237 = vmatpush2.msra.mxu0 0.0
  %2238 = vmatprep.subr.mxu0 0.0
  %2239 = vmatpush2.msra.mxu0 0.0
  %2240 = vmatprep.subr.mxu0 0.0
  %2241 = vmatpush2.msra.mxu0 0.0
  %2242 = vmatprep.subr.mxu0 0.0
  %2243 = vmatpush2.msra.mxu0 0.0
  %2244 = vmatprep.subr.mxu0 0.0
  %2245 = vmatpush2.msra.mxu0 0.0
  %2246 = vmatprep.subr.mxu0 0.0
  %2247 = vmatpush2.msra.mxu0 0.0
  %2248 = vmatprep.mubr.f32.mxu0 0.0
  %2249 = vmatmul.mubr.f32.gmra.mxu0 %v616
  %v2250 = vpop.f32.mrf.mxu0
  %v2251 = vadd.f32 %v1497, %v2250
  %v2252 = vpop.f32.mrf.mxu0
  %2253 = vdwg.mxu0
  %2255 = vrot.lane.b32.xlu0 %v2183, 96
  %v2256 = vpop.permute.xlu0 %2255
  %v2257 = vsel %vm161, %v2256, 0
  %2259 = vmatprep.subr.mxu0 0.0
  %2260 = vmatpush1.msra.mxu0 0.0
  %2261 = vmatprep.subr.mxu0 0.0
  %2262 = vmatpush1.msra.mxu0 0.0
  %2263 = vmatprep.subr.mxu0 0.0
  %2264 = vmatpush1.msra.mxu0 0.0
  %2265 = vmatprep.subr.mxu0 0.0
  %2266 = vmatpush1.msra.mxu0 0.0
  %2267 = vmatprep.subr.mxu0 0.0
  %2268 = vmatpush1.msra.mxu0 0.0
  %2269 = vmatprep.subr.mxu0 0.0
  %2270 = vmatpush1.msra.mxu0 0.0
  %2271 = vmatprep.subr.mxu0 0.0
  %2272 = vmatpush1.msra.mxu0 0.0
  %2273 = vmatprep.subr.mxu0 0.0
  %2274 = vmatpush1.msra.mxu0 0.0
  %2275 = vmatprep.subr.mxu0 0.0
  %2276 = vmatpush1.msra.mxu0 0.0
  %2277 = vmatprep.subr.mxu0 0.0
  %2278 = vmatpush1.msra.mxu0 0.0
  %2279 = vmatprep.subr.mxu0 0.0
  %2280 = vmatpush1.msra.mxu0 0.0
  %2281 = vmatprep.subr.mxu0 0.0
  %2282 = vmatpush1.msra.mxu0 0.0
  %2283 = vmatprep.subr.mxu0 0.0
  %2284 = vmatpush1.msra.mxu0 %v57
  %2285 = vmatprep.subr.mxu0 0.0
  %2286 = vmatpush1.msra.mxu0 %v56
  %2287 = vmatprep.subr.mxu0 0.0
  %2288 = vmatpush1.msra.mxu0 %v55
  %2289 = vmatprep.subr.mxu0 0.0
  %2290 = vmatpush1.msra.mxu0 %v54
  %2291 = vmatprep.subr.mxu0 0.0
  %2292 = vmatpush2.msra.mxu0 0.0
  %2293 = vmatprep.subr.mxu0 0.0
  %2294 = vmatpush2.msra.mxu0 0.0
  %2295 = vmatprep.subr.mxu0 0.0
  %2296 = vmatpush2.msra.mxu0 0.0
  %2297 = vmatprep.subr.mxu0 0.0
  %2298 = vmatpush2.msra.mxu0 0.0
  %2299 = vmatprep.subr.mxu0 0.0
  %2300 = vmatpush2.msra.mxu0 0.0
  %2301 = vmatprep.subr.mxu0 0.0
  %2302 = vmatpush2.msra.mxu0 0.0
  %2303 = vmatprep.subr.mxu0 0.0
  %2304 = vmatpush2.msra.mxu0 0.0
  %2305 = vmatprep.subr.mxu0 0.0
  %2306 = vmatpush2.msra.mxu0 0.0
  %2307 = vmatprep.subr.mxu0 0.0
  %2308 = vmatpush2.msra.mxu0 0.0
  %2309 = vmatprep.subr.mxu0 0.0
  %2310 = vmatpush2.msra.mxu0 0.0
  %2311 = vmatprep.subr.mxu0 0.0
  %2312 = vmatpush2.msra.mxu0 0.0
  %2313 = vmatprep.subr.mxu0 0.0
  %2314 = vmatpush2.msra.mxu0 0.0
  %2315 = vmatprep.subr.mxu0 0.0
  %2316 = vmatpush2.msra.mxu0 0.0
  %2317 = vmatprep.subr.mxu0 0.0
  %2318 = vmatpush2.msra.mxu0 0.0
  %2319 = vmatprep.subr.mxu0 0.0
  %2320 = vmatpush2.msra.mxu0 0.0
  %2321 = vmatprep.subr.mxu0 0.0
  %2322 = vmatpush2.msra.mxu0 0.0
  %2323 = vmatprep.mubr.f32.mxu0 0.0
  %2324 = vmatmul.mubr.f32.gmra.mxu0 %v2257
  %v2325 = vpop.f32.mrf.mxu0
  %v2326 = vadd.f32 %v1573, %v2325
  %v2327 = vpop.f32.mrf.mxu0
  %2328 = vdwg.mxu0
  %v2329 = vadd.f32 %v2251, %v2326
  %v2330 = vxor.u32 %v2329, 2147483648
  %v2331 = vmul.f32 %v2330, 1.442695
  %v2332 = vpow.pop %v2331
  %v2333 = vadd.f32 %v2332, 1.0
  %v2334 = vrcp.pop %v2333
  %v2335 = vmul.f32 1.0, %v2334
  %2337 = vrot.lane.b32.xlu0 %v2326, 64
  %v2338 = vpop.permute.xlu0 %2337
  %v2340 = vmul.f32 %v2335, %v2338
  %2342 = vrot.lane.b32.xlu0 %v2340, 64
  %v2343 = vpop.permute.xlu0 %2342
  %v2345 = vadd.f32 %v2251, %v2343
  %v2346 = vtanh.pop %v2345
  %v2347 = vsub.f32 1.0, %v2335
  %2349 = vrot.lane.b32.xlu0 %v2346, 96
  %v2350 = vpop.permute.xlu0 %2349
  %v2352 = vmul.f32 %v2347, %v2350
  %v2353 = vmul.f32 %v2335, %v2183
  %v2354 = vadd.f32 %v2352, %v2353
  %2355 = vmatprep.subr.mxu0 0.0
  %2356 = vmatpush1.msra.mxu0 0.0
  %2357 = vmatprep.subr.mxu0 0.0
  %2358 = vmatpush1.msra.mxu0 0.0
  %2359 = vmatprep.subr.mxu0 0.0
  %2360 = vmatpush1.msra.mxu0 0.0
  %2361 = vmatprep.subr.mxu0 0.0
  %2362 = vmatpush1.msra.mxu0 0.0
  %2363 = vmatprep.subr.mxu0 0.0
  %2364 = vmatpush1.msra.mxu0 0.0
  %2365 = vmatprep.subr.mxu0 0.0
  %2366 = vmatpush1.msra.mxu0 0.0
  %2367 = vmatprep.subr.mxu0 0.0
  %2368 = vmatpush1.msra.mxu0 0.0
  %2369 = vmatprep.subr.mxu0 0.0
  %2370 = vmatpush1.msra.mxu0 0.0
  %2371 = vmatprep.subr.mxu0 0.0
  %2372 = vmatpush1.msra.mxu0 0.0
  %2373 = vmatprep.subr.mxu0 0.0
  %2374 = vmatpush1.msra.mxu0 0.0
  %2375 = vmatprep.subr.mxu0 0.0
  %2376 = vmatpush1.msra.mxu0 0.0
  %2377 = vmatprep.subr.mxu0 0.0
  %2378 = vmatpush1.msra.mxu0 0.0
  %2379 = vmatprep.subr.mxu0 0.0
  %2380 = vmatpush1.msra.mxu0 0.0
  %2381 = vmatprep.subr.mxu0 0.0
  %2382 = vmatpush1.msra.mxu0 0.0
  %2383 = vmatprep.subr.mxu0 0.0
  %2384 = vmatpush1.msra.mxu0 %v53
  %2385 = vmatprep.subr.mxu0 0.0
  %2386 = vmatpush1.msra.mxu0 %v52
  %2387 = vmatprep.subr.mxu0 0.0
  %2388 = vmatpush2.msra.mxu0 0.0
  %2389 = vmatprep.subr.mxu0 0.0
  %2390 = vmatpush2.msra.mxu0 0.0
  %2391 = vmatprep.subr.mxu0 0.0
  %2392 = vmatpush2.msra.mxu0 0.0
  %2393 = vmatprep.subr.mxu0 0.0
  %2394 = vmatpush2.msra.mxu0 0.0
  %2395 = vmatprep.subr.mxu0 0.0
  %2396 = vmatpush2.msra.mxu0 0.0
  %2397 = vmatprep.subr.mxu0 0.0
  %2398 = vmatpush2.msra.mxu0 0.0
  %2399 = vmatprep.subr.mxu0 0.0
  %2400 = vmatpush2.msra.mxu0 0.0
  %2401 = vmatprep.subr.mxu0 0.0
  %2402 = vmatpush2.msra.mxu0 0.0
  %2403 = vmatprep.subr.mxu0 0.0
  %2404 = vmatpush2.msra.mxu0 0.0
  %2405 = vmatprep.subr.mxu0 0.0
  %2406 = vmatpush2.msra.mxu0 0.0
  %2407 = vmatprep.subr.mxu0 0.0
  %2408 = vmatpush2.msra.mxu0 0.0
  %2409 = vmatprep.subr.mxu0 0.0
  %2410 = vmatpush2.msra.mxu0 0.0
  %2411 = vmatprep.subr.mxu0 0.0
  %2412 = vmatpush2.msra.mxu0 0.0
  %2413 = vmatprep.subr.mxu0 0.0
  %2414 = vmatpush2.msra.mxu0 0.0
  %2415 = vmatprep.subr.mxu0 0.0
  %2416 = vmatpush2.msra.mxu0 0.0
  %2417 = vmatprep.subr.mxu0 0.0
  %2418 = vmatpush2.msra.mxu0 0.0
  %2419 = vmatprep.mubr.f32.mxu0 0.0
  %2420 = vmatmul.mubr.f32.gmra.mxu0 %v440
  %v2421 = vpop.f32.mrf.mxu0
  %v2422 = vadd.f32 %v1497, %v2421
  %v2423 = vpop.f32.mrf.mxu0
  %2424 = vdwg.mxu0
  %2426 = vrot.lane.b32.xlu0 %v2354, 96
  %v2427 = vpop.permute.xlu0 %2426
  %v2428 = vsel %vm161, %v2427, 0
  %2430 = vmatprep.subr.mxu0 0.0
  %2431 = vmatpush1.msra.mxu0 0.0
  %2432 = vmatprep.subr.mxu0 0.0
  %2433 = vmatpush1.msra.mxu0 0.0
  %2434 = vmatprep.subr.mxu0 0.0
  %2435 = vmatpush1.msra.mxu0 0.0
  %2436 = vmatprep.subr.mxu0 0.0
  %2437 = vmatpush1.msra.mxu0 0.0
  %2438 = vmatprep.subr.mxu0 0.0
  %2439 = vmatpush1.msra.mxu0 0.0
  %2440 = vmatprep.subr.mxu0 0.0
  %2441 = vmatpush1.msra.mxu0 0.0
  %2442 = vmatprep.subr.mxu0 0.0
  %2443 = vmatpush1.msra.mxu0 0.0
  %2444 = vmatprep.subr.mxu0 0.0
  %2445 = vmatpush1.msra.mxu0 0.0
  %2446 = vmatprep.subr.mxu0 0.0
  %2447 = vmatpush1.msra.mxu0 0.0
  %2448 = vmatprep.subr.mxu0 0.0
  %2449 = vmatpush1.msra.mxu0 0.0
  %2450 = vmatprep.subr.mxu0 0.0
  %2451 = vmatpush1.msra.mxu0 0.0
  %2452 = vmatprep.subr.mxu0 0.0
  %2453 = vmatpush1.msra.mxu0 0.0
  %2454 = vmatprep.subr.mxu0 0.0
  %2455 = vmatpush1.msra.mxu0 %v57
  %2456 = vmatprep.subr.mxu0 0.0
  %2457 = vmatpush1.msra.mxu0 %v56
  %2458 = vmatprep.subr.mxu0 0.0
  %2459 = vmatpush1.msra.mxu0 %v55
  %2460 = vmatprep.subr.mxu0 0.0
  %2461 = vmatpush1.msra.mxu0 %v54
  %2462 = vmatprep.subr.mxu0 0.0
  %2463 = vmatpush2.msra.mxu0 0.0
  %2464 = vmatprep.subr.mxu0 0.0
  %2465 = vmatpush2.msra.mxu0 0.0
  %2466 = vmatprep.subr.mxu0 0.0
  %2467 = vmatpush2.msra.mxu0 0.0
  %2468 = vmatprep.subr.mxu0 0.0
  %2469 = vmatpush2.msra.mxu0 0.0
  %2470 = vmatprep.subr.mxu0 0.0
  %2471 = vmatpush2.msra.mxu0 0.0
  %2472 = vmatprep.subr.mxu0 0.0
  %2473 = vmatpush2.msra.mxu0 0.0
  %2474 = vmatprep.subr.mxu0 0.0
  %2475 = vmatpush2.msra.mxu0 0.0
  %2476 = vmatprep.subr.mxu0 0.0
  %2477 = vmatpush2.msra.mxu0 0.0
  %2478 = vmatprep.subr.mxu0 0.0
  %2479 = vmatpush2.msra.mxu0 0.0
  %2480 = vmatprep.subr.mxu0 0.0
  %2481 = vmatpush2.msra.mxu0 0.0
  %2482 = vmatprep.subr.mxu0 0.0
  %2483 = vmatpush2.msra.mxu0 0.0
  %2484 = vmatprep.subr.mxu0 0.0
  %2485 = vmatpush2.msra.mxu0 0.0
  %2486 = vmatprep.subr.mxu0 0.0
  %2487 = vmatpush2.msra.mxu0 0.0
  %2488 = vmatprep.subr.mxu0 0.0
  %2489 = vmatpush2.msra.mxu0 0.0
  %2490 = vmatprep.subr.mxu0 0.0
  %2491 = vmatpush2.msra.mxu0 0.0
  %2492 = vmatprep.subr.mxu0 0.0
  %2493 = vmatpush2.msra.mxu0 0.0
  %2494 = vmatprep.mubr.f32.mxu0 0.0
  %2495 = vmatmul.mubr.f32.gmra.mxu0 %v2428
  %v2496 = vpop.f32.mrf.mxu0
  %v2497 = vadd.f32 %v1573, %v2496
  %v2498 = vpop.f32.mrf.mxu0
  %2499 = vdwg.mxu0
  %v2500 = vadd.f32 %v2422, %v2497
  %v2501 = vxor.u32 %v2500, 2147483648
  %v2502 = vmul.f32 %v2501, 1.442695
  %v2503 = vpow.pop %v2502
  %v2504 = vadd.f32 %v2503, 1.0
  %v2505 = vrcp.pop %v2504
  %v2506 = vmul.f32 1.0, %v2505
  %2508 = vrot.lane.b32.xlu0 %v2497, 64
  %v2509 = vpop.permute.xlu0 %2508
  %v2511 = vmul.f32 %v2506, %v2509
  %2513 = vrot.lane.b32.xlu0 %v2511, 64
  %v2514 = vpop.permute.xlu0 %2513
  %v2516 = vadd.f32 %v2422, %v2514
  %v2517 = vtanh.pop %v2516
  %v2518 = vsub.f32 1.0, %v2506
  %2520 = vrot.lane.b32.xlu0 %v2517, 96
  %v2521 = vpop.permute.xlu0 %2520
  %v2523 = vmul.f32 %v2518, %v2521
  %v2524 = vmul.f32 %v2506, %v2354
  %v2525 = vadd.f32 %v2523, %v2524
  %2526 = vmatprep.subr.mxu0 0.0
  %2527 = vmatpush1.msra.mxu0 0.0
  %2528 = vmatprep.subr.mxu0 0.0
  %2529 = vmatpush1.msra.mxu0 0.0
  %2530 = vmatprep.subr.mxu0 0.0
  %2531 = vmatpush1.msra.mxu0 0.0
  %2532 = vmatprep.subr.mxu0 0.0
  %2533 = vmatpush1.msra.mxu0 0.0
  %2534 = vmatprep.subr.mxu0 0.0
  %2535 = vmatpush1.msra.mxu0 0.0
  %2536 = vmatprep.subr.mxu0 0.0
  %2537 = vmatpush1.msra.mxu0 0.0
  %2538 = vmatprep.subr.mxu0 0.0
  %2539 = vmatpush1.msra.mxu0 0.0
  %2540 = vmatprep.subr.mxu0 0.0
  %2541 = vmatpush1.msra.mxu0 0.0
  %2542 = vmatprep.subr.mxu0 0.0
  %2543 = vmatpush1.msra.mxu0 0.0
  %2544 = vmatprep.subr.mxu0 0.0
  %2545 = vmatpush1.msra.mxu0 0.0
  %2546 = vmatprep.subr.mxu0 0.0
  %2547 = vmatpush1.msra.mxu0 0.0
  %2548 = vmatprep.subr.mxu0 0.0
  %2549 = vmatpush1.msra.mxu0 0.0
  %2550 = vmatprep.subr.mxu0 0.0
  %2551 = vmatpush1.msra.mxu0 0.0
  %2552 = vmatprep.subr.mxu0 0.0
  %2553 = vmatpush1.msra.mxu0 0.0
  %2554 = vmatprep.subr.mxu0 0.0
  %2555 = vmatpush1.msra.mxu0 %v53
  %2556 = vmatprep.subr.mxu0 0.0
  %2557 = vmatpush1.msra.mxu0 %v52
  %2558 = vmatprep.subr.mxu0 0.0
  %2559 = vmatpush2.msra.mxu0 0.0
  %2560 = vmatprep.subr.mxu0 0.0
  %2561 = vmatpush2.msra.mxu0 0.0
  %2562 = vmatprep.subr.mxu0 0.0
  %2563 = vmatpush2.msra.mxu0 0.0
  %2564 = vmatprep.subr.mxu0 0.0
  %2565 = vmatpush2.msra.mxu0 0.0
  %2566 = vmatprep.subr.mxu0 0.0
  %2567 = vmatpush2.msra.mxu0 0.0
  %2568 = vmatprep.subr.mxu0 0.0
  %2569 = vmatpush2.msra.mxu0 0.0
  %2570 = vmatprep.subr.mxu0 0.0
  %2571 = vmatpush2.msra.mxu0 0.0
  %2572 = vmatprep.subr.mxu0 0.0
  %2573 = vmatpush2.msra.mxu0 0.0
  %2574 = vmatprep.subr.mxu0 0.0
  %2575 = vmatpush2.msra.mxu0 0.0
  %2576 = vmatprep.subr.mxu0 0.0
  %2577 = vmatpush2.msra.mxu0 0.0
  %2578 = vmatprep.subr.mxu0 0.0
  %2579 = vmatpush2.msra.mxu0 0.0
  %2580 = vmatprep.subr.mxu0 0.0
  %2581 = vmatpush2.msra.mxu0 0.0
  %2582 = vmatprep.subr.mxu0 0.0
  %2583 = vmatpush2.msra.mxu0 0.0
  %2584 = vmatprep.subr.mxu0 0.0
  %2585 = vmatpush2.msra.mxu0 0.0
  %2586 = vmatprep.subr.mxu0 0.0
  %2587 = vmatpush2.msra.mxu0 0.0
  %2588 = vmatprep.subr.mxu0 0.0
  %2589 = vmatpush2.msra.mxu0 0.0
  %2590 = vmatprep.mubr.f32.mxu0 0.0
  %2591 = vmatmul.mubr.f32.gmra.mxu0 %v264
  %v2592 = vpop.f32.mrf.mxu0
  %v2593 = vadd.f32 %v1497, %v2592
  %v2594 = vpop.f32.mrf.mxu0
  %2595 = vdwg.mxu0
  %2597 = vrot.lane.b32.xlu0 %v2525, 96
  %v2598 = vpop.permute.xlu0 %2597
  %v2599 = vsel %vm161, %v2598, 0
  %2601 = vmatprep.subr.mxu0 0.0
  %2602 = vmatpush1.msra.mxu0 0.0
  %2603 = vmatprep.subr.mxu0 0.0
  %2604 = vmatpush1.msra.mxu0 0.0
  %2605 = vmatprep.subr.mxu0 0.0
  %2606 = vmatpush1.msra.mxu0 0.0
  %2607 = vmatprep.subr.mxu0 0.0
  %2608 = vmatpush1.msra.mxu0 0.0
  %2609 = vmatprep.subr.mxu0 0.0
  %2610 = vmatpush1.msra.mxu0 0.0
  %2611 = vmatprep.subr.mxu0 0.0
  %2612 = vmatpush1.msra.mxu0 0.0
  %2613 = vmatprep.subr.mxu0 0.0
  %2614 = vmatpush1.msra.mxu0 0.0
  %2615 = vmatprep.subr.mxu0 0.0
  %2616 = vmatpush1.msra.mxu0 0.0
  %2617 = vmatprep.subr.mxu0 0.0
  %2618 = vmatpush1.msra.mxu0 0.0
  %2619 = vmatprep.subr.mxu0 0.0
  %2620 = vmatpush1.msra.mxu0 0.0
  %2621 = vmatprep.subr.mxu0 0.0
  %2622 = vmatpush1.msra.mxu0 0.0
  %2623 = vmatprep.subr.mxu0 0.0
  %2624 = vmatpush1.msra.mxu0 0.0
  %2625 = vmatprep.subr.mxu0 0.0
  %2626 = vmatpush1.msra.mxu0 %v57
  %2627 = vmatprep.subr.mxu0 0.0
  %2628 = vmatpush1.msra.mxu0 %v56
  %2629 = vmatprep.subr.mxu0 0.0
  %2630 = vmatpush1.msra.mxu0 %v55
  %2631 = vmatprep.subr.mxu0 0.0
  %2632 = vmatpush1.msra.mxu0 %v54
  %2633 = vmatprep.subr.mxu0 0.0
  %2634 = vmatpush2.msra.mxu0 0.0
  %2635 = vmatprep.subr.mxu0 0.0
  %2636 = vmatpush2.msra.mxu0 0.0
  %2637 = vmatprep.subr.mxu0 0.0
  %2638 = vmatpush2.msra.mxu0 0.0
  %2639 = vmatprep.subr.mxu0 0.0
  %2640 = vmatpush2.msra.mxu0 0.0
  %2641 = vmatprep.subr.mxu0 0.0
  %2642 = vmatpush2.msra.mxu0 0.0
  %2643 = vmatprep.subr.mxu0 0.0
  %2644 = vmatpush2.msra.mxu0 0.0
  %2645 = vmatprep.subr.mxu0 0.0
  %2646 = vmatpush2.msra.mxu0 0.0
  %2647 = vmatprep.subr.mxu0 0.0
  %2648 = vmatpush2.msra.mxu0 0.0
  %2649 = vmatprep.subr.mxu0 0.0
  %2650 = vmatpush2.msra.mxu0 0.0
  %2651 = vmatprep.subr.mxu0 0.0
  %2652 = vmatpush2.msra.mxu0 0.0
  %2653 = vmatprep.subr.mxu0 0.0
  %2654 = vmatpush2.msra.mxu0 0.0
  %2655 = vmatprep.subr.mxu0 0.0
  %2656 = vmatpush2.msra.mxu0 0.0
  %2657 = vmatprep.subr.mxu0 0.0
  %2658 = vmatpush2.msra.mxu0 0.0
  %2659 = vmatprep.subr.mxu0 0.0
  %2660 = vmatpush2.msra.mxu0 0.0
  %2661 = vmatprep.subr.mxu0 0.0
  %2662 = vmatpush2.msra.mxu0 0.0
  %2663 = vmatprep.subr.mxu0 0.0
  %2664 = vmatpush2.msra.mxu0 0.0
  %2665 = vmatprep.mubr.f32.mxu0 0.0
  %2666 = vmatmul.mubr.f32.gmra.mxu0 %v2599
  %v2667 = vpop.f32.mrf.mxu0
  %v2668 = vadd.f32 %v1573, %v2667
  %v2669 = vpop.f32.mrf.mxu0
  %2670 = vdwg.mxu0
  %v2671 = vadd.f32 %v2593, %v2668
  %v2672 = vxor.u32 %v2671, 2147483648
  %v2673 = vmul.f32 %v2672, 1.442695
  %v2674 = vpow.pop %v2673
  %v2675 = vadd.f32 %v2674, 1.0
  %v2676 = vrcp.pop %v2675
  %v2677 = vmul.f32 1.0, %v2676
  %2679 = vrot.lane.b32.xlu0 %v2668, 64
  %v2680 = vpop.permute.xlu0 %2679
  %v2682 = vmul.f32 %v2677, %v2680
  %2684 = vrot.lane.b32.xlu0 %v2682, 64
  %v2685 = vpop.permute.xlu0 %2684
  %v2687 = vadd.f32 %v2593, %v2685
  %v2688 = vtanh.pop %v2687
  %v2689 = vsub.f32 1.0, %v2677
  %2691 = vrot.lane.b32.xlu0 %v2688, 96
  %v2692 = vpop.permute.xlu0 %2691
  %v2694 = vmul.f32 %v2689, %v2692
  %v2695 = vmul.f32 %v2677, %v2525
  %v2696 = vadd.f32 %v2694, %v2695
  %2697 = vmatprep.subr.mxu0 0.0
  %2698 = vmatpush1.msra.mxu0 0.0
  %2699 = vmatprep.subr.mxu0 0.0
  %2700 = vmatpush1.msra.mxu0 0.0
  %2701 = vmatprep.subr.mxu0 0.0
  %2702 = vmatpush1.msra.mxu0 0.0
  %2703 = vmatprep.subr.mxu0 0.0
  %2704 = vmatpush1.msra.mxu0 0.0
  %2705 = vmatprep.subr.mxu0 0.0
  %2706 = vmatpush1.msra.mxu0 0.0
  %2707 = vmatprep.subr.mxu0 0.0
  %2708 = vmatpush1.msra.mxu0 0.0
  %2709 = vmatprep.subr.mxu0 0.0
  %2710 = vmatpush1.msra.mxu0 0.0
  %2711 = vmatprep.subr.mxu0 0.0
  %2712 = vmatpush1.msra.mxu0 0.0
  %2713 = vmatprep.subr.mxu0 0.0
  %2714 = vmatpush1.msra.mxu0 0.0
  %2715 = vmatprep.subr.mxu0 0.0
  %2716 = vmatpush1.msra.mxu0 0.0
  %2717 = vmatprep.subr.mxu0 0.0
  %2718 = vmatpush1.msra.mxu0 0.0
  %2719 = vmatprep.subr.mxu0 0.0
  %2720 = vmatpush1.msra.mxu0 0.0
  %2721 = vmatprep.subr.mxu0 0.0
  %2722 = vmatpush1.msra.mxu0 0.0
  %2723 = vmatprep.subr.mxu0 0.0
  %2724 = vmatpush1.msra.mxu0 0.0
  %2725 = vmatprep.subr.mxu0 0.0
  %2726 = vmatpush1.msra.mxu0 %v53
  %2727 = vmatprep.subr.mxu0 0.0
  %2728 = vmatpush1.msra.mxu0 %v52
  %2729 = vmatprep.subr.mxu0 0.0
  %2730 = vmatpush2.msra.mxu0 0.0
  %2731 = vmatprep.subr.mxu0 0.0
  %2732 = vmatpush2.msra.mxu0 0.0
  %2733 = vmatprep.subr.mxu0 0.0
  %2734 = vmatpush2.msra.mxu0 0.0
  %2735 = vmatprep.subr.mxu0 0.0
  %2736 = vmatpush2.msra.mxu0 0.0
  %2737 = vmatprep.subr.mxu0 0.0
  %2738 = vmatpush2.msra.mxu0 0.0
  %2739 = vmatprep.subr.mxu0 0.0
  %2740 = vmatpush2.msra.mxu0 0.0
  %2741 = vmatprep.subr.mxu0 0.0
  %2742 = vmatpush2.msra.mxu0 0.0
  %2743 = vmatprep.subr.mxu0 0.0
  %2744 = vmatpush2.msra.mxu0 0.0
  %2745 = vmatprep.subr.mxu0 0.0
  %2746 = vmatpush2.msra.mxu0 0.0
  %2747 = vmatprep.subr.mxu0 0.0
  %2748 = vmatpush2.msra.mxu0 0.0
  %2749 = vmatprep.subr.mxu0 0.0
  %2750 = vmatpush2.msra.mxu0 0.0
  %2751 = vmatprep.subr.mxu0 0.0
  %2752 = vmatpush2.msra.mxu0 0.0
  %2753 = vmatprep.subr.mxu0 0.0
  %2754 = vmatpush2.msra.mxu0 0.0
  %2755 = vmatprep.subr.mxu0 0.0
  %2756 = vmatpush2.msra.mxu0 0.0
  %2757 = vmatprep.subr.mxu0 0.0
  %2758 = vmatpush2.msra.mxu0 0.0
  %2759 = vmatprep.subr.mxu0 0.0
  %2760 = vmatpush2.msra.mxu0 0.0
  %2761 = vmatprep.mubr.f32.mxu0 0.0
  %2762 = vmatmul.mubr.f32.gmra.mxu0 %v83
  %v2763 = vpop.f32.mrf.mxu0
  %v2764 = vadd.f32 %v1497, %v2763
  %v2765 = vpop.f32.mrf.mxu0
  %2766 = vdwg.mxu0
  %2768 = vrot.lane.b32.xlu0 %v2696, 96
  %v2769 = vpop.permute.xlu0 %2768
  %v2770 = vsel %vm161, %v2769, 0
  %2772 = vmatprep.subr.mxu0 0.0
  %2773 = vmatpush1.msra.mxu0 0.0
  %2774 = vmatprep.subr.mxu0 0.0
  %2775 = vmatpush1.msra.mxu0 0.0
  %2776 = vmatprep.subr.mxu0 0.0
  %2777 = vmatpush1.msra.mxu0 0.0
  %2778 = vmatprep.subr.mxu0 0.0
  %2779 = vmatpush1.msra.mxu0 0.0
  %2780 = vmatprep.subr.mxu0 0.0
  %2781 = vmatpush1.msra.mxu0 0.0
  %2782 = vmatprep.subr.mxu0 0.0
  %2783 = vmatpush1.msra.mxu0 0.0
  %2784 = vmatprep.subr.mxu0 0.0
  %2785 = vmatpush1.msra.mxu0 0.0
  %2786 = vmatprep.subr.mxu0 0.0
  %2787 = vmatpush1.msra.mxu0 0.0
  %2788 = vmatprep.subr.mxu0 0.0
  %2789 = vmatpush1.msra.mxu0 0.0
  %2790 = vmatprep.subr.mxu0 0.0
  %2791 = vmatpush1.msra.mxu0 0.0
  %2792 = vmatprep.subr.mxu0 0.0
  %2793 = vmatpush1.msra.mxu0 0.0
  %2794 = vmatprep.subr.mxu0 0.0
  %2795 = vmatpush1.msra.mxu0 0.0
  %2796 = vmatprep.subr.mxu0 0.0
  %2797 = vmatpush1.msra.mxu0 %v57
  %2798 = vmatprep.subr.mxu0 0.0
  %2799 = vmatpush1.msra.mxu0 %v56
  %2800 = vmatprep.subr.mxu0 0.0
  %2801 = vmatpush1.msra.mxu0 %v55
  %2802 = vmatprep.subr.mxu0 0.0
  %2803 = vmatpush1.msra.mxu0 %v54
  %2804 = vmatprep.subr.mxu0 0.0
  %2805 = vmatpush2.msra.mxu0 0.0
  %2806 = vmatprep.subr.mxu0 0.0
  %2807 = vmatpush2.msra.mxu0 0.0
  %2808 = vmatprep.subr.mxu0 0.0
  %2809 = vmatpush2.msra.mxu0 0.0
  %2810 = vmatprep.subr.mxu0 0.0
  %2811 = vmatpush2.msra.mxu0 0.0
  %2812 = vmatprep.subr.mxu0 0.0
  %2813 = vmatpush2.msra.mxu0 0.0
  %2814 = vmatprep.subr.mxu0 0.0
  %2815 = vmatpush2.msra.mxu0 0.0
  %2816 = vmatprep.subr.mxu0 0.0
  %2817 = vmatpush2.msra.mxu0 0.0
  %2818 = vmatprep.subr.mxu0 0.0
  %2819 = vmatpush2.msra.mxu0 0.0
  %2820 = vmatprep.subr.mxu0 0.0
  %2821 = vmatpush2.msra.mxu0 0.0
  %2822 = vmatprep.subr.mxu0 0.0
  %2823 = vmatpush2.msra.mxu0 0.0
  %2824 = vmatprep.subr.mxu0 0.0
  %2825 = vmatpush2.msra.mxu0 0.0
  %2826 = vmatprep.subr.mxu0 0.0
  %2827 = vmatpush2.msra.mxu0 0.0
  %2828 = vmatprep.subr.mxu0 0.0
  %2829 = vmatpush2.msra.mxu0 0.0
  %2830 = vmatprep.subr.mxu0 0.0
  %2831 = vmatpush2.msra.mxu0 0.0
  %2832 = vmatprep.subr.mxu0 0.0
  %2833 = vmatpush2.msra.mxu0 0.0
  %2834 = vmatprep.subr.mxu0 0.0
  %2835 = vmatpush2.msra.mxu0 0.0
  %2836 = vmatprep.mubr.f32.mxu0 0.0
  %2837 = vmatmul.mubr.f32.gmra.mxu0 %v2770
  %v2838 = vpop.f32.mrf.mxu0
  %v2839 = vadd.f32 %v1573, %v2838
  %v2840 = vpop.f32.mrf.mxu0
  %2841 = vdwg.mxu0
  %v2842 = vadd.f32 %v2764, %v2839
  %v2843 = vxor.u32 %v2842, 2147483648
  %v2844 = vmul.f32 %v2843, 1.442695
  %v2845 = vpow.pop %v2844
  %v2846 = vadd.f32 %v2845, 1.0
  %v2847 = vrcp.pop %v2846
  %v2848 = vmul.f32 1.0, %v2847
  %2850 = vrot.lane.b32.xlu0 %v2839, 64
  %v2851 = vpop.permute.xlu0 %2850
  %v2853 = vmul.f32 %v2848, %v2851
  %2855 = vrot.lane.b32.xlu0 %v2853, 64
  %v2856 = vpop.permute.xlu0 %2855
  %v2858 = vadd.f32 %v2764, %v2856
  %v2859 = vtanh.pop %v2858
  %v2860 = vsub.f32 1.0, %v2848
  %2862 = vrot.lane.b32.xlu0 %v2859, 96
  %v2863 = vpop.permute.xlu0 %2862
  %v2865 = vmul.f32 %v2860, %v2863
  %v2866 = vmul.f32 %v2848, %v2696
  %v2867 = vadd.f32 %v2865, %v2866
  %2868 = vmatprep.subr.mxu0 0.0
  %2869 = vmatpush1.msra.mxu0 0.0
  %2870 = vmatprep.subr.mxu0 0.0
  %2871 = vmatpush1.msra.mxu0 0.0
  %2872 = vmatprep.subr.mxu0 0.0
  %2873 = vmatpush1.msra.mxu0 0.0
  %2874 = vmatprep.subr.mxu0 0.0
  %2875 = vmatpush1.msra.mxu0 0.0
  %2876 = vmatprep.subr.mxu0 0.0
  %2877 = vmatpush1.msra.mxu0 0.0
  %2878 = vmatprep.subr.mxu0 0.0
  %2879 = vmatpush1.msra.mxu0 0.0
  %2880 = vmatprep.subr.mxu0 0.0
  %2881 = vmatpush1.msra.mxu0 0.0
  %2882 = vmatprep.subr.mxu0 0.0
  %2883 = vmatpush1.msra.mxu0 0.0
  %2884 = vmatprep.subr.mxu0 0.0
  %2885 = vmatpush1.msra.mxu0 0.0
  %2886 = vmatprep.subr.mxu0 0.0
  %2887 = vmatpush1.msra.mxu0 0.0
  %2888 = vmatprep.subr.mxu0 0.0
  %2889 = vmatpush1.msra.mxu0 0.0
  %2890 = vmatprep.subr.mxu0 0.0
  %2891 = vmatpush1.msra.mxu0 0.0
  %2892 = vmatprep.subr.mxu0 0.0
  %2893 = vmatpush1.msra.mxu0 %v67
  %2894 = vmatprep.subr.mxu0 0.0
  %2895 = vmatpush1.msra.mxu0 %v66
  %2896 = vmatprep.subr.mxu0 0.0
  %2897 = vmatpush1.msra.mxu0 %v65
  %2898 = vmatprep.subr.mxu0 0.0
  %2899 = vmatpush1.msra.mxu0 %v64
  %2900 = vmatprep.subr.mxu0 0.0
  %2901 = vmatpush2.msra.mxu0 0.0
  %2902 = vmatprep.subr.mxu0 0.0
  %2903 = vmatpush2.msra.mxu0 0.0
  %2904 = vmatprep.subr.mxu0 0.0
  %2905 = vmatpush2.msra.mxu0 0.0
  %2906 = vmatprep.subr.mxu0 0.0
  %2907 = vmatpush2.msra.mxu0 0.0
  %2908 = vmatprep.subr.mxu0 0.0
  %2909 = vmatpush2.msra.mxu0 0.0
  %2910 = vmatprep.subr.mxu0 0.0
  %2911 = vmatpush2.msra.mxu0 0.0
  %2912 = vmatprep.subr.mxu0 0.0
  %2913 = vmatpush2.msra.mxu0 0.0
  %2914 = vmatprep.subr.mxu0 0.0
  %2915 = vmatpush2.msra.mxu0 0.0
  %2916 = vmatprep.subr.mxu0 0.0
  %2917 = vmatpush2.msra.mxu0 0.0
  %2918 = vmatprep.subr.mxu0 0.0
  %2919 = vmatpush2.msra.mxu0 0.0
  %2920 = vmatprep.subr.mxu0 0.0
  %2921 = vmatpush2.msra.mxu0 0.0
  %2922 = vmatprep.subr.mxu0 0.0
  %2923 = vmatpush2.msra.mxu0 0.0
  %2924 = vmatprep.subr.mxu0 0.0
  %2925 = vmatpush2.msra.mxu0 0.0
  %2926 = vmatprep.subr.mxu0 0.0
  %2927 = vmatpush2.msra.mxu0 0.0
  %2928 = vmatprep.subr.mxu0 0.0
  %2929 = vmatpush2.msra.mxu0 0.0
  %2930 = vmatprep.subr.mxu0 0.0
  %2931 = vmatpush2.msra.mxu0 0.0
  %2932 = vmatprep.mubr.f32.mxu0 0.0
  %2933 = vmatmul.mubr.f32.gmra.mxu0 %v1744
  %v2934 = vpop.f32.mrf.mxu0
  %v2935 = vadd.f32 0.0, %v2934
  %v2936 = vpop.f32.mrf.mxu0
  %2937 = vdwg.mxu0
  %2939 = vrot.lane.b32.xlu0 %v1492, 96
  %v2940 = vpop.permute.xlu0 %2939
  %v2941 = vsel %vm161, %v2940, 0
  %2943 = vmatprep.subr.mxu0 0.0
  %2944 = vmatpush1.msra.mxu0 0.0
  %2945 = vmatprep.subr.mxu0 0.0
  %2946 = vmatpush1.msra.mxu0 0.0
  %2947 = vmatprep.subr.mxu0 0.0
  %2948 = vmatpush1.msra.mxu0 0.0
  %2949 = vmatprep.subr.mxu0 0.0
  %2950 = vmatpush1.msra.mxu0 0.0
  %2951 = vmatprep.subr.mxu0 0.0
  %2952 = vmatpush1.msra.mxu0 0.0
  %2953 = vmatprep.subr.mxu0 0.0
  %2954 = vmatpush1.msra.mxu0 0.0
  %2955 = vmatprep.subr.mxu0 0.0
  %2956 = vmatpush1.msra.mxu0 0.0
  %2957 = vmatprep.subr.mxu0 0.0
  %2958 = vmatpush1.msra.mxu0 0.0
  %2959 = vmatprep.subr.mxu0 0.0
  %2960 = vmatpush1.msra.mxu0 0.0
  %2961 = vmatprep.subr.mxu0 0.0
  %2962 = vmatpush1.msra.mxu0 0.0
  %2963 = vmatprep.subr.mxu0 0.0
  %2964 = vmatpush1.msra.mxu0 0.0
  %2965 = vmatprep.subr.mxu0 0.0
  %2966 = vmatpush1.msra.mxu0 0.0
  %2967 = vmatprep.subr.mxu0 0.0
  %2968 = vmatpush1.msra.mxu0 %v63
  %2969 = vmatprep.subr.mxu0 0.0
  %2970 = vmatpush1.msra.mxu0 %v62
  %2971 = vmatprep.subr.mxu0 0.0
  %2972 = vmatpush1.msra.mxu0 %v61
  %2973 = vmatprep.subr.mxu0 0.0
  %2974 = vmatpush1.msra.mxu0 %v60
  %2975 = vmatprep.subr.mxu0 0.0
  %2976 = vmatpush2.msra.mxu0 0.0
  %2977 = vmatprep.subr.mxu0 0.0
  %2978 = vmatpush2.msra.mxu0 0.0
  %2979 = vmatprep.subr.mxu0 0.0
  %2980 = vmatpush2.msra.mxu0 0.0
  %2981 = vmatprep.subr.mxu0 0.0
  %2982 = vmatpush2.msra.mxu0 0.0
  %2983 = vmatprep.subr.mxu0 0.0
  %2984 = vmatpush2.msra.mxu0 0.0
  %2985 = vmatprep.subr.mxu0 0.0
  %2986 = vmatpush2.msra.mxu0 0.0
  %2987 = vmatprep.subr.mxu0 0.0
  %2988 = vmatpush2.msra.mxu0 0.0
  %2989 = vmatprep.subr.mxu0 0.0
  %2990 = vmatpush2.msra.mxu0 0.0
  %2991 = vmatprep.subr.mxu0 0.0
  %2992 = vmatpush2.msra.mxu0 0.0
  %2993 = vmatprep.subr.mxu0 0.0
  %2994 = vmatpush2.msra.mxu0 0.0
  %2995 = vmatprep.subr.mxu0 0.0
  %2996 = vmatpush2.msra.mxu0 0.0
  %2997 = vmatprep.subr.mxu0 0.0
  %2998 = vmatpush2.msra.mxu0 0.0
  %2999 = vmatprep.subr.mxu0 0.0
  %3000 = vmatpush2.msra.mxu0 0.0
  %3001 = vmatprep.subr.mxu0 0.0
  %3002 = vmatpush2.msra.mxu0 0.0
  %3003 = vmatprep.subr.mxu0 0.0
  %3004 = vmatpush2.msra.mxu0 0.0
  %3005 = vmatprep.subr.mxu0 0.0
  %3006 = vmatpush2.msra.mxu0 0.0
  %3007 = vmatprep.mubr.f32.mxu0 0.0
  %3008 = vmatmul.mubr.f32.gmra.mxu0 %v2941
  %v3009 = vpop.f32.mrf.mxu0
  %v3010 = vadd.f32 %v2935, %v3009
  %v3011 = vpop.f32.mrf.mxu0
  %3012 = vdwg.mxu0
  %v3014 = vlaneseq
  %v3015 = vshrl.u32 %v3014, 7
  %v3016 = vsub.s32 0, %v3015
  %v3017 = vrot.slane %v72, %v3016
  %v3019 = vadd.f32 %v3010, %v3017
  %v3021 = vlaneseq
  %v3022 = vshrl.u32 %v3021, 7
  %v3023 = vsub.s32 0, %v3022
  %v3024 = vrot.slane %v73, %v3023
  %3026 = vmatprep.subr.mxu0 0.0
  %3027 = vmatpush1.msra.mxu0 0.0
  %3028 = vmatprep.subr.mxu0 0.0
  %3029 = vmatpush1.msra.mxu0 0.0
  %3030 = vmatprep.subr.mxu0 0.0
  %3031 = vmatpush1.msra.mxu0 0.0
  %3032 = vmatprep.subr.mxu0 0.0
  %3033 = vmatpush1.msra.mxu0 0.0
  %3034 = vmatprep.subr.mxu0 0.0
  %3035 = vmatpush1.msra.mxu0 0.0
  %3036 = vmatprep.subr.mxu0 0.0
  %3037 = vmatpush1.msra.mxu0 0.0
  %3038 = vmatprep.subr.mxu0 0.0
  %3039 = vmatpush1.msra.mxu0 0.0
  %3040 = vmatprep.subr.mxu0 0.0
  %3041 = vmatpush1.msra.mxu0 0.0
  %3042 = vmatprep.subr.mxu0 0.0
  %3043 = vmatpush1.msra.mxu0 0.0
  %3044 = vmatprep.subr.mxu0 0.0
  %3045 = vmatpush1.msra.mxu0 0.0
  %3046 = vmatprep.subr.mxu0 0.0
  %3047 = vmatpush1.msra.mxu0 0.0
  %3048 = vmatprep.subr.mxu0 0.0
  %3049 = vmatpush1.msra.mxu0 0.0
  %3050 = vmatprep.subr.mxu0 0.0
  %3051 = vmatpush1.msra.mxu0 %v71
  %3052 = vmatprep.subr.mxu0 0.0
  %3053 = vmatpush1.msra.mxu0 %v70
  %3054 = vmatprep.subr.mxu0 0.0
  %3055 = vmatpush1.msra.mxu0 %v69
  %3056 = vmatprep.subr.mxu0 0.0
  %3057 = vmatpush1.msra.mxu0 %v68
  %3058 = vmatprep.subr.mxu0 0.0
  %3059 = vmatpush2.msra.mxu0 0.0
  %3060 = vmatprep.subr.mxu0 0.0
  %3061 = vmatpush2.msra.mxu0 0.0
  %3062 = vmatprep.subr.mxu0 0.0
  %3063 = vmatpush2.msra.mxu0 0.0
  %3064 = vmatprep.subr.mxu0 0.0
  %3065 = vmatpush2.msra.mxu0 0.0
  %3066 = vmatprep.subr.mxu0 0.0
  %3067 = vmatpush2.msra.mxu0 0.0
  %3068 = vmatprep.subr.mxu0 0.0
  %3069 = vmatpush2.msra.mxu0 0.0
  %3070 = vmatprep.subr.mxu0 0.0
  %3071 = vmatpush2.msra.mxu0 0.0
  %3072 = vmatprep.subr.mxu0 0.0
  %3073 = vmatpush2.msra.mxu0 0.0
  %3074 = vmatprep.subr.mxu0 0.0
  %3075 = vmatpush2.msra.mxu0 0.0
  %3076 = vmatprep.subr.mxu0 0.0
  %3077 = vmatpush2.msra.mxu0 0.0
  %3078 = vmatprep.subr.mxu0 0.0
  %3079 = vmatpush2.msra.mxu0 0.0
  %3080 = vmatprep.subr.mxu0 0.0
  %3081 = vmatpush2.msra.mxu0 0.0
  %3082 = vmatprep.subr.mxu0 0.0
  %3083 = vmatpush2.msra.mxu0 0.0
  %3084 = vmatprep.subr.mxu0 0.0
  %3085 = vmatpush2.msra.mxu0 0.0
  %3086 = vmatprep.subr.mxu0 0.0
  %3087 = vmatpush2.msra.mxu0 0.0
  %3088 = vmatprep.subr.mxu0 0.0
  %3089 = vmatpush2.msra.mxu0 0.0
  %3090 = vmatprep.mubr.f32.mxu0 0.0
  %3091 = vmatmul.mubr.f32.gmra.mxu0 %v163
  %v3092 = vpop.f32.mrf.mxu0
  %v3093 = vadd.f32 %v3024, %v3092
  %v3094 = vpop.f32.mrf.mxu0
  %3095 = vdwg.mxu0
  %v3096 = vadd.f32 %v3019, %v3093
  %v3097 = vxor.u32 %v3096, 2147483648
  %v3098 = vmul.f32 %v3097, 1.442695
  %v3099 = vpow.pop %v3098
  %v3100 = vadd.f32 %v3099, 1.0
  %v3101 = vrcp.pop %v3100
  %v3102 = vmul.f32 1.0, %v3101
  %3104 = vrot.lane.b32.xlu0 %v3093, 64
  %v3105 = vpop.permute.xlu0 %3104
  %v3107 = vmul.f32 %v3102, %v3105
  %3109 = vrot.lane.b32.xlu0 %v3107, 64
  %v3110 = vpop.permute.xlu0 %3109
  %v3112 = vadd.f32 %v3019, %v3110
  %v3113 = vtanh.pop %v3112
  %v3114 = vsub.f32 1.0, %v3102
  %3116 = vrot.lane.b32.xlu0 %v3113, 96
  %v3117 = vpop.permute.xlu0 %3116
  %v3119 = vmul.f32 %v3114, %v3117
  %v3120 = vmul.f32 %v3102, 0.0
  %v3121 = vadd.f32 %v3119, %v3120
  %3122 = vmatprep.subr.mxu0 0.0
  %3123 = vmatpush1.msra.mxu0 0.0
  %3124 = vmatprep.subr.mxu0 0.0
  %3125 = vmatpush1.msra.mxu0 0.0
  %3126 = vmatprep.subr.mxu0 0.0
  %3127 = vmatpush1.msra.mxu0 0.0
  %3128 = vmatprep.subr.mxu0 0.0
  %3129 = vmatpush1.msra.mxu0 0.0
  %3130 = vmatprep.subr.mxu0 0.0
  %3131 = vmatpush1.msra.mxu0 0.0
  %3132 = vmatprep.subr.mxu0 0.0
  %3133 = vmatpush1.msra.mxu0 0.0
  %3134 = vmatprep.subr.mxu0 0.0
  %3135 = vmatpush1.msra.mxu0 0.0
  %3136 = vmatprep.subr.mxu0 0.0
  %3137 = vmatpush1.msra.mxu0 0.0
  %3138 = vmatprep.subr.mxu0 0.0
  %3139 = vmatpush1.msra.mxu0 0.0
  %3140 = vmatprep.subr.mxu0 0.0
  %3141 = vmatpush1.msra.mxu0 0.0
  %3142 = vmatprep.subr.mxu0 0.0
  %3143 = vmatpush1.msra.mxu0 0.0
  %3144 = vmatprep.subr.mxu0 0.0
  %3145 = vmatpush1.msra.mxu0 0.0
  %3146 = vmatprep.subr.mxu0 0.0
  %3147 = vmatpush1.msra.mxu0 %v67
  %3148 = vmatprep.subr.mxu0 0.0
  %3149 = vmatpush1.msra.mxu0 %v66
  %3150 = vmatprep.subr.mxu0 0.0
  %3151 = vmatpush1.msra.mxu0 %v65
  %3152 = vmatprep.subr.mxu0 0.0
  %3153 = vmatpush1.msra.mxu0 %v64
  %3154 = vmatprep.subr.mxu0 0.0
  %3155 = vmatpush2.msra.mxu0 0.0
  %3156 = vmatprep.subr.mxu0 0.0
  %3157 = vmatpush2.msra.mxu0 0.0
  %3158 = vmatprep.subr.mxu0 0.0
  %3159 = vmatpush2.msra.mxu0 0.0
  %3160 = vmatprep.subr.mxu0 0.0
  %3161 = vmatpush2.msra.mxu0 0.0
  %3162 = vmatprep.subr.mxu0 0.0
  %3163 = vmatpush2.msra.mxu0 0.0
  %3164 = vmatprep.subr.mxu0 0.0
  %3165 = vmatpush2.msra.mxu0 0.0
  %3166 = vmatprep.subr.mxu0 0.0
  %3167 = vmatpush2.msra.mxu0 0.0
  %3168 = vmatprep.subr.mxu0 0.0
  %3169 = vmatpush2.msra.mxu0 0.0
  %3170 = vmatprep.subr.mxu0 0.0
  %3171 = vmatpush2.msra.mxu0 0.0
  %3172 = vmatprep.subr.mxu0 0.0
  %3173 = vmatpush2.msra.mxu0 0.0
  %3174 = vmatprep.subr.mxu0 0.0
  %3175 = vmatpush2.msra.mxu0 0.0
  %3176 = vmatprep.subr.mxu0 0.0
  %3177 = vmatpush2.msra.mxu0 0.0
  %3178 = vmatprep.subr.mxu0 0.0
  %3179 = vmatpush2.msra.mxu0 0.0
  %3180 = vmatprep.subr.mxu0 0.0
  %3181 = vmatpush2.msra.mxu0 0.0
  %3182 = vmatprep.subr.mxu0 0.0
  %3183 = vmatpush2.msra.mxu0 0.0
  %3184 = vmatprep.subr.mxu0 0.0
  %3185 = vmatpush2.msra.mxu0 0.0
  %3186 = vmatprep.mubr.f32.mxu0 0.0
  %3187 = vmatmul.mubr.f32.gmra.mxu0 %v1915
  %v3188 = vpop.f32.mrf.mxu0
  %v3189 = vadd.f32 0.0, %v3188
  %v3190 = vpop.f32.mrf.mxu0
  %3191 = vdwg.mxu0
  %3192 = vmatprep.subr.mxu0 0.0
  %3193 = vmatpush1.msra.mxu0 0.0
  %3194 = vmatprep.subr.mxu0 0.0
  %3195 = vmatpush1.msra.mxu0 0.0
  %3196 = vmatprep.subr.mxu0 0.0
  %3197 = vmatpush1.msra.mxu0 0.0
  %3198 = vmatprep.subr.mxu0 0.0
  %3199 = vmatpush1.msra.mxu0 0.0
  %3200 = vmatprep.subr.mxu0 0.0
  %3201 = vmatpush1.msra.mxu0 0.0
  %3202 = vmatprep.subr.mxu0 0.0
  %3203 = vmatpush1.msra.mxu0 0.0
  %3204 = vmatprep.subr.mxu0 0.0
  %3205 = vmatpush1.msra.mxu0 0.0
  %3206 = vmatprep.subr.mxu0 0.0
  %3207 = vmatpush1.msra.mxu0 0.0
  %3208 = vmatprep.subr.mxu0 0.0
  %3209 = vmatpush1.msra.mxu0 0.0
  %3210 = vmatprep.subr.mxu0 0.0
  %3211 = vmatpush1.msra.mxu0 0.0
  %3212 = vmatprep.subr.mxu0 0.0
  %3213 = vmatpush1.msra.mxu0 0.0
  %3214 = vmatprep.subr.mxu0 0.0
  %3215 = vmatpush1.msra.mxu0 0.0
  %3216 = vmatprep.subr.mxu0 0.0
  %3217 = vmatpush1.msra.mxu0 %v63
  %3218 = vmatprep.subr.mxu0 0.0
  %3219 = vmatpush1.msra.mxu0 %v62
  %3220 = vmatprep.subr.mxu0 0.0
  %3221 = vmatpush1.msra.mxu0 %v61
  %3222 = vmatprep.subr.mxu0 0.0
  %3223 = vmatpush1.msra.mxu0 %v60
  %3224 = vmatprep.subr.mxu0 0.0
  %3225 = vmatpush2.msra.mxu0 0.0
  %3226 = vmatprep.subr.mxu0 0.0
  %3227 = vmatpush2.msra.mxu0 0.0
  %3228 = vmatprep.subr.mxu0 0.0
  %3229 = vmatpush2.msra.mxu0 0.0
  %3230 = vmatprep.subr.mxu0 0.0
  %3231 = vmatpush2.msra.mxu0 0.0
  %3232 = vmatprep.subr.mxu0 0.0
  %3233 = vmatpush2.msra.mxu0 0.0
  %3234 = vmatprep.subr.mxu0 0.0
  %3235 = vmatpush2.msra.mxu0 0.0
  %3236 = vmatprep.subr.mxu0 0.0
  %3237 = vmatpush2.msra.mxu0 0.0
  %3238 = vmatprep.subr.mxu0 0.0
  %3239 = vmatpush2.msra.mxu0 0.0
  %3240 = vmatprep.subr.mxu0 0.0
  %3241 = vmatpush2.msra.mxu0 0.0
  %3242 = vmatprep.subr.mxu0 0.0
  %3243 = vmatpush2.msra.mxu0 0.0
  %3244 = vmatprep.subr.mxu0 0.0
  %3245 = vmatpush2.msra.mxu0 0.0
  %3246 = vmatprep.subr.mxu0 0.0
  %3247 = vmatpush2.msra.mxu0 0.0
  %3248 = vmatprep.subr.mxu0 0.0
  %3249 = vmatpush2.msra.mxu0 0.0
  %3250 = vmatprep.subr.mxu0 0.0
  %3251 = vmatpush2.msra.mxu0 0.0
  %3252 = vmatprep.subr.mxu0 0.0
  %3253 = vmatpush2.msra.mxu0 0.0
  %3254 = vmatprep.subr.mxu0 0.0
  %3255 = vmatpush2.msra.mxu0 0.0
  %3256 = vmatprep.mubr.f32.mxu0 0.0
  %3257 = vmatmul.mubr.f32.gmra.mxu0 %v1395
  %v3258 = vpop.f32.mrf.mxu0
  %v3259 = vadd.f32 %v3189, %v3258
  %v3260 = vpop.f32.mrf.mxu0
  %3261 = vdwg.mxu0
  %v3262 = vadd.f32 %v3259, %v3017
  %3264 = vrot.lane.b32.xlu0 %v3121, 96
  %v3265 = vpop.permute.xlu0 %3264
  %v3266 = vsel %vm161, %v3265, 0
  %3268 = vmatprep.subr.mxu0 0.0
  %3269 = vmatpush1.msra.mxu0 0.0
  %3270 = vmatprep.subr.mxu0 0.0
  %3271 = vmatpush1.msra.mxu0 0.0
  %3272 = vmatprep.subr.mxu0 0.0
  %3273 = vmatpush1.msra.mxu0 0.0
  %3274 = vmatprep.subr.mxu0 0.0
  %3275 = vmatpush1.msra.mxu0 0.0
  %3276 = vmatprep.subr.mxu0 0.0
  %3277 = vmatpush1.msra.mxu0 0.0
  %3278 = vmatprep.subr.mxu0 0.0
  %3279 = vmatpush1.msra.mxu0 0.0
  %3280 = vmatprep.subr.mxu0 0.0
  %3281 = vmatpush1.msra.mxu0 0.0
  %3282 = vmatprep.subr.mxu0 0.0
  %3283 = vmatpush1.msra.mxu0 0.0
  %3284 = vmatprep.subr.mxu0 0.0
  %3285 = vmatpush1.msra.mxu0 0.0
  %3286 = vmatprep.subr.mxu0 0.0
  %3287 = vmatpush1.msra.mxu0 0.0
  %3288 = vmatprep.subr.mxu0 0.0
  %3289 = vmatpush1.msra.mxu0 0.0
  %3290 = vmatprep.subr.mxu0 0.0
  %3291 = vmatpush1.msra.mxu0 0.0
  %3292 = vmatprep.subr.mxu0 0.0
  %3293 = vmatpush1.msra.mxu0 %v71
  %3294 = vmatprep.subr.mxu0 0.0
  %3295 = vmatpush1.msra.mxu0 %v70
  %3296 = vmatprep.subr.mxu0 0.0
  %3297 = vmatpush1.msra.mxu0 %v69
  %3298 = vmatprep.subr.mxu0 0.0
  %3299 = vmatpush1.msra.mxu0 %v68
  %3300 = vmatprep.subr.mxu0 0.0
  %3301 = vmatpush2.msra.mxu0 0.0
  %3302 = vmatprep.subr.mxu0 0.0
  %3303 = vmatpush2.msra.mxu0 0.0
  %3304 = vmatprep.subr.mxu0 0.0
  %3305 = vmatpush2.msra.mxu0 0.0
  %3306 = vmatprep.subr.mxu0 0.0
  %3307 = vmatpush2.msra.mxu0 0.0
  %3308 = vmatprep.subr.mxu0 0.0
  %3309 = vmatpush2.msra.mxu0 0.0
  %3310 = vmatprep.subr.mxu0 0.0
  %3311 = vmatpush2.msra.mxu0 0.0
  %3312 = vmatprep.subr.mxu0 0.0
  %3313 = vmatpush2.msra.mxu0 0.0
  %3314 = vmatprep.subr.mxu0 0.0
  %3315 = vmatpush2.msra.mxu0 0.0
  %3316 = vmatprep.subr.mxu0 0.0
  %3317 = vmatpush2.msra.mxu0 0.0
  %3318 = vmatprep.subr.mxu0 0.0
  %3319 = vmatpush2.msra.mxu0 0.0
  %3320 = vmatprep.subr.mxu0 0.0
  %3321 = vmatpush2.msra.mxu0 0.0
  %3322 = vmatprep.subr.mxu0 0.0
  %3323 = vmatpush2.msra.mxu0 0.0
  %3324 = vmatprep.subr.mxu0 0.0
  %3325 = vmatpush2.msra.mxu0 0.0
  %3326 = vmatprep.subr.mxu0 0.0
  %3327 = vmatpush2.msra.mxu0 0.0
  %3328 = vmatprep.subr.mxu0 0.0
  %3329 = vmatpush2.msra.mxu0 0.0
  %3330 = vmatprep.subr.mxu0 0.0
  %3331 = vmatpush2.msra.mxu0 0.0
  %3332 = vmatprep.mubr.f32.mxu0 0.0
  %3333 = vmatmul.mubr.f32.gmra.mxu0 %v3266
  %v3334 = vpop.f32.mrf.mxu0
  %v3335 = vadd.f32 %v3024, %v3334
  %v3336 = vpop.f32.mrf.mxu0
  %3337 = vdwg.mxu0
  %v3338 = vadd.f32 %v3262, %v3335
  %v3339 = vxor.u32 %v3338, 2147483648
  %v3340 = vmul.f32 %v3339, 1.442695
  %v3341 = vpow.pop %v3340
  %v3342 = vadd.f32 %v3341, 1.0
  %v3343 = vrcp.pop %v3342
  %v3344 = vmul.f32 1.0, %v3343
  %3346 = vrot.lane.b32.xlu0 %v3335, 64
  %v3347 = vpop.permute.xlu0 %3346
  %v3349 = vmul.f32 %v3344, %v3347
  %3351 = vrot.lane.b32.xlu0 %v3349, 64
  %v3352 = vpop.permute.xlu0 %3351
  %v3354 = vadd.f32 %v3262, %v3352
  %v3355 = vtanh.pop %v3354
  %v3356 = vsub.f32 1.0, %v3344
  %3358 = vrot.lane.b32.xlu0 %v3355, 96
  %v3359 = vpop.permute.xlu0 %3358
  %v3361 = vmul.f32 %v3356, %v3359
  %v3362 = vmul.f32 %v3344, %v3121
  %v3363 = vadd.f32 %v3361, %v3362
  %3364 = vmatprep.subr.mxu0 0.0
  %3365 = vmatpush1.msra.mxu0 0.0
  %3366 = vmatprep.subr.mxu0 0.0
  %3367 = vmatpush1.msra.mxu0 0.0
  %3368 = vmatprep.subr.mxu0 0.0
  %3369 = vmatpush1.msra.mxu0 0.0
  %3370 = vmatprep.subr.mxu0 0.0
  %3371 = vmatpush1.msra.mxu0 0.0
  %3372 = vmatprep.subr.mxu0 0.0
  %3373 = vmatpush1.msra.mxu0 0.0
  %3374 = vmatprep.subr.mxu0 0.0
  %3375 = vmatpush1.msra.mxu0 0.0
  %3376 = vmatprep.subr.mxu0 0.0
  %3377 = vmatpush1.msra.mxu0 0.0
  %3378 = vmatprep.subr.mxu0 0.0
  %3379 = vmatpush1.msra.mxu0 0.0
  %3380 = vmatprep.subr.mxu0 0.0
  %3381 = vmatpush1.msra.mxu0 0.0
  %3382 = vmatprep.subr.mxu0 0.0
  %3383 = vmatpush1.msra.mxu0 0.0
  %3384 = vmatprep.subr.mxu0 0.0
  %3385 = vmatpush1.msra.mxu0 0.0
  %3386 = vmatprep.subr.mxu0 0.0
  %3387 = vmatpush1.msra.mxu0 0.0
  %3388 = vmatprep.subr.mxu0 0.0
  %3389 = vmatpush1.msra.mxu0 %v67
  %3390 = vmatprep.subr.mxu0 0.0
  %3391 = vmatpush1.msra.mxu0 %v66
  %3392 = vmatprep.subr.mxu0 0.0
  %3393 = vmatpush1.msra.mxu0 %v65
  %3394 = vmatprep.subr.mxu0 0.0
  %3395 = vmatpush1.msra.mxu0 %v64
  %3396 = vmatprep.subr.mxu0 0.0
  %3397 = vmatpush2.msra.mxu0 0.0
  %3398 = vmatprep.subr.mxu0 0.0
  %3399 = vmatpush2.msra.mxu0 0.0
  %3400 = vmatprep.subr.mxu0 0.0
  %3401 = vmatpush2.msra.mxu0 0.0
  %3402 = vmatprep.subr.mxu0 0.0
  %3403 = vmatpush2.msra.mxu0 0.0
  %3404 = vmatprep.subr.mxu0 0.0
  %3405 = vmatpush2.msra.mxu0 0.0
  %3406 = vmatprep.subr.mxu0 0.0
  %3407 = vmatpush2.msra.mxu0 0.0
  %3408 = vmatprep.subr.mxu0 0.0
  %3409 = vmatpush2.msra.mxu0 0.0
  %3410 = vmatprep.subr.mxu0 0.0
  %3411 = vmatpush2.msra.mxu0 0.0
  %3412 = vmatprep.subr.mxu0 0.0
  %3413 = vmatpush2.msra.mxu0 0.0
  %3414 = vmatprep.subr.mxu0 0.0
  %3415 = vmatpush2.msra.mxu0 0.0
  %3416 = vmatprep.subr.mxu0 0.0
  %3417 = vmatpush2.msra.mxu0 0.0
  %3418 = vmatprep.subr.mxu0 0.0
  %3419 = vmatpush2.msra.mxu0 0.0
  %3420 = vmatprep.subr.mxu0 0.0
  %3421 = vmatpush2.msra.mxu0 0.0
  %3422 = vmatprep.subr.mxu0 0.0
  %3423 = vmatpush2.msra.mxu0 0.0
  %3424 = vmatprep.subr.mxu0 0.0
  %3425 = vmatpush2.msra.mxu0 0.0
  %3426 = vmatprep.subr.mxu0 0.0
  %3427 = vmatpush2.msra.mxu0 0.0
  %3428 = vmatprep.mubr.f32.mxu0 0.0
  %3429 = vmatmul.mubr.f32.gmra.mxu0 %v2086
  %v3430 = vpop.f32.mrf.mxu0
  %v3431 = vadd.f32 0.0, %v3430
  %v3432 = vpop.f32.mrf.mxu0
  %3433 = vdwg.mxu0
  %3434 = vmatprep.subr.mxu0 0.0
  %3435 = vmatpush1.msra.mxu0 0.0
  %3436 = vmatprep.subr.mxu0 0.0
  %3437 = vmatpush1.msra.mxu0 0.0
  %3438 = vmatprep.subr.mxu0 0.0
  %3439 = vmatpush1.msra.mxu0 0.0
  %3440 = vmatprep.subr.mxu0 0.0
  %3441 = vmatpush1.msra.mxu0 0.0
  %3442 = vmatprep.subr.mxu0 0.0
  %3443 = vmatpush1.msra.mxu0 0.0
  %3444 = vmatprep.subr.mxu0 0.0
  %3445 = vmatpush1.msra.mxu0 0.0
  %3446 = vmatprep.subr.mxu0 0.0
  %3447 = vmatpush1.msra.mxu0 0.0
  %3448 = vmatprep.subr.mxu0 0.0
  %3449 = vmatpush1.msra.mxu0 0.0
  %3450 = vmatprep.subr.mxu0 0.0
  %3451 = vmatpush1.msra.mxu0 0.0
  %3452 = vmatprep.subr.mxu0 0.0
  %3453 = vmatpush1.msra.mxu0 0.0
  %3454 = vmatprep.subr.mxu0 0.0
  %3455 = vmatpush1.msra.mxu0 0.0
  %3456 = vmatprep.subr.mxu0 0.0
  %3457 = vmatpush1.msra.mxu0 0.0
  %3458 = vmatprep.subr.mxu0 0.0
  %3459 = vmatpush1.msra.mxu0 %v63
  %3460 = vmatprep.subr.mxu0 0.0
  %3461 = vmatpush1.msra.mxu0 %v62
  %3462 = vmatprep.subr.mxu0 0.0
  %3463 = vmatpush1.msra.mxu0 %v61
  %3464 = vmatprep.subr.mxu0 0.0
  %3465 = vmatpush1.msra.mxu0 %v60
  %3466 = vmatprep.subr.mxu0 0.0
  %3467 = vmatpush2.msra.mxu0 0.0
  %3468 = vmatprep.subr.mxu0 0.0
  %3469 = vmatpush2.msra.mxu0 0.0
  %3470 = vmatprep.subr.mxu0 0.0
  %3471 = vmatpush2.msra.mxu0 0.0
  %3472 = vmatprep.subr.mxu0 0.0
  %3473 = vmatpush2.msra.mxu0 0.0
  %3474 = vmatprep.subr.mxu0 0.0
  %3475 = vmatpush2.msra.mxu0 0.0
  %3476 = vmatprep.subr.mxu0 0.0
  %3477 = vmatpush2.msra.mxu0 0.0
  %3478 = vmatprep.subr.mxu0 0.0
  %3479 = vmatpush2.msra.mxu0 0.0
  %3480 = vmatprep.subr.mxu0 0.0
  %3481 = vmatpush2.msra.mxu0 0.0
  %3482 = vmatprep.subr.mxu0 0.0
  %3483 = vmatpush2.msra.mxu0 0.0
  %3484 = vmatprep.subr.mxu0 0.0
  %3485 = vmatpush2.msra.mxu0 0.0
  %3486 = vmatprep.subr.mxu0 0.0
  %3487 = vmatpush2.msra.mxu0 0.0
  %3488 = vmatprep.subr.mxu0 0.0
  %3489 = vmatpush2.msra.mxu0 0.0
  %3490 = vmatprep.subr.mxu0 0.0
  %3491 = vmatpush2.msra.mxu0 0.0
  %3492 = vmatprep.subr.mxu0 0.0
  %3493 = vmatpush2.msra.mxu0 0.0
  %3494 = vmatprep.subr.mxu0 0.0
  %3495 = vmatpush2.msra.mxu0 0.0
  %3496 = vmatprep.subr.mxu0 0.0
  %3497 = vmatpush2.msra.mxu0 0.0
  %3498 = vmatprep.mubr.f32.mxu0 0.0
  %3499 = vmatmul.mubr.f32.gmra.mxu0 %v1219
  %v3500 = vpop.f32.mrf.mxu0
  %v3501 = vadd.f32 %v3431, %v3500
  %v3502 = vpop.f32.mrf.mxu0
  %3503 = vdwg.mxu0
  %v3504 = vadd.f32 %v3501, %v3017
  %3506 = vrot.lane.b32.xlu0 %v3363, 96
  %v3507 = vpop.permute.xlu0 %3506
  %v3508 = vsel %vm161, %v3507, 0
  %3510 = vmatprep.subr.mxu0 0.0
  %3511 = vmatpush1.msra.mxu0 0.0
  %3512 = vmatprep.subr.mxu0 0.0
  %3513 = vmatpush1.msra.mxu0 0.0
  %3514 = vmatprep.subr.mxu0 0.0
  %3515 = vmatpush1.msra.mxu0 0.0
  %3516 = vmatprep.subr.mxu0 0.0
  %3517 = vmatpush1.msra.mxu0 0.0
  %3518 = vmatprep.subr.mxu0 0.0
  %3519 = vmatpush1.msra.mxu0 0.0
  %3520 = vmatprep.subr.mxu0 0.0
  %3521 = vmatpush1.msra.mxu0 0.0
  %3522 = vmatprep.subr.mxu0 0.0
  %3523 = vmatpush1.msra.mxu0 0.0
  %3524 = vmatprep.subr.mxu0 0.0
  %3525 = vmatpush1.msra.mxu0 0.0
  %3526 = vmatprep.subr.mxu0 0.0
  %3527 = vmatpush1.msra.mxu0 0.0
  %3528 = vmatprep.subr.mxu0 0.0
  %3529 = vmatpush1.msra.mxu0 0.0
  %3530 = vmatprep.subr.mxu0 0.0
  %3531 = vmatpush1.msra.mxu0 0.0
  %3532 = vmatprep.subr.mxu0 0.0
  %3533 = vmatpush1.msra.mxu0 0.0
  %3534 = vmatprep.subr.mxu0 0.0
  %3535 = vmatpush1.msra.mxu0 %v71
  %3536 = vmatprep.subr.mxu0 0.0
  %3537 = vmatpush1.msra.mxu0 %v70
  %3538 = vmatprep.subr.mxu0 0.0
  %3539 = vmatpush1.msra.mxu0 %v69
  %3540 = vmatprep.subr.mxu0 0.0
  %3541 = vmatpush1.msra.mxu0 %v68
  %3542 = vmatprep.subr.mxu0 0.0
  %3543 = vmatpush2.msra.mxu0 0.0
  %3544 = vmatprep.subr.mxu0 0.0
  %3545 = vmatpush2.msra.mxu0 0.0
  %3546 = vmatprep.subr.mxu0 0.0
  %3547 = vmatpush2.msra.mxu0 0.0
  %3548 = vmatprep.subr.mxu0 0.0
  %3549 = vmatpush2.msra.mxu0 0.0
  %3550 = vmatprep.subr.mxu0 0.0
  %3551 = vmatpush2.msra.mxu0 0.0
  %3552 = vmatprep.subr.mxu0 0.0
  %3553 = vmatpush2.msra.mxu0 0.0
  %3554 = vmatprep.subr.mxu0 0.0
  %3555 = vmatpush2.msra.mxu0 0.0
  %3556 = vmatprep.subr.mxu0 0.0
  %3557 = vmatpush2.msra.mxu0 0.0
  %3558 = vmatprep.subr.mxu0 0.0
  %3559 = vmatpush2.msra.mxu0 0.0
  %3560 = vmatprep.subr.mxu0 0.0
  %3561 = vmatpush2.msra.mxu0 0.0
  %3562 = vmatprep.subr.mxu0 0.0
  %3563 = vmatpush2.msra.mxu0 0.0
  %3564 = vmatprep.subr.mxu0 0.0
  %3565 = vmatpush2.msra.mxu0 0.0
  %3566 = vmatprep.subr.mxu0 0.0
  %3567 = vmatpush2.msra.mxu0 0.0
  %3568 = vmatprep.subr.mxu0 0.0
  %3569 = vmatpush2.msra.mxu0 0.0
  %3570 = vmatprep.subr.mxu0 0.0
  %3571 = vmatpush2.msra.mxu0 0.0
  %3572 = vmatprep.subr.mxu0 0.0
  %3573 = vmatpush2.msra.mxu0 0.0
  %3574 = vmatprep.mubr.f32.mxu0 0.0
  %3575 = vmatmul.mubr.f32.gmra.mxu0 %v3508
  %v3576 = vpop.f32.mrf.mxu0
  %v3577 = vadd.f32 %v3024, %v3576
  %v3578 = vpop.f32.mrf.mxu0
  %3579 = vdwg.mxu0
  %v3580 = vadd.f32 %v3504, %v3577
  %v3581 = vxor.u32 %v3580, 2147483648
  %v3582 = vmul.f32 %v3581, 1.442695
  %v3583 = vpow.pop %v3582
  %v3584 = vadd.f32 %v3583, 1.0
  %v3585 = vrcp.pop %v3584
  %v3586 = vmul.f32 1.0, %v3585
  %3588 = vrot.lane.b32.xlu0 %v3577, 64
  %v3589 = vpop.permute.xlu0 %3588
  %v3591 = vmul.f32 %v3586, %v3589
  %3593 = vrot.lane.b32.xlu0 %v3591, 64
  %v3594 = vpop.permute.xlu0 %3593
  %v3596 = vadd.f32 %v3504, %v3594
  %v3597 = vtanh.pop %v3596
  %v3598 = vsub.f32 1.0, %v3586
  %3600 = vrot.lane.b32.xlu0 %v3597, 96
  %v3601 = vpop.permute.xlu0 %3600
  %v3603 = vmul.f32 %v3598, %v3601
  %v3604 = vmul.f32 %v3586, %v3363
  %v3605 = vadd.f32 %v3603, %v3604
  %3606 = vmatprep.subr.mxu0 0.0
  %3607 = vmatpush1.msra.mxu0 0.0
  %3608 = vmatprep.subr.mxu0 0.0
  %3609 = vmatpush1.msra.mxu0 0.0
  %3610 = vmatprep.subr.mxu0 0.0
  %3611 = vmatpush1.msra.mxu0 0.0
  %3612 = vmatprep.subr.mxu0 0.0
  %3613 = vmatpush1.msra.mxu0 0.0
  %3614 = vmatprep.subr.mxu0 0.0
  %3615 = vmatpush1.msra.mxu0 0.0
  %3616 = vmatprep.subr.mxu0 0.0
  %3617 = vmatpush1.msra.mxu0 0.0
  %3618 = vmatprep.subr.mxu0 0.0
  %3619 = vmatpush1.msra.mxu0 0.0
  %3620 = vmatprep.subr.mxu0 0.0
  %3621 = vmatpush1.msra.mxu0 0.0
  %3622 = vmatprep.subr.mxu0 0.0
  %3623 = vmatpush1.msra.mxu0 0.0
  %3624 = vmatprep.subr.mxu0 0.0
  %3625 = vmatpush1.msra.mxu0 0.0
  %3626 = vmatprep.subr.mxu0 0.0
  %3627 = vmatpush1.msra.mxu0 0.0
  %3628 = vmatprep.subr.mxu0 0.0
  %3629 = vmatpush1.msra.mxu0 0.0
  %3630 = vmatprep.subr.mxu0 0.0
  %3631 = vmatpush1.msra.mxu0 %v67
  %3632 = vmatprep.subr.mxu0 0.0
  %3633 = vmatpush1.msra.mxu0 %v66
  %3634 = vmatprep.subr.mxu0 0.0
  %3635 = vmatpush1.msra.mxu0 %v65
  %3636 = vmatprep.subr.mxu0 0.0
  %3637 = vmatpush1.msra.mxu0 %v64
  %3638 = vmatprep.subr.mxu0 0.0
  %3639 = vmatpush2.msra.mxu0 0.0
  %3640 = vmatprep.subr.mxu0 0.0
  %3641 = vmatpush2.msra.mxu0 0.0
  %3642 = vmatprep.subr.mxu0 0.0
  %3643 = vmatpush2.msra.mxu0 0.0
  %3644 = vmatprep.subr.mxu0 0.0
  %3645 = vmatpush2.msra.mxu0 0.0
  %3646 = vmatprep.subr.mxu0 0.0
  %3647 = vmatpush2.msra.mxu0 0.0
  %3648 = vmatprep.subr.mxu0 0.0
  %3649 = vmatpush2.msra.mxu0 0.0
  %3650 = vmatprep.subr.mxu0 0.0
  %3651 = vmatpush2.msra.mxu0 0.0
  %3652 = vmatprep.subr.mxu0 0.0
  %3653 = vmatpush2.msra.mxu0 0.0
  %3654 = vmatprep.subr.mxu0 0.0
  %3655 = vmatpush2.msra.mxu0 0.0
  %3656 = vmatprep.subr.mxu0 0.0
  %3657 = vmatpush2.msra.mxu0 0.0
  %3658 = vmatprep.subr.mxu0 0.0
  %3659 = vmatpush2.msra.mxu0 0.0
  %3660 = vmatprep.subr.mxu0 0.0
  %3661 = vmatpush2.msra.mxu0 0.0
  %3662 = vmatprep.subr.mxu0 0.0
  %3663 = vmatpush2.msra.mxu0 0.0
  %3664 = vmatprep.subr.mxu0 0.0
  %3665 = vmatpush2.msra.mxu0 0.0
  %3666 = vmatprep.subr.mxu0 0.0
  %3667 = vmatpush2.msra.mxu0 0.0
  %3668 = vmatprep.subr.mxu0 0.0
  %3669 = vmatpush2.msra.mxu0 0.0
  %3670 = vmatprep.mubr.f32.mxu0 0.0
  %3671 = vmatmul.mubr.f32.gmra.mxu0 %v2257
  %v3672 = vpop.f32.mrf.mxu0
  %v3673 = vadd.f32 0.0, %v3672
  %v3674 = vpop.f32.mrf.mxu0
  %3675 = vdwg.mxu0
  %3676 = vmatprep.subr.mxu0 0.0
  %3677 = vmatpush1.msra.mxu0 0.0
  %3678 = vmatprep.subr.mxu0 0.0
  %3679 = vmatpush1.msra.mxu0 0.0
  %3680 = vmatprep.subr.mxu0 0.0
  %3681 = vmatpush1.msra.mxu0 0.0
  %3682 = vmatprep.subr.mxu0 0.0
  %3683 = vmatpush1.msra.mxu0 0.0
  %3684 = vmatprep.subr.mxu0 0.0
  %3685 = vmatpush1.msra.mxu0 0.0
  %3686 = vmatprep.subr.mxu0 0.0
  %3687 = vmatpush1.msra.mxu0 0.0
  %3688 = vmatprep.subr.mxu0 0.0
  %3689 = vmatpush1.msra.mxu0 0.0
  %3690 = vmatprep.subr.mxu0 0.0
  %3691 = vmatpush1.msra.mxu0 0.0
  %3692 = vmatprep.subr.mxu0 0.0
  %3693 = vmatpush1.msra.mxu0 0.0
  %3694 = vmatprep.subr.mxu0 0.0
  %3695 = vmatpush1.msra.mxu0 0.0
  %3696 = vmatprep.subr.mxu0 0.0
  %3697 = vmatpush1.msra.mxu0 0.0
  %3698 = vmatprep.subr.mxu0 0.0
  %3699 = vmatpush1.msra.mxu0 0.0
  %3700 = vmatprep.subr.mxu0 0.0
  %3701 = vmatpush1.msra.mxu0 %v63
  %3702 = vmatprep.subr.mxu0 0.0
  %3703 = vmatpush1.msra.mxu0 %v62
  %3704 = vmatprep.subr.mxu0 0.0
  %3705 = vmatpush1.msra.mxu0 %v61
  %3706 = vmatprep.subr.mxu0 0.0
  %3707 = vmatpush1.msra.mxu0 %v60
  %3708 = vmatprep.subr.mxu0 0.0
  %3709 = vmatpush2.msra.mxu0 0.0
  %3710 = vmatprep.subr.mxu0 0.0
  %3711 = vmatpush2.msra.mxu0 0.0
  %3712 = vmatprep.subr.mxu0 0.0
  %3713 = vmatpush2.msra.mxu0 0.0
  %3714 = vmatprep.subr.mxu0 0.0
  %3715 = vmatpush2.msra.mxu0 0.0
  %3716 = vmatprep.subr.mxu0 0.0
  %3717 = vmatpush2.msra.mxu0 0.0
  %3718 = vmatprep.subr.mxu0 0.0
  %3719 = vmatpush2.msra.mxu0 0.0
  %3720 = vmatprep.subr.mxu0 0.0
  %3721 = vmatpush2.msra.mxu0 0.0
  %3722 = vmatprep.subr.mxu0 0.0
  %3723 = vmatpush2.msra.mxu0 0.0
  %3724 = vmatprep.subr.mxu0 0.0
  %3725 = vmatpush2.msra.mxu0 0.0
  %3726 = vmatprep.subr.mxu0 0.0
  %3727 = vmatpush2.msra.mxu0 0.0
  %3728 = vmatprep.subr.mxu0 0.0
  %3729 = vmatpush2.msra.mxu0 0.0
  %3730 = vmatprep.subr.mxu0 0.0
  %3731 = vmatpush2.msra.mxu0 0.0
  %3732 = vmatprep.subr.mxu0 0.0
  %3733 = vmatpush2.msra.mxu0 0.0
  %3734 = vmatprep.subr.mxu0 0.0
  %3735 = vmatpush2.msra.mxu0 0.0
  %3736 = vmatprep.subr.mxu0 0.0
  %3737 = vmatpush2.msra.mxu0 0.0
  %3738 = vmatprep.subr.mxu0 0.0
  %3739 = vmatpush2.msra.mxu0 0.0
  %3740 = vmatprep.mubr.f32.mxu0 0.0
  %3741 = vmatmul.mubr.f32.gmra.mxu0 %v1043
  %v3742 = vpop.f32.mrf.mxu0
  %v3743 = vadd.f32 %v3673, %v3742
  %v3744 = vpop.f32.mrf.mxu0
  %3745 = vdwg.mxu0
  %v3746 = vadd.f32 %v3743, %v3017
  %3748 = vrot.lane.b32.xlu0 %v3605, 96
  %v3749 = vpop.permute.xlu0 %3748
  %v3750 = vsel %vm161, %v3749, 0
  %3752 = vmatprep.subr.mxu0 0.0
  %3753 = vmatpush1.msra.mxu0 0.0
  %3754 = vmatprep.subr.mxu0 0.0
  %3755 = vmatpush1.msra.mxu0 0.0
  %3756 = vmatprep.subr.mxu0 0.0
  %3757 = vmatpush1.msra.mxu0 0.0
  %3758 = vmatprep.subr.mxu0 0.0
  %3759 = vmatpush1.msra.mxu0 0.0
  %3760 = vmatprep.subr.mxu0 0.0
  %3761 = vmatpush1.msra.mxu0 0.0
  %3762 = vmatprep.subr.mxu0 0.0
  %3763 = vmatpush1.msra.mxu0 0.0
  %3764 = vmatprep.subr.mxu0 0.0
  %3765 = vmatpush1.msra.mxu0 0.0
  %3766 = vmatprep.subr.mxu0 0.0
  %3767 = vmatpush1.msra.mxu0 0.0
  %3768 = vmatprep.subr.mxu0 0.0
  %3769 = vmatpush1.msra.mxu0 0.0
  %3770 = vmatprep.subr.mxu0 0.0
  %3771 = vmatpush1.msra.mxu0 0.0
  %3772 = vmatprep.subr.mxu0 0.0
  %3773 = vmatpush1.msra.mxu0 0.0
  %3774 = vmatprep.subr.mxu0 0.0
  %3775 = vmatpush1.msra.mxu0 0.0
  %3776 = vmatprep.subr.mxu0 0.0
  %3777 = vmatpush1.msra.mxu0 %v71
  %3778 = vmatprep.subr.mxu0 0.0
  %3779 = vmatpush1.msra.mxu0 %v70
  %3780 = vmatprep.subr.mxu0 0.0
  %3781 = vmatpush1.msra.mxu0 %v69
  %3782 = vmatprep.subr.mxu0 0.0
  %3783 = vmatpush1.msra.mxu0 %v68
  %3784 = vmatprep.subr.mxu0 0.0
  %3785 = vmatpush2.msra.mxu0 0.0
  %3786 = vmatprep.subr.mxu0 0.0
  %3787 = vmatpush2.msra.mxu0 0.0
  %3788 = vmatprep.subr.mxu0 0.0
  %3789 = vmatpush2.msra.mxu0 0.0
  %3790 = vmatprep.subr.mxu0 0.0
  %3791 = vmatpush2.msra.mxu0 0.0
  %3792 = vmatprep.subr.mxu0 0.0
  %3793 = vmatpush2.msra.mxu0 0.0
  %3794 = vmatprep.subr.mxu0 0.0
  %3795 = vmatpush2.msra.mxu0 0.0
  %3796 = vmatprep.subr.mxu0 0.0
  %3797 = vmatpush2.msra.mxu0 0.0
  %3798 = vmatprep.subr.mxu0 0.0
  %3799 = vmatpush2.msra.mxu0 0.0
  %3800 = vmatprep.subr.mxu0 0.0
  %3801 = vmatpush2.msra.mxu0 0.0
  %3802 = vmatprep.subr.mxu0 0.0
  %3803 = vmatpush2.msra.mxu0 0.0
  %3804 = vmatprep.subr.mxu0 0.0
  %3805 = vmatpush2.msra.mxu0 0.0
  %3806 = vmatprep.subr.mxu0 0.0
  %3807 = vmatpush2.msra.mxu0 0.0
  %3808 = vmatprep.subr.mxu0 0.0
  %3809 = vmatpush2.msra.mxu0 0.0
  %3810 = vmatprep.subr.mxu0 0.0
  %3811 = vmatpush2.msra.mxu0 0.0
  %3812 = vmatprep.subr.mxu0 0.0
  %3813 = vmatpush2.msra.mxu0 0.0
  %3814 = vmatprep.subr.mxu0 0.0
  %3815 = vmatpush2.msra.mxu0 0.0
  %3816 = vmatprep.mubr.f32.mxu0 0.0
  %3817 = vmatmul.mubr.f32.gmra.mxu0 %v3750
  %v3818 = vpop.f32.mrf.mxu0
  %v3819 = vadd.f32 %v3024, %v3818
  %v3820 = vpop.f32.mrf.mxu0
  %3821 = vdwg.mxu0
  %v3822 = vadd.f32 %v3746, %v3819
  %v3823 = vxor.u32 %v3822, 2147483648
  %v3824 = vmul.f32 %v3823, 1.442695
  %v3825 = vpow.pop %v3824
  %v3826 = vadd.f32 %v3825, 1.0
  %v3827 = vrcp.pop %v3826
  %v3828 = vmul.f32 1.0, %v3827
  %3830 = vrot.lane.b32.xlu0 %v3819, 64
  %v3831 = vpop.permute.xlu0 %3830
  %v3833 = vmul.f32 %v3828, %v3831
  %3835 = vrot.lane.b32.xlu0 %v3833, 64
  %v3836 = vpop.permute.xlu0 %3835
  %v3838 = vadd.f32 %v3746, %v3836
  %v3839 = vtanh.pop %v3838
  %v3840 = vsub.f32 1.0, %v3828
  %3842 = vrot.lane.b32.xlu0 %v3839, 96
  %v3843 = vpop.permute.xlu0 %3842
  %v3845 = vmul.f32 %v3840, %v3843
  %v3846 = vmul.f32 %v3828, %v3605
  %v3847 = vadd.f32 %v3845, %v3846
  %3848 = vmatprep.subr.mxu0 0.0
  %3849 = vmatpush1.msra.mxu0 0.0
  %3850 = vmatprep.subr.mxu0 0.0
  %3851 = vmatpush1.msra.mxu0 0.0
  %3852 = vmatprep.subr.mxu0 0.0
  %3853 = vmatpush1.msra.mxu0 0.0
  %3854 = vmatprep.subr.mxu0 0.0
  %3855 = vmatpush1.msra.mxu0 0.0
  %3856 = vmatprep.subr.mxu0 0.0
  %3857 = vmatpush1.msra.mxu0 0.0
  %3858 = vmatprep.subr.mxu0 0.0
  %3859 = vmatpush1.msra.mxu0 0.0
  %3860 = vmatprep.subr.mxu0 0.0
  %3861 = vmatpush1.msra.mxu0 0.0
  %3862 = vmatprep.subr.mxu0 0.0
  %3863 = vmatpush1.msra.mxu0 0.0
  %3864 = vmatprep.subr.mxu0 0.0
  %3865 = vmatpush1.msra.mxu0 0.0
  %3866 = vmatprep.subr.mxu0 0.0
  %3867 = vmatpush1.msra.mxu0 0.0
  %3868 = vmatprep.subr.mxu0 0.0
  %3869 = vmatpush1.msra.mxu0 0.0
  %3870 = vmatprep.subr.mxu0 0.0
  %3871 = vmatpush1.msra.mxu0 0.0
  %3872 = vmatprep.subr.mxu0 0.0
  %3873 = vmatpush1.msra.mxu0 %v67
  %3874 = vmatprep.subr.mxu0 0.0
  %3875 = vmatpush1.msra.mxu0 %v66
  %3876 = vmatprep.subr.mxu0 0.0
  %3877 = vmatpush1.msra.mxu0 %v65
  %3878 = vmatprep.subr.mxu0 0.0
  %3879 = vmatpush1.msra.mxu0 %v64
  %3880 = vmatprep.subr.mxu0 0.0
  %3881 = vmatpush2.msra.mxu0 0.0
  %3882 = vmatprep.subr.mxu0 0.0
  %3883 = vmatpush2.msra.mxu0 0.0
  %3884 = vmatprep.subr.mxu0 0.0
  %3885 = vmatpush2.msra.mxu0 0.0
  %3886 = vmatprep.subr.mxu0 0.0
  %3887 = vmatpush2.msra.mxu0 0.0
  %3888 = vmatprep.subr.mxu0 0.0
  %3889 = vmatpush2.msra.mxu0 0.0
  %3890 = vmatprep.subr.mxu0 0.0
  %3891 = vmatpush2.msra.mxu0 0.0
  %3892 = vmatprep.subr.mxu0 0.0
  %3893 = vmatpush2.msra.mxu0 0.0
  %3894 = vmatprep.subr.mxu0 0.0
  %3895 = vmatpush2.msra.mxu0 0.0
  %3896 = vmatprep.subr.mxu0 0.0
  %3897 = vmatpush2.msra.mxu0 0.0
  %3898 = vmatprep.subr.mxu0 0.0
  %3899 = vmatpush2.msra.mxu0 0.0
  %3900 = vmatprep.subr.mxu0 0.0
  %3901 = vmatpush2.msra.mxu0 0.0
  %3902 = vmatprep.subr.mxu0 0.0
  %3903 = vmatpush2.msra.mxu0 0.0
  %3904 = vmatprep.subr.mxu0 0.0
  %3905 = vmatpush2.msra.mxu0 0.0
  %3906 = vmatprep.subr.mxu0 0.0
  %3907 = vmatpush2.msra.mxu0 0.0
  %3908 = vmatprep.subr.mxu0 0.0
  %3909 = vmatpush2.msra.mxu0 0.0
  %3910 = vmatprep.subr.mxu0 0.0
  %3911 = vmatpush2.msra.mxu0 0.0
  %3912 = vmatprep.mubr.f32.mxu0 0.0
  %3913 = vmatmul.mubr.f32.gmra.mxu0 %v2428
  %v3914 = vpop.f32.mrf.mxu0
  %v3915 = vadd.f32 0.0, %v3914
  %v3916 = vpop.f32.mrf.mxu0
  %3917 = vdwg.mxu0
  %3918 = vmatprep.subr.mxu0 0.0
  %3919 = vmatpush1.msra.mxu0 0.0
  %3920 = vmatprep.subr.mxu0 0.0
  %3921 = vmatpush1.msra.mxu0 0.0
  %3922 = vmatprep.subr.mxu0 0.0
  %3923 = vmatpush1.msra.mxu0 0.0
  %3924 = vmatprep.subr.mxu0 0.0
  %3925 = vmatpush1.msra.mxu0 0.0
  %3926 = vmatprep.subr.mxu0 0.0
  %3927 = vmatpush1.msra.mxu0 0.0
  %3928 = vmatprep.subr.mxu0 0.0
  %3929 = vmatpush1.msra.mxu0 0.0
  %3930 = vmatprep.subr.mxu0 0.0
  %3931 = vmatpush1.msra.mxu0 0.0
  %3932 = vmatprep.subr.mxu0 0.0
  %3933 = vmatpush1.msra.mxu0 0.0
  %3934 = vmatprep.subr.mxu0 0.0
  %3935 = vmatpush1.msra.mxu0 0.0
  %3936 = vmatprep.subr.mxu0 0.0
  %3937 = vmatpush1.msra.mxu0 0.0
  %3938 = vmatprep.subr.mxu0 0.0
  %3939 = vmatpush1.msra.mxu0 0.0
  %3940 = vmatprep.subr.mxu0 0.0
  %3941 = vmatpush1.msra.mxu0 0.0
  %3942 = vmatprep.subr.mxu0 0.0
  %3943 = vmatpush1.msra.mxu0 %v63
  %3944 = vmatprep.subr.mxu0 0.0
  %3945 = vmatpush1.msra.mxu0 %v62
  %3946 = vmatprep.subr.mxu0 0.0
  %3947 = vmatpush1.msra.mxu0 %v61
  %3948 = vmatprep.subr.mxu0 0.0
  %3949 = vmatpush1.msra.mxu0 %v60
  %3950 = vmatprep.subr.mxu0 0.0
  %3951 = vmatpush2.msra.mxu0 0.0
  %3952 = vmatprep.subr.mxu0 0.0
  %3953 = vmatpush2.msra.mxu0 0.0
  %3954 = vmatprep.subr.mxu0 0.0
  %3955 = vmatpush2.msra.mxu0 0.0
  %3956 = vmatprep.subr.mxu0 0.0
  %3957 = vmatpush2.msra.mxu0 0.0
  %3958 = vmatprep.subr.mxu0 0.0
  %3959 = vmatpush2.msra.mxu0 0.0
  %3960 = vmatprep.subr.mxu0 0.0
  %3961 = vmatpush2.msra.mxu0 0.0
  %3962 = vmatprep.subr.mxu0 0.0
  %3963 = vmatpush2.msra.mxu0 0.0
  %3964 = vmatprep.subr.mxu0 0.0
  %3965 = vmatpush2.msra.mxu0 0.0
  %3966 = vmatprep.subr.mxu0 0.0
  %3967 = vmatpush2.msra.mxu0 0.0
  %3968 = vmatprep.subr.mxu0 0.0
  %3969 = vmatpush2.msra.mxu0 0.0
  %3970 = vmatprep.subr.mxu0 0.0
  %3971 = vmatpush2.msra.mxu0 0.0
  %3972 = vmatprep.subr.mxu0 0.0
  %3973 = vmatpush2.msra.mxu0 0.0
  %3974 = vmatprep.subr.mxu0 0.0
  %3975 = vmatpush2.msra.mxu0 0.0
  %3976 = vmatprep.subr.mxu0 0.0
  %3977 = vmatpush2.msra.mxu0 0.0
  %3978 = vmatprep.subr.mxu0 0.0
  %3979 = vmatpush2.msra.mxu0 0.0
  %3980 = vmatprep.subr.mxu0 0.0
  %3981 = vmatpush2.msra.mxu0 0.0
  %3982 = vmatprep.mubr.f32.mxu0 0.0
  %3983 = vmatmul.mubr.f32.gmra.mxu0 %v867
  %v3984 = vpop.f32.mrf.mxu0
  %v3985 = vadd.f32 %v3915, %v3984
  %v3986 = vpop.f32.mrf.mxu0
  %3987 = vdwg.mxu0
  %v3988 = vadd.f32 %v3985, %v3017
  %3990 = vrot.lane.b32.xlu0 %v3847, 96
  %v3991 = vpop.permute.xlu0 %3990
  %v3992 = vsel %vm161, %v3991, 0
  %3994 = vmatprep.subr.mxu0 0.0
  %3995 = vmatpush1.msra.mxu0 0.0
  %3996 = vmatprep.subr.mxu0 0.0
  %3997 = vmatpush1.msra.mxu0 0.0
  %3998 = vmatprep.subr.mxu0 0.0
  %3999 = vmatpush1.msra.mxu0 0.0
  %4000 = vmatprep.subr.mxu0 0.0
  %4001 = vmatpush1.msra.mxu0 0.0
  %4002 = vmatprep.subr.mxu0 0.0
  %4003 = vmatpush1.msra.mxu0 0.0
  %4004 = vmatprep.subr.mxu0 0.0
  %4005 = vmatpush1.msra.mxu0 0.0
  %4006 = vmatprep.subr.mxu0 0.0
  %4007 = vmatpush1.msra.mxu0 0.0
  %4008 = vmatprep.subr.mxu0 0.0
  %4009 = vmatpush1.msra.mxu0 0.0
  %4010 = vmatprep.subr.mxu0 0.0
  %4011 = vmatpush1.msra.mxu0 0.0
  %4012 = vmatprep.subr.mxu0 0.0
  %4013 = vmatpush1.msra.mxu0 0.0
  %4014 = vmatprep.subr.mxu0 0.0
  %4015 = vmatpush1.msra.mxu0 0.0
  %4016 = vmatprep.subr.mxu0 0.0
  %4017 = vmatpush1.msra.mxu0 0.0
  %4018 = vmatprep.subr.mxu0 0.0
  %4019 = vmatpush1.msra.mxu0 %v71
  %4020 = vmatprep.subr.mxu0 0.0
  %4021 = vmatpush1.msra.mxu0 %v70
  %4022 = vmatprep.subr.mxu0 0.0
  %4023 = vmatpush1.msra.mxu0 %v69
  %4024 = vmatprep.subr.mxu0 0.0
  %4025 = vmatpush1.msra.mxu0 %v68
  %4026 = vmatprep.subr.mxu0 0.0
  %4027 = vmatpush2.msra.mxu0 0.0
  %4028 = vmatprep.subr.mxu0 0.0
  %4029 = vmatpush2.msra.mxu0 0.0
  %4030 = vmatprep.subr.mxu0 0.0
  %4031 = vmatpush2.msra.mxu0 0.0
  %4032 = vmatprep.subr.mxu0 0.0
  %4033 = vmatpush2.msra.mxu0 0.0
  %4034 = vmatprep.subr.mxu0 0.0
  %4035 = vmatpush2.msra.mxu0 0.0
  %4036 = vmatprep.subr.mxu0 0.0
  %4037 = vmatpush2.msra.mxu0 0.0
  %4038 = vmatprep.subr.mxu0 0.0
  %4039 = vmatpush2.msra.mxu0 0.0
  %4040 = vmatprep.subr.mxu0 0.0
  %4041 = vmatpush2.msra.mxu0 0.0
  %4042 = vmatprep.subr.mxu0 0.0
  %4043 = vmatpush2.msra.mxu0 0.0
  %4044 = vmatprep.subr.mxu0 0.0
  %4045 = vmatpush2.msra.mxu0 0.0
  %4046 = vmatprep.subr.mxu0 0.0
  %4047 = vmatpush2.msra.mxu0 0.0
  %4048 = vmatprep.subr.mxu0 0.0
  %4049 = vmatpush2.msra.mxu0 0.0
  %4050 = vmatprep.subr.mxu0 0.0
  %4051 = vmatpush2.msra.mxu0 0.0
  %4052 = vmatprep.subr.mxu0 0.0
  %4053 = vmatpush2.msra.mxu0 0.0
  %4054 = vmatprep.subr.mxu0 0.0
  %4055 = vmatpush2.msra.mxu0 0.0
  %4056 = vmatprep.subr.mxu0 0.0
  %4057 = vmatpush2.msra.mxu0 0.0
  %4058 = vmatprep.mubr.f32.mxu0 0.0
  %4059 = vmatmul.mubr.f32.gmra.mxu0 %v3992
  %v4060 = vpop.f32.mrf.mxu0
  %v4061 = vadd.f32 %v3024, %v4060
  %v4062 = vpop.f32.mrf.mxu0
  %4063 = vdwg.mxu0
  %v4064 = vadd.f32 %v3988, %v4061
  %v4065 = vxor.u32 %v4064, 2147483648
  %v4066 = vmul.f32 %v4065, 1.442695
  %v4067 = vpow.pop %v4066
  %v4068 = vadd.f32 %v4067, 1.0
  %v4069 = vrcp.pop %v4068
  %v4070 = vmul.f32 1.0, %v4069
  %4072 = vrot.lane.b32.xlu0 %v4061, 64
  %v4073 = vpop.permute.xlu0 %4072
  %v4075 = vmul.f32 %v4070, %v4073
  %4077 = vrot.lane.b32.xlu0 %v4075, 64
  %v4078 = vpop.permute.xlu0 %4077
  %v4080 = vadd.f32 %v3988, %v4078
  %v4081 = vtanh.pop %v4080
  %v4082 = vsub.f32 1.0, %v4070
  %4084 = vrot.lane.b32.xlu0 %v4081, 96
  %v4085 = vpop.permute.xlu0 %4084
  %v4087 = vmul.f32 %v4082, %v4085
  %v4088 = vmul.f32 %v4070, %v3847
  %v4089 = vadd.f32 %v4087, %v4088
  %4090 = vmatprep.subr.mxu0 0.0
  %4091 = vmatpush1.msra.mxu0 0.0
  %4092 = vmatprep.subr.mxu0 0.0
  %4093 = vmatpush1.msra.mxu0 0.0
  %4094 = vmatprep.subr.mxu0 0.0
  %4095 = vmatpush1.msra.mxu0 0.0
  %4096 = vmatprep.subr.mxu0 0.0
  %4097 = vmatpush1.msra.mxu0 0.0
  %4098 = vmatprep.subr.mxu0 0.0
  %4099 = vmatpush1.msra.mxu0 0.0
  %4100 = vmatprep.subr.mxu0 0.0
  %4101 = vmatpush1.msra.mxu0 0.0
  %4102 = vmatprep.subr.mxu0 0.0
  %4103 = vmatpush1.msra.mxu0 0.0
  %4104 = vmatprep.subr.mxu0 0.0
  %4105 = vmatpush1.msra.mxu0 0.0
  %4106 = vmatprep.subr.mxu0 0.0
  %4107 = vmatpush1.msra.mxu0 0.0
  %4108 = vmatprep.subr.mxu0 0.0
  %4109 = vmatpush1.msra.mxu0 0.0
  %4110 = vmatprep.subr.mxu0 0.0
  %4111 = vmatpush1.msra.mxu0 0.0
  %4112 = vmatprep.subr.mxu0 0.0
  %4113 = vmatpush1.msra.mxu0 0.0
  %4114 = vmatprep.subr.mxu0 0.0
  %4115 = vmatpush1.msra.mxu0 %v67
  %4116 = vmatprep.subr.mxu0 0.0
  %4117 = vmatpush1.msra.mxu0 %v66
  %4118 = vmatprep.subr.mxu0 0.0
  %4119 = vmatpush1.msra.mxu0 %v65
  %4120 = vmatprep.subr.mxu0 0.0
  %4121 = vmatpush1.msra.mxu0 %v64
  %4122 = vmatprep.subr.mxu0 0.0
  %4123 = vmatpush2.msra.mxu0 0.0
  %4124 = vmatprep.subr.mxu0 0.0
  %4125 = vmatpush2.msra.mxu0 0.0
  %4126 = vmatprep.subr.mxu0 0.0
  %4127 = vmatpush2.msra.mxu0 0.0
  %4128 = vmatprep.subr.mxu0 0.0
  %4129 = vmatpush2.msra.mxu0 0.0
  %4130 = vmatprep.subr.mxu0 0.0
  %4131 = vmatpush2.msra.mxu0 0.0
  %4132 = vmatprep.subr.mxu0 0.0
  %4133 = vmatpush2.msra.mxu0 0.0
  %4134 = vmatprep.subr.mxu0 0.0
  %4135 = vmatpush2.msra.mxu0 0.0
  %4136 = vmatprep.subr.mxu0 0.0
  %4137 = vmatpush2.msra.mxu0 0.0
  %4138 = vmatprep.subr.mxu0 0.0
  %4139 = vmatpush2.msra.mxu0 0.0
  %4140 = vmatprep.subr.mxu0 0.0
  %4141 = vmatpush2.msra.mxu0 0.0
  %4142 = vmatprep.subr.mxu0 0.0
  %4143 = vmatpush2.msra.mxu0 0.0
  %4144 = vmatprep.subr.mxu0 0.0
  %4145 = vmatpush2.msra.mxu0 0.0
  %4146 = vmatprep.subr.mxu0 0.0
  %4147 = vmatpush2.msra.mxu0 0.0
  %4148 = vmatprep.subr.mxu0 0.0
  %4149 = vmatpush2.msra.mxu0 0.0
  %4150 = vmatprep.subr.mxu0 0.0
  %4151 = vmatpush2.msra.mxu0 0.0
  %4152 = vmatprep.subr.mxu0 0.0
  %4153 = vmatpush2.msra.mxu0 0.0
  %4154 = vmatprep.mubr.f32.mxu0 0.0
  %4155 = vmatmul.mubr.f32.gmra.mxu0 %v2599
  %v4156 = vpop.f32.mrf.mxu0
  %v4157 = vadd.f32 0.0, %v4156
  %v4158 = vpop.f32.mrf.mxu0
  %4159 = vdwg.mxu0
  %4160 = vmatprep.subr.mxu0 0.0
  %4161 = vmatpush1.msra.mxu0 0.0
  %4162 = vmatprep.subr.mxu0 0.0
  %4163 = vmatpush1.msra.mxu0 0.0
  %4164 = vmatprep.subr.mxu0 0.0
  %4165 = vmatpush1.msra.mxu0 0.0
  %4166 = vmatprep.subr.mxu0 0.0
  %4167 = vmatpush1.msra.mxu0 0.0
  %4168 = vmatprep.subr.mxu0 0.0
  %4169 = vmatpush1.msra.mxu0 0.0
  %4170 = vmatprep.subr.mxu0 0.0
  %4171 = vmatpush1.msra.mxu0 0.0
  %4172 = vmatprep.subr.mxu0 0.0
  %4173 = vmatpush1.msra.mxu0 0.0
  %4174 = vmatprep.subr.mxu0 0.0
  %4175 = vmatpush1.msra.mxu0 0.0
  %4176 = vmatprep.subr.mxu0 0.0
  %4177 = vmatpush1.msra.mxu0 0.0
  %4178 = vmatprep.subr.mxu0 0.0
  %4179 = vmatpush1.msra.mxu0 0.0
  %4180 = vmatprep.subr.mxu0 0.0
  %4181 = vmatpush1.msra.mxu0 0.0
  %4182 = vmatprep.subr.mxu0 0.0
  %4183 = vmatpush1.msra.mxu0 0.0
  %4184 = vmatprep.subr.mxu0 0.0
  %4185 = vmatpush1.msra.mxu0 %v63
  %4186 = vmatprep.subr.mxu0 0.0
  %4187 = vmatpush1.msra.mxu0 %v62
  %4188 = vmatprep.subr.mxu0 0.0
  %4189 = vmatpush1.msra.mxu0 %v61
  %4190 = vmatprep.subr.mxu0 0.0
  %4191 = vmatpush1.msra.mxu0 %v60
  %4192 = vmatprep.subr.mxu0 0.0
  %4193 = vmatpush2.msra.mxu0 0.0
  %4194 = vmatprep.subr.mxu0 0.0
  %4195 = vmatpush2.msra.mxu0 0.0
  %4196 = vmatprep.subr.mxu0 0.0
  %4197 = vmatpush2.msra.mxu0 0.0
  %4198 = vmatprep.subr.mxu0 0.0
  %4199 = vmatpush2.msra.mxu0 0.0
  %4200 = vmatprep.subr.mxu0 0.0
  %4201 = vmatpush2.msra.mxu0 0.0
  %4202 = vmatprep.subr.mxu0 0.0
  %4203 = vmatpush2.msra.mxu0 0.0
  %4204 = vmatprep.subr.mxu0 0.0
  %4205 = vmatpush2.msra.mxu0 0.0
  %4206 = vmatprep.subr.mxu0 0.0
  %4207 = vmatpush2.msra.mxu0 0.0
  %4208 = vmatprep.subr.mxu0 0.0
  %4209 = vmatpush2.msra.mxu0 0.0
  %4210 = vmatprep.subr.mxu0 0.0
  %4211 = vmatpush2.msra.mxu0 0.0
  %4212 = vmatprep.subr.mxu0 0.0
  %4213 = vmatpush2.msra.mxu0 0.0
  %4214 = vmatprep.subr.mxu0 0.0
  %4215 = vmatpush2.msra.mxu0 0.0
  %4216 = vmatprep.subr.mxu0 0.0
  %4217 = vmatpush2.msra.mxu0 0.0
  %4218 = vmatprep.subr.mxu0 0.0
  %4219 = vmatpush2.msra.mxu0 0.0
  %4220 = vmatprep.subr.mxu0 0.0
  %4221 = vmatpush2.msra.mxu0 0.0
  %4222 = vmatprep.subr.mxu0 0.0
  %4223 = vmatpush2.msra.mxu0 0.0
  %4224 = vmatprep.mubr.f32.mxu0 0.0
  %4225 = vmatmul.mubr.f32.gmra.mxu0 %v691
  %v4226 = vpop.f32.mrf.mxu0
  %v4227 = vadd.f32 %v4157, %v4226
  %v4228 = vpop.f32.mrf.mxu0
  %4229 = vdwg.mxu0
  %v4230 = vadd.f32 %v4227, %v3017
  %4232 = vrot.lane.b32.xlu0 %v4089, 96
  %v4233 = vpop.permute.xlu0 %4232
  %v4234 = vsel %vm161, %v4233, 0
  %4236 = vmatprep.subr.mxu0 0.0
  %4237 = vmatpush1.msra.mxu0 0.0
  %4238 = vmatprep.subr.mxu0 0.0
  %4239 = vmatpush1.msra.mxu0 0.0
  %4240 = vmatprep.subr.mxu0 0.0
  %4241 = vmatpush1.msra.mxu0 0.0
  %4242 = vmatprep.subr.mxu0 0.0
  %4243 = vmatpush1.msra.mxu0 0.0
  %4244 = vmatprep.subr.mxu0 0.0
  %4245 = vmatpush1.msra.mxu0 0.0
  %4246 = vmatprep.subr.mxu0 0.0
  %4247 = vmatpush1.msra.mxu0 0.0
  %4248 = vmatprep.subr.mxu0 0.0
  %4249 = vmatpush1.msra.mxu0 0.0
  %4250 = vmatprep.subr.mxu0 0.0
  %4251 = vmatpush1.msra.mxu0 0.0
  %4252 = vmatprep.subr.mxu0 0.0
  %4253 = vmatpush1.msra.mxu0 0.0
  %4254 = vmatprep.subr.mxu0 0.0
  %4255 = vmatpush1.msra.mxu0 0.0
  %4256 = vmatprep.subr.mxu0 0.0
  %4257 = vmatpush1.msra.mxu0 0.0
  %4258 = vmatprep.subr.mxu0 0.0
  %4259 = vmatpush1.msra.mxu0 0.0
  %4260 = vmatprep.subr.mxu0 0.0
  %4261 = vmatpush1.msra.mxu0 %v71
  %4262 = vmatprep.subr.mxu0 0.0
  %4263 = vmatpush1.msra.mxu0 %v70
  %4264 = vmatprep.subr.mxu0 0.0
  %4265 = vmatpush1.msra.mxu0 %v69
  %4266 = vmatprep.subr.mxu0 0.0
  %4267 = vmatpush1.msra.mxu0 %v68
  %4268 = vmatprep.subr.mxu0 0.0
  %4269 = vmatpush2.msra.mxu0 0.0
  %4270 = vmatprep.subr.mxu0 0.0
  %4271 = vmatpush2.msra.mxu0 0.0
  %4272 = vmatprep.subr.mxu0 0.0
  %4273 = vmatpush2.msra.mxu0 0.0
  %4274 = vmatprep.subr.mxu0 0.0
  %4275 = vmatpush2.msra.mxu0 0.0
  %4276 = vmatprep.subr.mxu0 0.0
  %4277 = vmatpush2.msra.mxu0 0.0
  %4278 = vmatprep.subr.mxu0 0.0
  %4279 = vmatpush2.msra.mxu0 0.0
  %4280 = vmatprep.subr.mxu0 0.0
  %4281 = vmatpush2.msra.mxu0 0.0
  %4282 = vmatprep.subr.mxu0 0.0
  %4283 = vmatpush2.msra.mxu0 0.0
  %4284 = vmatprep.subr.mxu0 0.0
  %4285 = vmatpush2.msra.mxu0 0.0
  %4286 = vmatprep.subr.mxu0 0.0
  %4287 = vmatpush2.msra.mxu0 0.0
  %4288 = vmatprep.subr.mxu0 0.0
  %4289 = vmatpush2.msra.mxu0 0.0
  %4290 = vmatprep.subr.mxu0 0.0
  %4291 = vmatpush2.msra.mxu0 0.0
  %4292 = vmatprep.subr.mxu0 0.0
  %4293 = vmatpush2.msra.mxu0 0.0
  %4294 = vmatprep.subr.mxu0 0.0
  %4295 = vmatpush2.msra.mxu0 0.0
  %4296 = vmatprep.subr.mxu0 0.0
  %4297 = vmatpush2.msra.mxu0 0.0
  %4298 = vmatprep.subr.mxu0 0.0
  %4299 = vmatpush2.msra.mxu0 0.0
  %4300 = vmatprep.mubr.f32.mxu0 0.0
  %4301 = vmatmul.mubr.f32.gmra.mxu0 %v4234
  %v4302 = vpop.f32.mrf.mxu0
  %v4303 = vadd.f32 %v3024, %v4302
  %v4304 = vpop.f32.mrf.mxu0
  %4305 = vdwg.mxu0
  %v4306 = vadd.f32 %v4230, %v4303
  %v4307 = vxor.u32 %v4306, 2147483648
  %v4308 = vmul.f32 %v4307, 1.442695
  %v4309 = vpow.pop %v4308
  %v4310 = vadd.f32 %v4309, 1.0
  %v4311 = vrcp.pop %v4310
  %v4312 = vmul.f32 1.0, %v4311
  %4314 = vrot.lane.b32.xlu0 %v4303, 64
  %v4315 = vpop.permute.xlu0 %4314
  %v4317 = vmul.f32 %v4312, %v4315
  %4319 = vrot.lane.b32.xlu0 %v4317, 64
  %v4320 = vpop.permute.xlu0 %4319
  %v4322 = vadd.f32 %v4230, %v4320
  %v4323 = vtanh.pop %v4322
  %v4324 = vsub.f32 1.0, %v4312
  %4326 = vrot.lane.b32.xlu0 %v4323, 96
  %v4327 = vpop.permute.xlu0 %4326
  %v4329 = vmul.f32 %v4324, %v4327
  %v4330 = vmul.f32 %v4312, %v4089
  %v4331 = vadd.f32 %v4329, %v4330
  %4332 = vmatprep.subr.mxu0 0.0
  %4333 = vmatpush1.msra.mxu0 0.0
  %4334 = vmatprep.subr.mxu0 0.0
  %4335 = vmatpush1.msra.mxu0 0.0
  %4336 = vmatprep.subr.mxu0 0.0
  %4337 = vmatpush1.msra.mxu0 0.0
  %4338 = vmatprep.subr.mxu0 0.0
  %4339 = vmatpush1.msra.mxu0 0.0
  %4340 = vmatprep.subr.mxu0 0.0
  %4341 = vmatpush1.msra.mxu0 0.0
  %4342 = vmatprep.subr.mxu0 0.0
  %4343 = vmatpush1.msra.mxu0 0.0
  %4344 = vmatprep.subr.mxu0 0.0
  %4345 = vmatpush1.msra.mxu0 0.0
  %4346 = vmatprep.subr.mxu0 0.0
  %4347 = vmatpush1.msra.mxu0 0.0
  %4348 = vmatprep.subr.mxu0 0.0
  %4349 = vmatpush1.msra.mxu0 0.0
  %4350 = vmatprep.subr.mxu0 0.0
  %4351 = vmatpush1.msra.mxu0 0.0
  %4352 = vmatprep.subr.mxu0 0.0
  %4353 = vmatpush1.msra.mxu0 0.0
  %4354 = vmatprep.subr.mxu0 0.0
  %4355 = vmatpush1.msra.mxu0 0.0
  %4356 = vmatprep.subr.mxu0 0.0
  %4357 = vmatpush1.msra.mxu0 %v67
  %4358 = vmatprep.subr.mxu0 0.0
  %4359 = vmatpush1.msra.mxu0 %v66
  %4360 = vmatprep.subr.mxu0 0.0
  %4361 = vmatpush1.msra.mxu0 %v65
  %4362 = vmatprep.subr.mxu0 0.0
  %4363 = vmatpush1.msra.mxu0 %v64
  %4364 = vmatprep.subr.mxu0 0.0
  %4365 = vmatpush2.msra.mxu0 0.0
  %4366 = vmatprep.subr.mxu0 0.0
  %4367 = vmatpush2.msra.mxu0 0.0
  %4368 = vmatprep.subr.mxu0 0.0
  %4369 = vmatpush2.msra.mxu0 0.0
  %4370 = vmatprep.subr.mxu0 0.0
  %4371 = vmatpush2.msra.mxu0 0.0
  %4372 = vmatprep.subr.mxu0 0.0
  %4373 = vmatpush2.msra.mxu0 0.0
  %4374 = vmatprep.subr.mxu0 0.0
  %4375 = vmatpush2.msra.mxu0 0.0
  %4376 = vmatprep.subr.mxu0 0.0
  %4377 = vmatpush2.msra.mxu0 0.0
  %4378 = vmatprep.subr.mxu0 0.0
  %4379 = vmatpush2.msra.mxu0 0.0
  %4380 = vmatprep.subr.mxu0 0.0
  %4381 = vmatpush2.msra.mxu0 0.0
  %4382 = vmatprep.subr.mxu0 0.0
  %4383 = vmatpush2.msra.mxu0 0.0
  %4384 = vmatprep.subr.mxu0 0.0
  %4385 = vmatpush2.msra.mxu0 0.0
  %4386 = vmatprep.subr.mxu0 0.0
  %4387 = vmatpush2.msra.mxu0 0.0
  %4388 = vmatprep.subr.mxu0 0.0
  %4389 = vmatpush2.msra.mxu0 0.0
  %4390 = vmatprep.subr.mxu0 0.0
  %4391 = vmatpush2.msra.mxu0 0.0
  %4392 = vmatprep.subr.mxu0 0.0
  %4393 = vmatpush2.msra.mxu0 0.0
  %4394 = vmatprep.subr.mxu0 0.0
  %4395 = vmatpush2.msra.mxu0 0.0
  %4396 = vmatprep.mubr.f32.mxu0 0.0
  %4397 = vmatmul.mubr.f32.gmra.mxu0 %v2770
  %v4398 = vpop.f32.mrf.mxu0
  %v4399 = vadd.f32 0.0, %v4398
  %v4400 = vpop.f32.mrf.mxu0
  %4401 = vdwg.mxu0
  %4402 = vmatprep.subr.mxu0 0.0
  %4403 = vmatpush1.msra.mxu0 0.0
  %4404 = vmatprep.subr.mxu0 0.0
  %4405 = vmatpush1.msra.mxu0 0.0
  %4406 = vmatprep.subr.mxu0 0.0
  %4407 = vmatpush1.msra.mxu0 0.0
  %4408 = vmatprep.subr.mxu0 0.0
  %4409 = vmatpush1.msra.mxu0 0.0
  %4410 = vmatprep.subr.mxu0 0.0
  %4411 = vmatpush1.msra.mxu0 0.0
  %4412 = vmatprep.subr.mxu0 0.0
  %4413 = vmatpush1.msra.mxu0 0.0
  %4414 = vmatprep.subr.mxu0 0.0
  %4415 = vmatpush1.msra.mxu0 0.0
  %4416 = vmatprep.subr.mxu0 0.0
  %4417 = vmatpush1.msra.mxu0 0.0
  %4418 = vmatprep.subr.mxu0 0.0
  %4419 = vmatpush1.msra.mxu0 0.0
  %4420 = vmatprep.subr.mxu0 0.0
  %4421 = vmatpush1.msra.mxu0 0.0
  %4422 = vmatprep.subr.mxu0 0.0
  %4423 = vmatpush1.msra.mxu0 0.0
  %4424 = vmatprep.subr.mxu0 0.0
  %4425 = vmatpush1.msra.mxu0 0.0
  %4426 = vmatprep.subr.mxu0 0.0
  %4427 = vmatpush1.msra.mxu0 %v63
  %4428 = vmatprep.subr.mxu0 0.0
  %4429 = vmatpush1.msra.mxu0 %v62
  %4430 = vmatprep.subr.mxu0 0.0
  %4431 = vmatpush1.msra.mxu0 %v61
  %4432 = vmatprep.subr.mxu0 0.0
  %4433 = vmatpush1.msra.mxu0 %v60
  %4434 = vmatprep.subr.mxu0 0.0
  %4435 = vmatpush2.msra.mxu0 0.0
  %4436 = vmatprep.subr.mxu0 0.0
  %4437 = vmatpush2.msra.mxu0 0.0
  %4438 = vmatprep.subr.mxu0 0.0
  %4439 = vmatpush2.msra.mxu0 0.0
  %4440 = vmatprep.subr.mxu0 0.0
  %4441 = vmatpush2.msra.mxu0 0.0
  %4442 = vmatprep.subr.mxu0 0.0
  %4443 = vmatpush2.msra.mxu0 0.0
  %4444 = vmatprep.subr.mxu0 0.0
  %4445 = vmatpush2.msra.mxu0 0.0
  %4446 = vmatprep.subr.mxu0 0.0
  %4447 = vmatpush2.msra.mxu0 0.0
  %4448 = vmatprep.subr.mxu0 0.0
  %4449 = vmatpush2.msra.mxu0 0.0
  %4450 = vmatprep.subr.mxu0 0.0
  %4451 = vmatpush2.msra.mxu0 0.0
  %4452 = vmatprep.subr.mxu0 0.0
  %4453 = vmatpush2.msra.mxu0 0.0
  %4454 = vmatprep.subr.mxu0 0.0
  %4455 = vmatpush2.msra.mxu0 0.0
  %4456 = vmatprep.subr.mxu0 0.0
  %4457 = vmatpush2.msra.mxu0 0.0
  %4458 = vmatprep.subr.mxu0 0.0
  %4459 = vmatpush2.msra.mxu0 0.0
  %4460 = vmatprep.subr.mxu0 0.0
  %4461 = vmatpush2.msra.mxu0 0.0
  %4462 = vmatprep.subr.mxu0 0.0
  %4463 = vmatpush2.msra.mxu0 0.0
  %4464 = vmatprep.subr.mxu0 0.0
  %4465 = vmatpush2.msra.mxu0 0.0
  %4466 = vmatprep.mubr.f32.mxu0 0.0
  %4467 = vmatmul.mubr.f32.gmra.mxu0 %v515
  %v4468 = vpop.f32.mrf.mxu0
  %v4469 = vadd.f32 %v4399, %v4468
  %v4470 = vpop.f32.mrf.mxu0
  %4471 = vdwg.mxu0
  %v4472 = vadd.f32 %v4469, %v3017
  %4474 = vrot.lane.b32.xlu0 %v4331, 96
  %v4475 = vpop.permute.xlu0 %4474
  %v4476 = vsel %vm161, %v4475, 0
  %4478 = vmatprep.subr.mxu0 0.0
  %4479 = vmatpush1.msra.mxu0 0.0
  %4480 = vmatprep.subr.mxu0 0.0
  %4481 = vmatpush1.msra.mxu0 0.0
  %4482 = vmatprep.subr.mxu0 0.0
  %4483 = vmatpush1.msra.mxu0 0.0
  %4484 = vmatprep.subr.mxu0 0.0
  %4485 = vmatpush1.msra.mxu0 0.0
  %4486 = vmatprep.subr.mxu0 0.0
  %4487 = vmatpush1.msra.mxu0 0.0
  %4488 = vmatprep.subr.mxu0 0.0
  %4489 = vmatpush1.msra.mxu0 0.0
  %4490 = vmatprep.subr.mxu0 0.0
  %4491 = vmatpush1.msra.mxu0 0.0
  %4492 = vmatprep.subr.mxu0 0.0
  %4493 = vmatpush1.msra.mxu0 0.0
  %4494 = vmatprep.subr.mxu0 0.0
  %4495 = vmatpush1.msra.mxu0 0.0
  %4496 = vmatprep.subr.mxu0 0.0
  %4497 = vmatpush1.msra.mxu0 0.0
  %4498 = vmatprep.subr.mxu0 0.0
  %4499 = vmatpush1.msra.mxu0 0.0
  %4500 = vmatprep.subr.mxu0 0.0
  %4501 = vmatpush1.msra.mxu0 0.0
  %4502 = vmatprep.subr.mxu0 0.0
  %4503 = vmatpush1.msra.mxu0 %v71
  %4504 = vmatprep.subr.mxu0 0.0
  %4505 = vmatpush1.msra.mxu0 %v70
  %4506 = vmatprep.subr.mxu0 0.0
  %4507 = vmatpush1.msra.mxu0 %v69
  %4508 = vmatprep.subr.mxu0 0.0
  %4509 = vmatpush1.msra.mxu0 %v68
  %4510 = vmatprep.subr.mxu0 0.0
  %4511 = vmatpush2.msra.mxu0 0.0
  %4512 = vmatprep.subr.mxu0 0.0
  %4513 = vmatpush2.msra.mxu0 0.0
  %4514 = vmatprep.subr.mxu0 0.0
  %4515 = vmatpush2.msra.mxu0 0.0
  %4516 = vmatprep.subr.mxu0 0.0
  %4517 = vmatpush2.msra.mxu0 0.0
  %4518 = vmatprep.subr.mxu0 0.0
  %4519 = vmatpush2.msra.mxu0 0.0
  %4520 = vmatprep.subr.mxu0 0.0
  %4521 = vmatpush2.msra.mxu0 0.0
  %4522 = vmatprep.subr.mxu0 0.0
  %4523 = vmatpush2.msra.mxu0 0.0
  %4524 = vmatprep.subr.mxu0 0.0
  %4525 = vmatpush2.msra.mxu0 0.0
  %4526 = vmatprep.subr.mxu0 0.0
  %4527 = vmatpush2.msra.mxu0 0.0
  %4528 = vmatprep.subr.mxu0 0.0
  %4529 = vmatpush2.msra.mxu0 0.0
  %4530 = vmatprep.subr.mxu0 0.0
  %4531 = vmatpush2.msra.mxu0 0.0
  %4532 = vmatprep.subr.mxu0 0.0
  %4533 = vmatpush2.msra.mxu0 0.0
  %4534 = vmatprep.subr.mxu0 0.0
  %4535 = vmatpush2.msra.mxu0 0.0
  %4536 = vmatprep.subr.mxu0 0.0
  %4537 = vmatpush2.msra.mxu0 0.0
  %4538 = vmatprep.subr.mxu0 0.0
  %4539 = vmatpush2.msra.mxu0 0.0
  %4540 = vmatprep.subr.mxu0 0.0
  %4541 = vmatpush2.msra.mxu0 0.0
  %4542 = vmatprep.mubr.f32.mxu0 0.0
  %4543 = vmatmul.mubr.f32.gmra.mxu0 %v4476
  %v4544 = vpop.f32.mrf.mxu0
  %v4545 = vadd.f32 %v3024, %v4544
  %v4546 = vpop.f32.mrf.mxu0
  %4547 = vdwg.mxu0
  %v4548 = vadd.f32 %v4472, %v4545
  %v4549 = vxor.u32 %v4548, 2147483648
  %v4550 = vmul.f32 %v4549, 1.442695
  %v4551 = vpow.pop %v4550
  %v4552 = vadd.f32 %v4551, 1.0
  %v4553 = vrcp.pop %v4552
  %v4554 = vmul.f32 1.0, %v4553
  %4556 = vrot.lane.b32.xlu0 %v4545, 64
  %v4557 = vpop.permute.xlu0 %4556
  %v4559 = vmul.f32 %v4554, %v4557
  %4561 = vrot.lane.b32.xlu0 %v4559, 64
  %v4562 = vpop.permute.xlu0 %4561
  %v4564 = vadd.f32 %v4472, %v4562
  %v4565 = vtanh.pop %v4564
  %v4566 = vsub.f32 1.0, %v4554
  %4568 = vrot.lane.b32.xlu0 %v4565, 96
  %v4569 = vpop.permute.xlu0 %4568
  %v4571 = vmul.f32 %v4566, %v4569
  %v4572 = vmul.f32 %v4554, %v4331
  %v4573 = vadd.f32 %v4571, %v4572
  %4575 = vrot.lane.b32.xlu0 %v2867, 96
  %v4576 = vpop.permute.xlu0 %4575
  %v4577 = vsel %vm161, %v4576, 0
  %4579 = vmatprep.subr.mxu0 0.0
  %4580 = vmatpush1.msra.mxu0 0.0
  %4581 = vmatprep.subr.mxu0 0.0
  %4582 = vmatpush1.msra.mxu0 0.0
  %4583 = vmatprep.subr.mxu0 0.0
  %4584 = vmatpush1.msra.mxu0 0.0
  %4585 = vmatprep.subr.mxu0 0.0
  %4586 = vmatpush1.msra.mxu0 0.0
  %4587 = vmatprep.subr.mxu0 0.0
  %4588 = vmatpush1.msra.mxu0 0.0
  %4589 = vmatprep.subr.mxu0 0.0
  %4590 = vmatpush1.msra.mxu0 0.0
  %4591 = vmatprep.subr.mxu0 0.0
  %4592 = vmatpush1.msra.mxu0 0.0
  %4593 = vmatprep.subr.mxu0 0.0
  %4594 = vmatpush1.msra.mxu0 0.0
  %4595 = vmatprep.subr.mxu0 0.0
  %4596 = vmatpush1.msra.mxu0 0.0
  %4597 = vmatprep.subr.mxu0 0.0
  %4598 = vmatpush1.msra.mxu0 0.0
  %4599 = vmatprep.subr.mxu0 0.0
  %4600 = vmatpush1.msra.mxu0 0.0
  %4601 = vmatprep.subr.mxu0 0.0
  %4602 = vmatpush1.msra.mxu0 0.0
  %4603 = vmatprep.subr.mxu0 0.0
  %4604 = vmatpush1.msra.mxu0 %v67
  %4605 = vmatprep.subr.mxu0 0.0
  %4606 = vmatpush1.msra.mxu0 %v66
  %4607 = vmatprep.subr.mxu0 0.0
  %4608 = vmatpush1.msra.mxu0 %v65
  %4609 = vmatprep.subr.mxu0 0.0
  %4610 = vmatpush1.msra.mxu0 %v64
  %4611 = vmatprep.subr.mxu0 0.0
  %4612 = vmatpush2.msra.mxu0 0.0
  %4613 = vmatprep.subr.mxu0 0.0
  %4614 = vmatpush2.msra.mxu0 0.0
  %4615 = vmatprep.subr.mxu0 0.0
  %4616 = vmatpush2.msra.mxu0 0.0
  %4617 = vmatprep.subr.mxu0 0.0
  %4618 = vmatpush2.msra.mxu0 0.0
  %4619 = vmatprep.subr.mxu0 0.0
  %4620 = vmatpush2.msra.mxu0 0.0
  %4621 = vmatprep.subr.mxu0 0.0
  %4622 = vmatpush2.msra.mxu0 0.0
  %4623 = vmatprep.subr.mxu0 0.0
  %4624 = vmatpush2.msra.mxu0 0.0
  %4625 = vmatprep.subr.mxu0 0.0
  %4626 = vmatpush2.msra.mxu0 0.0
  %4627 = vmatprep.subr.mxu0 0.0
  %4628 = vmatpush2.msra.mxu0 0.0
  %4629 = vmatprep.subr.mxu0 0.0
  %4630 = vmatpush2.msra.mxu0 0.0
  %4631 = vmatprep.subr.mxu0 0.0
  %4632 = vmatpush2.msra.mxu0 0.0
  %4633 = vmatprep.subr.mxu0 0.0
  %4634 = vmatpush2.msra.mxu0 0.0
  %4635 = vmatprep.subr.mxu0 0.0
  %4636 = vmatpush2.msra.mxu0 0.0
  %4637 = vmatprep.subr.mxu0 0.0
  %4638 = vmatpush2.msra.mxu0 0.0
  %4639 = vmatprep.subr.mxu0 0.0
  %4640 = vmatpush2.msra.mxu0 0.0
  %4641 = vmatprep.subr.mxu0 0.0
  %4642 = vmatpush2.msra.mxu0 0.0
  %4643 = vmatprep.mubr.f32.mxu0 0.0
  %4644 = vmatmul.mubr.f32.gmra.mxu0 %v4577
  %v4645 = vpop.f32.mrf.mxu0
  %v4646 = vadd.f32 0.0, %v4645
  %v4647 = vpop.f32.mrf.mxu0
  %4648 = vdwg.mxu0
  %4649 = vmatprep.subr.mxu0 0.0
  %4650 = vmatpush1.msra.mxu0 0.0
  %4651 = vmatprep.subr.mxu0 0.0
  %4652 = vmatpush1.msra.mxu0 0.0
  %4653 = vmatprep.subr.mxu0 0.0
  %4654 = vmatpush1.msra.mxu0 0.0
  %4655 = vmatprep.subr.mxu0 0.0
  %4656 = vmatpush1.msra.mxu0 0.0
  %4657 = vmatprep.subr.mxu0 0.0
  %4658 = vmatpush1.msra.mxu0 0.0
  %4659 = vmatprep.subr.mxu0 0.0
  %4660 = vmatpush1.msra.mxu0 0.0
  %4661 = vmatprep.subr.mxu0 0.0
  %4662 = vmatpush1.msra.mxu0 0.0
  %4663 = vmatprep.subr.mxu0 0.0
  %4664 = vmatpush1.msra.mxu0 0.0
  %4665 = vmatprep.subr.mxu0 0.0
  %4666 = vmatpush1.msra.mxu0 0.0
  %4667 = vmatprep.subr.mxu0 0.0
  %4668 = vmatpush1.msra.mxu0 0.0
  %4669 = vmatprep.subr.mxu0 0.0
  %4670 = vmatpush1.msra.mxu0 0.0
  %4671 = vmatprep.subr.mxu0 0.0
  %4672 = vmatpush1.msra.mxu0 0.0
  %4673 = vmatprep.subr.mxu0 0.0
  %4674 = vmatpush1.msra.mxu0 %v63
  %4675 = vmatprep.subr.mxu0 0.0
  %4676 = vmatpush1.msra.mxu0 %v62
  %4677 = vmatprep.subr.mxu0 0.0
  %4678 = vmatpush1.msra.mxu0 %v61
  %4679 = vmatprep.subr.mxu0 0.0
  %4680 = vmatpush1.msra.mxu0 %v60
  %4681 = vmatprep.subr.mxu0 0.0
  %4682 = vmatpush2.msra.mxu0 0.0
  %4683 = vmatprep.subr.mxu0 0.0
  %4684 = vmatpush2.msra.mxu0 0.0
  %4685 = vmatprep.subr.mxu0 0.0
  %4686 = vmatpush2.msra.mxu0 0.0
  %4687 = vmatprep.subr.mxu0 0.0
  %4688 = vmatpush2.msra.mxu0 0.0
  %4689 = vmatprep.subr.mxu0 0.0
  %4690 = vmatpush2.msra.mxu0 0.0
  %4691 = vmatprep.subr.mxu0 0.0
  %4692 = vmatpush2.msra.mxu0 0.0
  %4693 = vmatprep.subr.mxu0 0.0
  %4694 = vmatpush2.msra.mxu0 0.0
  %4695 = vmatprep.subr.mxu0 0.0
  %4696 = vmatpush2.msra.mxu0 0.0
  %4697 = vmatprep.subr.mxu0 0.0
  %4698 = vmatpush2.msra.mxu0 0.0
  %4699 = vmatprep.subr.mxu0 0.0
  %4700 = vmatpush2.msra.mxu0 0.0
  %4701 = vmatprep.subr.mxu0 0.0
  %4702 = vmatpush2.msra.mxu0 0.0
  %4703 = vmatprep.subr.mxu0 0.0
  %4704 = vmatpush2.msra.mxu0 0.0
  %4705 = vmatprep.subr.mxu0 0.0
  %4706 = vmatpush2.msra.mxu0 0.0
  %4707 = vmatprep.subr.mxu0 0.0
  %4708 = vmatpush2.msra.mxu0 0.0
  %4709 = vmatprep.subr.mxu0 0.0
  %4710 = vmatpush2.msra.mxu0 0.0
  %4711 = vmatprep.subr.mxu0 0.0
  %4712 = vmatpush2.msra.mxu0 0.0
  %4713 = vmatprep.mubr.f32.mxu0 0.0
  %4714 = vmatmul.mubr.f32.gmra.mxu0 %v339
  %v4715 = vpop.f32.mrf.mxu0
  %v4716 = vadd.f32 %v4646, %v4715
  %v4717 = vpop.f32.mrf.mxu0
  %4718 = vdwg.mxu0
  %v4719 = vadd.f32 %v4716, %v3017
  %4721 = vrot.lane.b32.xlu0 %v4573, 96
  %v4722 = vpop.permute.xlu0 %4721
  %v4723 = vsel %vm161, %v4722, 0
  %4725 = vmatprep.subr.mxu0 0.0
  %4726 = vmatpush1.msra.mxu0 0.0
  %4727 = vmatprep.subr.mxu0 0.0
  %4728 = vmatpush1.msra.mxu0 0.0
  %4729 = vmatprep.subr.mxu0 0.0
  %4730 = vmatpush1.msra.mxu0 0.0
  %4731 = vmatprep.subr.mxu0 0.0
  %4732 = vmatpush1.msra.mxu0 0.0
  %4733 = vmatprep.subr.mxu0 0.0
  %4734 = vmatpush1.msra.mxu0 0.0
  %4735 = vmatprep.subr.mxu0 0.0
  %4736 = vmatpush1.msra.mxu0 0.0
  %4737 = vmatprep.subr.mxu0 0.0
  %4738 = vmatpush1.msra.mxu0 0.0
  %4739 = vmatprep.subr.mxu0 0.0
  %4740 = vmatpush1.msra.mxu0 0.0
  %4741 = vmatprep.subr.mxu0 0.0
  %4742 = vmatpush1.msra.mxu0 0.0
  %4743 = vmatprep.subr.mxu0 0.0
  %4744 = vmatpush1.msra.mxu0 0.0
  %4745 = vmatprep.subr.mxu0 0.0
  %4746 = vmatpush1.msra.mxu0 0.0
  %4747 = vmatprep.subr.mxu0 0.0
  %4748 = vmatpush1.msra.mxu0 0.0
  %4749 = vmatprep.subr.mxu0 0.0
  %4750 = vmatpush1.msra.mxu0 %v71
  %4751 = vmatprep.subr.mxu0 0.0
  %4752 = vmatpush1.msra.mxu0 %v70
  %4753 = vmatprep.subr.mxu0 0.0
  %4754 = vmatpush1.msra.mxu0 %v69
  %4755 = vmatprep.subr.mxu0 0.0
  %4756 = vmatpush1.msra.mxu0 %v68
  %4757 = vmatprep.subr.mxu0 0.0
  %4758 = vmatpush2.msra.mxu0 0.0
  %4759 = vmatprep.subr.mxu0 0.0
  %4760 = vmatpush2.msra.mxu0 0.0
  %4761 = vmatprep.subr.mxu0 0.0
  %4762 = vmatpush2.msra.mxu0 0.0
  %4763 = vmatprep.subr.mxu0 0.0
  %4764 = vmatpush2.msra.mxu0 0.0
  %4765 = vmatprep.subr.mxu0 0.0
  %4766 = vmatpush2.msra.mxu0 0.0
  %4767 = vmatprep.subr.mxu0 0.0
  %4768 = vmatpush2.msra.mxu0 0.0
  %4769 = vmatprep.subr.mxu0 0.0
  %4770 = vmatpush2.msra.mxu0 0.0
  %4771 = vmatprep.subr.mxu0 0.0
  %4772 = vmatpush2.msra.mxu0 0.0
  %4773 = vmatprep.subr.mxu0 0.0
  %4774 = vmatpush2.msra.mxu0 0.0
  %4775 = vmatprep.subr.mxu0 0.0
  %4776 = vmatpush2.msra.mxu0 0.0
  %4777 = vmatprep.subr.mxu0 0.0
  %4778 = vmatpush2.msra.mxu0 0.0
  %4779 = vmatprep.subr.mxu0 0.0
  %4780 = vmatpush2.msra.mxu0 0.0
  %4781 = vmatprep.subr.mxu0 0.0
  %4782 = vmatpush2.msra.mxu0 0.0
  %4783 = vmatprep.subr.mxu0 0.0
  %4784 = vmatpush2.msra.mxu0 0.0
  %4785 = vmatprep.subr.mxu0 0.0
  %4786 = vmatpush2.msra.mxu0 0.0
  %4787 = vmatprep.subr.mxu0 0.0
  %4788 = vmatpush2.msra.mxu0 0.0
  %4789 = vmatprep.mubr.f32.mxu0 0.0
  %4790 = vmatmul.mubr.f32.gmra.mxu0 %v4723
  %v4791 = vpop.f32.mrf.mxu0
  %v4792 = vadd.f32 %v3024, %v4791
  %v4793 = vpop.f32.mrf.mxu0
  %4794 = vdwg.mxu0
  %v4795 = vadd.f32 %v4719, %v4792
  %v4796 = vxor.u32 %v4795, 2147483648
  %v4797 = vmul.f32 %v4796, 1.442695
  %v4798 = vpow.pop %v4797
  %v4799 = vadd.f32 %v4798, 1.0
  %v4800 = vrcp.pop %v4799
  %v4801 = vmul.f32 1.0, %v4800
  %4803 = vrot.lane.b32.xlu0 %v4792, 64
  %v4804 = vpop.permute.xlu0 %4803
  %v4806 = vmul.f32 %v4801, %v4804
  %4808 = vrot.lane.b32.xlu0 %v4806, 64
  %v4809 = vpop.permute.xlu0 %4808
  %v4811 = vadd.f32 %v4719, %v4809
  %v4812 = vtanh.pop %v4811
  %v4813 = vsub.f32 1.0, %v4801
  %4815 = vrot.lane.b32.xlu0 %v4812, 96
  %v4816 = vpop.permute.xlu0 %4815
  %v4818 = vmul.f32 %v4813, %v4816
  %v4819 = vmul.f32 %v4801, %v4573
  %v4820 = vadd.f32 %v4818, %v4819
  %v4821 = vadd.f32 %v2867, %v4820
  %4823 = vrot.lane.b32.xlu0 %v4821, 96
  %v4824 = vpop.permute.xlu0 %4823
  %4826 = vst.msk [vmem:[%s13] sm:$0xff] %vm161, %v4824
  // Predicated region
  $region54: #{_lambda_.2} parent=0 // pred_check
    _
  $region55: #{_lambda_.2} parent=0 // pred_check_branch
    %4828 = sbr.rel (0) target = $region57
  $region56: #{_lambda_.2} parent=0 // pred_region
    _
  $region57: #{_lambda_.2} parent=0 // pred_fallthru
    _
  // Predicated region
  $region58: #{_lambda_.2} parent=0 // pred_check
    _
  $region59: #{_lambda_.2} parent=0 // pred_check_branch
    %4830 = sbr.rel (0) target = $region61
  $region60: #{_lambda_.2} parent=0 // pred_region
    _
  $region61: #{_lambda_.2} parent=0 // pred_fallthru
    _

</llo_original>
